<compile_context>
chip_gen: v7x
topology: tpu7x:2x2x1
jax: 0.10.0
libtpu: 0.0.40
codegen_flags: <defaults>
</compile_context>

<pallas_src>
import functools

import jax
import jax.numpy as jnp
from jax.experimental import pallas as pl
from jax.experimental.pallas import tpu as pltpu

_EPS = 1e-5


def _vmem_limit():
    """Generation-aware scoped-VMEM budget (v5e/v6e: 128 MiB, v7x: 64 MiB)."""
    try:
        cap = int(pltpu.get_tpu_info().vmem_capacity_bytes)
        if cap <= 0:
            raise ValueError("bad vmem capacity")
    except Exception:                                   # conservative fallback
        cap = 64 * 1024 * 1024
    return min((cap * 3) // 4, 100 * 1024 * 1024)


def _round_up(n, m):
    return (n + m - 1) // m * m


def _pick_tile(n, cap):
    """Largest multiple of 128 (<= cap) dividing n; falls back to n."""
    best = None
    t = 128
    while t <= min(n, cap):
        if n % t == 0:
            best = t
        t += 128
    return best if best is not None else n


def _bn_rows(y, gamma, beta, n_valid):
    """Training-mode BatchNorm over rows (per-column stats, biased variance),
    two-pass (mean, then centered variance).  Rows >= n_valid are padding and
    are excluded from the statistics (their outputs are discarded later)."""
    rows = y.shape[0]
    inv_n = 1.0 / float(n_valid)
    if n_valid < rows:
        mask = (jax.lax.broadcasted_iota(jnp.int32, (rows, 1), 0)
                < n_valid).astype(y.dtype)
        mean = jnp.sum(y * mask, axis=0, keepdims=True) * inv_n
        d = (y - mean) * mask
    else:
        mean = jnp.sum(y, axis=0, keepdims=True) * inv_n
        d = y - mean
    var = jnp.sum(d * d, axis=0, keepdims=True) * inv_n
    return (y - mean) * jax.lax.rsqrt(var + _EPS) * gamma + beta


# ---------------------------------------------------------------------------
# Fused FC stage: fc1 -> BN1 -> ReLU -> fc2 -> BN2 -> ReLU in one pallas_call.
# Grid iterates over fc2 output-feature tiles; every tile sees all rows, so
# per-column BN statistics are exact.  fc1's small activation lives in VMEM
# scratch (computed once at grid step 0).
# ---------------------------------------------------------------------------
def _fc_fused_kernel(x_ref, w1_ref, b1_ref, g1_ref, be1_ref,
                     w2_ref, b2_ref, g2_ref, be2_ref, o_ref, h_ref, *, n_valid):
    @pl.when(pl.program_id(0) == 0)
    def _():
        h = jnp.dot(x_ref[...], w1_ref[...].astype(jnp.float32),
                    preferred_element_type=jnp.float32) + b1_ref[...]
        h = _bn_rows(h, g1_ref[...], be1_ref[...], n_valid)
        h_ref[...] = jnp.maximum(h, 0.0)

    y = jnp.dot(h_ref[...], w2_ref[...].astype(jnp.float32),
                preferred_element_type=jnp.float32) + b2_ref[...]
    y = _bn_rows(y, g2_ref[...], be2_ref[...], n_valid)
    o_ref[...] = jnp.maximum(y, 0.0).astype(o_ref.dtype)


def fc_fused(x, w1, b1, g1, be1, w2, b2, g2, be2):
    B, K1 = x.shape
    H = w1.shape[1]
    N = w2.shape[1]
    Bp = _round_up(B, 8)                    # sublane-dense rows / stores
    if Bp != B:
        x = jnp.pad(x, ((0, Bp - B), (0, 0)))
    tn = _pick_tile(N, cap=1024)            # bf16 weights -> bigger tiles
    row = lambda v: v.reshape(1, -1)
    kernel = functools.partial(_fc_fused_kernel, n_valid=B)
    out = pl.pallas_call(
        kernel,
        out_shape=jax.ShapeDtypeStruct((Bp, N), jnp.float32),
        grid=(N // tn,),
        in_specs=[
            pl.BlockSpec((Bp, K1), lambda j: (0, 0)),   # concatenated input
            pl.BlockSpec((K1, H), lambda j: (0, 0)),    # fc1 weight (bf16)
            pl.BlockSpec((1, H), lambda j: (0, 0)),     # fc1 bias
            pl.BlockSpec((1, H), lambda j: (0, 0)),     # bn1 gamma
            pl.BlockSpec((1, H), lambda j: (0, 0)),     # bn1 beta
            pl.BlockSpec((H, tn), lambda j: (0, j)),    # fc2 weight tile (bf16)
            pl.BlockSpec((1, tn), lambda j: (0, j)),    # fc2 bias
            pl.BlockSpec((1, tn), lambda j: (0, j)),    # bn2 gamma
            pl.BlockSpec((1, tn), lambda j: (0, j)),    # bn2 beta
        ],
        out_specs=pl.BlockSpec((Bp, tn), lambda j: (0, j)),
        scratch_shapes=[pltpu.VMEM((Bp, H), jnp.float32)],   # fc1 activations
        compiler_params=pltpu.CompilerParams(
            # scratch written at step 0 is reused by later steps -> sequential
            dimension_semantics=("arbitrary",),
            vmem_limit_bytes=_vmem_limit()),
    )(x, w1, row(b1), row(g1), row(be1), w2, row(b2), row(g2), row(be2))
    return out[:B]


# ---------------------------------------------------------------------------
# ConvTranspose2d(k=4, s=2, p=1) [+ BN2d] [+ act] as ONE pallas_call via the
# sub-pixel (stride-phase) decomposition:
#   out[2m+py, 2n+px] = sum_{dy,dx in {0,1}} zpad[m+py+dy, n+px+dx] @
#                       w[(3-py)-2dy, (3-px)-2dx]
# where zpad is the compact activation zero-padded by 1 pixel on each side.
# Each phase is one K = 4*C matmul; phases are interleaved at store time into
# an output layout (B, H, 2, W, 2*OC) that reshapes for free to (B,2H,2W,OC).
# ---------------------------------------------------------------------------
def _deconv_kernel(x_ref, w_ref, b_ref, g_ref, be_ref, o_ref, zp_ref, *,
                   use_bn, act):
    TB, H, W, C = x_ref.shape
    OC = b_ref.shape[-1]
    rows = TB * H * W

    # Fold the 1-pixel halo into the kernel (replaces the old dilate_pad HBM
    # round trip): zero VMEM scratch, then write the interior.
    zp_ref[...] = jnp.zeros_like(zp_ref)
    zp_ref[:, 1:H + 1, 1:W + 1, :] = x_ref[...]

    # The 9 distinct shifted windows (offsets 0..2 in H and W), collapsed to
    # (rows, C) once and shared by all 4 output phases.
    win = [[zp_ref[:, a:a + H, b:b + W, :].reshape(rows, C) for b in range(3)]
           for a in range(3)]

    def conv_phase(py, px):
        # One lane-dense matmul with K = 4*C (512) for this output phase.
        cols = jnp.concatenate([win[py][px], win[py][px + 1],
                                win[py + 1][px], win[py + 1][px + 1]], axis=1)
        w = w_ref[py, px].astype(jnp.float32)
        return jnp.dot(cols, w, preferred_element_type=jnp.float32) + b_ref[...]

    def activate(v):
        return jnp.tanh(v) if act == "tanh" else jnp.maximum(v, 0.0)

    def store_phase_row(py, y_even, y_odd):
        # Interleave px = 0 / 1 along the lane axis; with the (B,H,2,W,2*OC)
        # output layout this completes the pixel shuffle at store time.
        r = jnp.concatenate([y_even.reshape(TB, H, W, OC),
                             y_odd.reshape(TB, H, W, OC)], axis=-1)
        o_ref[:, :, py:py + 1, :, :] = r.reshape(TB, H, 1, W, 2 * OC)

    if use_bn:
        # BatchNorm2d statistics span all four phases -> compute them first.
        y = jnp.concatenate([conv_phase(0, 0), conv_phase(0, 1),
                             conv_phase(1, 0), conv_phase(1, 1)], axis=0)
        y = activate(_bn_rows(y, g_ref[...], be_ref[...], 4 * rows))
        store_phase_row(0, y[0 * rows:1 * rows], y[1 * rows:2 * rows])
        store_phase_row(1, y[2 * rows:3 * rows], y[3 * rows:4 * rows])
    else:
        store_phase_row(0, activate(conv_phase(0, 0)),
                        activate(conv_phase(0, 1)))
        store_phase_row(1, activate(conv_phase(1, 0)),
                        activate(conv_phase(1, 1)))


def deconv_fused(x, w, b, gamma, beta, *, use_bn, act):
    """x: compact NHWC (B,H,W,C); w: sub-pixel weights (2,2,4*C,OCp) bf16."""
    B, H, W, C = x.shape
    OCp = w.shape[-1]
    assert w.shape[2] == 4 * C, (w.shape, C)
    # BN2d needs the whole batch per block (per-channel stats over B*2H*2W);
    # without BN we tile over batch (parallel / megacore-friendly).
    # TODO(synk): stream partial BN stats across batch tiles for large B so
    # v7x's 64 MiB VMEM bound and megacore sharding apply to the BN stage too.
    tb = B if use_bn else 1
    row = lambda v: v.reshape(1, -1)
    kernel = functools.partial(_deconv_kernel, use_bn=use_bn, act=act)
    out = pl.pallas_call(
        kernel,
        out_shape=jax.ShapeDtypeStruct((B, H, 2, W, 2 * OCp), jnp.float32),
        grid=(B // tb,),
        in_specs=[
            pl.BlockSpec((tb, H, W, C), lambda i: (i, 0, 0, 0)),
            pl.BlockSpec((2, 2, 4 * C, OCp), lambda i: (0, 0, 0, 0)),
            pl.BlockSpec((1, OCp), lambda i: (0, 0)),
            pl.BlockSpec((1, OCp), lambda i: (0, 0)),
            pl.BlockSpec((1, OCp), lambda i: (0, 0)),
        ],
        out_specs=pl.BlockSpec((tb, H, 2, W, 2 * OCp),
                               lambda i: (i, 0, 0, 0, 0)),
        scratch_shapes=[pltpu.VMEM((tb, H + 2, W + 2, C), jnp.float32)],
        compiler_params=pltpu.CompilerParams(
            dimension_semantics=("parallel",),
            vmem_limit_bytes=_vmem_limit()),
    )(x, w, row(b), row(gamma), row(beta))
    # (B, H, 2, W, 2*OC) -> (B, 2H, 2W, OC): pure row-major merge (no copy).
    return out.reshape(B, 2 * H, 2 * W, OCp)


# ---------------------------------------------------------------------------
# Parameters: synthetic init in PyTorch layouts + one-time repack for kernels.
# ---------------------------------------------------------------------------
def init_params(key, input_dim, output_dim, input_size, class_num):
    s4 = input_size // 4
    fc2_out = 128 * s4 * s4
    keys = jax.random.split(key, 8)

    def nrm(k, shape, scale=0.05):
        return scale * jax.random.normal(k, shape, dtype=jnp.float32)

    return {
        "fc1_w": nrm(keys[0], (input_dim + class_num, 1024)),
        "fc1_b": nrm(keys[1], (1024,)),
        "bn1_g": jnp.ones((1024,), jnp.float32),
        "bn1_b": jnp.zeros((1024,), jnp.float32),
        "fc2_w": nrm(keys[2], (1024, fc2_out)),
        "fc2_b": nrm(keys[3], (fc2_out,)),
        "bn2_g": jnp.ones((fc2_out,), jnp.float32),
        "bn2_b": jnp.zeros((fc2_out,), jnp.float32),
        "dc1_w": nrm(keys[4], (128, 64, 4, 4)),         # ConvTranspose2d(128,64,4,2,1)
        "dc1_b": nrm(keys[5], (64,)),
        "bn3_g": jnp.ones((64,), jnp.float32),
        "bn3_b": jnp.zeros((64,), jnp.float32),
        "dc2_w": nrm(keys[6], (64, output_dim, 4, 4)),  # ConvTranspose2d(64,out,4,2,1)
        "dc2_b": nrm(keys[7], (output_dim,)),
    }


def _pad_vec(v, n, fill):
    out = jnp.full((n,), fill, v.dtype)
    return out.at[: v.shape[0]].set(v)


def _convt_subpixel_weights(w_pt, *, ic_pad, oc_pad):
    """PyTorch ConvTranspose2d weight (IC,OC,4,4) -> per-output-phase sub-pixel
    matrices (2, 2, 4*ic_pad, oc_pad) in bf16; channels zero-padded to
    lane-dense counts.  Row block k = dy*2+dx of phase (py,px) holds
    w[(3-py)-2dy, (3-px)-2dx]."""
    IC, OC, KH, KW = w_pt.shape
    assert KH == 4 and KW == 4
    w = jnp.transpose(w_pt, (2, 3, 0, 1))               # (KH, KW, IC, OC)
    out = jnp.zeros((2, 2, 4 * ic_pad, oc_pad), jnp.float32)
    for py in range(2):
        for px in range(2):
            for dy in range(2):
                for dx in range(2):
                    blk = dy * 2 + dx
                    tap = w[3 - py - 2 * dy, 3 - px - 2 * dx]   # (IC, OC)
                    out = out.at[py, px,
                                 blk * ic_pad: blk * ic_pad + IC,
                                 :OC].set(tap)
    return out.astype(jnp.bfloat16)


def prepare_params(raw, *, input_size):
    """One-time (outside the traced forward) repack to kernel layouts."""
    s4 = input_size // 4
    n2 = 128 * s4 * s4
    # Permute fc2 columns (and its bias/BN params) so the fc output, reshaped
    # to (B, s4, s4, 128), is already NHWC -- no transpose in the forward.
    perm = jnp.arange(n2).reshape(128, s4, s4).transpose(1, 2, 0).reshape(-1)
    bf = lambda w: w.astype(jnp.bfloat16)
    return {
        "fc1_w": bf(raw["fc1_w"]), "fc1_b": raw["fc1_b"],
        "bn1_g": raw["bn1_g"], "bn1_b": raw["bn1_b"],
        "fc2_w": bf(raw["fc2_w"][:, perm]), "fc2_b": raw["fc2_b"][perm],
        "bn2_g": raw["bn2_g"][perm], "bn2_b": raw["bn2_b"][perm],
        # dc1: OC 64 -> 128 lanes (padded channels stay exactly zero).
        "dc1_w": _convt_subpixel_weights(raw["dc1_w"], ic_pad=128, oc_pad=128),
        "dc1_b": _pad_vec(raw["dc1_b"], 128, 0.0),
        "bn3_g": _pad_vec(raw["bn3_g"], 128, 1.0),
        "bn3_b": _pad_vec(raw["bn3_b"], 128, 0.0),
        # dc2: IC 64 -> 128 (matches dc1's padded output), OC out_dim -> 128.
        "dc2_w": _convt_subpixel_weights(raw["dc2_w"], ic_pad=128, oc_pad=128),
        "dc2_b": _pad_vec(raw["dc2_b"], 128, 0.0),
        "dc2_g": jnp.ones((128,), jnp.float32),   # unused (no BN on dc2)
        "dc2_be": jnp.zeros((128,), jnp.float32),
    }


# ---------------------------------------------------------------------------
# Generator forward
# ---------------------------------------------------------------------------
def generator_forward(params, noise, label, *, input_size, output_dim):
    s4 = input_size // 4
    B = noise.shape[0]

    # fc: cat -> Linear -> BN1d -> ReLU -> Linear -> BN1d -> ReLU (one kernel)
    x = jnp.concatenate([noise, label], axis=1)
    x = fc_fused(x, params["fc1_w"], params["fc1_b"],
                 params["bn1_g"], params["bn1_b"],
                 params["fc2_w"], params["fc2_b"],
                 params["bn2_g"], params["bn2_b"])

    # fc2 columns were pre-permuted: this reshape lands directly in NHWC.
    x = x.reshape(B, s4, s4, 128)

    # deconv: ConvT(128->64)+BN+ReLU, then ConvT(64->out)+Tanh (sub-pixel form)
    x = deconv_fused(x, params["dc1_w"], params["dc1_b"],
                     params["bn3_g"], params["bn3_b"], use_bn=True, act="relu")
    x = deconv_fused(x, params["dc2_w"], params["dc2_b"],
                     params["dc2_g"], params["dc2_be"], use_bn=False, act="tanh")

    # Drop the channel padding and return NCHW like the PyTorch module.
    return jnp.transpose(x[..., :output_dim], (0, 3, 1, 2))


# ---------------------------------------------------------------------------
# Plain-JAX reference (f32 HIGHEST matmuls; weights rounded to bf16 to match
# the kernels' stored-weight precision) for validation.
# ---------------------------------------------------------------------------
def _dilate_pad_ref(x_nhwc, *, stride=2, k=4, pad=1):
    B, H, W, C = x_nhwc.shape
    z = jnp.zeros((B, (H - 1) * stride + 1, (W - 1) * stride + 1, C),
                  x_nhwc.dtype)
    z = z.at[:, ::stride, ::stride, :].set(x_nhwc)
    p = k - 1 - pad
    return jnp.pad(z, ((0, 0), (p, p), (p, p), (0, 0)))


def reference_forward(raw, noise, label, *, input_size):
    hp = jax.lax.Precision.HIGHEST
    q = lambda w: w.astype(jnp.bfloat16).astype(jnp.float32)
    s4 = input_size // 4
    B = noise.shape[0]

    def bn(y, g, b, axes):
        m = jnp.mean(y, axis=axes, keepdims=True)
        v = jnp.mean(jnp.square(y - m), axis=axes, keepdims=True)
        return (y - m) * jax.lax.rsqrt(v + _EPS) * g + b

    def convt(x_nhwc, w_pt, b):
        IC, OC, KH, KW = w_pt.shape
        z = _dilate_pad_ref(x_nhwc, k=KH)
        OH, OW = z.shape[1] - KH + 1, z.shape[2] - KW + 1
        wf = jnp.transpose(w_pt[:, :, ::-1, ::-1], (2, 3, 0, 1))
        out = jnp.zeros((B, OH, OW, OC), jnp.float32)
        for dy in range(KH):
            for dx in range(KW):
                out = out + jnp.einsum("bhwc,co->bhwo",
                                       z[:, dy:dy + OH, dx:dx + OW, :],
                                       wf[dy, dx], precision=hp)
        return out + b

    x = jnp.concatenate([noise, label], axis=1)
    x = jnp.maximum(bn(jnp.dot(x, q(raw["fc1_w"]), precision=hp) + raw["fc1_b"],
                       raw["bn1_g"], raw["bn1_b"], axes=0), 0.0)
    x = jnp.maximum(bn(jnp.dot(x, q(raw["fc2_w"]), precision=hp) + raw["fc2_b"],
                       raw["bn2_g"], raw["bn2_b"], axes=0), 0.0)
    x = jnp.transpose(x.reshape(B, 128, s4, s4), (0, 2, 3, 1))   # NCHW -> NHWC
    x = jnp.maximum(bn(convt(x, q(raw["dc1_w"]), raw["dc1_b"]),
                       raw["bn3_g"], raw["bn3_b"], axes=(0, 1, 2)), 0.0)
    x = jnp.tanh(convt(x, q(raw["dc2_w"]), raw["dc2_b"]))
    return jnp.transpose(x, (0, 3, 1, 2))


if __name__ == "__main__":
    B = 4
    input_dim, output_dim, input_size, class_num = 16, 3, 16, 4

    key = jax.random.PRNGKey(0)
    kp, kz, kl = jax.random.split(key, 3)
    raw = init_params(kp, input_dim, output_dim, input_size, class_num)
    params = prepare_params(raw, input_size=input_size)   # one-time repack

    noise = jax.random.normal(kz, (B, input_dim), dtype=jnp.float32)
    label_idx = jax.random.randint(kl, (B,), 0, class_num)
    label = jax.nn.one_hot(label_idx, class_num, dtype=jnp.float32)

    fwd = jax.jit(functools.partial(generator_forward,
                                    input_size=input_size,
                                    output_dim=output_dim))
    out = fwd(params, noise, label)
    jax.block_until_ready(out)

    assert out.shape == (B, output_dim, input_size, input_size), out.shape
    assert bool(jnp.all(jnp.isfinite(out)))
    assert bool(jnp.all(jnp.abs(out) <= 1.0 + 1e-6))       # tanh range

    ref = reference_forward(raw, noise, label, input_size=input_size)
    err = float(jnp.max(jnp.abs(out - ref)))
    assert err < 5e-3, f"mismatch vs plain-JAX reference: max abs err {err}"

    print("KERNEL_OK")
</pallas_src>

<mosaic_0001>
module attributes {stable_mosaic.version = 11 : i64} {
  func.func @_fc_fused_kernel(%arg0: i32, %arg1: memref<8x20xf32, #tpu.memory_space<vmem>>, %arg2: memref<20x1024xbf16, #tpu.memory_space<vmem>>, %arg3: memref<1x1024xf32, #tpu.memory_space<vmem>>, %arg4: memref<1x1024xf32, #tpu.memory_space<vmem>>, %arg5: memref<1x1024xf32, #tpu.memory_space<vmem>>, %arg6: memref<1024x1024xbf16, #tpu.memory_space<vmem>>, %arg7: memref<1x1024xf32, #tpu.memory_space<vmem>>, %arg8: memref<1x1024xf32, #tpu.memory_space<vmem>>, %arg9: memref<1x1024xf32, #tpu.memory_space<vmem>>, %arg10: memref<8x1024xf32, #tpu.memory_space<vmem>>, %arg11: memref<8x1024xf32, #tpu.memory_space<vmem>>) attributes {dimension_semantics = [#tpu.dimension_semantics<arbitrary>], iteration_bounds = array<i64: 2>, scalar_prefetch = 0 : i64, scratch_operands = 1 : i64, tpu.core_type = #tpu.core_type<tc>, window_params = [{pipeline_mode = #tpu.pipeline_mode<synchronous>, transform_indices = @transform_0, window_bounds = array<i64: 8, 20>}, {pipeline_mode = #tpu.pipeline_mode<synchronous>, transform_indices = @transform_1, window_bounds = array<i64: 20, 1024>}, {pipeline_mode = #tpu.pipeline_mode<synchronous>, transform_indices = @transform_2, window_bounds = array<i64: 1, 1024>}, {pipeline_mode = #tpu.pipeline_mode<synchronous>, transform_indices = @transform_3, window_bounds = array<i64: 1, 1024>}, {pipeline_mode = #tpu.pipeline_mode<synchronous>, transform_indices = @transform_4, window_bounds = array<i64: 1, 1024>}, {transform_indices = @transform_5, window_bounds = array<i64: 1024, 1024>}, {transform_indices = @transform_6, window_bounds = array<i64: 1, 1024>}, {transform_indices = @transform_7, window_bounds = array<i64: 1, 1024>}, {transform_indices = @transform_8, window_bounds = array<i64: 1, 1024>}, {transform_indices = @transform_9, window_bounds = array<i64: 8, 1024>}]} {
    %c0_i32 = arith.constant 0 : i32
    %0 = arith.cmpi eq, %arg0, %c0_i32 : i32
    %1 = arith.extui %0 : i1 to i32
    %c0_i32_0 = arith.constant 0 : i32
    %2 = arith.cmpi ne, %1, %c0_i32_0 : i32
    scf.if %2 {
      %c0_18 = arith.constant 0 : index
      %c0_19 = arith.constant 0 : index
      %46 = vector.load %arg1[%c0_18, %c0_19] : memref<8x20xf32, #tpu.memory_space<vmem>>, vector<8x20xf32>
      %c0_20 = arith.constant 0 : index
      %c0_21 = arith.constant 0 : index
      %47 = vector.load %arg2[%c0_20, %c0_21] : memref<20x1024xbf16, #tpu.memory_space<vmem>>, vector<20x1024xbf16>
      %48 = arith.extf %47 : vector<20x1024xbf16> to vector<20x1024xf32>
      %cst_22 = arith.constant dense<0.000000e+00> : vector<8x1024xf32>
      %49 = tpu.matmul %46, %48, %cst_22 {dimension_numbers = #tpu.dot_dimension_numbers<[1], [0], [0], [1], [0, 0, 1, 1], [], []>} : vector<8x20xf32>, vector<20x1024xf32>, vector<8x1024xf32> -> vector<8x1024xf32>
      %c0_23 = arith.constant 0 : index
      %c0_24 = arith.constant 0 : index
      %50 = vector.load %arg3[%c0_23, %c0_24] : memref<1x1024xf32, #tpu.memory_space<vmem>>, vector<1x1024xf32>
      %51 = vector.broadcast %50 : vector<1x1024xf32> to vector<8x1024xf32>
      %52 = arith.addf %49, %51 : vector<8x1024xf32>
      %c0_25 = arith.constant 0 : index
      %c0_26 = arith.constant 0 : index
      %53 = vector.load %arg4[%c0_25, %c0_26] : memref<1x1024xf32, #tpu.memory_space<vmem>>, vector<1x1024xf32>
      %c0_27 = arith.constant 0 : index
      %c0_28 = arith.constant 0 : index
      %54 = vector.load %arg5[%c0_27, %c0_28] : memref<1x1024xf32, #tpu.memory_space<vmem>>, vector<1x1024xf32>
      %55 = tpu.iota {dimensions = array<i32: 0>} : vector<8x1xi32>
      %c4_i32_29 = arith.constant 4 : i32
      %56 = vector.broadcast %c4_i32_29 : i32 to vector<8x1xi32>
      %57 = arith.cmpi slt, %55, %56 : vector<8x1xi32>
      %58 = arith.extui %57 : vector<8x1xi1> to vector<8x1xi32>
      %59 = arith.sitofp %58 : vector<8x1xi32> to vector<8x1xf32>
      %60 = vector.broadcast %59 : vector<8x1xf32> to vector<8x1024xf32>
      %61 = arith.mulf %52, %60 : vector<8x1024xf32>
      %cst_30 = arith.constant dense<0.000000e+00> : vector<1024xf32>
      %62 = vector.multi_reduction <add>, %61, %cst_30 [0] : vector<8x1024xf32> to vector<1024xf32>
      %63 = vector.shape_cast %62 : vector<1024xf32> to vector<1x1024xf32>
      %cst_31 = arith.constant 2.500000e-01 : f32
      %64 = vector.broadcast %cst_31 : f32 to vector<1x1024xf32>
      %65 = arith.mulf %63, %64 : vector<1x1024xf32>
      %66 = vector.broadcast %65 : vector<1x1024xf32> to vector<8x1024xf32>
      %67 = arith.subf %52, %66 : vector<8x1024xf32>
      %68 = vector.broadcast %59 : vector<8x1xf32> to vector<8x1024xf32>
      %69 = arith.mulf %67, %68 : vector<8x1024xf32>
      %70 = arith.mulf %69, %69 : vector<8x1024xf32>
      %cst_32 = arith.constant dense<0.000000e+00> : vector<1024xf32>
      %71 = vector.multi_reduction <add>, %70, %cst_32 [0] : vector<8x1024xf32> to vector<1024xf32>
      %72 = vector.shape_cast %71 : vector<1024xf32> to vector<1x1024xf32>
      %cst_33 = arith.constant 2.500000e-01 : f32
      %73 = vector.broadcast %cst_33 : f32 to vector<1x1024xf32>
      %74 = arith.mulf %72, %73 : vector<1x1024xf32>
      %75 = vector.broadcast %65 : vector<1x1024xf32> to vector<8x1024xf32>
      %76 = arith.subf %52, %75 : vector<8x1024xf32>
      %cst_34 = arith.constant 9.99999974E-6 : f32
      %77 = vector.broadcast %cst_34 : f32 to vector<1x1024xf32>
      %78 = arith.addf %74, %77 : vector<1x1024xf32>
      %79 = math.rsqrt %78 : vector<1x1024xf32>
      %80 = vector.broadcast %79 : vector<1x1024xf32> to vector<8x1024xf32>
      %81 = arith.mulf %76, %80 : vector<8x1024xf32>
      %82 = vector.broadcast %53 : vector<1x1024xf32> to vector<8x1024xf32>
      %83 = arith.mulf %81, %82 : vector<8x1024xf32>
      %84 = vector.broadcast %54 : vector<1x1024xf32> to vector<8x1024xf32>
      %85 = arith.addf %83, %84 : vector<8x1024xf32>
      %cst_35 = arith.constant 0.000000e+00 : f32
      %86 = vector.broadcast %cst_35 : f32 to vector<8x1024xf32>
      %87 = arith.maximumf %85, %86 : vector<8x1024xf32>
      %c0_36 = arith.constant 0 : index
      %c0_37 = arith.constant 0 : index
      %88 = vector.load %arg11[%c0_36, %c0_37] : memref<8x1024xf32, #tpu.memory_space<vmem>>, vector<8x1024xf32>
      tpu.vector_store %arg11[%c0_36, %c0_37], %87 {strides = array<i32>} : memref<8x1024xf32, #tpu.memory_space<vmem>>, vector<8x1024xf32>,
    } else {
    }
    %c0 = arith.constant 0 : index
    %c0_1 = arith.constant 0 : index
    %3 = vector.load %arg11[%c0, %c0_1] : memref<8x1024xf32, #tpu.memory_space<vmem>>, vector<8x1024xf32>
    %c0_2 = arith.constant 0 : index
    %c0_3 = arith.constant 0 : index
    %4 = vector.load %arg6[%c0_2, %c0_3] : memref<1024x1024xbf16, #tpu.memory_space<vmem>>, vector<1024x1024xbf16>
    %5 = arith.extf %4 : vector<1024x1024xbf16> to vector<1024x1024xf32>
    %cst = arith.constant dense<0.000000e+00> : vector<8x1024xf32>
    %6 = tpu.matmul %3, %5, %cst {dimension_numbers = #tpu.dot_dimension_numbers<[1], [0], [0], [1], [0, 0, 1, 1], [], []>} : vector<8x1024xf32>, vector<1024x1024xf32>, vector<8x1024xf32> -> vector<8x1024xf32>
    %c0_4 = arith.constant 0 : index
    %c0_5 = arith.constant 0 : index
    %7 = vector.load %arg7[%c0_4, %c0_5] : memref<1x1024xf32, #tpu.memory_space<vmem>>, vector<1x1024xf32>
    %8 = vector.broadcast %7 : vector<1x1024xf32> to vector<8x1024xf32>
    %9 = arith.addf %6, %8 : vector<8x1024xf32>
    %c0_6 = arith.constant 0 : index
    %c0_7 = arith.constant 0 : index
    %10 = vector.load %arg8[%c0_6, %c0_7] : memref<1x1024xf32, #tpu.memory_space<vmem>>, vector<1x1024xf32>
    %c0_8 = arith.constant 0 : index
    %c0_9 = arith.constant 0 : index
    %11 = vector.load %arg9[%c0_8, %c0_9] : memref<1x1024xf32, #tpu.memory_space<vmem>>, vector<1x1024xf32>
    %12 = tpu.iota {dimensions = array<i32: 0>} : vector<8x1xi32>
    %c4_i32 = arith.constant 4 : i32
    %13 = vector.broadcast %c4_i32 : i32 to vector<8x1xi32>
    %14 = arith.cmpi slt, %12, %13 : vector<8x1xi32>
    %15 = arith.extui %14 : vector<8x1xi1> to vector<8x1xi32>
    %16 = arith.sitofp %15 : vector<8x1xi32> to vector<8x1xf32>
    %17 = vector.broadcast %16 : vector<8x1xf32> to vector<8x1024xf32>
    %18 = arith.mulf %9, %17 : vector<8x1024xf32>
    %cst_10 = arith.constant dense<0.000000e+00> : vector<1024xf32>
    %19 = vector.multi_reduction <add>, %18, %cst_10 [0] : vector<8x1024xf32> to vector<1024xf32>
    %20 = vector.shape_cast %19 : vector<1024xf32> to vector<1x1024xf32>
    %cst_11 = arith.constant 2.500000e-01 : f32
    %21 = vector.broadcast %cst_11 : f32 to vector<1x1024xf32>
    %22 = arith.mulf %20, %21 : vector<1x1024xf32>
    %23 = vector.broadcast %22 : vector<1x1024xf32> to vector<8x1024xf32>
    %24 = arith.subf %9, %23 : vector<8x1024xf32>
    %25 = vector.broadcast %16 : vector<8x1xf32> to vector<8x1024xf32>
    %26 = arith.mulf %24, %25 : vector<8x1024xf32>
    %27 = arith.mulf %26, %26 : vector<8x1024xf32>
    %cst_12 = arith.constant dense<0.000000e+00> : vector<1024xf32>
    %28 = vector.multi_reduction <add>, %27, %cst_12 [0] : vector<8x1024xf32> to vector<1024xf32>
    %29 = vector.shape_cast %28 : vector<1024xf32> to vector<1x1024xf32>
    %cst_13 = arith.constant 2.500000e-01 : f32
    %30 = vector.broadcast %cst_13 : f32 to vector<1x1024xf32>
    %31 = arith.mulf %29, %30 : vector<1x1024xf32>
    %32 = vector.broadcast %22 : vector<1x1024xf32> to vector<8x1024xf32>
    %33 = arith.subf %9, %32 : vector<8x1024xf32>
    %cst_14 = arith.constant 9.99999974E-6 : f32
    %34 = vector.broadcast %cst_14 : f32 to vector<1x1024xf32>
    %35 = arith.addf %31, %34 : vector<1x1024xf32>
    %36 = math.rsqrt %35 : vector<1x1024xf32>
    %37 = vector.broadcast %36 : vector<1x1024xf32> to vector<8x1024xf32>
    %38 = arith.mulf %33, %37 : vector<8x1024xf32>
    %39 = vector.broadcast %10 : vector<1x1024xf32> to vector<8x1024xf32>
    %40 = arith.mulf %38, %39 : vector<8x1024xf32>
    %41 = vector.broadcast %11 : vector<1x1024xf32> to vector<8x1024xf32>
    %42 = arith.addf %40, %41 : vector<8x1024xf32>
    %cst_15 = arith.constant 0.000000e+00 : f32
    %43 = vector.broadcast %cst_15 : f32 to vector<8x1024xf32>
    %44 = arith.maximumf %42, %43 : vector<8x1024xf32>
    %c0_16 = arith.constant 0 : index
    %c0_17 = arith.constant 0 : index
    %45 = vector.load %arg10[%c0_16, %c0_17] : memref<8x1024xf32, #tpu.memory_space<vmem>>, vector<8x1024xf32>
    tpu.vector_store %arg10[%c0_16, %c0_17], %44 {strides = array<i32>} : memref<8x1024xf32, #tpu.memory_space<vmem>>, vector<8x1024xf32>,
    return
  }
  func.func @transform_0(%arg0: i32) -> (i32, i32) {
    %c0_i32 = arith.constant 0 : i32
    %c0_i32_0 = arith.constant 0 : i32
    %c0_i32_1 = arith.constant 0 : i32
    return %c0_i32, %c0_i32_0 : i32, i32
  }
  func.func @transform_1(%arg0: i32) -> (i32, i32) {
    %c0_i32 = arith.constant 0 : i32
    %c0_i32_0 = arith.constant 0 : i32
    %c0_i32_1 = arith.constant 0 : i32
    return %c0_i32, %c0_i32_0 : i32, i32
  }
  func.func @transform_2(%arg0: i32) -> (i32, i32) {
    %c0_i32 = arith.constant 0 : i32
    %c0_i32_0 = arith.constant 0 : i32
    %c0_i32_1 = arith.constant 0 : i32
    return %c0_i32, %c0_i32_0 : i32, i32
  }
  func.func @transform_3(%arg0: i32) -> (i32, i32) {
    %c0_i32 = arith.constant 0 : i32
    %c0_i32_0 = arith.constant 0 : i32
    %c0_i32_1 = arith.constant 0 : i32
    return %c0_i32, %c0_i32_0 : i32, i32
  }
  func.func @transform_4(%arg0: i32) -> (i32, i32) {
    %c0_i32 = arith.constant 0 : i32
    %c0_i32_0 = arith.constant 0 : i32
    %c0_i32_1 = arith.constant 0 : i32
    return %c0_i32, %c0_i32_0 : i32, i32
  }
  func.func @transform_5(%arg0: i32) -> (i32, i32) {
    %c0_i32 = arith.constant 0 : i32
    %c0_i32_0 = arith.constant 0 : i32
    return %c0_i32, %arg0 : i32, i32
  }
  func.func @transform_6(%arg0: i32) -> (i32, i32) {
    %c0_i32 = arith.constant 0 : i32
    %c0_i32_0 = arith.constant 0 : i32
    return %c0_i32, %arg0 : i32, i32
  }
  func.func @transform_7(%arg0: i32) -> (i32, i32) {
    %c0_i32 = arith.constant 0 : i32
    %c0_i32_0 = arith.constant 0 : i32
    return %c0_i32, %arg0 : i32, i32
  }
  func.func @transform_8(%arg0: i32) -> (i32, i32) {
    %c0_i32 = arith.constant 0 : i32
    %c0_i32_0 = arith.constant 0 : i32
    return %c0_i32, %arg0 : i32, i32
  }
  func.func @transform_9(%arg0: i32) -> (i32, i32) {
    %c0_i32 = arith.constant 0 : i32
    %c0_i32_0 = arith.constant 0 : i32
    return %c0_i32, %arg0 : i32, i32
  }
}

module attributes {stable_mosaic.version = 11 : i64} {
  func.func @_deconv_kernel(%arg0: i32, %arg1: memref<1x8x8x128xf32, #tpu.memory_space<vmem>>, %arg2: memref<2x2x512x128xbf16, #tpu.memory_space<vmem>>, %arg3: memref<1x128xf32, #tpu.memory_space<vmem>>, %arg4: memref<1x128xf32, #tpu.memory_space<vmem>>, %arg5: memref<1x128xf32, #tpu.memory_space<vmem>>, %arg6: memref<1x8x2x8x256xf32, #tpu.memory_space<vmem>>, %arg7: memref<1x10x10x128xf32, #tpu.memory_space<vmem>>) attributes {dimension_semantics = [#tpu.dimension_semantics<parallel>], iteration_bounds = array<i64: 4>, scalar_prefetch = 0 : i64, scratch_operands = 1 : i64, tpu.core_type = #tpu.core_type<tc>, window_params = [{transform_indices = @transform_0, window_bounds = array<i64: 1, 8, 8, 128>}, {pipeline_mode = #tpu.pipeline_mode<synchronous>, transform_indices = @transform_1, window_bounds = array<i64: 2, 2, 512, 128>}, {pipeline_mode = #tpu.pipeline_mode<synchronous>, transform_indices = @transform_2, window_bounds = array<i64: 1, 128>}, {pipeline_mode = #tpu.pipeline_mode<synchronous>, transform_indices = @transform_3, window_bounds = array<i64: 1, 128>}, {pipeline_mode = #tpu.pipeline_mode<synchronous>, transform_indices = @transform_4, window_bounds = array<i64: 1, 128>}, {transform_indices = @transform_5, window_bounds = array<i64: 1, 8, 2, 8, 256>}]} {
    %cst = arith.constant 0.000000e+00 : f32
    %0 = vector.broadcast %cst : f32 to vector<1x10x10x128xf32>
    %c0 = arith.constant 0 : index
    %c0_0 = arith.constant 0 : index
    %c0_1 = arith.constant 0 : index
    %c0_2 = arith.constant 0 : index
    %1 = vector.load %arg7[%c0, %c0_0, %c0_1, %c0_2] : memref<1x10x10x128xf32, #tpu.memory_space<vmem>>, vector<1x10x10x128xf32>
    tpu.vector_store %arg7[%c0, %c0_0, %c0_1, %c0_2], %0 {strides = array<i32>} : memref<1x10x10x128xf32, #tpu.memory_space<vmem>>, vector<1x10x10x128xf32>,
    %c0_3 = arith.constant 0 : index
    %c0_4 = arith.constant 0 : index
    %c0_5 = arith.constant 0 : index
    %c0_6 = arith.constant 0 : index
    %2 = vector.load %arg1[%c0_3, %c0_4, %c0_5, %c0_6] : memref<1x8x8x128xf32, #tpu.memory_space<vmem>>, vector<1x8x8x128xf32>
    %c0_7 = arith.constant 0 : index
    %c1 = arith.constant 1 : index
    %c1_8 = arith.constant 1 : index
    %c0_9 = arith.constant 0 : index
    %3 = vector.load %arg7[%c0_7, %c1, %c1_8, %c0_9] : memref<1x10x10x128xf32, #tpu.memory_space<vmem>>, vector<1x8x8x128xf32>
    tpu.vector_store %arg7[%c0_7, %c1, %c1_8, %c0_9], %2 {strides = array<i32>} : memref<1x10x10x128xf32, #tpu.memory_space<vmem>>, vector<1x8x8x128xf32>,
    %c0_10 = arith.constant 0 : index
    %c0_11 = arith.constant 0 : index
    %c0_12 = arith.constant 0 : index
    %c0_13 = arith.constant 0 : index
    %4 = vector.load %arg7[%c0_10, %c0_11, %c0_12, %c0_13] : memref<1x10x10x128xf32, #tpu.memory_space<vmem>>, vector<1x8x8x128xf32>
    %5 = vector.shape_cast %4 : vector<1x8x8x128xf32> to vector<64x128xf32>
    %c0_14 = arith.constant 0 : index
    %c0_15 = arith.constant 0 : index
    %c1_16 = arith.constant 1 : index
    %c0_17 = arith.constant 0 : index
    %6 = vector.load %arg7[%c0_14, %c0_15, %c1_16, %c0_17] : memref<1x10x10x128xf32, #tpu.memory_space<vmem>>, vector<1x8x8x128xf32>
    %7 = vector.shape_cast %6 : vector<1x8x8x128xf32> to vector<64x128xf32>
    %c0_18 = arith.constant 0 : index
    %c0_19 = arith.constant 0 : index
    %c2 = arith.constant 2 : index
    %c0_20 = arith.constant 0 : index
    %8 = vector.load %arg7[%c0_18, %c0_19, %c2, %c0_20] : memref<1x10x10x128xf32, #tpu.memory_space<vmem>>, vector<1x8x8x128xf32>
    %9 = vector.shape_cast %8 : vector<1x8x8x128xf32> to vector<64x128xf32>
    %c0_21 = arith.constant 0 : index
    %c1_22 = arith.constant 1 : index
    %c0_23 = arith.constant 0 : index
    %c0_24 = arith.constant 0 : index
    %10 = vector.load %arg7[%c0_21, %c1_22, %c0_23, %c0_24] : memref<1x10x10x128xf32, #tpu.memory_space<vmem>>, vector<1x8x8x128xf32>
    %11 = vector.shape_cast %10 : vector<1x8x8x128xf32> to vector<64x128xf32>
    %c0_25 = arith.constant 0 : index
    %c1_26 = arith.constant 1 : index
    %c1_27 = arith.constant 1 : index
    %c0_28 = arith.constant 0 : index
    %12 = vector.load %arg7[%c0_25, %c1_26, %c1_27, %c0_28] : memref<1x10x10x128xf32, #tpu.memory_space<vmem>>, vector<1x8x8x128xf32>
    %13 = vector.shape_cast %12 : vector<1x8x8x128xf32> to vector<64x128xf32>
    %c0_29 = arith.constant 0 : index
    %c1_30 = arith.constant 1 : index
    %c2_31 = arith.constant 2 : index
    %c0_32 = arith.constant 0 : index
    %14 = vector.load %arg7[%c0_29, %c1_30, %c2_31, %c0_32] : memref<1x10x10x128xf32, #tpu.memory_space<vmem>>, vector<1x8x8x128xf32>
    %15 = vector.shape_cast %14 : vector<1x8x8x128xf32> to vector<64x128xf32>
    %c0_33 = arith.constant 0 : index
    %c2_34 = arith.constant 2 : index
    %c0_35 = arith.constant 0 : index
    %c0_36 = arith.constant 0 : index
    %16 = vector.load %arg7[%c0_33, %c2_34, %c0_35, %c0_36] : memref<1x10x10x128xf32, #tpu.memory_space<vmem>>, vector<1x8x8x128xf32>
    %17 = vector.shape_cast %16 : vector<1x8x8x128xf32> to vector<64x128xf32>
    %c0_37 = arith.constant 0 : index
    %c2_38 = arith.constant 2 : index
    %c1_39 = arith.constant 1 : index
    %c0_40 = arith.constant 0 : index
    %18 = vector.load %arg7[%c0_37, %c2_38, %c1_39, %c0_40] : memref<1x10x10x128xf32, #tpu.memory_space<vmem>>, vector<1x8x8x128xf32>
    %19 = vector.shape_cast %18 : vector<1x8x8x128xf32> to vector<64x128xf32>
    %c0_41 = arith.constant 0 : index
    %c2_42 = arith.constant 2 : index
    %c2_43 = arith.constant 2 : index
    %c0_44 = arith.constant 0 : index
    %20 = vector.load %arg7[%c0_41, %c2_42, %c2_43, %c0_44] : memref<1x10x10x128xf32, #tpu.memory_space<vmem>>, vector<1x8x8x128xf32>
    %21 = vector.shape_cast %20 : vector<1x8x8x128xf32> to vector<64x128xf32>
    %22 = tpu.concatenate %5, %7, %11, %13 in 1 : vector<64x128xf32>, vector<64x128xf32>, vector<64x128xf32>, vector<64x128xf32> -> vector<64x512xf32>
    %c0_45 = arith.constant 0 : index
    %c0_46 = arith.constant 0 : index
    %c0_47 = arith.constant 0 : index
    %c0_48 = arith.constant 0 : index
    %23 = vector.load %arg2[%c0_45, %c0_46, %c0_47, %c0_48] : memref<2x2x512x128xbf16, #tpu.memory_space<vmem>>, vector<1x1x512x128xbf16>
    %24 = vector.shape_cast %23 : vector<1x1x512x128xbf16> to vector<512x128xbf16>
    %25 = arith.extf %24 : vector<512x128xbf16> to vector<512x128xf32>
    %cst_49 = arith.constant dense<0.000000e+00> : vector<64x128xf32>
    %26 = tpu.matmul %22, %25, %cst_49 {dimension_numbers = #tpu.dot_dimension_numbers<[1], [0], [0], [1], [0, 0, 1, 1], [], []>} : vector<64x512xf32>, vector<512x128xf32>, vector<64x128xf32> -> vector<64x128xf32>
    %c0_50 = arith.constant 0 : index
    %c0_51 = arith.constant 0 : index
    %27 = vector.load %arg3[%c0_50, %c0_51] : memref<1x128xf32, #tpu.memory_space<vmem>>, vector<1x128xf32>
    %28 = vector.broadcast %27 : vector<1x128xf32> to vector<64x128xf32>
    %29 = arith.addf %26, %28 : vector<64x128xf32>
    %30 = math.tanh %29 : vector<64x128xf32>
    %31 = tpu.concatenate %7, %9, %13, %15 in 1 : vector<64x128xf32>, vector<64x128xf32>, vector<64x128xf32>, vector<64x128xf32> -> vector<64x512xf32>
    %c0_52 = arith.constant 0 : index
    %c1_53 = arith.constant 1 : index
    %c0_54 = arith.constant 0 : index
    %c0_55 = arith.constant 0 : index
    %32 = vector.load %arg2[%c0_52, %c1_53, %c0_54, %c0_55] : memref<2x2x512x128xbf16, #tpu.memory_space<vmem>>, vector<1x1x512x128xbf16>
    %33 = vector.shape_cast %32 : vector<1x1x512x128xbf16> to vector<512x128xbf16>
    %34 = arith.extf %33 : vector<512x128xbf16> to vector<512x128xf32>
    %cst_56 = arith.constant dense<0.000000e+00> : vector<64x128xf32>
    %35 = tpu.matmul %31, %34, %cst_56 {dimension_numbers = #tpu.dot_dimension_numbers<[1], [0], [0], [1], [0, 0, 1, 1], [], []>} : vector<64x512xf32>, vector<512x128xf32>, vector<64x128xf32> -> vector<64x128xf32>
    %c0_57 = arith.constant 0 : index
    %c0_58 = arith.constant 0 : index
    %36 = vector.load %arg3[%c0_57, %c0_58] : memref<1x128xf32, #tpu.memory_space<vmem>>, vector<1x128xf32>
    %37 = vector.broadcast %36 : vector<1x128xf32> to vector<64x128xf32>
    %38 = arith.addf %35, %37 : vector<64x128xf32>
    %39 = math.tanh %38 : vector<64x128xf32>
    %40 = vector.shape_cast %30 : vector<64x128xf32> to vector<1x8x8x128xf32>
    %41 = vector.shape_cast %39 : vector<64x128xf32> to vector<1x8x8x128xf32>
    %42 = tpu.concatenate %40, %41 in 3 : vector<1x8x8x128xf32>, vector<1x8x8x128xf32> -> vector<1x8x8x256xf32>
    %43 = vector.shape_cast %42 : vector<1x8x8x256xf32> to vector<1x8x1x8x256xf32>
    %c0_59 = arith.constant 0 : index
    %c0_60 = arith.constant 0 : index
    %c0_61 = arith.constant 0 : index
    %c0_62 = arith.constant 0 : index
    %c0_63 = arith.constant 0 : index
    %44 = vector.load %arg6[%c0_59, %c0_60, %c0_61, %c0_62, %c0_63] : memref<1x8x2x8x256xf32, #tpu.memory_space<vmem>>, vector<1x8x1x8x256xf32>
    tpu.vector_store %arg6[%c0_59, %c0_60, %c0_61, %c0_62, %c0_63], %43 {strides = array<i32>} : memref<1x8x2x8x256xf32, #tpu.memory_space<vmem>>, vector<1x8x1x8x256xf32>,
    %45 = tpu.concatenate %11, %13, %17, %19 in 1 : vector<64x128xf32>, vector<64x128xf32>, vector<64x128xf32>, vector<64x128xf32> -> vector<64x512xf32>
    %c1_64 = arith.constant 1 : index
    %c0_65 = arith.constant 0 : index
    %c0_66 = arith.constant 0 : index
    %c0_67 = arith.constant 0 : index
    %46 = vector.load %arg2[%c1_64, %c0_65, %c0_66, %c0_67] : memref<2x2x512x128xbf16, #tpu.memory_space<vmem>>, vector<1x1x512x128xbf16>
    %47 = vector.shape_cast %46 : vector<1x1x512x128xbf16> to vector<512x128xbf16>
    %48 = arith.extf %47 : vector<512x128xbf16> to vector<512x128xf32>
    %cst_68 = arith.constant dense<0.000000e+00> : vector<64x128xf32>
    %49 = tpu.matmul %45, %48, %cst_68 {dimension_numbers = #tpu.dot_dimension_numbers<[1], [0], [0], [1], [0, 0, 1, 1], [], []>} : vector<64x512xf32>, vector<512x128xf32>, vector<64x128xf32> -> vector<64x128xf32>
    %c0_69 = arith.constant 0 : index
    %c0_70 = arith.constant 0 : index
    %50 = vector.load %arg3[%c0_69, %c0_70] : memref<1x128xf32, #tpu.memory_space<vmem>>, vector<1x128xf32>
    %51 = vector.broadcast %50 : vector<1x128xf32> to vector<64x128xf32>
    %52 = arith.addf %49, %51 : vector<64x128xf32>
    %53 = math.tanh %52 : vector<64x128xf32>
    %54 = tpu.concatenate %13, %15, %19, %21 in 1 : vector<64x128xf32>, vector<64x128xf32>, vector<64x128xf32>, vector<64x128xf32> -> vector<64x512xf32>
    %c1_71 = arith.constant 1 : index
    %c1_72 = arith.constant 1 : index
    %c0_73 = arith.constant 0 : index
    %c0_74 = arith.constant 0 : index
    %55 = vector.load %arg2[%c1_71, %c1_72, %c0_73, %c0_74] : memref<2x2x512x128xbf16, #tpu.memory_space<vmem>>, vector<1x1x512x128xbf16>
    %56 = vector.shape_cast %55 : vector<1x1x512x128xbf16> to vector<512x128xbf16>
    %57 = arith.extf %56 : vector<512x128xbf16> to vector<512x128xf32>
    %cst_75 = arith.constant dense<0.000000e+00> : vector<64x128xf32>
    %58 = tpu.matmul %54, %57, %cst_75 {dimension_numbers = #tpu.dot_dimension_numbers<[1], [0], [0], [1], [0, 0, 1, 1], [], []>} : vector<64x512xf32>, vector<512x128xf32>, vector<64x128xf32> -> vector<64x128xf32>
    %c0_76 = arith.constant 0 : index
    %c0_77 = arith.constant 0 : index
    %59 = vector.load %arg3[%c0_76, %c0_77] : memref<1x128xf32, #tpu.memory_space<vmem>>, vector<1x128xf32>
    %60 = vector.broadcast %59 : vector<1x128xf32> to vector<64x128xf32>
    %61 = arith.addf %58, %60 : vector<64x128xf32>
    %62 = math.tanh %61 : vector<64x128xf32>
    %63 = vector.shape_cast %53 : vector<64x128xf32> to vector<1x8x8x128xf32>
    %64 = vector.shape_cast %62 : vector<64x128xf32> to vector<1x8x8x128xf32>
    %65 = tpu.concatenate %63, %64 in 3 : vector<1x8x8x128xf32>, vector<1x8x8x128xf32> -> vector<1x8x8x256xf32>
    %66 = vector.shape_cast %65 : vector<1x8x8x256xf32> to vector<1x8x1x8x256xf32>
    %c0_78 = arith.constant 0 : index
    %c0_79 = arith.constant 0 : index
    %c1_80 = arith.constant 1 : index
    %c0_81 = arith.constant 0 : index
    %c0_82 = arith.constant 0 : index
    %67 = vector.load %arg6[%c0_78, %c0_79, %c1_80, %c0_81, %c0_82] : memref<1x8x2x8x256xf32, #tpu.memory_space<vmem>>, vector<1x8x1x8x256xf32>
    tpu.vector_store %arg6[%c0_78, %c0_79, %c1_80, %c0_81, %c0_82], %66 {strides = array<i32>} : memref<1x8x2x8x256xf32, #tpu.memory_space<vmem>>, vector<1x8x1x8x256xf32>,
    return
  }
  func.func @transform_0(%arg0: i32) -> (i32, i32, i32, i32) {
    %c0_i32 = arith.constant 0 : i32
    %c0_i32_0 = arith.constant 0 : i32
    %c0_i32_1 = arith.constant 0 : i32
    %c0_i32_2 = arith.constant 0 : i32
    return %arg0, %c0_i32, %c0_i32_0, %c0_i32_1 : i32, i32, i32, i32
  }
  func.func @transform_1(%arg0: i32) -> (i32, i32, i32, i32) {
    %c0_i32 = arith.constant 0 : i32
    %c0_i32_0 = arith.constant 0 : i32
    %c0_i32_1 = arith.constant 0 : i32
    %c0_i32_2 = arith.constant 0 : i32
    %c0_i32_3 = arith.constant 0 : i32
    return %c0_i32, %c0_i32_0, %c0_i32_1, %c0_i32_2 : i32, i32, i32, i32
  }
  func.func @transform_2(%arg0: i32) -> (i32, i32) {
    %c0_i32 = arith.constant 0 : i32
    %c0_i32_0 = arith.constant 0 : i32
    %c0_i32_1 = arith.constant 0 : i32
    return %c0_i32, %c0_i32_0 : i32, i32
  }
  func.func @transform_3(%arg0: i32) -> (i32, i32) {
    %c0_i32 = arith.constant 0 : i32
    %c0_i32_0 = arith.constant 0 : i32
    %c0_i32_1 = arith.constant 0 : i32
    return %c0_i32, %c0_i32_0 : i32, i32
  }
  func.func @transform_4(%arg0: i32) -> (i32, i32) {
    %c0_i32 = arith.constant 0 : i32
    %c0_i32_0 = arith.constant 0 : i32
    %c0_i32_1 = arith.constant 0 : i32
    return %c0_i32, %c0_i32_0 : i32, i32
  }
  func.func @transform_5(%arg0: i32) -> (i32, i32, i32, i32, i32) {
    %c0_i32 = arith.constant 0 : i32
    %c0_i32_0 = arith.constant 0 : i32
    %c0_i32_1 = arith.constant 0 : i32
    %c0_i32_2 = arith.constant 0 : i32
    %c0_i32_3 = arith.constant 0 : i32
    return %arg0, %c0_i32, %c0_i32_0, %c0_i32_1, %c0_i32_2 : i32, i32, i32, i32, i32
  }
}

module attributes {stable_mosaic.version = 11 : i64} {
  func.func @_deconv_kernel(%arg0: i32, %arg1: memref<4x4x4x128xf32, #tpu.memory_space<vmem>>, %arg2: memref<2x2x512x128xbf16, #tpu.memory_space<vmem>>, %arg3: memref<1x128xf32, #tpu.memory_space<vmem>>, %arg4: memref<1x128xf32, #tpu.memory_space<vmem>>, %arg5: memref<1x128xf32, #tpu.memory_space<vmem>>, %arg6: memref<4x4x2x4x256xf32, #tpu.memory_space<vmem>>, %arg7: memref<4x6x6x128xf32, #tpu.memory_space<vmem>>) attributes {dimension_semantics = [#tpu.dimension_semantics<parallel>], iteration_bounds = array<i64: 1>, scalar_prefetch = 0 : i64, scratch_operands = 1 : i64, tpu.core_type = #tpu.core_type<tc>, window_params = [{transform_indices = @transform_0, window_bounds = array<i64: 4, 4, 4, 128>}, {pipeline_mode = #tpu.pipeline_mode<synchronous>, transform_indices = @transform_1, window_bounds = array<i64: 2, 2, 512, 128>}, {pipeline_mode = #tpu.pipeline_mode<synchronous>, transform_indices = @transform_2, window_bounds = array<i64: 1, 128>}, {pipeline_mode = #tpu.pipeline_mode<synchronous>, transform_indices = @transform_3, window_bounds = array<i64: 1, 128>}, {pipeline_mode = #tpu.pipeline_mode<synchronous>, transform_indices = @transform_4, window_bounds = array<i64: 1, 128>}, {transform_indices = @transform_5, window_bounds = array<i64: 4, 4, 2, 4, 256>}]} {
    %cst = arith.constant 0.000000e+00 : f32
    %0 = vector.broadcast %cst : f32 to vector<4x6x6x128xf32>
    %c0 = arith.constant 0 : index
    %c0_0 = arith.constant 0 : index
    %c0_1 = arith.constant 0 : index
    %c0_2 = arith.constant 0 : index
    %1 = vector.load %arg7[%c0, %c0_0, %c0_1, %c0_2] : memref<4x6x6x128xf32, #tpu.memory_space<vmem>>, vector<4x6x6x128xf32>
    tpu.vector_store %arg7[%c0, %c0_0, %c0_1, %c0_2], %0 {strides = array<i32>} : memref<4x6x6x128xf32, #tpu.memory_space<vmem>>, vector<4x6x6x128xf32>,
    %c0_3 = arith.constant 0 : index
    %c0_4 = arith.constant 0 : index
    %c0_5 = arith.constant 0 : index
    %c0_6 = arith.constant 0 : index
    %2 = vector.load %arg1[%c0_3, %c0_4, %c0_5, %c0_6] : memref<4x4x4x128xf32, #tpu.memory_space<vmem>>, vector<4x4x4x128xf32>
    %c0_7 = arith.constant 0 : index
    %c1 = arith.constant 1 : index
    %c1_8 = arith.constant 1 : index
    %c0_9 = arith.constant 0 : index
    %3 = vector.load %arg7[%c0_7, %c1, %c1_8, %c0_9] : memref<4x6x6x128xf32, #tpu.memory_space<vmem>>, vector<4x4x4x128xf32>
    tpu.vector_store %arg7[%c0_7, %c1, %c1_8, %c0_9], %2 {strides = array<i32>} : memref<4x6x6x128xf32, #tpu.memory_space<vmem>>, vector<4x4x4x128xf32>,
    %c0_10 = arith.constant 0 : index
    %c0_11 = arith.constant 0 : index
    %c0_12 = arith.constant 0 : index
    %c0_13 = arith.constant 0 : index
    %4 = vector.load %arg7[%c0_10, %c0_11, %c0_12, %c0_13] : memref<4x6x6x128xf32, #tpu.memory_space<vmem>>, vector<4x4x4x128xf32>
    %5 = vector.shape_cast %4 : vector<4x4x4x128xf32> to vector<64x128xf32>
    %c0_14 = arith.constant 0 : index
    %c0_15 = arith.constant 0 : index
    %c1_16 = arith.constant 1 : index
    %c0_17 = arith.constant 0 : index
    %6 = vector.load %arg7[%c0_14, %c0_15, %c1_16, %c0_17] : memref<4x6x6x128xf32, #tpu.memory_space<vmem>>, vector<4x4x4x128xf32>
    %7 = vector.shape_cast %6 : vector<4x4x4x128xf32> to vector<64x128xf32>
    %c0_18 = arith.constant 0 : index
    %c0_19 = arith.constant 0 : index
    %c2 = arith.constant 2 : index
    %c0_20 = arith.constant 0 : index
    %8 = vector.load %arg7[%c0_18, %c0_19, %c2, %c0_20] : memref<4x6x6x128xf32, #tpu.memory_space<vmem>>, vector<4x4x4x128xf32>
    %9 = vector.shape_cast %8 : vector<4x4x4x128xf32> to vector<64x128xf32>
    %c0_21 = arith.constant 0 : index
    %c1_22 = arith.constant 1 : index
    %c0_23 = arith.constant 0 : index
    %c0_24 = arith.constant 0 : index
    %10 = vector.load %arg7[%c0_21, %c1_22, %c0_23, %c0_24] : memref<4x6x6x128xf32, #tpu.memory_space<vmem>>, vector<4x4x4x128xf32>
    %11 = vector.shape_cast %10 : vector<4x4x4x128xf32> to vector<64x128xf32>
    %c0_25 = arith.constant 0 : index
    %c1_26 = arith.constant 1 : index
    %c1_27 = arith.constant 1 : index
    %c0_28 = arith.constant 0 : index
    %12 = vector.load %arg7[%c0_25, %c1_26, %c1_27, %c0_28] : memref<4x6x6x128xf32, #tpu.memory_space<vmem>>, vector<4x4x4x128xf32>
    %13 = vector.shape_cast %12 : vector<4x4x4x128xf32> to vector<64x128xf32>
    %c0_29 = arith.constant 0 : index
    %c1_30 = arith.constant 1 : index
    %c2_31 = arith.constant 2 : index
    %c0_32 = arith.constant 0 : index
    %14 = vector.load %arg7[%c0_29, %c1_30, %c2_31, %c0_32] : memref<4x6x6x128xf32, #tpu.memory_space<vmem>>, vector<4x4x4x128xf32>
    %15 = vector.shape_cast %14 : vector<4x4x4x128xf32> to vector<64x128xf32>
    %c0_33 = arith.constant 0 : index
    %c2_34 = arith.constant 2 : index
    %c0_35 = arith.constant 0 : index
    %c0_36 = arith.constant 0 : index
    %16 = vector.load %arg7[%c0_33, %c2_34, %c0_35, %c0_36] : memref<4x6x6x128xf32, #tpu.memory_space<vmem>>, vector<4x4x4x128xf32>
    %17 = vector.shape_cast %16 : vector<4x4x4x128xf32> to vector<64x128xf32>
    %c0_37 = arith.constant 0 : index
    %c2_38 = arith.constant 2 : index
    %c1_39 = arith.constant 1 : index
    %c0_40 = arith.constant 0 : index
    %18 = vector.load %arg7[%c0_37, %c2_38, %c1_39, %c0_40] : memref<4x6x6x128xf32, #tpu.memory_space<vmem>>, vector<4x4x4x128xf32>
    %19 = vector.shape_cast %18 : vector<4x4x4x128xf32> to vector<64x128xf32>
    %c0_41 = arith.constant 0 : index
    %c2_42 = arith.constant 2 : index
    %c2_43 = arith.constant 2 : index
    %c0_44 = arith.constant 0 : index
    %20 = vector.load %arg7[%c0_41, %c2_42, %c2_43, %c0_44] : memref<4x6x6x128xf32, #tpu.memory_space<vmem>>, vector<4x4x4x128xf32>
    %21 = vector.shape_cast %20 : vector<4x4x4x128xf32> to vector<64x128xf32>
    %22 = tpu.concatenate %5, %7, %11, %13 in 1 : vector<64x128xf32>, vector<64x128xf32>, vector<64x128xf32>, vector<64x128xf32> -> vector<64x512xf32>
    %c0_45 = arith.constant 0 : index
    %c0_46 = arith.constant 0 : index
    %c0_47 = arith.constant 0 : index
    %c0_48 = arith.constant 0 : index
    %23 = vector.load %arg2[%c0_45, %c0_46, %c0_47, %c0_48] : memref<2x2x512x128xbf16, #tpu.memory_space<vmem>>, vector<1x1x512x128xbf16>
    %24 = vector.shape_cast %23 : vector<1x1x512x128xbf16> to vector<512x128xbf16>
    %25 = arith.extf %24 : vector<512x128xbf16> to vector<512x128xf32>
    %cst_49 = arith.constant dense<0.000000e+00> : vector<64x128xf32>
    %26 = tpu.matmul %22, %25, %cst_49 {dimension_numbers = #tpu.dot_dimension_numbers<[1], [0], [0], [1], [0, 0, 1, 1], [], []>} : vector<64x512xf32>, vector<512x128xf32>, vector<64x128xf32> -> vector<64x128xf32>
    %c0_50 = arith.constant 0 : index
    %c0_51 = arith.constant 0 : index
    %27 = vector.load %arg3[%c0_50, %c0_51] : memref<1x128xf32, #tpu.memory_space<vmem>>, vector<1x128xf32>
    %28 = vector.broadcast %27 : vector<1x128xf32> to vector<64x128xf32>
    %29 = arith.addf %26, %28 : vector<64x128xf32>
    %30 = tpu.concatenate %7, %9, %13, %15 in 1 : vector<64x128xf32>, vector<64x128xf32>, vector<64x128xf32>, vector<64x128xf32> -> vector<64x512xf32>
    %c0_52 = arith.constant 0 : index
    %c1_53 = arith.constant 1 : index
    %c0_54 = arith.constant 0 : index
    %c0_55 = arith.constant 0 : index
    %31 = vector.load %arg2[%c0_52, %c1_53, %c0_54, %c0_55] : memref<2x2x512x128xbf16, #tpu.memory_space<vmem>>, vector<1x1x512x128xbf16>
    %32 = vector.shape_cast %31 : vector<1x1x512x128xbf16> to vector<512x128xbf16>
    %33 = arith.extf %32 : vector<512x128xbf16> to vector<512x128xf32>
    %cst_56 = arith.constant dense<0.000000e+00> : vector<64x128xf32>
    %34 = tpu.matmul %30, %33, %cst_56 {dimension_numbers = #tpu.dot_dimension_numbers<[1], [0], [0], [1], [0, 0, 1, 1], [], []>} : vector<64x512xf32>, vector<512x128xf32>, vector<64x128xf32> -> vector<64x128xf32>
    %c0_57 = arith.constant 0 : index
    %c0_58 = arith.constant 0 : index
    %35 = vector.load %arg3[%c0_57, %c0_58] : memref<1x128xf32, #tpu.memory_space<vmem>>, vector<1x128xf32>
    %36 = vector.broadcast %35 : vector<1x128xf32> to vector<64x128xf32>
    %37 = arith.addf %34, %36 : vector<64x128xf32>
    %38 = tpu.concatenate %11, %13, %17, %19 in 1 : vector<64x128xf32>, vector<64x128xf32>, vector<64x128xf32>, vector<64x128xf32> -> vector<64x512xf32>
    %c1_59 = arith.constant 1 : index
    %c0_60 = arith.constant 0 : index
    %c0_61 = arith.constant 0 : index
    %c0_62 = arith.constant 0 : index
    %39 = vector.load %arg2[%c1_59, %c0_60, %c0_61, %c0_62] : memref<2x2x512x128xbf16, #tpu.memory_space<vmem>>, vector<1x1x512x128xbf16>
    %40 = vector.shape_cast %39 : vector<1x1x512x128xbf16> to vector<512x128xbf16>
    %41 = arith.extf %40 : vector<512x128xbf16> to vector<512x128xf32>
    %cst_63 = arith.constant dense<0.000000e+00> : vector<64x128xf32>
    %42 = tpu.matmul %38, %41, %cst_63 {dimension_numbers = #tpu.dot_dimension_numbers<[1], [0], [0], [1], [0, 0, 1, 1], [], []>} : vector<64x512xf32>, vector<512x128xf32>, vector<64x128xf32> -> vector<64x128xf32>
    %c0_64 = arith.constant 0 : index
    %c0_65 = arith.constant 0 : index
    %43 = vector.load %arg3[%c0_64, %c0_65] : memref<1x128xf32, #tpu.memory_space<vmem>>, vector<1x128xf32>
    %44 = vector.broadcast %43 : vector<1x128xf32> to vector<64x128xf32>
    %45 = arith.addf %42, %44 : vector<64x128xf32>
    %46 = tpu.concatenate %13, %15, %19, %21 in 1 : vector<64x128xf32>, vector<64x128xf32>, vector<64x128xf32>, vector<64x128xf32> -> vector<64x512xf32>
    %c1_66 = arith.constant 1 : index
    %c1_67 = arith.constant 1 : index
    %c0_68 = arith.constant 0 : index
    %c0_69 = arith.constant 0 : index
    %47 = vector.load %arg2[%c1_66, %c1_67, %c0_68, %c0_69] : memref<2x2x512x128xbf16, #tpu.memory_space<vmem>>, vector<1x1x512x128xbf16>
    %48 = vector.shape_cast %47 : vector<1x1x512x128xbf16> to vector<512x128xbf16>
    %49 = arith.extf %48 : vector<512x128xbf16> to vector<512x128xf32>
    %cst_70 = arith.constant dense<0.000000e+00> : vector<64x128xf32>
    %50 = tpu.matmul %46, %49, %cst_70 {dimension_numbers = #tpu.dot_dimension_numbers<[1], [0], [0], [1], [0, 0, 1, 1], [], []>} : vector<64x512xf32>, vector<512x128xf32>, vector<64x128xf32> -> vector<64x128xf32>
    %c0_71 = arith.constant 0 : index
    %c0_72 = arith.constant 0 : index
    %51 = vector.load %arg3[%c0_71, %c0_72] : memref<1x128xf32, #tpu.memory_space<vmem>>, vector<1x128xf32>
    %52 = vector.broadcast %51 : vector<1x128xf32> to vector<64x128xf32>
    %53 = arith.addf %50, %52 : vector<64x128xf32>
    %54 = tpu.concatenate %29, %37, %45, %53 in 0 : vector<64x128xf32>, vector<64x128xf32>, vector<64x128xf32>, vector<64x128xf32> -> vector<256x128xf32>
    %c0_73 = arith.constant 0 : index
    %c0_74 = arith.constant 0 : index
    %55 = vector.load %arg4[%c0_73, %c0_74] : memref<1x128xf32, #tpu.memory_space<vmem>>, vector<1x128xf32>
    %c0_75 = arith.constant 0 : index
    %c0_76 = arith.constant 0 : index
    %56 = vector.load %arg5[%c0_75, %c0_76] : memref<1x128xf32, #tpu.memory_space<vmem>>, vector<1x128xf32>
    %cst_77 = arith.constant dense<0.000000e+00> : vector<128xf32>
    %57 = vector.multi_reduction <add>, %54, %cst_77 [0] : vector<256x128xf32> to vector<128xf32>
    %58 = vector.shape_cast %57 : vector<128xf32> to vector<1x128xf32>
    %cst_78 = arith.constant 3.906250e-03 : f32
    %59 = vector.broadcast %cst_78 : f32 to vector<1x128xf32>
    %60 = arith.mulf %58, %59 : vector<1x128xf32>
    %61 = vector.broadcast %60 : vector<1x128xf32> to vector<256x128xf32>
    %62 = arith.subf %54, %61 : vector<256x128xf32>
    %63 = arith.mulf %62, %62 : vector<256x128xf32>
    %cst_79 = arith.constant dense<0.000000e+00> : vector<128xf32>
    %64 = vector.multi_reduction <add>, %63, %cst_79 [0] : vector<256x128xf32> to vector<128xf32>
    %65 = vector.shape_cast %64 : vector<128xf32> to vector<1x128xf32>
    %cst_80 = arith.constant 3.906250e-03 : f32
    %66 = vector.broadcast %cst_80 : f32 to vector<1x128xf32>
    %67 = arith.mulf %65, %66 : vector<1x128xf32>
    %68 = vector.broadcast %60 : vector<1x128xf32> to vector<256x128xf32>
    %69 = arith.subf %54, %68 : vector<256x128xf32>
    %cst_81 = arith.constant 9.99999974E-6 : f32
    %70 = vector.broadcast %cst_81 : f32 to vector<1x128xf32>
    %71 = arith.addf %67, %70 : vector<1x128xf32>
    %72 = math.rsqrt %71 : vector<1x128xf32>
    %73 = vector.broadcast %72 : vector<1x128xf32> to vector<256x128xf32>
    %74 = arith.mulf %69, %73 : vector<256x128xf32>
    %75 = vector.broadcast %55 : vector<1x128xf32> to vector<256x128xf32>
    %76 = arith.mulf %74, %75 : vector<256x128xf32>
    %77 = vector.broadcast %56 : vector<1x128xf32> to vector<256x128xf32>
    %78 = arith.addf %76, %77 : vector<256x128xf32>
    %cst_82 = arith.constant 0.000000e+00 : f32
    %79 = vector.broadcast %cst_82 : f32 to vector<256x128xf32>
    %80 = arith.maximumf %78, %79 : vector<256x128xf32>
    %81 = vector.extract_strided_slice %80 {offsets = [0, 0], sizes = [64, 128], strides = [1, 1]} : vector<256x128xf32> to vector<64x128xf32>
    %82 = vector.extract_strided_slice %80 {offsets = [64, 0], sizes = [64, 128], strides = [1, 1]} : vector<256x128xf32> to vector<64x128xf32>
    %83 = vector.shape_cast %81 : vector<64x128xf32> to vector<4x4x4x128xf32>
    %84 = vector.shape_cast %82 : vector<64x128xf32> to vector<4x4x4x128xf32>
    %85 = tpu.concatenate %83, %84 in 3 : vector<4x4x4x128xf32>, vector<4x4x4x128xf32> -> vector<4x4x4x256xf32>
    %86 = vector.shape_cast %85 : vector<4x4x4x256xf32> to vector<4x4x1x4x256xf32>
    %c0_83 = arith.constant 0 : index
    %c0_84 = arith.constant 0 : index
    %c0_85 = arith.constant 0 : index
    %c0_86 = arith.constant 0 : index
    %c0_87 = arith.constant 0 : index
    %87 = vector.load %arg6[%c0_83, %c0_84, %c0_85, %c0_86, %c0_87] : memref<4x4x2x4x256xf32, #tpu.memory_space<vmem>>, vector<4x4x1x4x256xf32>
    tpu.vector_store %arg6[%c0_83, %c0_84, %c0_85, %c0_86, %c0_87], %86 {strides = array<i32>} : memref<4x4x2x4x256xf32, #tpu.memory_space<vmem>>, vector<4x4x1x4x256xf32>,
    %88 = vector.extract_strided_slice %80 {offsets = [128, 0], sizes = [64, 128], strides = [1, 1]} : vector<256x128xf32> to vector<64x128xf32>
    %89 = vector.extract_strided_slice %80 {offsets = [192, 0], sizes = [64, 128], strides = [1, 1]} : vector<256x128xf32> to vector<64x128xf32>
    %90 = vector.shape_cast %88 : vector<64x128xf32> to vector<4x4x4x128xf32>
    %91 = vector.shape_cast %89 : vector<64x128xf32> to vector<4x4x4x128xf32>
    %92 = tpu.concatenate %90, %91 in 3 : vector<4x4x4x128xf32>, vector<4x4x4x128xf32> -> vector<4x4x4x256xf32>
    %93 = vector.shape_cast %92 : vector<4x4x4x256xf32> to vector<4x4x1x4x256xf32>
    %c0_88 = arith.constant 0 : index
    %c0_89 = arith.constant 0 : index
    %c1_90 = arith.constant 1 : index
    %c0_91 = arith.constant 0 : index
    %c0_92 = arith.constant 0 : index
    %94 = vector.load %arg6[%c0_88, %c0_89, %c1_90, %c0_91, %c0_92] : memref<4x4x2x4x256xf32, #tpu.memory_space<vmem>>, vector<4x4x1x4x256xf32>
    tpu.vector_store %arg6[%c0_88, %c0_89, %c1_90, %c0_91, %c0_92], %93 {strides = array<i32>} : memref<4x4x2x4x256xf32, #tpu.memory_space<vmem>>, vector<4x4x1x4x256xf32>,
    return
  }
  func.func @transform_0(%arg0: i32) -> (i32, i32, i32, i32) {
    %c0_i32 = arith.constant 0 : i32
    %c0_i32_0 = arith.constant 0 : i32
    %c0_i32_1 = arith.constant 0 : i32
    %c0_i32_2 = arith.constant 0 : i32
    return %arg0, %c0_i32, %c0_i32_0, %c0_i32_1 : i32, i32, i32, i32
  }
  func.func @transform_1(%arg0: i32) -> (i32, i32, i32, i32) {
    %c0_i32 = arith.constant 0 : i32
    %c0_i32_0 = arith.constant 0 : i32
    %c0_i32_1 = arith.constant 0 : i32
    %c0_i32_2 = arith.constant 0 : i32
    %c0_i32_3 = arith.constant 0 : i32
    return %c0_i32, %c0_i32_0, %c0_i32_1, %c0_i32_2 : i32, i32, i32, i32
  }
  func.func @transform_2(%arg0: i32) -> (i32, i32) {
    %c0_i32 = arith.constant 0 : i32
    %c0_i32_0 = arith.constant 0 : i32
    %c0_i32_1 = arith.constant 0 : i32
    return %c0_i32, %c0_i32_0 : i32, i32
  }
  func.func @transform_3(%arg0: i32) -> (i32, i32) {
    %c0_i32 = arith.constant 0 : i32
    %c0_i32_0 = arith.constant 0 : i32
    %c0_i32_1 = arith.constant 0 : i32
    return %c0_i32, %c0_i32_0 : i32, i32
  }
  func.func @transform_4(%arg0: i32) -> (i32, i32) {
    %c0_i32 = arith.constant 0 : i32
    %c0_i32_0 = arith.constant 0 : i32
    %c0_i32_1 = arith.constant 0 : i32
    return %c0_i32, %c0_i32_0 : i32, i32
  }
  func.func @transform_5(%arg0: i32) -> (i32, i32, i32, i32, i32) {
    %c0_i32 = arith.constant 0 : i32
    %c0_i32_0 = arith.constant 0 : i32
    %c0_i32_1 = arith.constant 0 : i32
    %c0_i32_2 = arith.constant 0 : i32
    %c0_i32_3 = arith.constant 0 : i32
    return %arg0, %c0_i32, %c0_i32_0, %c0_i32_1, %c0_i32_2 : i32, i32, i32, i32, i32
  }
}

</mosaic_0001>

<llo_original>
// kernel: generator_forward.5
$region0: #{generator_forward.5}
  #allocation0 [shape = 'u32[]', space=smem, size = 0x4, offset = 0x4, fixed_abs, tag = 'smem constant byte address 0x4 - core index']
  #allocation1 [shape = 'u32[144,128]{1,0:T(1,128)}', space=vmem, size = 0x12000, scoped, tag = 'internal scratch']
  #allocation2 [shape = 'f32[1,10,10,128]{3,2,1,0:T(8,128)}', space=vmem, size = 0x14000, scoped, tag = 'scratch operand']
  %s0 = inlined_call_operand.vmem [shape: f32[4,8,8,128], index: 0, kind: input, shape index: {}]
  %s1 = inlined_call_operand.vmem [shape: bf16[2,2,512,128], index: 1, kind: input, shape index: {}]
  %s2 = inlined_call_operand.vmem [shape: f32[1,128], index: 2, kind: input, shape index: {}]
  %s3 = inlined_call_operand.vmem [shape: f32[1,128], index: 3, kind: input, shape index: {}]
  %s4 = inlined_call_operand.vmem [shape: f32[1,128], index: 4, kind: input, shape index: {}]
  %s5 = inlined_call_operand.vmem [shape: f32[4,8,2,8,256], index: 5, kind: output, shape index: {}]
  %s6 = sld [smem:[#allocation0]]
  $region53: #{generator_forward.5} parent=0
    _
  %s8 = ssub.s32 1, %s6
  %s9 = scalar_select 0, %s8, %s6
  loop: start=0, step=1, limit=6
  $region2: #{generator_forward.5} parent=0 // loop_pre_header
    _
  $region3: #{generator_forward.5} parent=0 // loop_header
    %s11 = sphi 0, %s15
    %p12 = scmp.ge.s32.totalorder %s11, 6
    %s21 = sphi 0, %s23
    %s24 = sphi 0, %s21
    %s25 = sphi 0, %s24
    %s41 = sphi 0, %s25
    %s45 = sphi 0, %s45
    %s47 = sphi 0, %s45
    %s48 = sphi 0, %s47
    %s62 = sphi 0, %s48
    %s66 = sphi 0, %s66
    %s68 = sphi 0, %s66
    %s69 = sphi 0, %s68
    %s83 = sphi 0, %s69
    %s87 = sphi 0, %s87
    %s89 = sphi 0, %s87
    %s90 = sphi 0, %s89
    %s104 = sphi 0, %s90
    %s108 = sphi 0, %s108
    %s110 = sphi 0, %s108
    %s111 = sphi 0, %s110
    %s125 = sphi 0, %s111
    %s131 = sphi 0, %s133
    %s134 = sphi 0, %s131
    %s135 = sphi 0, %s134
    %s151 = sphi 0, %s135
  $region4: #{generator_forward.5} parent=0 // loop_header_branch
    %14 = sbr.rel (%p12) target = $region8
  $region5: #{generator_forward.5} parent=0 // loop_body
    %s16 = ssub.s32 %s11, 1
    %s17 = ssub.s32 %s11, 2
    %s18 = sadd.s32 %s11, 1
    %s19 = ssub.s32 %s11, %s18
    %p20 = scmp.eq.s32.totalorder %s19, 0
    %s22 = sadd.s32 %s21, 1
    %s23 = scalar_select %p20, %s21, %s22
    %p26 = pneg %p20
    %p27 = scmp.eq.s32.totalorder %s11, 3
    %p28 = por %p26, %p27
    %p29 = scmp.ne.s32.totalorder %s21, %s24
    %p30 = scmp.eq.s32.totalorder %s11, 0
    %p31 = por %p29, %p30
    %p32 = scmp.ne.s32.totalorder %s21, %s24
    %p33 = scmp.eq.s32.totalorder %s16, 3
    %p34 = por %p32, %p33
    %p35 = scmp.ne.s32.totalorder %s24, %s25
    %p36 = scmp.eq.s32.totalorder %s16, 0
    %p37 = por %p35, %p36
    %p38 = scmp.ne.s32.totalorder %s24, %s25
    %p39 = scmp.eq.s32.totalorder %s17, 3
    %p40 = por %p38, %p39
    %p42 = scmp.ne.s32.totalorder %s25, %s41
    %p43 = scmp.eq.s32.totalorder %s17, 0
    %p44 = por %p42, %p43
    %s46 = sadd.s32 %s45, 1
    %p49 = scmp.eq.s32.totalorder %s11, 3
    %p50 = scmp.ne.s32.totalorder %s45, %s47
    %p51 = scmp.eq.s32.totalorder %s11, 0
    %p52 = por %p50, %p51
    %p53 = scmp.ne.s32.totalorder %s45, %s47
    %p54 = scmp.eq.s32.totalorder %s16, 3
    %p55 = por %p53, %p54
    %p56 = scmp.ne.s32.totalorder %s47, %s48
    %p57 = scmp.eq.s32.totalorder %s16, 0
    %p58 = por %p56, %p57
    %p59 = scmp.ne.s32.totalorder %s47, %s48
    %p60 = scmp.eq.s32.totalorder %s17, 3
    %p61 = por %p59, %p60
    %p63 = scmp.ne.s32.totalorder %s48, %s62
    %p64 = scmp.eq.s32.totalorder %s17, 0
    %p65 = por %p63, %p64
    %s67 = sadd.s32 %s66, 1
    %p70 = scmp.eq.s32.totalorder %s11, 3
    %p71 = scmp.ne.s32.totalorder %s66, %s68
    %p72 = scmp.eq.s32.totalorder %s11, 0
    %p73 = por %p71, %p72
    %p74 = scmp.ne.s32.totalorder %s66, %s68
    %p75 = scmp.eq.s32.totalorder %s16, 3
    %p76 = por %p74, %p75
    %p77 = scmp.ne.s32.totalorder %s68, %s69
    %p78 = scmp.eq.s32.totalorder %s16, 0
    %p79 = por %p77, %p78
    %p80 = scmp.ne.s32.totalorder %s68, %s69
    %p81 = scmp.eq.s32.totalorder %s17, 3
    %p82 = por %p80, %p81
    %p84 = scmp.ne.s32.totalorder %s69, %s83
    %p85 = scmp.eq.s32.totalorder %s17, 0
    %p86 = por %p84, %p85
    %s88 = sadd.s32 %s87, 1
    %p91 = scmp.eq.s32.totalorder %s11, 3
    %p92 = scmp.ne.s32.totalorder %s87, %s89
    %p93 = scmp.eq.s32.totalorder %s11, 0
    %p94 = por %p92, %p93
    %p95 = scmp.ne.s32.totalorder %s87, %s89
    %p96 = scmp.eq.s32.totalorder %s16, 3
    %p97 = por %p95, %p96
    %p98 = scmp.ne.s32.totalorder %s89, %s90
    %p99 = scmp.eq.s32.totalorder %s16, 0
    %p100 = por %p98, %p99
    %p101 = scmp.ne.s32.totalorder %s89, %s90
    %p102 = scmp.eq.s32.totalorder %s17, 3
    %p103 = por %p101, %p102
    %p105 = scmp.ne.s32.totalorder %s90, %s104
    %p106 = scmp.eq.s32.totalorder %s17, 0
    %p107 = por %p105, %p106
    %s109 = sadd.s32 %s108, 1
    %p112 = scmp.eq.s32.totalorder %s11, 3
    %p113 = scmp.ne.s32.totalorder %s108, %s110
    %p114 = scmp.eq.s32.totalorder %s11, 0
    %p115 = por %p113, %p114
    %p116 = scmp.ne.s32.totalorder %s108, %s110
    %p117 = scmp.eq.s32.totalorder %s16, 3
    %p118 = por %p116, %p117
    %p119 = scmp.ne.s32.totalorder %s110, %s111
    %p120 = scmp.eq.s32.totalorder %s16, 0
    %p121 = por %p119, %p120
    %p122 = scmp.ne.s32.totalorder %s110, %s111
    %p123 = scmp.eq.s32.totalorder %s17, 3
    %p124 = por %p122, %p123
    %p126 = scmp.ne.s32.totalorder %s111, %s125
    %p127 = scmp.eq.s32.totalorder %s17, 0
    %p128 = por %p126, %p127
    %s129 = ssub.s32 %s11, %s18
    %p130 = scmp.eq.s32.totalorder %s129, 0
    %s132 = sadd.s32 %s131, 1
    %s133 = scalar_select %p130, %s131, %s132
    %p136 = pneg %p130
    %p137 = scmp.eq.s32.totalorder %s11, 3
    %p138 = por %p136, %p137
    %p139 = scmp.ne.s32.totalorder %s131, %s134
    %p140 = scmp.eq.s32.totalorder %s11, 0
    %p141 = por %p139, %p140
    %p142 = scmp.ne.s32.totalorder %s131, %s134
    %p143 = scmp.eq.s32.totalorder %s16, 3
    %p144 = por %p142, %p143
    %p145 = scmp.ne.s32.totalorder %s134, %s135
    %p146 = scmp.eq.s32.totalorder %s16, 0
    %p147 = por %p145, %p146
    %p148 = scmp.ne.s32.totalorder %s134, %s135
    %p149 = scmp.eq.s32.totalorder %s17, 3
    %p150 = por %p148, %p149
    %p152 = scmp.ne.s32.totalorder %s135, %s151
    %p153 = scmp.eq.s32.totalorder %s17, 0
    %p154 = por %p152, %p153
    %p155 = scmp.le.s32.totalorder 1, %s11
    %p156 = scmp.lt.s32.totalorder %s11, 5
    %p157 = pnand %p155, %p156
    %p158 = pneg %p157
    // Predicated region
    $region9: #{generator_forward.5} parent=5 // pred_check
      _
    $region10: #{generator_forward.5} parent=5 // pred_check_branch
      %160 = sbr.rel (%p157) target = $region12
    $region11: #{generator_forward.5} parent=5 // pred_region
      %s161 = ssub.s32 %s11, 1
      // Predicated region
      $region13: #{generator_forward.5} parent=11 // pred_check
        %p162 = pneg %p58
      $region14: #{generator_forward.5} parent=11 // pred_check_branch
        %164 = sbr.rel (%p162) target = $region16
      $region15: #{generator_forward.5} parent=11 // pred_region
        _
      $region16: #{generator_forward.5} parent=11 // pred_fallthru
        _
      // Predicated region
      $region17: #{generator_forward.5} parent=11 // pred_check
        %p165 = pneg %p79
      $region18: #{generator_forward.5} parent=11 // pred_check_branch
        %167 = sbr.rel (%p165) target = $region20
      $region19: #{generator_forward.5} parent=11 // pred_region
        _
      $region20: #{generator_forward.5} parent=11 // pred_fallthru
        _
      // Predicated region
      $region21: #{generator_forward.5} parent=11 // pred_check
        %p168 = pneg %p100
      $region22: #{generator_forward.5} parent=11 // pred_check_branch
        %170 = sbr.rel (%p168) target = $region24
      $region23: #{generator_forward.5} parent=11 // pred_region
        _
      $region24: #{generator_forward.5} parent=11 // pred_fallthru
        _
      // Predicated region
      $region25: #{generator_forward.5} parent=11 // pred_check
        %p171 = pneg %p121
      $region26: #{generator_forward.5} parent=11 // pred_check_branch
        %173 = sbr.rel (%p171) target = $region28
      $region27: #{generator_forward.5} parent=11 // pred_region
        _
      $region28: #{generator_forward.5} parent=11 // pred_fallthru
        _
    $region12: #{generator_forward.5} parent=5 // pred_fallthru
      _
    %p174 = scmp.lt.s32.totalorder %s11, 4
    // Predicated region
    $region29: #{generator_forward.5} parent=5 // pred_check
      %p175 = pneg %p174
    $region30: #{generator_forward.5} parent=5 // pred_check_branch
      %177 = sbr.rel (%p175) target = $region32
    $region31: #{generator_forward.5} parent=5 // pred_region
      // Predicated region
      $region33: #{generator_forward.5} parent=31 // pred_check
        %p178 = pneg %p31
      $region34: #{generator_forward.5} parent=31 // pred_check_branch
        %180 = sbr.rel (%p178) target = $region36
      $region35: #{generator_forward.5} parent=31 // pred_region
        %p181 = scmp.lt.s32.totalorder %s11, 3
        %s182 = scalar_select %p181, %s11, 3
        %s183 = smul.addr %s182, 8
        %s184 = smul.addr %s183, 8
        %s185 = scalar_lea.vmem %s0, %s184
      $region36: #{generator_forward.5} parent=31 // pred_fallthru
        _
    $region32: #{generator_forward.5} parent=5 // pred_fallthru
      _
    %p186 = scmp.le.s32.totalorder 1, %s11
    %p187 = scmp.lt.s32.totalorder %s11, 5
    %p188 = pnand %p186, %p187
    %p189 = pneg %p188
    // Predicated region
    $region37: #{generator_forward.5} parent=5 // pred_check
      _
    $region38: #{generator_forward.5} parent=5 // pred_check_branch
      %191 = sbr.rel (%p188) target = $region40
    $region39: #{generator_forward.5} parent=5 // pred_region
      %s192 = ssub.s32 %s11, 1
      %p193 = scmp.lt.s32.totalorder %s16, 3
      %s194 = scalar_select %p193, %s16, 3
      %s195 = smul.addr %s194, 8
      %s196 = smul.addr %s195, 8
      %s197 = scalar_lea.vmem %s0, %s196
      %p198 = pneg %p37
      %p199 = pneg %p34
      %p200 = pneg %p58
      %p201 = pneg %p55
      %p202 = pneg %p79
      %p203 = pneg %p76
      %p204 = pneg %p100
      %p205 = pneg %p97
      %p206 = pneg %p121
      %p207 = pneg %p118
      %p208 = pneg %p147
      %p209 = pneg %p144
      %p210 = scmp.lt.s32.totalorder %s16, 3
      %s211 = scalar_select %p210, %s16, 3
      %s212 = smul.addr %s211, 32
      %s213 = smul.addr %s212, 8
      %s214 = scalar_lea.vmem %s5, %s213
      %p215 = scmp.lt.s32.totalorder %s16, 3
      %s216 = scalar_select %p215, %s16, 3
      %s217 = smul.addr %s216, 8
      %s218 = smul.addr %s217, 8
      %s219 = scalar_lea.vmem %s0, %s218
      %p220 = scmp.lt.s32.totalorder %s16, 3
      %s221 = scalar_select %p220, %s16, 3
      %s222 = smul.addr %s221, 32
      %s223 = smul.addr %s222, 8
      %s224 = scalar_lea.vmem %s5, %s223
      %225 = vst [vmem:[#allocation2] sm:$0xff] 0.0
      %226 = vst [vmem:[#allocation2 + $0x8] sm:$0x3] 0.0
      %227 = vst [vmem:[#allocation2 + $0x10] sm:$0xff] 0.0
      %228 = vst [vmem:[#allocation2 + $0x18] sm:$0x3] 0.0
      %229 = vst [vmem:[#allocation2 + $0x20] sm:$0xff] 0.0
      %230 = vst [vmem:[#allocation2 + $0x28] sm:$0x3] 0.0
      %231 = vst [vmem:[#allocation2 + $0x30] sm:$0xff] 0.0
      %232 = vst [vmem:[#allocation2 + $0x38] sm:$0x3] 0.0
      %233 = vst [vmem:[#allocation2 + $0x40] sm:$0xff] 0.0
      %234 = vst [vmem:[#allocation2 + $0x48] sm:$0x3] 0.0
      %235 = vst [vmem:[#allocation2 + $0x50] sm:$0xff] 0.0
      %236 = vst [vmem:[#allocation2 + $0x58] sm:$0x3] 0.0
      %237 = vst [vmem:[#allocation2 + $0x60] sm:$0xff] 0.0
      %238 = vst [vmem:[#allocation2 + $0x68] sm:$0x3] 0.0
      %239 = vst [vmem:[#allocation2 + $0x70] sm:$0xff] 0.0
      %240 = vst [vmem:[#allocation2 + $0x78] sm:$0x3] 0.0
      %241 = vst [vmem:[#allocation2 + $0x80] sm:$0xff] 0.0
      %242 = vst [vmem:[#allocation2 + $0x88] sm:$0x3] 0.0
      %243 = vst [vmem:[#allocation2 + $0x90] sm:$0xff] 0.0
      %244 = vst [vmem:[#allocation2 + $0x98] sm:$0x3] 0.0
      %v245 = vld [vmem:[%s219] sm:$0xff]
      %v246 = vld [vmem:[%s219 + $0x8] sm:$0xff]
      %v247 = vld [vmem:[%s219 + $0x10] sm:$0xff]
      %v248 = vld [vmem:[%s219 + $0x18] sm:$0xff]
      %v249 = vld [vmem:[%s219 + $0x20] sm:$0xff]
      %v250 = vld [vmem:[%s219 + $0x28] sm:$0xff]
      %v251 = vld [vmem:[%s219 + $0x30] sm:$0xff]
      %v252 = vld [vmem:[%s219 + $0x38] sm:$0xff]
      %s253 = scalar_lea.vmem [#allocation2], 16
      %254 = vst [vmem:[%s253 + $0x1] sm:$0xff] %v245
      %255 = vst [vmem:[%s253 + $0x11] sm:$0xff] %v246
      %256 = vst [vmem:[%s253 + $0x21] sm:$0xff] %v247
      %257 = vst [vmem:[%s253 + $0x31] sm:$0xff] %v248
      %258 = vst [vmem:[%s253 + $0x41] sm:$0xff] %v249
      %259 = vst [vmem:[%s253 + $0x51] sm:$0xff] %v250
      %260 = vst [vmem:[%s253 + $0x61] sm:$0xff] %v251
      %261 = vst [vmem:[%s253 + $0x71] sm:$0xff] %v252
      %v262 = vld [vmem:[#allocation2] sm:$0xff]
      %v263 = vld [vmem:[#allocation2 + $0x10] sm:$0xff]
      %v264 = vld [vmem:[#allocation2 + $0x20] sm:$0xff]
      %v265 = vld [vmem:[#allocation2 + $0x30] sm:$0xff]
      %v266 = vld [vmem:[#allocation2 + $0x40] sm:$0xff]
      %v267 = vld [vmem:[#allocation2 + $0x50] sm:$0xff]
      %v268 = vld [vmem:[#allocation2 + $0x60] sm:$0xff]
      %v269 = vld [vmem:[#allocation2 + $0x70] sm:$0xff]
      %v270 = vld [vmem:[#allocation2 + $0x1] sm:$0xff]
      %v271 = vld [vmem:[#allocation2 + $0x11] sm:$0xff]
      %v272 = vld [vmem:[#allocation2 + $0x21] sm:$0xff]
      %v273 = vld [vmem:[#allocation2 + $0x31] sm:$0xff]
      %v274 = vld [vmem:[#allocation2 + $0x41] sm:$0xff]
      %v275 = vld [vmem:[#allocation2 + $0x51] sm:$0xff]
      %v276 = vld [vmem:[#allocation2 + $0x61] sm:$0xff]
      %v277 = vld [vmem:[#allocation2 + $0x71] sm:$0xff]
      %v278 = vld [vmem:[#allocation2 + $0x2] sm:$0xff]
      %v279 = vld [vmem:[#allocation2 + $0x12] sm:$0xff]
      %v280 = vld [vmem:[#allocation2 + $0x22] sm:$0xff]
      %v281 = vld [vmem:[#allocation2 + $0x32] sm:$0xff]
      %v282 = vld [vmem:[#allocation2 + $0x42] sm:$0xff]
      %v283 = vld [vmem:[#allocation2 + $0x52] sm:$0xff]
      %v284 = vld [vmem:[#allocation2 + $0x62] sm:$0xff]
      %v285 = vld [vmem:[#allocation2 + $0x72] sm:$0xff]
      %v286 = vld [vmem:[%s253] sm:$0xff]
      %v287 = vld [vmem:[%s253 + $0x10] sm:$0xff]
      %v288 = vld [vmem:[%s253 + $0x20] sm:$0xff]
      %v289 = vld [vmem:[%s253 + $0x30] sm:$0xff]
      %v290 = vld [vmem:[%s253 + $0x40] sm:$0xff]
      %v291 = vld [vmem:[%s253 + $0x50] sm:$0xff]
      %v292 = vld [vmem:[%s253 + $0x60] sm:$0xff]
      %v293 = vld [vmem:[%s253 + $0x70] sm:$0xff]
      %v294 = vld [vmem:[%s253 + $0x1] sm:$0xff]
      %v295 = vld [vmem:[%s253 + $0x11] sm:$0xff]
      %v296 = vld [vmem:[%s253 + $0x21] sm:$0xff]
      %v297 = vld [vmem:[%s253 + $0x31] sm:$0xff]
      %v298 = vld [vmem:[%s253 + $0x41] sm:$0xff]
      %v299 = vld [vmem:[%s253 + $0x51] sm:$0xff]
      %v300 = vld [vmem:[%s253 + $0x61] sm:$0xff]
      %v301 = vld [vmem:[%s253 + $0x71] sm:$0xff]
      %v302 = vld [vmem:[%s253 + $0x2] sm:$0xff]
      %v303 = vld [vmem:[%s253 + $0x12] sm:$0xff]
      %v304 = vld [vmem:[%s253 + $0x22] sm:$0xff]
      %v305 = vld [vmem:[%s253 + $0x32] sm:$0xff]
      %v306 = vld [vmem:[%s253 + $0x42] sm:$0xff]
      %v307 = vld [vmem:[%s253 + $0x52] sm:$0xff]
      %v308 = vld [vmem:[%s253 + $0x62] sm:$0xff]
      %v309 = vld [vmem:[%s253 + $0x72] sm:$0xff]
      %s310 = scalar_lea.vmem [#allocation2], 32
      %v311 = vld [vmem:[%s310] sm:$0xff]
      %v312 = vld [vmem:[%s310 + $0x10] sm:$0xff]
      %v313 = vld [vmem:[%s310 + $0x20] sm:$0xff]
      %v314 = vld [vmem:[%s310 + $0x30] sm:$0xff]
      %v315 = vld [vmem:[%s310 + $0x40] sm:$0xff]
      %v316 = vld [vmem:[%s310 + $0x50] sm:$0xff]
      %v317 = vld [vmem:[%s310 + $0x60] sm:$0xff]
      %v318 = vld [vmem:[%s310 + $0x70] sm:$0xff]
      %v319 = vld [vmem:[%s310 + $0x1] sm:$0xff]
      %v320 = vld [vmem:[%s310 + $0x11] sm:$0xff]
      %v321 = vld [vmem:[%s310 + $0x21] sm:$0xff]
      %v322 = vld [vmem:[%s310 + $0x31] sm:$0xff]
      %v323 = vld [vmem:[%s310 + $0x41] sm:$0xff]
      %v324 = vld [vmem:[%s310 + $0x51] sm:$0xff]
      %v325 = vld [vmem:[%s310 + $0x61] sm:$0xff]
      %v326 = vld [vmem:[%s310 + $0x71] sm:$0xff]
      %v327 = vld [vmem:[%s310 + $0x2] sm:$0xff]
      %v328 = vld [vmem:[%s310 + $0x12] sm:$0xff]
      %v329 = vld [vmem:[%s310 + $0x22] sm:$0xff]
      %v330 = vld [vmem:[%s310 + $0x32] sm:$0xff]
      %v331 = vld [vmem:[%s310 + $0x42] sm:$0xff]
      %v332 = vld [vmem:[%s310 + $0x52] sm:$0xff]
      %v333 = vld [vmem:[%s310 + $0x62] sm:$0xff]
      %v334 = vld [vmem:[%s310 + $0x72] sm:$0xff]
      %v335 = vld [vmem:[%s1] sm:$0xf]
      %v336 = vld [vmem:[%s1 + $0x4] sm:$0xf]
      %v337 = vld [vmem:[%s1 + $0x8] sm:$0xf]
      %v338 = vld [vmem:[%s1 + $0xc] sm:$0xf]
      %v339 = vld [vmem:[%s1 + $0x10] sm:$0xf]
      %v340 = vld [vmem:[%s1 + $0x14] sm:$0xf]
      %v341 = vld [vmem:[%s1 + $0x18] sm:$0xf]
      %v342 = vld [vmem:[%s1 + $0x1c] sm:$0xf]
      %v343 = vld [vmem:[%s1 + $0x20] sm:$0xf]
      %v344 = vld [vmem:[%s1 + $0x24] sm:$0xf]
      %v345 = vld [vmem:[%s1 + $0x28] sm:$0xf]
      %v346 = vld [vmem:[%s1 + $0x2c] sm:$0xf]
      %v347 = vld [vmem:[%s1 + $0x30] sm:$0xf]
      %v348 = vld [vmem:[%s1 + $0x34] sm:$0xf]
      %v349 = vld [vmem:[%s1 + $0x38] sm:$0xf]
      %v350 = vld [vmem:[%s1 + $0x3c] sm:$0xf]
      %v351 = vld [vmem:[%s1 + $0x40] sm:$0xf]
      %v352 = vld [vmem:[%s1 + $0x44] sm:$0xf]
      %v353 = vld [vmem:[%s1 + $0x48] sm:$0xf]
      %v354 = vld [vmem:[%s1 + $0x4c] sm:$0xf]
      %v355 = vld [vmem:[%s1 + $0x50] sm:$0xf]
      %v356 = vld [vmem:[%s1 + $0x54] sm:$0xf]
      %v357 = vld [vmem:[%s1 + $0x58] sm:$0xf]
      %v358 = vld [vmem:[%s1 + $0x5c] sm:$0xf]
      %v359 = vld [vmem:[%s1 + $0x60] sm:$0xf]
      %v360 = vld [vmem:[%s1 + $0x64] sm:$0xf]
      %v361 = vld [vmem:[%s1 + $0x68] sm:$0xf]
      %v362 = vld [vmem:[%s1 + $0x6c] sm:$0xf]
      %v363 = vld [vmem:[%s1 + $0x70] sm:$0xf]
      %v364 = vld [vmem:[%s1 + $0x74] sm:$0xf]
      %v365 = vld [vmem:[%s1 + $0x78] sm:$0xf]
      %v366 = vld [vmem:[%s1 + $0x7c] sm:$0xf]
      %v367 = vld [vmem:[%s1 + $0x80] sm:$0xf]
      %v368 = vld [vmem:[%s1 + $0x84] sm:$0xf]
      %v369 = vld [vmem:[%s1 + $0x88] sm:$0xf]
      %v370 = vld [vmem:[%s1 + $0x8c] sm:$0xf]
      %v371 = vld [vmem:[%s1 + $0x90] sm:$0xf]
      %v372 = vld [vmem:[%s1 + $0x94] sm:$0xf]
      %v373 = vld [vmem:[%s1 + $0x98] sm:$0xf]
      %v374 = vld [vmem:[%s1 + $0x9c] sm:$0xf]
      %v375 = vld [vmem:[%s1 + $0xa0] sm:$0xf]
      %v376 = vld [vmem:[%s1 + $0xa4] sm:$0xf]
      %v377 = vld [vmem:[%s1 + $0xa8] sm:$0xf]
      %v378 = vld [vmem:[%s1 + $0xac] sm:$0xf]
      %v379 = vld [vmem:[%s1 + $0xb0] sm:$0xf]
      %v380 = vld [vmem:[%s1 + $0xb4] sm:$0xf]
      %v381 = vld [vmem:[%s1 + $0xb8] sm:$0xf]
      %v382 = vld [vmem:[%s1 + $0xbc] sm:$0xf]
      %v383 = vld [vmem:[%s1 + $0xc0] sm:$0xf]
      %v384 = vld [vmem:[%s1 + $0xc4] sm:$0xf]
      %v385 = vld [vmem:[%s1 + $0xc8] sm:$0xf]
      %v386 = vld [vmem:[%s1 + $0xcc] sm:$0xf]
      %v387 = vld [vmem:[%s1 + $0xd0] sm:$0xf]
      %v388 = vld [vmem:[%s1 + $0xd4] sm:$0xf]
      %v389 = vld [vmem:[%s1 + $0xd8] sm:$0xf]
      %v390 = vld [vmem:[%s1 + $0xdc] sm:$0xf]
      %v391 = vld [vmem:[%s1 + $0xe0] sm:$0xf]
      %v392 = vld [vmem:[%s1 + $0xe4] sm:$0xf]
      %v393 = vld [vmem:[%s1 + $0xe8] sm:$0xf]
      %v394 = vld [vmem:[%s1 + $0xec] sm:$0xf]
      %v395 = vld [vmem:[%s1 + $0xf0] sm:$0xf]
      %v396 = vld [vmem:[%s1 + $0xf4] sm:$0xf]
      %v397 = vld [vmem:[%s1 + $0xf8] sm:$0xf]
      %v398 = vld [vmem:[%s1 + $0xfc] sm:$0xf]
      %v399 = vunpack.c.l.bf16 %v335
      %v400 = vunpack.c.l.bf16 %v336
      %v401 = vunpack.c.l.bf16 %v337
      %v402 = vunpack.c.l.bf16 %v338
      %v403 = vunpack.c.l.bf16 %v339
      %v404 = vunpack.c.l.bf16 %v340
      %v405 = vunpack.c.l.bf16 %v341
      %v406 = vunpack.c.l.bf16 %v342
      %v407 = vunpack.c.l.bf16 %v343
      %v408 = vunpack.c.l.bf16 %v344
      %v409 = vunpack.c.l.bf16 %v345
      %v410 = vunpack.c.l.bf16 %v346
      %v411 = vunpack.c.l.bf16 %v347
      %v412 = vunpack.c.l.bf16 %v348
      %v413 = vunpack.c.l.bf16 %v349
      %v414 = vunpack.c.l.bf16 %v350
      %v415 = vunpack.c.l.bf16 %v351
      %v416 = vunpack.c.l.bf16 %v352
      %v417 = vunpack.c.l.bf16 %v353
      %v418 = vunpack.c.l.bf16 %v354
      %v419 = vunpack.c.l.bf16 %v355
      %v420 = vunpack.c.l.bf16 %v356
      %v421 = vunpack.c.l.bf16 %v357
      %v422 = vunpack.c.l.bf16 %v358
      %v423 = vunpack.c.l.bf16 %v359
      %v424 = vunpack.c.l.bf16 %v360
      %v425 = vunpack.c.l.bf16 %v361
      %v426 = vunpack.c.l.bf16 %v362
      %v427 = vunpack.c.l.bf16 %v363
      %v428 = vunpack.c.l.bf16 %v364
      %v429 = vunpack.c.l.bf16 %v365
      %v430 = vunpack.c.l.bf16 %v366
      %v431 = vunpack.c.l.bf16 %v367
      %v432 = vunpack.c.l.bf16 %v368
      %v433 = vunpack.c.l.bf16 %v369
      %v434 = vunpack.c.l.bf16 %v370
      %v435 = vunpack.c.l.bf16 %v371
      %v436 = vunpack.c.l.bf16 %v372
      %v437 = vunpack.c.l.bf16 %v373
      %v438 = vunpack.c.l.bf16 %v374
      %v439 = vunpack.c.l.bf16 %v375
      %v440 = vunpack.c.l.bf16 %v376
      %v441 = vunpack.c.l.bf16 %v377
      %v442 = vunpack.c.l.bf16 %v378
      %v443 = vunpack.c.l.bf16 %v379
      %v444 = vunpack.c.l.bf16 %v380
      %v445 = vunpack.c.l.bf16 %v381
      %v446 = vunpack.c.l.bf16 %v382
      %v447 = vunpack.c.l.bf16 %v383
      %v448 = vunpack.c.l.bf16 %v384
      %v449 = vunpack.c.l.bf16 %v385
      %v450 = vunpack.c.l.bf16 %v386
      %v451 = vunpack.c.l.bf16 %v387
      %v452 = vunpack.c.l.bf16 %v388
      %v453 = vunpack.c.l.bf16 %v389
      %v454 = vunpack.c.l.bf16 %v390
      %v455 = vunpack.c.l.bf16 %v391
      %v456 = vunpack.c.l.bf16 %v392
      %v457 = vunpack.c.l.bf16 %v393
      %v458 = vunpack.c.l.bf16 %v394
      %v459 = vunpack.c.l.bf16 %v395
      %v460 = vunpack.c.l.bf16 %v396
      %v461 = vunpack.c.l.bf16 %v397
      %v462 = vunpack.c.l.bf16 %v398
      %v463 = vld [vmem:[%s2] sm:$0x1]
      %v465 = vlaneseq
      %v466 = vshrl.u32 %v465, 7
      %v467 = vsub.s32 0, %v466
      %v468 = vrot.slane %v463, %v467
      %470 = vmatprep.subr.mxu0 0.0
      %471 = vmatpush1.msra.mxu0 %v399
      %472 = vmatprep.subr.mxu0 0.0
      %473 = vmatpush1.msra.mxu0 %v400
      %474 = vmatprep.subr.mxu0 0.0
      %475 = vmatpush1.msra.mxu0 %v401
      %476 = vmatprep.subr.mxu0 0.0
      %477 = vmatpush1.msra.mxu0 %v402
      %478 = vmatprep.subr.mxu0 0.0
      %479 = vmatpush1.msra.mxu0 %v403
      %480 = vmatprep.subr.mxu0 0.0
      %481 = vmatpush1.msra.mxu0 %v404
      %482 = vmatprep.subr.mxu0 0.0
      %483 = vmatpush1.msra.mxu0 %v405
      %484 = vmatprep.subr.mxu0 0.0
      %485 = vmatpush1.msra.mxu0 %v406
      %486 = vmatprep.subr.mxu0 0.0
      %487 = vmatpush1.msra.mxu0 %v407
      %488 = vmatprep.subr.mxu0 0.0
      %489 = vmatpush1.msra.mxu0 %v408
      %490 = vmatprep.subr.mxu0 0.0
      %491 = vmatpush1.msra.mxu0 %v409
      %492 = vmatprep.subr.mxu0 0.0
      %493 = vmatpush1.msra.mxu0 %v410
      %494 = vmatprep.subr.mxu0 0.0
      %495 = vmatpush1.msra.mxu0 %v411
      %496 = vmatprep.subr.mxu0 0.0
      %497 = vmatpush1.msra.mxu0 %v412
      %498 = vmatprep.subr.mxu0 0.0
      %499 = vmatpush1.msra.mxu0 %v413
      %500 = vmatprep.subr.mxu0 0.0
      %501 = vmatpush1.msra.mxu0 %v414
      %502 = vmatprep.subr.mxu0 0.0
      %503 = vmatpush1.msra.mxu0 %v415
      %504 = vmatprep.subr.mxu0 0.0
      %505 = vmatpush1.msra.mxu0 %v416
      %506 = vmatprep.subr.mxu0 0.0
      %507 = vmatpush1.msra.mxu0 %v417
      %508 = vmatprep.subr.mxu0 0.0
      %509 = vmatpush1.msra.mxu0 %v418
      %510 = vmatprep.subr.mxu0 0.0
      %511 = vmatpush1.msra.mxu0 %v419
      %512 = vmatprep.subr.mxu0 0.0
      %513 = vmatpush1.msra.mxu0 %v420
      %514 = vmatprep.subr.mxu0 0.0
      %515 = vmatpush1.msra.mxu0 %v421
      %516 = vmatprep.subr.mxu0 0.0
      %517 = vmatpush1.msra.mxu0 %v422
      %518 = vmatprep.subr.mxu0 0.0
      %519 = vmatpush1.msra.mxu0 %v423
      %520 = vmatprep.subr.mxu0 0.0
      %521 = vmatpush1.msra.mxu0 %v424
      %522 = vmatprep.subr.mxu0 0.0
      %523 = vmatpush1.msra.mxu0 %v425
      %524 = vmatprep.subr.mxu0 0.0
      %525 = vmatpush1.msra.mxu0 %v426
      %526 = vmatprep.subr.mxu0 0.0
      %527 = vmatpush1.msra.mxu0 %v427
      %528 = vmatprep.subr.mxu0 0.0
      %529 = vmatpush1.msra.mxu0 %v428
      %530 = vmatprep.subr.mxu0 0.0
      %531 = vmatpush1.msra.mxu0 %v429
      %532 = vmatprep.subr.mxu0 0.0
      %533 = vmatpush1.msra.mxu0 %v430
      %534 = vmatprep.mubr.f32.mxu0 %v270
      %535 = vmatmul.mubr.f32.gmra.mrb[0].mxu0 %v262
      %v536 = vpop.f32.mrb[0].mxu0
      %v537 = vadd.f32 %v468, %v536
      %v538 = vpop.f32.mrb[0].mxu0
      %539 = vmatprep.mubr.f32.mxu0 %v271
      %540 = vmatmul.mubr.f32.gmra.mrb[0].mxu0 %v263
      %v541 = vpop.f32.mrb[0].mxu0
      %v542 = vadd.f32 %v468, %v541
      %v543 = vpop.f32.mrb[0].mxu0
      %544 = vmatprep.mubr.f32.mxu0 %v272
      %545 = vmatmul.mubr.f32.gmra.mrb[0].mxu0 %v264
      %v546 = vpop.f32.mrb[0].mxu0
      %v547 = vadd.f32 %v468, %v546
      %v548 = vpop.f32.mrb[0].mxu0
      %549 = vmatprep.mubr.f32.mxu0 %v273
      %550 = vmatmul.mubr.f32.gmra.mrb[0].mxu0 %v265
      %v551 = vpop.f32.mrb[0].mxu0
      %v552 = vadd.f32 %v468, %v551
      %v553 = vpop.f32.mrb[0].mxu0
      %554 = vmatprep.mubr.f32.mxu0 %v274
      %555 = vmatmul.mubr.f32.gmra.mrb[0].mxu0 %v266
      %v556 = vpop.f32.mrb[0].mxu0
      %v557 = vadd.f32 %v468, %v556
      %v558 = vpop.f32.mrb[0].mxu0
      %559 = vmatprep.mubr.f32.mxu0 %v275
      %560 = vmatmul.mubr.f32.gmra.mrb[0].mxu0 %v267
      %v561 = vpop.f32.mrb[0].mxu0
      %v562 = vadd.f32 %v468, %v561
      %v563 = vpop.f32.mrb[0].mxu0
      %564 = vmatprep.mubr.f32.mxu0 %v276
      %565 = vmatmul.mubr.f32.gmra.mrb[0].mxu0 %v268
      %v566 = vpop.f32.mrb[0].mxu0
      %v567 = vadd.f32 %v468, %v566
      %v568 = vpop.f32.mrb[0].mxu0
      %569 = vmatprep.mubr.f32.mxu0 %v277
      %570 = vmatmul.mubr.f32.gmra.mrb[0].mxu0 %v269
      %v571 = vpop.f32.mrb[0].mxu0
      %v572 = vadd.f32 %v468, %v571
      %v573 = vpop.f32.mrb[0].mxu0
      %574 = vdwg.mxu0
      %575 = vmatprep.subr.mxu0 0.0
      %576 = vmatpush1.msra.mxu0 %v431
      %577 = vmatprep.subr.mxu0 0.0
      %578 = vmatpush1.msra.mxu0 %v432
      %579 = vmatprep.subr.mxu0 0.0
      %580 = vmatpush1.msra.mxu0 %v433
      %581 = vmatprep.subr.mxu0 0.0
      %582 = vmatpush1.msra.mxu0 %v434
      %583 = vmatprep.subr.mxu0 0.0
      %584 = vmatpush1.msra.mxu0 %v435
      %585 = vmatprep.subr.mxu0 0.0
      %586 = vmatpush1.msra.mxu0 %v436
      %587 = vmatprep.subr.mxu0 0.0
      %588 = vmatpush1.msra.mxu0 %v437
      %589 = vmatprep.subr.mxu0 0.0
      %590 = vmatpush1.msra.mxu0 %v438
      %591 = vmatprep.subr.mxu0 0.0
      %592 = vmatpush1.msra.mxu0 %v439
      %593 = vmatprep.subr.mxu0 0.0
      %594 = vmatpush1.msra.mxu0 %v440
      %595 = vmatprep.subr.mxu0 0.0
      %596 = vmatpush1.msra.mxu0 %v441
      %597 = vmatprep.subr.mxu0 0.0
      %598 = vmatpush1.msra.mxu0 %v442
      %599 = vmatprep.subr.mxu0 0.0
      %600 = vmatpush1.msra.mxu0 %v443
      %601 = vmatprep.subr.mxu0 0.0
      %602 = vmatpush1.msra.mxu0 %v444
      %603 = vmatprep.subr.mxu0 0.0
      %604 = vmatpush1.msra.mxu0 %v445
      %605 = vmatprep.subr.mxu0 0.0
      %606 = vmatpush1.msra.mxu0 %v446
      %607 = vmatprep.subr.mxu0 0.0
      %608 = vmatpush1.msra.mxu0 %v447
      %609 = vmatprep.subr.mxu0 0.0
      %610 = vmatpush1.msra.mxu0 %v448
      %611 = vmatprep.subr.mxu0 0.0
      %612 = vmatpush1.msra.mxu0 %v449
      %613 = vmatprep.subr.mxu0 0.0
      %614 = vmatpush1.msra.mxu0 %v450
      %615 = vmatprep.subr.mxu0 0.0
      %616 = vmatpush1.msra.mxu0 %v451
      %617 = vmatprep.subr.mxu0 0.0
      %618 = vmatpush1.msra.mxu0 %v452
      %619 = vmatprep.subr.mxu0 0.0
      %620 = vmatpush1.msra.mxu0 %v453
      %621 = vmatprep.subr.mxu0 0.0
      %622 = vmatpush1.msra.mxu0 %v454
      %623 = vmatprep.subr.mxu0 0.0
      %624 = vmatpush1.msra.mxu0 %v455
      %625 = vmatprep.subr.mxu0 0.0
      %626 = vmatpush1.msra.mxu0 %v456
      %627 = vmatprep.subr.mxu0 0.0
      %628 = vmatpush1.msra.mxu0 %v457
      %629 = vmatprep.subr.mxu0 0.0
      %630 = vmatpush1.msra.mxu0 %v458
      %631 = vmatprep.subr.mxu0 0.0
      %632 = vmatpush1.msra.mxu0 %v459
      %633 = vmatprep.subr.mxu0 0.0
      %634 = vmatpush1.msra.mxu0 %v460
      %635 = vmatprep.subr.mxu0 0.0
      %636 = vmatpush1.msra.mxu0 %v461
      %637 = vmatprep.subr.mxu0 0.0
      %638 = vmatpush1.msra.mxu0 %v462
      %639 = vmatprep.mubr.f32.mxu0 %v294
      %640 = vmatmul.mubr.f32.gmra.mrb[0].mxu0 %v286
      %v641 = vpop.f32.mrb[0].mxu0
      %v642 = vadd.f32 %v537, %v641
      %v643 = vpop.f32.mrb[0].mxu0
      %644 = vmatprep.mubr.f32.mxu0 %v295
      %645 = vmatmul.mubr.f32.gmra.mrb[0].mxu0 %v287
      %v646 = vpop.f32.mrb[0].mxu0
      %v647 = vadd.f32 %v542, %v646
      %v648 = vpop.f32.mrb[0].mxu0
      %649 = vmatprep.mubr.f32.mxu0 %v296
      %650 = vmatmul.mubr.f32.gmra.mrb[0].mxu0 %v288
      %v651 = vpop.f32.mrb[0].mxu0
      %v652 = vadd.f32 %v547, %v651
      %v653 = vpop.f32.mrb[0].mxu0
      %654 = vmatprep.mubr.f32.mxu0 %v297
      %655 = vmatmul.mubr.f32.gmra.mrb[0].mxu0 %v289
      %v656 = vpop.f32.mrb[0].mxu0
      %v657 = vadd.f32 %v552, %v656
      %v658 = vpop.f32.mrb[0].mxu0
      %659 = vmatprep.mubr.f32.mxu0 %v298
      %660 = vmatmul.mubr.f32.gmra.mrb[0].mxu0 %v290
      %v661 = vpop.f32.mrb[0].mxu0
      %v662 = vadd.f32 %v557, %v661
      %v663 = vpop.f32.mrb[0].mxu0
      %664 = vmatprep.mubr.f32.mxu0 %v299
      %665 = vmatmul.mubr.f32.gmra.mrb[0].mxu0 %v291
      %v666 = vpop.f32.mrb[0].mxu0
      %v667 = vadd.f32 %v562, %v666
      %v668 = vpop.f32.mrb[0].mxu0
      %669 = vmatprep.mubr.f32.mxu0 %v300
      %670 = vmatmul.mubr.f32.gmra.mrb[0].mxu0 %v292
      %v671 = vpop.f32.mrb[0].mxu0
      %v672 = vadd.f32 %v567, %v671
      %v673 = vpop.f32.mrb[0].mxu0
      %674 = vmatprep.mubr.f32.mxu0 %v301
      %675 = vmatmul.mubr.f32.gmra.mrb[0].mxu0 %v293
      %v676 = vpop.f32.mrb[0].mxu0
      %v677 = vadd.f32 %v572, %v676
      %v678 = vpop.f32.mrb[0].mxu0
      %679 = vdwg.mxu0
      %v680 = vtanh.pop %v642
      %v681 = vtanh.pop %v647
      %v682 = vtanh.pop %v652
      %v683 = vtanh.pop %v657
      %v684 = vtanh.pop %v662
      %v685 = vtanh.pop %v667
      %v686 = vtanh.pop %v672
      %v687 = vtanh.pop %v677
      %s688 = scalar_lea.vmem %s1, 256
      %v689 = vld [vmem:[%s688] sm:$0xf]
      %v690 = vld [vmem:[%s688 + $0x4] sm:$0xf]
      %v691 = vld [vmem:[%s688 + $0x8] sm:$0xf]
      %v692 = vld [vmem:[%s688 + $0xc] sm:$0xf]
      %v693 = vld [vmem:[%s688 + $0x10] sm:$0xf]
      %v694 = vld [vmem:[%s688 + $0x14] sm:$0xf]
      %v695 = vld [vmem:[%s688 + $0x18] sm:$0xf]
      %v696 = vld [vmem:[%s688 + $0x1c] sm:$0xf]
      %v697 = vld [vmem:[%s688 + $0x20] sm:$0xf]
      %v698 = vld [vmem:[%s688 + $0x24] sm:$0xf]
      %v699 = vld [vmem:[%s688 + $0x28] sm:$0xf]
      %v700 = vld [vmem:[%s688 + $0x2c] sm:$0xf]
      %v701 = vld [vmem:[%s688 + $0x30] sm:$0xf]
      %v702 = vld [vmem:[%s688 + $0x34] sm:$0xf]
      %v703 = vld [vmem:[%s688 + $0x38] sm:$0xf]
      %v704 = vld [vmem:[%s688 + $0x3c] sm:$0xf]
      %v705 = vld [vmem:[%s688 + $0x40] sm:$0xf]
      %v706 = vld [vmem:[%s688 + $0x44] sm:$0xf]
      %v707 = vld [vmem:[%s688 + $0x48] sm:$0xf]
      %v708 = vld [vmem:[%s688 + $0x4c] sm:$0xf]
      %v709 = vld [vmem:[%s688 + $0x50] sm:$0xf]
      %v710 = vld [vmem:[%s688 + $0x54] sm:$0xf]
      %v711 = vld [vmem:[%s688 + $0x58] sm:$0xf]
      %v712 = vld [vmem:[%s688 + $0x5c] sm:$0xf]
      %v713 = vld [vmem:[%s688 + $0x60] sm:$0xf]
      %v714 = vld [vmem:[%s688 + $0x64] sm:$0xf]
      %v715 = vld [vmem:[%s688 + $0x68] sm:$0xf]
      %v716 = vld [vmem:[%s688 + $0x6c] sm:$0xf]
      %v717 = vld [vmem:[%s688 + $0x70] sm:$0xf]
      %v718 = vld [vmem:[%s688 + $0x74] sm:$0xf]
      %v719 = vld [vmem:[%s688 + $0x78] sm:$0xf]
      %v720 = vld [vmem:[%s688 + $0x7c] sm:$0xf]
      %v721 = vld [vmem:[%s688 + $0x80] sm:$0xf]
      %v722 = vld [vmem:[%s688 + $0x84] sm:$0xf]
      %v723 = vld [vmem:[%s688 + $0x88] sm:$0xf]
      %v724 = vld [vmem:[%s688 + $0x8c] sm:$0xf]
      %v725 = vld [vmem:[%s688 + $0x90] sm:$0xf]
      %v726 = vld [vmem:[%s688 + $0x94] sm:$0xf]
      %v727 = vld [vmem:[%s688 + $0x98] sm:$0xf]
      %v728 = vld [vmem:[%s688 + $0x9c] sm:$0xf]
      %v729 = vld [vmem:[%s688 + $0xa0] sm:$0xf]
      %v730 = vld [vmem:[%s688 + $0xa4] sm:$0xf]
      %v731 = vld [vmem:[%s688 + $0xa8] sm:$0xf]
      %v732 = vld [vmem:[%s688 + $0xac] sm:$0xf]
      %v733 = vld [vmem:[%s688 + $0xb0] sm:$0xf]
      %v734 = vld [vmem:[%s688 + $0xb4] sm:$0xf]
      %v735 = vld [vmem:[%s688 + $0xb8] sm:$0xf]
      %v736 = vld [vmem:[%s688 + $0xbc] sm:$0xf]
      %v737 = vld [vmem:[%s688 + $0xc0] sm:$0xf]
      %v738 = vld [vmem:[%s688 + $0xc4] sm:$0xf]
      %v739 = vld [vmem:[%s688 + $0xc8] sm:$0xf]
      %v740 = vld [vmem:[%s688 + $0xcc] sm:$0xf]
      %v741 = vld [vmem:[%s688 + $0xd0] sm:$0xf]
      %v742 = vld [vmem:[%s688 + $0xd4] sm:$0xf]
      %v743 = vld [vmem:[%s688 + $0xd8] sm:$0xf]
      %v744 = vld [vmem:[%s688 + $0xdc] sm:$0xf]
      %v745 = vld [vmem:[%s688 + $0xe0] sm:$0xf]
      %v746 = vld [vmem:[%s688 + $0xe4] sm:$0xf]
      %v747 = vld [vmem:[%s688 + $0xe8] sm:$0xf]
      %v748 = vld [vmem:[%s688 + $0xec] sm:$0xf]
      %v749 = vld [vmem:[%s688 + $0xf0] sm:$0xf]
      %v750 = vld [vmem:[%s688 + $0xf4] sm:$0xf]
      %v751 = vld [vmem:[%s688 + $0xf8] sm:$0xf]
      %v752 = vld [vmem:[%s688 + $0xfc] sm:$0xf]
      %v753 = vunpack.c.l.bf16 %v689
      %v754 = vunpack.c.l.bf16 %v690
      %v755 = vunpack.c.l.bf16 %v691
      %v756 = vunpack.c.l.bf16 %v692
      %v757 = vunpack.c.l.bf16 %v693
      %v758 = vunpack.c.l.bf16 %v694
      %v759 = vunpack.c.l.bf16 %v695
      %v760 = vunpack.c.l.bf16 %v696
      %v761 = vunpack.c.l.bf16 %v697
      %v762 = vunpack.c.l.bf16 %v698
      %v763 = vunpack.c.l.bf16 %v699
      %v764 = vunpack.c.l.bf16 %v700
      %v765 = vunpack.c.l.bf16 %v701
      %v766 = vunpack.c.l.bf16 %v702
      %v767 = vunpack.c.l.bf16 %v703
      %v768 = vunpack.c.l.bf16 %v704
      %v769 = vunpack.c.l.bf16 %v705
      %v770 = vunpack.c.l.bf16 %v706
      %v771 = vunpack.c.l.bf16 %v707
      %v772 = vunpack.c.l.bf16 %v708
      %v773 = vunpack.c.l.bf16 %v709
      %v774 = vunpack.c.l.bf16 %v710
      %v775 = vunpack.c.l.bf16 %v711
      %v776 = vunpack.c.l.bf16 %v712
      %v777 = vunpack.c.l.bf16 %v713
      %v778 = vunpack.c.l.bf16 %v714
      %v779 = vunpack.c.l.bf16 %v715
      %v780 = vunpack.c.l.bf16 %v716
      %v781 = vunpack.c.l.bf16 %v717
      %v782 = vunpack.c.l.bf16 %v718
      %v783 = vunpack.c.l.bf16 %v719
      %v784 = vunpack.c.l.bf16 %v720
      %v785 = vunpack.c.l.bf16 %v721
      %v786 = vunpack.c.l.bf16 %v722
      %v787 = vunpack.c.l.bf16 %v723
      %v788 = vunpack.c.l.bf16 %v724
      %v789 = vunpack.c.l.bf16 %v725
      %v790 = vunpack.c.l.bf16 %v726
      %v791 = vunpack.c.l.bf16 %v727
      %v792 = vunpack.c.l.bf16 %v728
      %v793 = vunpack.c.l.bf16 %v729
      %v794 = vunpack.c.l.bf16 %v730
      %v795 = vunpack.c.l.bf16 %v731
      %v796 = vunpack.c.l.bf16 %v732
      %v797 = vunpack.c.l.bf16 %v733
      %v798 = vunpack.c.l.bf16 %v734
      %v799 = vunpack.c.l.bf16 %v735
      %v800 = vunpack.c.l.bf16 %v736
      %v801 = vunpack.c.l.bf16 %v737
      %v802 = vunpack.c.l.bf16 %v738
      %v803 = vunpack.c.l.bf16 %v739
      %v804 = vunpack.c.l.bf16 %v740
      %v805 = vunpack.c.l.bf16 %v741
      %v806 = vunpack.c.l.bf16 %v742
      %v807 = vunpack.c.l.bf16 %v743
      %v808 = vunpack.c.l.bf16 %v744
      %v809 = vunpack.c.l.bf16 %v745
      %v810 = vunpack.c.l.bf16 %v746
      %v811 = vunpack.c.l.bf16 %v747
      %v812 = vunpack.c.l.bf16 %v748
      %v813 = vunpack.c.l.bf16 %v749
      %v814 = vunpack.c.l.bf16 %v750
      %v815 = vunpack.c.l.bf16 %v751
      %v816 = vunpack.c.l.bf16 %v752
      %817 = vmatprep.subr.mxu0 0.0
      %818 = vmatpush1.msra.mxu0 %v753
      %819 = vmatprep.subr.mxu0 0.0
      %820 = vmatpush1.msra.mxu0 %v754
      %821 = vmatprep.subr.mxu0 0.0
      %822 = vmatpush1.msra.mxu0 %v755
      %823 = vmatprep.subr.mxu0 0.0
      %824 = vmatpush1.msra.mxu0 %v756
      %825 = vmatprep.subr.mxu0 0.0
      %826 = vmatpush1.msra.mxu0 %v757
      %827 = vmatprep.subr.mxu0 0.0
      %828 = vmatpush1.msra.mxu0 %v758
      %829 = vmatprep.subr.mxu0 0.0
      %830 = vmatpush1.msra.mxu0 %v759
      %831 = vmatprep.subr.mxu0 0.0
      %832 = vmatpush1.msra.mxu0 %v760
      %833 = vmatprep.subr.mxu0 0.0
      %834 = vmatpush1.msra.mxu0 %v761
      %835 = vmatprep.subr.mxu0 0.0
      %836 = vmatpush1.msra.mxu0 %v762
      %837 = vmatprep.subr.mxu0 0.0
      %838 = vmatpush1.msra.mxu0 %v763
      %839 = vmatprep.subr.mxu0 0.0
      %840 = vmatpush1.msra.mxu0 %v764
      %841 = vmatprep.subr.mxu0 0.0
      %842 = vmatpush1.msra.mxu0 %v765
      %843 = vmatprep.subr.mxu0 0.0
      %844 = vmatpush1.msra.mxu0 %v766
      %845 = vmatprep.subr.mxu0 0.0
      %846 = vmatpush1.msra.mxu0 %v767
      %847 = vmatprep.subr.mxu0 0.0
      %848 = vmatpush1.msra.mxu0 %v768
      %849 = vmatprep.subr.mxu0 0.0
      %850 = vmatpush1.msra.mxu0 %v769
      %851 = vmatprep.subr.mxu0 0.0
      %852 = vmatpush1.msra.mxu0 %v770
      %853 = vmatprep.subr.mxu0 0.0
      %854 = vmatpush1.msra.mxu0 %v771
      %855 = vmatprep.subr.mxu0 0.0
      %856 = vmatpush1.msra.mxu0 %v772
      %857 = vmatprep.subr.mxu0 0.0
      %858 = vmatpush1.msra.mxu0 %v773
      %859 = vmatprep.subr.mxu0 0.0
      %860 = vmatpush1.msra.mxu0 %v774
      %861 = vmatprep.subr.mxu0 0.0
      %862 = vmatpush1.msra.mxu0 %v775
      %863 = vmatprep.subr.mxu0 0.0
      %864 = vmatpush1.msra.mxu0 %v776
      %865 = vmatprep.subr.mxu0 0.0
      %866 = vmatpush1.msra.mxu0 %v777
      %867 = vmatprep.subr.mxu0 0.0
      %868 = vmatpush1.msra.mxu0 %v778
      %869 = vmatprep.subr.mxu0 0.0
      %870 = vmatpush1.msra.mxu0 %v779
      %871 = vmatprep.subr.mxu0 0.0
      %872 = vmatpush1.msra.mxu0 %v780
      %873 = vmatprep.subr.mxu0 0.0
      %874 = vmatpush1.msra.mxu0 %v781
      %875 = vmatprep.subr.mxu0 0.0
      %876 = vmatpush1.msra.mxu0 %v782
      %877 = vmatprep.subr.mxu0 0.0
      %878 = vmatpush1.msra.mxu0 %v783
      %879 = vmatprep.subr.mxu0 0.0
      %880 = vmatpush1.msra.mxu0 %v784
      %881 = vmatprep.mubr.f32.mxu0 %v278
      %882 = vmatmul.mubr.f32.gmra.mrb[0].mxu0 %v270
      %v883 = vpop.f32.mrb[0].mxu0
      %v884 = vadd.f32 %v468, %v883
      %v885 = vpop.f32.mrb[0].mxu0
      %886 = vmatprep.mubr.f32.mxu0 %v279
      %887 = vmatmul.mubr.f32.gmra.mrb[0].mxu0 %v271
      %v888 = vpop.f32.mrb[0].mxu0
      %v889 = vadd.f32 %v468, %v888
      %v890 = vpop.f32.mrb[0].mxu0
      %891 = vmatprep.mubr.f32.mxu0 %v280
      %892 = vmatmul.mubr.f32.gmra.mrb[0].mxu0 %v272
      %v893 = vpop.f32.mrb[0].mxu0
      %v894 = vadd.f32 %v468, %v893
      %v895 = vpop.f32.mrb[0].mxu0
      %896 = vmatprep.mubr.f32.mxu0 %v281
      %897 = vmatmul.mubr.f32.gmra.mrb[0].mxu0 %v273
      %v898 = vpop.f32.mrb[0].mxu0
      %v899 = vadd.f32 %v468, %v898
      %v900 = vpop.f32.mrb[0].mxu0
      %901 = vmatprep.mubr.f32.mxu0 %v282
      %902 = vmatmul.mubr.f32.gmra.mrb[0].mxu0 %v274
      %v903 = vpop.f32.mrb[0].mxu0
      %v904 = vadd.f32 %v468, %v903
      %v905 = vpop.f32.mrb[0].mxu0
      %906 = vmatprep.mubr.f32.mxu0 %v283
      %907 = vmatmul.mubr.f32.gmra.mrb[0].mxu0 %v275
      %v908 = vpop.f32.mrb[0].mxu0
      %v909 = vadd.f32 %v468, %v908
      %v910 = vpop.f32.mrb[0].mxu0
      %911 = vmatprep.mubr.f32.mxu0 %v284
      %912 = vmatmul.mubr.f32.gmra.mrb[0].mxu0 %v276
      %v913 = vpop.f32.mrb[0].mxu0
      %v914 = vadd.f32 %v468, %v913
      %v915 = vpop.f32.mrb[0].mxu0
      %916 = vmatprep.mubr.f32.mxu0 %v285
      %917 = vmatmul.mubr.f32.gmra.mrb[0].mxu0 %v277
      %v918 = vpop.f32.mrb[0].mxu0
      %v919 = vadd.f32 %v468, %v918
      %v920 = vpop.f32.mrb[0].mxu0
      %921 = vdwg.mxu0
      %922 = vmatprep.subr.mxu0 0.0
      %923 = vmatpush1.msra.mxu0 %v785
      %924 = vmatprep.subr.mxu0 0.0
      %925 = vmatpush1.msra.mxu0 %v786
      %926 = vmatprep.subr.mxu0 0.0
      %927 = vmatpush1.msra.mxu0 %v787
      %928 = vmatprep.subr.mxu0 0.0
      %929 = vmatpush1.msra.mxu0 %v788
      %930 = vmatprep.subr.mxu0 0.0
      %931 = vmatpush1.msra.mxu0 %v789
      %932 = vmatprep.subr.mxu0 0.0
      %933 = vmatpush1.msra.mxu0 %v790
      %934 = vmatprep.subr.mxu0 0.0
      %935 = vmatpush1.msra.mxu0 %v791
      %936 = vmatprep.subr.mxu0 0.0
      %937 = vmatpush1.msra.mxu0 %v792
      %938 = vmatprep.subr.mxu0 0.0
      %939 = vmatpush1.msra.mxu0 %v793
      %940 = vmatprep.subr.mxu0 0.0
      %941 = vmatpush1.msra.mxu0 %v794
      %942 = vmatprep.subr.mxu0 0.0
      %943 = vmatpush1.msra.mxu0 %v795
      %944 = vmatprep.subr.mxu0 0.0
      %945 = vmatpush1.msra.mxu0 %v796
      %946 = vmatprep.subr.mxu0 0.0
      %947 = vmatpush1.msra.mxu0 %v797
      %948 = vmatprep.subr.mxu0 0.0
      %949 = vmatpush1.msra.mxu0 %v798
      %950 = vmatprep.subr.mxu0 0.0
      %951 = vmatpush1.msra.mxu0 %v799
      %952 = vmatprep.subr.mxu0 0.0
      %953 = vmatpush1.msra.mxu0 %v800
      %954 = vmatprep.subr.mxu0 0.0
      %955 = vmatpush1.msra.mxu0 %v801
      %956 = vmatprep.subr.mxu0 0.0
      %957 = vmatpush1.msra.mxu0 %v802
      %958 = vmatprep.subr.mxu0 0.0
      %959 = vmatpush1.msra.mxu0 %v803
      %960 = vmatprep.subr.mxu0 0.0
      %961 = vmatpush1.msra.mxu0 %v804
      %962 = vmatprep.subr.mxu0 0.0
      %963 = vmatpush1.msra.mxu0 %v805
      %964 = vmatprep.subr.mxu0 0.0
      %965 = vmatpush1.msra.mxu0 %v806
      %966 = vmatprep.subr.mxu0 0.0
      %967 = vmatpush1.msra.mxu0 %v807
      %968 = vmatprep.subr.mxu0 0.0
      %969 = vmatpush1.msra.mxu0 %v808
      %970 = vmatprep.subr.mxu0 0.0
      %971 = vmatpush1.msra.mxu0 %v809
      %972 = vmatprep.subr.mxu0 0.0
      %973 = vmatpush1.msra.mxu0 %v810
      %974 = vmatprep.subr.mxu0 0.0
      %975 = vmatpush1.msra.mxu0 %v811
      %976 = vmatprep.subr.mxu0 0.0
      %977 = vmatpush1.msra.mxu0 %v812
      %978 = vmatprep.subr.mxu0 0.0
      %979 = vmatpush1.msra.mxu0 %v813
      %980 = vmatprep.subr.mxu0 0.0
      %981 = vmatpush1.msra.mxu0 %v814
      %982 = vmatprep.subr.mxu0 0.0
      %983 = vmatpush1.msra.mxu0 %v815
      %984 = vmatprep.subr.mxu0 0.0
      %985 = vmatpush1.msra.mxu0 %v816
      %986 = vmatprep.mubr.f32.mxu0 %v302
      %987 = vmatmul.mubr.f32.gmra.mrb[0].mxu0 %v294
      %v988 = vpop.f32.mrb[0].mxu0
      %v989 = vadd.f32 %v884, %v988
      %v990 = vpop.f32.mrb[0].mxu0
      %991 = vmatprep.mubr.f32.mxu0 %v303
      %992 = vmatmul.mubr.f32.gmra.mrb[0].mxu0 %v295
      %v993 = vpop.f32.mrb[0].mxu0
      %v994 = vadd.f32 %v889, %v993
      %v995 = vpop.f32.mrb[0].mxu0
      %996 = vmatprep.mubr.f32.mxu0 %v304
      %997 = vmatmul.mubr.f32.gmra.mrb[0].mxu0 %v296
      %v998 = vpop.f32.mrb[0].mxu0
      %v999 = vadd.f32 %v894, %v998
      %v1000 = vpop.f32.mrb[0].mxu0
      %1001 = vmatprep.mubr.f32.mxu0 %v305
      %1002 = vmatmul.mubr.f32.gmra.mrb[0].mxu0 %v297
      %v1003 = vpop.f32.mrb[0].mxu0
      %v1004 = vadd.f32 %v899, %v1003
      %v1005 = vpop.f32.mrb[0].mxu0
      %1006 = vmatprep.mubr.f32.mxu0 %v306
      %1007 = vmatmul.mubr.f32.gmra.mrb[0].mxu0 %v298
      %v1008 = vpop.f32.mrb[0].mxu0
      %v1009 = vadd.f32 %v904, %v1008
      %v1010 = vpop.f32.mrb[0].mxu0
      %1011 = vmatprep.mubr.f32.mxu0 %v307
      %1012 = vmatmul.mubr.f32.gmra.mrb[0].mxu0 %v299
      %v1013 = vpop.f32.mrb[0].mxu0
      %v1014 = vadd.f32 %v909, %v1013
      %v1015 = vpop.f32.mrb[0].mxu0
      %1016 = vmatprep.mubr.f32.mxu0 %v308
      %1017 = vmatmul.mubr.f32.gmra.mrb[0].mxu0 %v300
      %v1018 = vpop.f32.mrb[0].mxu0
      %v1019 = vadd.f32 %v914, %v1018
      %v1020 = vpop.f32.mrb[0].mxu0
      %1021 = vmatprep.mubr.f32.mxu0 %v309
      %1022 = vmatmul.mubr.f32.gmra.mrb[0].mxu0 %v301
      %v1023 = vpop.f32.mrb[0].mxu0
      %v1024 = vadd.f32 %v919, %v1023
      %v1025 = vpop.f32.mrb[0].mxu0
      %1026 = vdwg.mxu0
      %v1027 = vtanh.pop %v989
      %v1028 = vtanh.pop %v994
      %v1029 = vtanh.pop %v999
      %v1030 = vtanh.pop %v1004
      %v1031 = vtanh.pop %v1009
      %v1032 = vtanh.pop %v1014
      %v1033 = vtanh.pop %v1019
      %v1034 = vtanh.pop %v1024
      %1035 = vst [vmem:[%s224] sm:$0xff] %v680
      %1036 = vst [vmem:[%s224 + $0x8] sm:$0xff] %v1027
      %1037 = vst [vmem:[%s224 + $0x20] sm:$0xff] %v681
      %1038 = vst [vmem:[%s224 + $0x28] sm:$0xff] %v1028
      %1039 = vst [vmem:[%s224 + $0x40] sm:$0xff] %v682
      %1040 = vst [vmem:[%s224 + $0x48] sm:$0xff] %v1029
      %1041 = vst [vmem:[%s224 + $0x60] sm:$0xff] %v683
      %1042 = vst [vmem:[%s224 + $0x68] sm:$0xff] %v1030
      %1043 = vst [vmem:[%s224 + $0x80] sm:$0xff] %v684
      %1044 = vst [vmem:[%s224 + $0x88] sm:$0xff] %v1031
      %1045 = vst [vmem:[%s224 + $0xa0] sm:$0xff] %v685
      %1046 = vst [vmem:[%s224 + $0xa8] sm:$0xff] %v1032
      %1047 = vst [vmem:[%s224 + $0xc0] sm:$0xff] %v686
      %1048 = vst [vmem:[%s224 + $0xc8] sm:$0xff] %v1033
      %1049 = vst [vmem:[%s224 + $0xe0] sm:$0xff] %v687
      %1050 = vst [vmem:[%s224 + $0xe8] sm:$0xff] %v1034
      %s1051 = scalar_lea.vmem %s1, 512
      %v1052 = vld [vmem:[%s1051] sm:$0xf]
      %v1053 = vld [vmem:[%s1051 + $0x4] sm:$0xf]
      %v1054 = vld [vmem:[%s1051 + $0x8] sm:$0xf]
      %v1055 = vld [vmem:[%s1051 + $0xc] sm:$0xf]
      %v1056 = vld [vmem:[%s1051 + $0x10] sm:$0xf]
      %v1057 = vld [vmem:[%s1051 + $0x14] sm:$0xf]
      %v1058 = vld [vmem:[%s1051 + $0x18] sm:$0xf]
      %v1059 = vld [vmem:[%s1051 + $0x1c] sm:$0xf]
      %v1060 = vld [vmem:[%s1051 + $0x20] sm:$0xf]
      %v1061 = vld [vmem:[%s1051 + $0x24] sm:$0xf]
      %v1062 = vld [vmem:[%s1051 + $0x28] sm:$0xf]
      %v1063 = vld [vmem:[%s1051 + $0x2c] sm:$0xf]
      %v1064 = vld [vmem:[%s1051 + $0x30] sm:$0xf]
      %v1065 = vld [vmem:[%s1051 + $0x34] sm:$0xf]
      %v1066 = vld [vmem:[%s1051 + $0x38] sm:$0xf]
      %v1067 = vld [vmem:[%s1051 + $0x3c] sm:$0xf]
      %v1068 = vld [vmem:[%s1051 + $0x40] sm:$0xf]
      %v1069 = vld [vmem:[%s1051 + $0x44] sm:$0xf]
      %v1070 = vld [vmem:[%s1051 + $0x48] sm:$0xf]
      %v1071 = vld [vmem:[%s1051 + $0x4c] sm:$0xf]
      %v1072 = vld [vmem:[%s1051 + $0x50] sm:$0xf]
      %v1073 = vld [vmem:[%s1051 + $0x54] sm:$0xf]
      %v1074 = vld [vmem:[%s1051 + $0x58] sm:$0xf]
      %v1075 = vld [vmem:[%s1051 + $0x5c] sm:$0xf]
      %v1076 = vld [vmem:[%s1051 + $0x60] sm:$0xf]
      %v1077 = vld [vmem:[%s1051 + $0x64] sm:$0xf]
      %v1078 = vld [vmem:[%s1051 + $0x68] sm:$0xf]
      %v1079 = vld [vmem:[%s1051 + $0x6c] sm:$0xf]
      %v1080 = vld [vmem:[%s1051 + $0x70] sm:$0xf]
      %v1081 = vld [vmem:[%s1051 + $0x74] sm:$0xf]
      %v1082 = vld [vmem:[%s1051 + $0x78] sm:$0xf]
      %v1083 = vld [vmem:[%s1051 + $0x7c] sm:$0xf]
      %v1084 = vld [vmem:[%s1051 + $0x80] sm:$0xf]
      %v1085 = vld [vmem:[%s1051 + $0x84] sm:$0xf]
      %v1086 = vld [vmem:[%s1051 + $0x88] sm:$0xf]
      %v1087 = vld [vmem:[%s1051 + $0x8c] sm:$0xf]
      %v1088 = vld [vmem:[%s1051 + $0x90] sm:$0xf]
      %v1089 = vld [vmem:[%s1051 + $0x94] sm:$0xf]
      %v1090 = vld [vmem:[%s1051 + $0x98] sm:$0xf]
      %v1091 = vld [vmem:[%s1051 + $0x9c] sm:$0xf]
      %v1092 = vld [vmem:[%s1051 + $0xa0] sm:$0xf]
      %v1093 = vld [vmem:[%s1051 + $0xa4] sm:$0xf]
      %v1094 = vld [vmem:[%s1051 + $0xa8] sm:$0xf]
      %v1095 = vld [vmem:[%s1051 + $0xac] sm:$0xf]
      %v1096 = vld [vmem:[%s1051 + $0xb0] sm:$0xf]
      %v1097 = vld [vmem:[%s1051 + $0xb4] sm:$0xf]
      %v1098 = vld [vmem:[%s1051 + $0xb8] sm:$0xf]
      %v1099 = vld [vmem:[%s1051 + $0xbc] sm:$0xf]
      %v1100 = vld [vmem:[%s1051 + $0xc0] sm:$0xf]
      %v1101 = vld [vmem:[%s1051 + $0xc4] sm:$0xf]
      %v1102 = vld [vmem:[%s1051 + $0xc8] sm:$0xf]
      %v1103 = vld [vmem:[%s1051 + $0xcc] sm:$0xf]
      %v1104 = vld [vmem:[%s1051 + $0xd0] sm:$0xf]
      %v1105 = vld [vmem:[%s1051 + $0xd4] sm:$0xf]
      %v1106 = vld [vmem:[%s1051 + $0xd8] sm:$0xf]
      %v1107 = vld [vmem:[%s1051 + $0xdc] sm:$0xf]
      %v1108 = vld [vmem:[%s1051 + $0xe0] sm:$0xf]
      %v1109 = vld [vmem:[%s1051 + $0xe4] sm:$0xf]
      %v1110 = vld [vmem:[%s1051 + $0xe8] sm:$0xf]
      %v1111 = vld [vmem:[%s1051 + $0xec] sm:$0xf]
      %v1112 = vld [vmem:[%s1051 + $0xf0] sm:$0xf]
      %v1113 = vld [vmem:[%s1051 + $0xf4] sm:$0xf]
      %v1114 = vld [vmem:[%s1051 + $0xf8] sm:$0xf]
      %v1115 = vld [vmem:[%s1051 + $0xfc] sm:$0xf]
      %v1116 = vunpack.c.l.bf16 %v1052
      %v1117 = vunpack.c.l.bf16 %v1053
      %v1118 = vunpack.c.l.bf16 %v1054
      %v1119 = vunpack.c.l.bf16 %v1055
      %v1120 = vunpack.c.l.bf16 %v1056
      %v1121 = vunpack.c.l.bf16 %v1057
      %v1122 = vunpack.c.l.bf16 %v1058
      %v1123 = vunpack.c.l.bf16 %v1059
      %v1124 = vunpack.c.l.bf16 %v1060
      %v1125 = vunpack.c.l.bf16 %v1061
      %v1126 = vunpack.c.l.bf16 %v1062
      %v1127 = vunpack.c.l.bf16 %v1063
      %v1128 = vunpack.c.l.bf16 %v1064
      %v1129 = vunpack.c.l.bf16 %v1065
      %v1130 = vunpack.c.l.bf16 %v1066
      %v1131 = vunpack.c.l.bf16 %v1067
      %v1132 = vunpack.c.l.bf16 %v1068
      %v1133 = vunpack.c.l.bf16 %v1069
      %v1134 = vunpack.c.l.bf16 %v1070
      %v1135 = vunpack.c.l.bf16 %v1071
      %v1136 = vunpack.c.l.bf16 %v1072
      %v1137 = vunpack.c.l.bf16 %v1073
      %v1138 = vunpack.c.l.bf16 %v1074
      %v1139 = vunpack.c.l.bf16 %v1075
      %v1140 = vunpack.c.l.bf16 %v1076
      %v1141 = vunpack.c.l.bf16 %v1077
      %v1142 = vunpack.c.l.bf16 %v1078
      %v1143 = vunpack.c.l.bf16 %v1079
      %v1144 = vunpack.c.l.bf16 %v1080
      %v1145 = vunpack.c.l.bf16 %v1081
      %v1146 = vunpack.c.l.bf16 %v1082
      %v1147 = vunpack.c.l.bf16 %v1083
      %v1148 = vunpack.c.l.bf16 %v1084
      %v1149 = vunpack.c.l.bf16 %v1085
      %v1150 = vunpack.c.l.bf16 %v1086
      %v1151 = vunpack.c.l.bf16 %v1087
      %v1152 = vunpack.c.l.bf16 %v1088
      %v1153 = vunpack.c.l.bf16 %v1089
      %v1154 = vunpack.c.l.bf16 %v1090
      %v1155 = vunpack.c.l.bf16 %v1091
      %v1156 = vunpack.c.l.bf16 %v1092
      %v1157 = vunpack.c.l.bf16 %v1093
      %v1158 = vunpack.c.l.bf16 %v1094
      %v1159 = vunpack.c.l.bf16 %v1095
      %v1160 = vunpack.c.l.bf16 %v1096
      %v1161 = vunpack.c.l.bf16 %v1097
      %v1162 = vunpack.c.l.bf16 %v1098
      %v1163 = vunpack.c.l.bf16 %v1099
      %v1164 = vunpack.c.l.bf16 %v1100
      %v1165 = vunpack.c.l.bf16 %v1101
      %v1166 = vunpack.c.l.bf16 %v1102
      %v1167 = vunpack.c.l.bf16 %v1103
      %v1168 = vunpack.c.l.bf16 %v1104
      %v1169 = vunpack.c.l.bf16 %v1105
      %v1170 = vunpack.c.l.bf16 %v1106
      %v1171 = vunpack.c.l.bf16 %v1107
      %v1172 = vunpack.c.l.bf16 %v1108
      %v1173 = vunpack.c.l.bf16 %v1109
      %v1174 = vunpack.c.l.bf16 %v1110
      %v1175 = vunpack.c.l.bf16 %v1111
      %v1176 = vunpack.c.l.bf16 %v1112
      %v1177 = vunpack.c.l.bf16 %v1113
      %v1178 = vunpack.c.l.bf16 %v1114
      %v1179 = vunpack.c.l.bf16 %v1115
      %v1180 = vld [vmem:[%s2] sm:$0x1]
      %v1182 = vlaneseq
      %v1183 = vshrl.u32 %v1182, 7
      %v1184 = vsub.s32 0, %v1183
      %v1185 = vrot.slane %v1180, %v1184
      %1187 = vmatprep.subr.mxu0 0.0
      %1188 = vmatpush1.msra.mxu0 %v1116
      %1189 = vmatprep.subr.mxu0 0.0
      %1190 = vmatpush1.msra.mxu0 %v1117
      %1191 = vmatprep.subr.mxu0 0.0
      %1192 = vmatpush1.msra.mxu0 %v1118
      %1193 = vmatprep.subr.mxu0 0.0
      %1194 = vmatpush1.msra.mxu0 %v1119
      %1195 = vmatprep.subr.mxu0 0.0
      %1196 = vmatpush1.msra.mxu0 %v1120
      %1197 = vmatprep.subr.mxu0 0.0
      %1198 = vmatpush1.msra.mxu0 %v1121
      %1199 = vmatprep.subr.mxu0 0.0
      %1200 = vmatpush1.msra.mxu0 %v1122
      %1201 = vmatprep.subr.mxu0 0.0
      %1202 = vmatpush1.msra.mxu0 %v1123
      %1203 = vmatprep.subr.mxu0 0.0
      %1204 = vmatpush1.msra.mxu0 %v1124
      %1205 = vmatprep.subr.mxu0 0.0
      %1206 = vmatpush1.msra.mxu0 %v1125
      %1207 = vmatprep.subr.mxu0 0.0
      %1208 = vmatpush1.msra.mxu0 %v1126
      %1209 = vmatprep.subr.mxu0 0.0
      %1210 = vmatpush1.msra.mxu0 %v1127
      %1211 = vmatprep.subr.mxu0 0.0
      %1212 = vmatpush1.msra.mxu0 %v1128
      %1213 = vmatprep.subr.mxu0 0.0
      %1214 = vmatpush1.msra.mxu0 %v1129
      %1215 = vmatprep.subr.mxu0 0.0
      %1216 = vmatpush1.msra.mxu0 %v1130
      %1217 = vmatprep.subr.mxu0 0.0
      %1218 = vmatpush1.msra.mxu0 %v1131
      %1219 = vmatprep.subr.mxu0 0.0
      %1220 = vmatpush1.msra.mxu0 %v1132
      %1221 = vmatprep.subr.mxu0 0.0
      %1222 = vmatpush1.msra.mxu0 %v1133
      %1223 = vmatprep.subr.mxu0 0.0
      %1224 = vmatpush1.msra.mxu0 %v1134
      %1225 = vmatprep.subr.mxu0 0.0
      %1226 = vmatpush1.msra.mxu0 %v1135
      %1227 = vmatprep.subr.mxu0 0.0
      %1228 = vmatpush1.msra.mxu0 %v1136
      %1229 = vmatprep.subr.mxu0 0.0
      %1230 = vmatpush1.msra.mxu0 %v1137
      %1231 = vmatprep.subr.mxu0 0.0
      %1232 = vmatpush1.msra.mxu0 %v1138
      %1233 = vmatprep.subr.mxu0 0.0
      %1234 = vmatpush1.msra.mxu0 %v1139
      %1235 = vmatprep.subr.mxu0 0.0
      %1236 = vmatpush1.msra.mxu0 %v1140
      %1237 = vmatprep.subr.mxu0 0.0
      %1238 = vmatpush1.msra.mxu0 %v1141
      %1239 = vmatprep.subr.mxu0 0.0
      %1240 = vmatpush1.msra.mxu0 %v1142
      %1241 = vmatprep.subr.mxu0 0.0
      %1242 = vmatpush1.msra.mxu0 %v1143
      %1243 = vmatprep.subr.mxu0 0.0
      %1244 = vmatpush1.msra.mxu0 %v1144
      %1245 = vmatprep.subr.mxu0 0.0
      %1246 = vmatpush1.msra.mxu0 %v1145
      %1247 = vmatprep.subr.mxu0 0.0
      %1248 = vmatpush1.msra.mxu0 %v1146
      %1249 = vmatprep.subr.mxu0 0.0
      %1250 = vmatpush1.msra.mxu0 %v1147
      %1251 = vmatprep.mubr.f32.mxu0 %v294
      %1252 = vmatmul.mubr.f32.gmra.mrb[0].mxu0 %v286
      %v1253 = vpop.f32.mrb[0].mxu0
      %v1254 = vadd.f32 %v1185, %v1253
      %v1255 = vpop.f32.mrb[0].mxu0
      %1256 = vmatprep.mubr.f32.mxu0 %v295
      %1257 = vmatmul.mubr.f32.gmra.mrb[0].mxu0 %v287
      %v1258 = vpop.f32.mrb[0].mxu0
      %v1259 = vadd.f32 %v1185, %v1258
      %v1260 = vpop.f32.mrb[0].mxu0
      %1261 = vmatprep.mubr.f32.mxu0 %v296
      %1262 = vmatmul.mubr.f32.gmra.mrb[0].mxu0 %v288
      %v1263 = vpop.f32.mrb[0].mxu0
      %v1264 = vadd.f32 %v1185, %v1263
      %v1265 = vpop.f32.mrb[0].mxu0
      %1266 = vmatprep.mubr.f32.mxu0 %v297
      %1267 = vmatmul.mubr.f32.gmra.mrb[0].mxu0 %v289
      %v1268 = vpop.f32.mrb[0].mxu0
      %v1269 = vadd.f32 %v1185, %v1268
      %v1270 = vpop.f32.mrb[0].mxu0
      %1271 = vmatprep.mubr.f32.mxu0 %v298
      %1272 = vmatmul.mubr.f32.gmra.mrb[0].mxu0 %v290
      %v1273 = vpop.f32.mrb[0].mxu0
      %v1274 = vadd.f32 %v1185, %v1273
      %v1275 = vpop.f32.mrb[0].mxu0
      %1276 = vmatprep.mubr.f32.mxu0 %v299
      %1277 = vmatmul.mubr.f32.gmra.mrb[0].mxu0 %v291
      %v1278 = vpop.f32.mrb[0].mxu0
      %v1279 = vadd.f32 %v1185, %v1278
      %v1280 = vpop.f32.mrb[0].mxu0
      %1281 = vmatprep.mubr.f32.mxu0 %v300
      %1282 = vmatmul.mubr.f32.gmra.mrb[0].mxu0 %v292
      %v1283 = vpop.f32.mrb[0].mxu0
      %v1284 = vadd.f32 %v1185, %v1283
      %v1285 = vpop.f32.mrb[0].mxu0
      %1286 = vmatprep.mubr.f32.mxu0 %v301
      %1287 = vmatmul.mubr.f32.gmra.mrb[0].mxu0 %v293
      %v1288 = vpop.f32.mrb[0].mxu0
      %v1289 = vadd.f32 %v1185, %v1288
      %v1290 = vpop.f32.mrb[0].mxu0
      %1291 = vdwg.mxu0
      %1292 = vmatprep.subr.mxu0 0.0
      %1293 = vmatpush1.msra.mxu0 %v1148
      %1294 = vmatprep.subr.mxu0 0.0
      %1295 = vmatpush1.msra.mxu0 %v1149
      %1296 = vmatprep.subr.mxu0 0.0
      %1297 = vmatpush1.msra.mxu0 %v1150
      %1298 = vmatprep.subr.mxu0 0.0
      %1299 = vmatpush1.msra.mxu0 %v1151
      %1300 = vmatprep.subr.mxu0 0.0
      %1301 = vmatpush1.msra.mxu0 %v1152
      %1302 = vmatprep.subr.mxu0 0.0
      %1303 = vmatpush1.msra.mxu0 %v1153
      %1304 = vmatprep.subr.mxu0 0.0
      %1305 = vmatpush1.msra.mxu0 %v1154
      %1306 = vmatprep.subr.mxu0 0.0
      %1307 = vmatpush1.msra.mxu0 %v1155
      %1308 = vmatprep.subr.mxu0 0.0
      %1309 = vmatpush1.msra.mxu0 %v1156
      %1310 = vmatprep.subr.mxu0 0.0
      %1311 = vmatpush1.msra.mxu0 %v1157
      %1312 = vmatprep.subr.mxu0 0.0
      %1313 = vmatpush1.msra.mxu0 %v1158
      %1314 = vmatprep.subr.mxu0 0.0
      %1315 = vmatpush1.msra.mxu0 %v1159
      %1316 = vmatprep.subr.mxu0 0.0
      %1317 = vmatpush1.msra.mxu0 %v1160
      %1318 = vmatprep.subr.mxu0 0.0
      %1319 = vmatpush1.msra.mxu0 %v1161
      %1320 = vmatprep.subr.mxu0 0.0
      %1321 = vmatpush1.msra.mxu0 %v1162
      %1322 = vmatprep.subr.mxu0 0.0
      %1323 = vmatpush1.msra.mxu0 %v1163
      %1324 = vmatprep.subr.mxu0 0.0
      %1325 = vmatpush1.msra.mxu0 %v1164
      %1326 = vmatprep.subr.mxu0 0.0
      %1327 = vmatpush1.msra.mxu0 %v1165
      %1328 = vmatprep.subr.mxu0 0.0
      %1329 = vmatpush1.msra.mxu0 %v1166
      %1330 = vmatprep.subr.mxu0 0.0
      %1331 = vmatpush1.msra.mxu0 %v1167
      %1332 = vmatprep.subr.mxu0 0.0
      %1333 = vmatpush1.msra.mxu0 %v1168
      %1334 = vmatprep.subr.mxu0 0.0
      %1335 = vmatpush1.msra.mxu0 %v1169
      %1336 = vmatprep.subr.mxu0 0.0
      %1337 = vmatpush1.msra.mxu0 %v1170
      %1338 = vmatprep.subr.mxu0 0.0
      %1339 = vmatpush1.msra.mxu0 %v1171
      %1340 = vmatprep.subr.mxu0 0.0
      %1341 = vmatpush1.msra.mxu0 %v1172
      %1342 = vmatprep.subr.mxu0 0.0
      %1343 = vmatpush1.msra.mxu0 %v1173
      %1344 = vmatprep.subr.mxu0 0.0
      %1345 = vmatpush1.msra.mxu0 %v1174
      %1346 = vmatprep.subr.mxu0 0.0
      %1347 = vmatpush1.msra.mxu0 %v1175
      %1348 = vmatprep.subr.mxu0 0.0
      %1349 = vmatpush1.msra.mxu0 %v1176
      %1350 = vmatprep.subr.mxu0 0.0
      %1351 = vmatpush1.msra.mxu0 %v1177
      %1352 = vmatprep.subr.mxu0 0.0
      %1353 = vmatpush1.msra.mxu0 %v1178
      %1354 = vmatprep.subr.mxu0 0.0
      %1355 = vmatpush1.msra.mxu0 %v1179
      %1356 = vmatprep.mubr.f32.mxu0 %v319
      %1357 = vmatmul.mubr.f32.gmra.mrb[0].mxu0 %v311
      %v1358 = vpop.f32.mrb[0].mxu0
      %v1359 = vadd.f32 %v1254, %v1358
      %v1360 = vpop.f32.mrb[0].mxu0
      %1361 = vmatprep.mubr.f32.mxu0 %v320
      %1362 = vmatmul.mubr.f32.gmra.mrb[0].mxu0 %v312
      %v1363 = vpop.f32.mrb[0].mxu0
      %v1364 = vadd.f32 %v1259, %v1363
      %v1365 = vpop.f32.mrb[0].mxu0
      %1366 = vmatprep.mubr.f32.mxu0 %v321
      %1367 = vmatmul.mubr.f32.gmra.mrb[0].mxu0 %v313
      %v1368 = vpop.f32.mrb[0].mxu0
      %v1369 = vadd.f32 %v1264, %v1368
      %v1370 = vpop.f32.mrb[0].mxu0
      %1371 = vmatprep.mubr.f32.mxu0 %v322
      %1372 = vmatmul.mubr.f32.gmra.mrb[0].mxu0 %v314
      %v1373 = vpop.f32.mrb[0].mxu0
      %v1374 = vadd.f32 %v1269, %v1373
      %v1375 = vpop.f32.mrb[0].mxu0
      %1376 = vmatprep.mubr.f32.mxu0 %v323
      %1377 = vmatmul.mubr.f32.gmra.mrb[0].mxu0 %v315
      %v1378 = vpop.f32.mrb[0].mxu0
      %v1379 = vadd.f32 %v1274, %v1378
      %v1380 = vpop.f32.mrb[0].mxu0
      %1381 = vmatprep.mubr.f32.mxu0 %v324
      %1382 = vmatmul.mubr.f32.gmra.mrb[0].mxu0 %v316
      %v1383 = vpop.f32.mrb[0].mxu0
      %v1384 = vadd.f32 %v1279, %v1383
      %v1385 = vpop.f32.mrb[0].mxu0
      %1386 = vmatprep.mubr.f32.mxu0 %v325
      %1387 = vmatmul.mubr.f32.gmra.mrb[0].mxu0 %v317
      %v1388 = vpop.f32.mrb[0].mxu0
      %v1389 = vadd.f32 %v1284, %v1388
      %v1390 = vpop.f32.mrb[0].mxu0
      %1391 = vmatprep.mubr.f32.mxu0 %v326
      %1392 = vmatmul.mubr.f32.gmra.mrb[0].mxu0 %v318
      %v1393 = vpop.f32.mrb[0].mxu0
      %v1394 = vadd.f32 %v1289, %v1393
      %v1395 = vpop.f32.mrb[0].mxu0
      %1396 = vdwg.mxu0
      %v1397 = vtanh.pop %v1359
      %v1398 = vtanh.pop %v1364
      %v1399 = vtanh.pop %v1369
      %v1400 = vtanh.pop %v1374
      %v1401 = vtanh.pop %v1379
      %v1402 = vtanh.pop %v1384
      %v1403 = vtanh.pop %v1389
      %v1404 = vtanh.pop %v1394
      %s1405 = scalar_lea.vmem %s1, 768
      %v1406 = vld [vmem:[%s1405] sm:$0xf]
      %v1407 = vld [vmem:[%s1405 + $0x4] sm:$0xf]
      %v1408 = vld [vmem:[%s1405 + $0x8] sm:$0xf]
      %v1409 = vld [vmem:[%s1405 + $0xc] sm:$0xf]
      %v1410 = vld [vmem:[%s1405 + $0x10] sm:$0xf]
      %v1411 = vld [vmem:[%s1405 + $0x14] sm:$0xf]
      %v1412 = vld [vmem:[%s1405 + $0x18] sm:$0xf]
      %v1413 = vld [vmem:[%s1405 + $0x1c] sm:$0xf]
      %v1414 = vld [vmem:[%s1405 + $0x20] sm:$0xf]
      %v1415 = vld [vmem:[%s1405 + $0x24] sm:$0xf]
      %v1416 = vld [vmem:[%s1405 + $0x28] sm:$0xf]
      %v1417 = vld [vmem:[%s1405 + $0x2c] sm:$0xf]
      %v1418 = vld [vmem:[%s1405 + $0x30] sm:$0xf]
      %v1419 = vld [vmem:[%s1405 + $0x34] sm:$0xf]
      %v1420 = vld [vmem:[%s1405 + $0x38] sm:$0xf]
      %v1421 = vld [vmem:[%s1405 + $0x3c] sm:$0xf]
      %v1422 = vld [vmem:[%s1405 + $0x40] sm:$0xf]
      %v1423 = vld [vmem:[%s1405 + $0x44] sm:$0xf]
      %v1424 = vld [vmem:[%s1405 + $0x48] sm:$0xf]
      %v1425 = vld [vmem:[%s1405 + $0x4c] sm:$0xf]
      %v1426 = vld [vmem:[%s1405 + $0x50] sm:$0xf]
      %v1427 = vld [vmem:[%s1405 + $0x54] sm:$0xf]
      %v1428 = vld [vmem:[%s1405 + $0x58] sm:$0xf]
      %v1429 = vld [vmem:[%s1405 + $0x5c] sm:$0xf]
      %v1430 = vld [vmem:[%s1405 + $0x60] sm:$0xf]
      %v1431 = vld [vmem:[%s1405 + $0x64] sm:$0xf]
      %v1432 = vld [vmem:[%s1405 + $0x68] sm:$0xf]
      %v1433 = vld [vmem:[%s1405 + $0x6c] sm:$0xf]
      %v1434 = vld [vmem:[%s1405 + $0x70] sm:$0xf]
      %v1435 = vld [vmem:[%s1405 + $0x74] sm:$0xf]
      %v1436 = vld [vmem:[%s1405 + $0x78] sm:$0xf]
      %v1437 = vld [vmem:[%s1405 + $0x7c] sm:$0xf]
      %v1438 = vld [vmem:[%s1405 + $0x80] sm:$0xf]
      %v1439 = vld [vmem:[%s1405 + $0x84] sm:$0xf]
      %v1440 = vld [vmem:[%s1405 + $0x88] sm:$0xf]
      %v1441 = vld [vmem:[%s1405 + $0x8c] sm:$0xf]
      %v1442 = vld [vmem:[%s1405 + $0x90] sm:$0xf]
      %v1443 = vld [vmem:[%s1405 + $0x94] sm:$0xf]
      %v1444 = vld [vmem:[%s1405 + $0x98] sm:$0xf]
      %v1445 = vld [vmem:[%s1405 + $0x9c] sm:$0xf]
      %v1446 = vld [vmem:[%s1405 + $0xa0] sm:$0xf]
      %v1447 = vld [vmem:[%s1405 + $0xa4] sm:$0xf]
      %v1448 = vld [vmem:[%s1405 + $0xa8] sm:$0xf]
      %v1449 = vld [vmem:[%s1405 + $0xac] sm:$0xf]
      %v1450 = vld [vmem:[%s1405 + $0xb0] sm:$0xf]
      %v1451 = vld [vmem:[%s1405 + $0xb4] sm:$0xf]
      %v1452 = vld [vmem:[%s1405 + $0xb8] sm:$0xf]
      %v1453 = vld [vmem:[%s1405 + $0xbc] sm:$0xf]
      %v1454 = vld [vmem:[%s1405 + $0xc0] sm:$0xf]
      %v1455 = vld [vmem:[%s1405 + $0xc4] sm:$0xf]
      %v1456 = vld [vmem:[%s1405 + $0xc8] sm:$0xf]
      %v1457 = vld [vmem:[%s1405 + $0xcc] sm:$0xf]
      %v1458 = vld [vmem:[%s1405 + $0xd0] sm:$0xf]
      %v1459 = vld [vmem:[%s1405 + $0xd4] sm:$0xf]
      %v1460 = vld [vmem:[%s1405 + $0xd8] sm:$0xf]
      %v1461 = vld [vmem:[%s1405 + $0xdc] sm:$0xf]
      %v1462 = vld [vmem:[%s1405 + $0xe0] sm:$0xf]
      %v1463 = vld [vmem:[%s1405 + $0xe4] sm:$0xf]
      %v1464 = vld [vmem:[%s1405 + $0xe8] sm:$0xf]
      %v1465 = vld [vmem:[%s1405 + $0xec] sm:$0xf]
      %v1466 = vld [vmem:[%s1405 + $0xf0] sm:$0xf]
      %v1467 = vld [vmem:[%s1405 + $0xf4] sm:$0xf]
      %v1468 = vld [vmem:[%s1405 + $0xf8] sm:$0xf]
      %v1469 = vld [vmem:[%s1405 + $0xfc] sm:$0xf]
      %v1470 = vunpack.c.l.bf16 %v1406
      %v1471 = vunpack.c.l.bf16 %v1407
      %v1472 = vunpack.c.l.bf16 %v1408
      %v1473 = vunpack.c.l.bf16 %v1409
      %v1474 = vunpack.c.l.bf16 %v1410
      %v1475 = vunpack.c.l.bf16 %v1411
      %v1476 = vunpack.c.l.bf16 %v1412
      %v1477 = vunpack.c.l.bf16 %v1413
      %v1478 = vunpack.c.l.bf16 %v1414
      %v1479 = vunpack.c.l.bf16 %v1415
      %v1480 = vunpack.c.l.bf16 %v1416
      %v1481 = vunpack.c.l.bf16 %v1417
      %v1482 = vunpack.c.l.bf16 %v1418
      %v1483 = vunpack.c.l.bf16 %v1419
      %v1484 = vunpack.c.l.bf16 %v1420
      %v1485 = vunpack.c.l.bf16 %v1421
      %v1486 = vunpack.c.l.bf16 %v1422
      %v1487 = vunpack.c.l.bf16 %v1423
      %v1488 = vunpack.c.l.bf16 %v1424
      %v1489 = vunpack.c.l.bf16 %v1425
      %v1490 = vunpack.c.l.bf16 %v1426
      %v1491 = vunpack.c.l.bf16 %v1427
      %v1492 = vunpack.c.l.bf16 %v1428
      %v1493 = vunpack.c.l.bf16 %v1429
      %v1494 = vunpack.c.l.bf16 %v1430
      %v1495 = vunpack.c.l.bf16 %v1431
      %v1496 = vunpack.c.l.bf16 %v1432
      %v1497 = vunpack.c.l.bf16 %v1433
      %v1498 = vunpack.c.l.bf16 %v1434
      %v1499 = vunpack.c.l.bf16 %v1435
      %v1500 = vunpack.c.l.bf16 %v1436
      %v1501 = vunpack.c.l.bf16 %v1437
      %v1502 = vunpack.c.l.bf16 %v1438
      %v1503 = vunpack.c.l.bf16 %v1439
      %v1504 = vunpack.c.l.bf16 %v1440
      %v1505 = vunpack.c.l.bf16 %v1441
      %v1506 = vunpack.c.l.bf16 %v1442
      %v1507 = vunpack.c.l.bf16 %v1443
      %v1508 = vunpack.c.l.bf16 %v1444
      %v1509 = vunpack.c.l.bf16 %v1445
      %v1510 = vunpack.c.l.bf16 %v1446
      %v1511 = vunpack.c.l.bf16 %v1447
      %v1512 = vunpack.c.l.bf16 %v1448
      %v1513 = vunpack.c.l.bf16 %v1449
      %v1514 = vunpack.c.l.bf16 %v1450
      %v1515 = vunpack.c.l.bf16 %v1451
      %v1516 = vunpack.c.l.bf16 %v1452
      %v1517 = vunpack.c.l.bf16 %v1453
      %v1518 = vunpack.c.l.bf16 %v1454
      %v1519 = vunpack.c.l.bf16 %v1455
      %v1520 = vunpack.c.l.bf16 %v1456
      %v1521 = vunpack.c.l.bf16 %v1457
      %v1522 = vunpack.c.l.bf16 %v1458
      %v1523 = vunpack.c.l.bf16 %v1459
      %v1524 = vunpack.c.l.bf16 %v1460
      %v1525 = vunpack.c.l.bf16 %v1461
      %v1526 = vunpack.c.l.bf16 %v1462
      %v1527 = vunpack.c.l.bf16 %v1463
      %v1528 = vunpack.c.l.bf16 %v1464
      %v1529 = vunpack.c.l.bf16 %v1465
      %v1530 = vunpack.c.l.bf16 %v1466
      %v1531 = vunpack.c.l.bf16 %v1467
      %v1532 = vunpack.c.l.bf16 %v1468
      %v1533 = vunpack.c.l.bf16 %v1469
      %1534 = vmatprep.subr.mxu0 0.0
      %1535 = vmatpush1.msra.mxu0 %v1470
      %1536 = vmatprep.subr.mxu0 0.0
      %1537 = vmatpush1.msra.mxu0 %v1471
      %1538 = vmatprep.subr.mxu0 0.0
      %1539 = vmatpush1.msra.mxu0 %v1472
      %1540 = vmatprep.subr.mxu0 0.0
      %1541 = vmatpush1.msra.mxu0 %v1473
      %1542 = vmatprep.subr.mxu0 0.0
      %1543 = vmatpush1.msra.mxu0 %v1474
      %1544 = vmatprep.subr.mxu0 0.0
      %1545 = vmatpush1.msra.mxu0 %v1475
      %1546 = vmatprep.subr.mxu0 0.0
      %1547 = vmatpush1.msra.mxu0 %v1476
      %1548 = vmatprep.subr.mxu0 0.0
      %1549 = vmatpush1.msra.mxu0 %v1477
      %1550 = vmatprep.subr.mxu0 0.0
      %1551 = vmatpush1.msra.mxu0 %v1478
      %1552 = vmatprep.subr.mxu0 0.0
      %1553 = vmatpush1.msra.mxu0 %v1479
      %1554 = vmatprep.subr.mxu0 0.0
      %1555 = vmatpush1.msra.mxu0 %v1480
      %1556 = vmatprep.subr.mxu0 0.0
      %1557 = vmatpush1.msra.mxu0 %v1481
      %1558 = vmatprep.subr.mxu0 0.0
      %1559 = vmatpush1.msra.mxu0 %v1482
      %1560 = vmatprep.subr.mxu0 0.0
      %1561 = vmatpush1.msra.mxu0 %v1483
      %1562 = vmatprep.subr.mxu0 0.0
      %1563 = vmatpush1.msra.mxu0 %v1484
      %1564 = vmatprep.subr.mxu0 0.0
      %1565 = vmatpush1.msra.mxu0 %v1485
      %1566 = vmatprep.subr.mxu0 0.0
      %1567 = vmatpush1.msra.mxu0 %v1486
      %1568 = vmatprep.subr.mxu0 0.0
      %1569 = vmatpush1.msra.mxu0 %v1487
      %1570 = vmatprep.subr.mxu0 0.0
      %1571 = vmatpush1.msra.mxu0 %v1488
      %1572 = vmatprep.subr.mxu0 0.0
      %1573 = vmatpush1.msra.mxu0 %v1489
      %1574 = vmatprep.subr.mxu0 0.0
      %1575 = vmatpush1.msra.mxu0 %v1490
      %1576 = vmatprep.subr.mxu0 0.0
      %1577 = vmatpush1.msra.mxu0 %v1491
      %1578 = vmatprep.subr.mxu0 0.0
      %1579 = vmatpush1.msra.mxu0 %v1492
      %1580 = vmatprep.subr.mxu0 0.0
      %1581 = vmatpush1.msra.mxu0 %v1493
      %1582 = vmatprep.subr.mxu0 0.0
      %1583 = vmatpush1.msra.mxu0 %v1494
      %1584 = vmatprep.subr.mxu0 0.0
      %1585 = vmatpush1.msra.mxu0 %v1495
      %1586 = vmatprep.subr.mxu0 0.0
      %1587 = vmatpush1.msra.mxu0 %v1496
      %1588 = vmatprep.subr.mxu0 0.0
      %1589 = vmatpush1.msra.mxu0 %v1497
      %1590 = vmatprep.subr.mxu0 0.0
      %1591 = vmatpush1.msra.mxu0 %v1498
      %1592 = vmatprep.subr.mxu0 0.0
      %1593 = vmatpush1.msra.mxu0 %v1499
      %1594 = vmatprep.subr.mxu0 0.0
      %1595 = vmatpush1.msra.mxu0 %v1500
      %1596 = vmatprep.subr.mxu0 0.0
      %1597 = vmatpush1.msra.mxu0 %v1501
      %1598 = vmatprep.mubr.f32.mxu0 %v302
      %1599 = vmatmul.mubr.f32.gmra.mrb[0].mxu0 %v294
      %v1600 = vpop.f32.mrb[0].mxu0
      %v1601 = vadd.f32 %v1185, %v1600
      %v1602 = vpop.f32.mrb[0].mxu0
      %1603 = vmatprep.mubr.f32.mxu0 %v303
      %1604 = vmatmul.mubr.f32.gmra.mrb[0].mxu0 %v295
      %v1605 = vpop.f32.mrb[0].mxu0
      %v1606 = vadd.f32 %v1185, %v1605
      %v1607 = vpop.f32.mrb[0].mxu0
      %1608 = vmatprep.mubr.f32.mxu0 %v304
      %1609 = vmatmul.mubr.f32.gmra.mrb[0].mxu0 %v296
      %v1610 = vpop.f32.mrb[0].mxu0
      %v1611 = vadd.f32 %v1185, %v1610
      %v1612 = vpop.f32.mrb[0].mxu0
      %1613 = vmatprep.mubr.f32.mxu0 %v305
      %1614 = vmatmul.mubr.f32.gmra.mrb[0].mxu0 %v297
      %v1615 = vpop.f32.mrb[0].mxu0
      %v1616 = vadd.f32 %v1185, %v1615
      %v1617 = vpop.f32.mrb[0].mxu0
      %1618 = vmatprep.mubr.f32.mxu0 %v306
      %1619 = vmatmul.mubr.f32.gmra.mrb[0].mxu0 %v298
      %v1620 = vpop.f32.mrb[0].mxu0
      %v1621 = vadd.f32 %v1185, %v1620
      %v1622 = vpop.f32.mrb[0].mxu0
      %1623 = vmatprep.mubr.f32.mxu0 %v307
      %1624 = vmatmul.mubr.f32.gmra.mrb[0].mxu0 %v299
      %v1625 = vpop.f32.mrb[0].mxu0
      %v1626 = vadd.f32 %v1185, %v1625
      %v1627 = vpop.f32.mrb[0].mxu0
      %1628 = vmatprep.mubr.f32.mxu0 %v308
      %1629 = vmatmul.mubr.f32.gmra.mrb[0].mxu0 %v300
      %v1630 = vpop.f32.mrb[0].mxu0
      %v1631 = vadd.f32 %v1185, %v1630
      %v1632 = vpop.f32.mrb[0].mxu0
      %1633 = vmatprep.mubr.f32.mxu0 %v309
      %1634 = vmatmul.mubr.f32.gmra.mrb[0].mxu0 %v301
      %v1635 = vpop.f32.mrb[0].mxu0
      %v1636 = vadd.f32 %v1185, %v1635
      %v1637 = vpop.f32.mrb[0].mxu0
      %1638 = vdwg.mxu0
      %1639 = vmatprep.subr.mxu0 0.0
      %1640 = vmatpush1.msra.mxu0 %v1502
      %1641 = vmatprep.subr.mxu0 0.0
      %1642 = vmatpush1.msra.mxu0 %v1503
      %1643 = vmatprep.subr.mxu0 0.0
      %1644 = vmatpush1.msra.mxu0 %v1504
      %1645 = vmatprep.subr.mxu0 0.0
      %1646 = vmatpush1.msra.mxu0 %v1505
      %1647 = vmatprep.subr.mxu0 0.0
      %1648 = vmatpush1.msra.mxu0 %v1506
      %1649 = vmatprep.subr.mxu0 0.0
      %1650 = vmatpush1.msra.mxu0 %v1507
      %1651 = vmatprep.subr.mxu0 0.0
      %1652 = vmatpush1.msra.mxu0 %v1508
      %1653 = vmatprep.subr.mxu0 0.0
      %1654 = vmatpush1.msra.mxu0 %v1509
      %1655 = vmatprep.subr.mxu0 0.0
      %1656 = vmatpush1.msra.mxu0 %v1510
      %1657 = vmatprep.subr.mxu0 0.0
      %1658 = vmatpush1.msra.mxu0 %v1511
      %1659 = vmatprep.subr.mxu0 0.0
      %1660 = vmatpush1.msra.mxu0 %v1512
      %1661 = vmatprep.subr.mxu0 0.0
      %1662 = vmatpush1.msra.mxu0 %v1513
      %1663 = vmatprep.subr.mxu0 0.0
      %1664 = vmatpush1.msra.mxu0 %v1514
      %1665 = vmatprep.subr.mxu0 0.0
      %1666 = vmatpush1.msra.mxu0 %v1515
      %1667 = vmatprep.subr.mxu0 0.0
      %1668 = vmatpush1.msra.mxu0 %v1516
      %1669 = vmatprep.subr.mxu0 0.0
      %1670 = vmatpush1.msra.mxu0 %v1517
      %1671 = vmatprep.subr.mxu0 0.0
      %1672 = vmatpush1.msra.mxu0 %v1518
      %1673 = vmatprep.subr.mxu0 0.0
      %1674 = vmatpush1.msra.mxu0 %v1519
      %1675 = vmatprep.subr.mxu0 0.0
      %1676 = vmatpush1.msra.mxu0 %v1520
      %1677 = vmatprep.subr.mxu0 0.0
      %1678 = vmatpush1.msra.mxu0 %v1521
      %1679 = vmatprep.subr.mxu0 0.0
      %1680 = vmatpush1.msra.mxu0 %v1522
      %1681 = vmatprep.subr.mxu0 0.0
      %1682 = vmatpush1.msra.mxu0 %v1523
      %1683 = vmatprep.subr.mxu0 0.0
      %1684 = vmatpush1.msra.mxu0 %v1524
      %1685 = vmatprep.subr.mxu0 0.0
      %1686 = vmatpush1.msra.mxu0 %v1525
      %1687 = vmatprep.subr.mxu0 0.0
      %1688 = vmatpush1.msra.mxu0 %v1526
      %1689 = vmatprep.subr.mxu0 0.0
      %1690 = vmatpush1.msra.mxu0 %v1527
      %1691 = vmatprep.subr.mxu0 0.0
      %1692 = vmatpush1.msra.mxu0 %v1528
      %1693 = vmatprep.subr.mxu0 0.0
      %1694 = vmatpush1.msra.mxu0 %v1529
      %1695 = vmatprep.subr.mxu0 0.0
      %1696 = vmatpush1.msra.mxu0 %v1530
      %1697 = vmatprep.subr.mxu0 0.0
      %1698 = vmatpush1.msra.mxu0 %v1531
      %1699 = vmatprep.subr.mxu0 0.0
      %1700 = vmatpush1.msra.mxu0 %v1532
      %1701 = vmatprep.subr.mxu0 0.0
      %1702 = vmatpush1.msra.mxu0 %v1533
      %1703 = vmatprep.mubr.f32.mxu0 %v327
      %1704 = vmatmul.mubr.f32.gmra.mrb[0].mxu0 %v319
      %v1705 = vpop.f32.mrb[0].mxu0
      %v1706 = vadd.f32 %v1601, %v1705
      %v1707 = vpop.f32.mrb[0].mxu0
      %1708 = vmatprep.mubr.f32.mxu0 %v328
      %1709 = vmatmul.mubr.f32.gmra.mrb[0].mxu0 %v320
      %v1710 = vpop.f32.mrb[0].mxu0
      %v1711 = vadd.f32 %v1606, %v1710
      %v1712 = vpop.f32.mrb[0].mxu0
      %1713 = vmatprep.mubr.f32.mxu0 %v329
      %1714 = vmatmul.mubr.f32.gmra.mrb[0].mxu0 %v321
      %v1715 = vpop.f32.mrb[0].mxu0
      %v1716 = vadd.f32 %v1611, %v1715
      %v1717 = vpop.f32.mrb[0].mxu0
      %1718 = vmatprep.mubr.f32.mxu0 %v330
      %1719 = vmatmul.mubr.f32.gmra.mrb[0].mxu0 %v322
      %v1720 = vpop.f32.mrb[0].mxu0
      %v1721 = vadd.f32 %v1616, %v1720
      %v1722 = vpop.f32.mrb[0].mxu0
      %1723 = vmatprep.mubr.f32.mxu0 %v331
      %1724 = vmatmul.mubr.f32.gmra.mrb[0].mxu0 %v323
      %v1725 = vpop.f32.mrb[0].mxu0
      %v1726 = vadd.f32 %v1621, %v1725
      %v1727 = vpop.f32.mrb[0].mxu0
      %1728 = vmatprep.mubr.f32.mxu0 %v332
      %1729 = vmatmul.mubr.f32.gmra.mrb[0].mxu0 %v324
      %v1730 = vpop.f32.mrb[0].mxu0
      %v1731 = vadd.f32 %v1626, %v1730
      %v1732 = vpop.f32.mrb[0].mxu0
      %1733 = vmatprep.mubr.f32.mxu0 %v333
      %1734 = vmatmul.mubr.f32.gmra.mrb[0].mxu0 %v325
      %v1735 = vpop.f32.mrb[0].mxu0
      %v1736 = vadd.f32 %v1631, %v1735
      %v1737 = vpop.f32.mrb[0].mxu0
      %1738 = vmatprep.mubr.f32.mxu0 %v334
      %1739 = vmatmul.mubr.f32.gmra.mrb[0].mxu0 %v326
      %v1740 = vpop.f32.mrb[0].mxu0
      %v1741 = vadd.f32 %v1636, %v1740
      %v1742 = vpop.f32.mrb[0].mxu0
      %1743 = vdwg.mxu0
      %v1744 = vtanh.pop %v1706
      %v1745 = vtanh.pop %v1711
      %v1746 = vtanh.pop %v1716
      %v1747 = vtanh.pop %v1721
      %v1748 = vtanh.pop %v1726
      %v1749 = vtanh.pop %v1731
      %v1750 = vtanh.pop %v1736
      %v1751 = vtanh.pop %v1741
      %s1752 = scalar_lea.vmem %s224, 16
      %1753 = vst [vmem:[%s1752] sm:$0xff] %v1397
      %1754 = vst [vmem:[%s1752 + $0x8] sm:$0xff] %v1744
      %1755 = vst [vmem:[%s1752 + $0x20] sm:$0xff] %v1398
      %1756 = vst [vmem:[%s1752 + $0x28] sm:$0xff] %v1745
      %1757 = vst [vmem:[%s1752 + $0x40] sm:$0xff] %v1399
      %1758 = vst [vmem:[%s1752 + $0x48] sm:$0xff] %v1746
      %1759 = vst [vmem:[%s1752 + $0x60] sm:$0xff] %v1400
      %1760 = vst [vmem:[%s1752 + $0x68] sm:$0xff] %v1747
      %1761 = vst [vmem:[%s1752 + $0x80] sm:$0xff] %v1401
      %1762 = vst [vmem:[%s1752 + $0x88] sm:$0xff] %v1748
      %1763 = vst [vmem:[%s1752 + $0xa0] sm:$0xff] %v1402
      %1764 = vst [vmem:[%s1752 + $0xa8] sm:$0xff] %v1749
      %1765 = vst [vmem:[%s1752 + $0xc0] sm:$0xff] %v1403
      %1766 = vst [vmem:[%s1752 + $0xc8] sm:$0xff] %v1750
      %1767 = vst [vmem:[%s1752 + $0xe0] sm:$0xff] %v1404
      %1768 = vst [vmem:[%s1752 + $0xe8] sm:$0xff] %v1751
      %p1769 = scmp.lt.s32.totalorder %s16, 3
      %s1770 = scalar_select %p1769, %s16, 3
      %s1771 = smul.addr %s1770, 32
      %s1772 = smul.addr %s1771, 8
      %s1773 = scalar_lea.vmem %s5, %s1772
      // Predicated region
      $region41: #{generator_forward.5} parent=39 // pred_check
        %p1774 = pneg %p144
      $region42: #{generator_forward.5} parent=39 // pred_check_branch
        %1776 = sbr.rel (%p1774) target = $region44
      $region43: #{generator_forward.5} parent=39 // pred_region
        _
      $region44: #{generator_forward.5} parent=39 // pred_fallthru
        _
    $region40: #{generator_forward.5} parent=5 // pred_fallthru
      _
    %p1777 = scmp.le.s32.totalorder 2, %s11
    // Predicated region
    $region45: #{generator_forward.5} parent=5 // pred_check
      %p1778 = pneg %p1777
    $region46: #{generator_forward.5} parent=5 // pred_check_branch
      %1780 = sbr.rel (%p1778) target = $region48
    $region47: #{generator_forward.5} parent=5 // pred_region
      %s1781 = ssub.s32 %s11, 2
      // Predicated region
      $region49: #{generator_forward.5} parent=47 // pred_check
        %p1782 = pneg %p150
      $region50: #{generator_forward.5} parent=47 // pred_check_branch
        %1784 = sbr.rel (%p1782) target = $region52
      $region51: #{generator_forward.5} parent=47 // pred_region
        %p1785 = scmp.lt.s32.totalorder %s17, 3
        %s1786 = scalar_select %p1785, %s17, 3
        %s1787 = smul.addr %s1786, 32
        %s1788 = smul.addr %s1787, 8
        %s1789 = scalar_lea.vmem %s5, %s1788
      $region52: #{generator_forward.5} parent=47 // pred_fallthru
        _
    $region48: #{generator_forward.5} parent=5 // pred_fallthru
      _
  $region6: #{generator_forward.5} parent=0 // loop_footer
    %s15 = sadd.s32 1, %s11
  $region7: #{generator_forward.5} parent=0 // loop_footer_branch
    %10 = sbr.rel target = $region3
  $region8: #{generator_forward.5} parent=0 // loop_exit
    _

// kernel: generator_forward.4
$region0: #{generator_forward.4}
  #allocation0 [shape = 'u32[]', space=smem, size = 0x4, offset = 0x4, fixed_abs, tag = 'smem constant byte address 0x4 - core index']
  #allocation1 [shape = 'u32[144,128]{1,0:T(1,128)}', space=vmem, size = 0x12000, scoped, tag = 'internal scratch']
  #allocation2 [shape = 'f32[4,6,6,128]{3,2,1,0:T(8,128)}', space=vmem, size = 0x18000, scoped, tag = 'scratch operand']
  %s0 = inlined_call_operand.vmem [shape: f32[4,4,4,128], index: 0, kind: input, shape index: {}]
  %s1 = inlined_call_operand.vmem [shape: bf16[2,2,512,128], index: 1, kind: input, shape index: {}]
  %s2 = inlined_call_operand.vmem [shape: f32[1,128], index: 2, kind: input, shape index: {}]
  %s3 = inlined_call_operand.vmem [shape: f32[1,128], index: 3, kind: input, shape index: {}]
  %s4 = inlined_call_operand.vmem [shape: f32[1,128], index: 4, kind: input, shape index: {}]
  %s5 = inlined_call_operand.vmem [shape: f32[4,4,2,4,256], index: 5, kind: output, shape index: {}]
  %s6 = sld [smem:[#allocation0]]
  $region30: #{generator_forward.4} parent=0
    _
  %s8 = ssub.s32 1, %s6
  %s9 = scalar_select 0, %s8, %s6
  // Predicated region
  $region2: #{generator_forward.4} parent=0 // pred_check
    _
  $region3: #{generator_forward.4} parent=0 // pred_check_branch
    %11 = sbr.rel (0) target = $region5
  $region4: #{generator_forward.4} parent=0 // pred_region
    _
  $region5: #{generator_forward.4} parent=0 // pred_fallthru
    _
  // Predicated region
  $region6: #{generator_forward.4} parent=0 // pred_check
    _
  $region7: #{generator_forward.4} parent=0 // pred_check_branch
    %13 = sbr.rel (0) target = $region9
  $region8: #{generator_forward.4} parent=0 // pred_region
    _
  $region9: #{generator_forward.4} parent=0 // pred_fallthru
    _
  // Predicated region
  $region10: #{generator_forward.4} parent=0 // pred_check
    _
  $region11: #{generator_forward.4} parent=0 // pred_check_branch
    %15 = sbr.rel (0) target = $region13
  $region12: #{generator_forward.4} parent=0 // pred_region
    _
  $region13: #{generator_forward.4} parent=0 // pred_fallthru
    _
  // Predicated region
  $region14: #{generator_forward.4} parent=0 // pred_check
    _
  $region15: #{generator_forward.4} parent=0 // pred_check_branch
    %17 = sbr.rel (0) target = $region17
  $region16: #{generator_forward.4} parent=0 // pred_region
    _
  $region17: #{generator_forward.4} parent=0 // pred_fallthru
    _
  // Predicated region
  $region18: #{generator_forward.4} parent=0 // pred_check
    _
  $region19: #{generator_forward.4} parent=0 // pred_check_branch
    %19 = sbr.rel (0) target = $region21
  $region20: #{generator_forward.4} parent=0 // pred_region
    _
  $region21: #{generator_forward.4} parent=0 // pred_fallthru
    _
  %20 = vst [vmem:[#allocation2] sm:$0x3f] 0.0
  %21 = vst [vmem:[#allocation2 + $0x8] sm:$0x3f] 0.0
  %22 = vst [vmem:[#allocation2 + $0x10] sm:$0x3f] 0.0
  %23 = vst [vmem:[#allocation2 + $0x18] sm:$0x3f] 0.0
  %24 = vst [vmem:[#allocation2 + $0x20] sm:$0x3f] 0.0
  %25 = vst [vmem:[#allocation2 + $0x28] sm:$0x3f] 0.0
  %26 = vst [vmem:[#allocation2 + $0x30] sm:$0x3f] 0.0
  %27 = vst [vmem:[#allocation2 + $0x38] sm:$0x3f] 0.0
  %28 = vst [vmem:[#allocation2 + $0x40] sm:$0x3f] 0.0
  %29 = vst [vmem:[#allocation2 + $0x48] sm:$0x3f] 0.0
  %30 = vst [vmem:[#allocation2 + $0x50] sm:$0x3f] 0.0
  %31 = vst [vmem:[#allocation2 + $0x58] sm:$0x3f] 0.0
  %32 = vst [vmem:[#allocation2 + $0x60] sm:$0x3f] 0.0
  %33 = vst [vmem:[#allocation2 + $0x68] sm:$0x3f] 0.0
  %34 = vst [vmem:[#allocation2 + $0x70] sm:$0x3f] 0.0
  %35 = vst [vmem:[#allocation2 + $0x78] sm:$0x3f] 0.0
  %36 = vst [vmem:[#allocation2 + $0x80] sm:$0x3f] 0.0
  %37 = vst [vmem:[#allocation2 + $0x88] sm:$0x3f] 0.0
  %38 = vst [vmem:[#allocation2 + $0x90] sm:$0x3f] 0.0
  %39 = vst [vmem:[#allocation2 + $0x98] sm:$0x3f] 0.0
  %40 = vst [vmem:[#allocation2 + $0xa0] sm:$0x3f] 0.0
  %41 = vst [vmem:[#allocation2 + $0xa8] sm:$0x3f] 0.0
  %42 = vst [vmem:[#allocation2 + $0xb0] sm:$0x3f] 0.0
  %43 = vst [vmem:[#allocation2 + $0xb8] sm:$0x3f] 0.0
  %v44 = vld [vmem:[%s0] sm:$0xf]
  %v45 = vld [vmem:[%s0 + $0x4] sm:$0xf]
  %v46 = vld [vmem:[%s0 + $0x8] sm:$0xf]
  %v47 = vld [vmem:[%s0 + $0xc] sm:$0xf]
  %v48 = vld [vmem:[%s0 + $0x10] sm:$0xf]
  %v49 = vld [vmem:[%s0 + $0x14] sm:$0xf]
  %v50 = vld [vmem:[%s0 + $0x18] sm:$0xf]
  %v51 = vld [vmem:[%s0 + $0x1c] sm:$0xf]
  %v52 = vld [vmem:[%s0 + $0x20] sm:$0xf]
  %v53 = vld [vmem:[%s0 + $0x24] sm:$0xf]
  %v54 = vld [vmem:[%s0 + $0x28] sm:$0xf]
  %v55 = vld [vmem:[%s0 + $0x2c] sm:$0xf]
  %v56 = vld [vmem:[%s0 + $0x30] sm:$0xf]
  %v57 = vld [vmem:[%s0 + $0x34] sm:$0xf]
  %v58 = vld [vmem:[%s0 + $0x38] sm:$0xf]
  %v59 = vld [vmem:[%s0 + $0x3c] sm:$0xf]
  %s60 = scalar_lea.vmem [#allocation2], 8
  %61 = vst [vmem:[%s60 + $0x1] sm:$0xf] %v44
  %62 = vst [vmem:[%s60 + $0x9] sm:$0xf] %v45
  %63 = vst [vmem:[%s60 + $0x11] sm:$0xf] %v46
  %64 = vst [vmem:[%s60 + $0x19] sm:$0xf] %v47
  %65 = vst [vmem:[%s60 + $0x31] sm:$0xf] %v48
  %66 = vst [vmem:[%s60 + $0x39] sm:$0xf] %v49
  %67 = vst [vmem:[%s60 + $0x41] sm:$0xf] %v50
  %68 = vst [vmem:[%s60 + $0x49] sm:$0xf] %v51
  %69 = vst [vmem:[%s60 + $0x61] sm:$0xf] %v52
  %70 = vst [vmem:[%s60 + $0x69] sm:$0xf] %v53
  %71 = vst [vmem:[%s60 + $0x71] sm:$0xf] %v54
  %72 = vst [vmem:[%s60 + $0x79] sm:$0xf] %v55
  %73 = vst [vmem:[%s60 + $0x91] sm:$0xf] %v56
  %74 = vst [vmem:[%s60 + $0x99] sm:$0xf] %v57
  %75 = vst [vmem:[%s60 + $0xa1] sm:$0xf] %v58
  %76 = vst [vmem:[%s60 + $0xa9] sm:$0xf] %v59
  %v77 = vld [vmem:[#allocation2] sm:$0xf]
  %v78 = vld [vmem:[#allocation2 + $0x8] sm:$0xf]
  %v79 = vld [vmem:[#allocation2 + $0x10] sm:$0xf]
  %v80 = vld [vmem:[#allocation2 + $0x18] sm:$0xf]
  %v81 = vld [vmem:[#allocation2 + $0x30] sm:$0xf]
  %v82 = vld [vmem:[#allocation2 + $0x38] sm:$0xf]
  %v83 = vld [vmem:[#allocation2 + $0x40] sm:$0xf]
  %v84 = vld [vmem:[#allocation2 + $0x48] sm:$0xf]
  %v85 = vld [vmem:[#allocation2 + $0x60] sm:$0xf]
  %v86 = vld [vmem:[#allocation2 + $0x68] sm:$0xf]
  %v87 = vld [vmem:[#allocation2 + $0x70] sm:$0xf]
  %v88 = vld [vmem:[#allocation2 + $0x78] sm:$0xf]
  %v89 = vld [vmem:[#allocation2 + $0x90] sm:$0xf]
  %v90 = vld [vmem:[#allocation2 + $0x98] sm:$0xf]
  %v91 = vld [vmem:[#allocation2 + $0xa0] sm:$0xf]
  %v92 = vld [vmem:[#allocation2 + $0xa8] sm:$0xf]
  %v93 = vld [vmem:[#allocation2 + $0x1] sm:$0xf]
  %v94 = vld [vmem:[#allocation2 + $0x9] sm:$0xf]
  %v95 = vld [vmem:[#allocation2 + $0x11] sm:$0xf]
  %v96 = vld [vmem:[#allocation2 + $0x19] sm:$0xf]
  %v97 = vld [vmem:[#allocation2 + $0x31] sm:$0xf]
  %v98 = vld [vmem:[#allocation2 + $0x39] sm:$0xf]
  %v99 = vld [vmem:[#allocation2 + $0x41] sm:$0xf]
  %v100 = vld [vmem:[#allocation2 + $0x49] sm:$0xf]
  %v101 = vld [vmem:[#allocation2 + $0x61] sm:$0xf]
  %v102 = vld [vmem:[#allocation2 + $0x69] sm:$0xf]
  %v103 = vld [vmem:[#allocation2 + $0x71] sm:$0xf]
  %v104 = vld [vmem:[#allocation2 + $0x79] sm:$0xf]
  %v105 = vld [vmem:[#allocation2 + $0x91] sm:$0xf]
  %v106 = vld [vmem:[#allocation2 + $0x99] sm:$0xf]
  %v107 = vld [vmem:[#allocation2 + $0xa1] sm:$0xf]
  %v108 = vld [vmem:[#allocation2 + $0xa9] sm:$0xf]
  %v109 = vld [vmem:[#allocation2 + $0x2] sm:$0xf]
  %v110 = vld [vmem:[#allocation2 + $0xa] sm:$0xf]
  %v111 = vld [vmem:[#allocation2 + $0x12] sm:$0xf]
  %v112 = vld [vmem:[#allocation2 + $0x1a] sm:$0xf]
  %v113 = vld [vmem:[#allocation2 + $0x32] sm:$0xf]
  %v114 = vld [vmem:[#allocation2 + $0x3a] sm:$0xf]
  %v115 = vld [vmem:[#allocation2 + $0x42] sm:$0xf]
  %v116 = vld [vmem:[#allocation2 + $0x4a] sm:$0xf]
  %v117 = vld [vmem:[#allocation2 + $0x62] sm:$0xf]
  %v118 = vld [vmem:[#allocation2 + $0x6a] sm:$0xf]
  %v119 = vld [vmem:[#allocation2 + $0x72] sm:$0xf]
  %v120 = vld [vmem:[#allocation2 + $0x7a] sm:$0xf]
  %v121 = vld [vmem:[#allocation2 + $0x92] sm:$0xf]
  %v122 = vld [vmem:[#allocation2 + $0x9a] sm:$0xf]
  %v123 = vld [vmem:[#allocation2 + $0xa2] sm:$0xf]
  %v124 = vld [vmem:[#allocation2 + $0xaa] sm:$0xf]
  %v125 = vld [vmem:[%s60] sm:$0xf]
  %v126 = vld [vmem:[%s60 + $0x8] sm:$0xf]
  %v127 = vld [vmem:[%s60 + $0x10] sm:$0xf]
  %v128 = vld [vmem:[%s60 + $0x18] sm:$0xf]
  %v129 = vld [vmem:[%s60 + $0x30] sm:$0xf]
  %v130 = vld [vmem:[%s60 + $0x38] sm:$0xf]
  %v131 = vld [vmem:[%s60 + $0x40] sm:$0xf]
  %v132 = vld [vmem:[%s60 + $0x48] sm:$0xf]
  %v133 = vld [vmem:[%s60 + $0x60] sm:$0xf]
  %v134 = vld [vmem:[%s60 + $0x68] sm:$0xf]
  %v135 = vld [vmem:[%s60 + $0x70] sm:$0xf]
  %v136 = vld [vmem:[%s60 + $0x78] sm:$0xf]
  %v137 = vld [vmem:[%s60 + $0x90] sm:$0xf]
  %v138 = vld [vmem:[%s60 + $0x98] sm:$0xf]
  %v139 = vld [vmem:[%s60 + $0xa0] sm:$0xf]
  %v140 = vld [vmem:[%s60 + $0xa8] sm:$0xf]
  %v141 = vld [vmem:[%s60 + $0x1] sm:$0xf]
  %v142 = vld [vmem:[%s60 + $0x9] sm:$0xf]
  %v143 = vld [vmem:[%s60 + $0x11] sm:$0xf]
  %v144 = vld [vmem:[%s60 + $0x19] sm:$0xf]
  %v145 = vld [vmem:[%s60 + $0x31] sm:$0xf]
  %v146 = vld [vmem:[%s60 + $0x39] sm:$0xf]
  %v147 = vld [vmem:[%s60 + $0x41] sm:$0xf]
  %v148 = vld [vmem:[%s60 + $0x49] sm:$0xf]
  %v149 = vld [vmem:[%s60 + $0x61] sm:$0xf]
  %v150 = vld [vmem:[%s60 + $0x69] sm:$0xf]
  %v151 = vld [vmem:[%s60 + $0x71] sm:$0xf]
  %v152 = vld [vmem:[%s60 + $0x79] sm:$0xf]
  %v153 = vld [vmem:[%s60 + $0x91] sm:$0xf]
  %v154 = vld [vmem:[%s60 + $0x99] sm:$0xf]
  %v155 = vld [vmem:[%s60 + $0xa1] sm:$0xf]
  %v156 = vld [vmem:[%s60 + $0xa9] sm:$0xf]
  %v157 = vld [vmem:[%s60 + $0x2] sm:$0xf]
  %v158 = vld [vmem:[%s60 + $0xa] sm:$0xf]
  %v159 = vld [vmem:[%s60 + $0x12] sm:$0xf]
  %v160 = vld [vmem:[%s60 + $0x1a] sm:$0xf]
  %v161 = vld [vmem:[%s60 + $0x32] sm:$0xf]
  %v162 = vld [vmem:[%s60 + $0x3a] sm:$0xf]
  %v163 = vld [vmem:[%s60 + $0x42] sm:$0xf]
  %v164 = vld [vmem:[%s60 + $0x4a] sm:$0xf]
  %v165 = vld [vmem:[%s60 + $0x62] sm:$0xf]
  %v166 = vld [vmem:[%s60 + $0x6a] sm:$0xf]
  %v167 = vld [vmem:[%s60 + $0x72] sm:$0xf]
  %v168 = vld [vmem:[%s60 + $0x7a] sm:$0xf]
  %v169 = vld [vmem:[%s60 + $0x92] sm:$0xf]
  %v170 = vld [vmem:[%s60 + $0x9a] sm:$0xf]
  %v171 = vld [vmem:[%s60 + $0xa2] sm:$0xf]
  %v172 = vld [vmem:[%s60 + $0xaa] sm:$0xf]
  %s173 = scalar_lea.vmem [#allocation2], 16
  %v174 = vld [vmem:[%s173] sm:$0xf]
  %v175 = vld [vmem:[%s173 + $0x8] sm:$0xf]
  %v176 = vld [vmem:[%s173 + $0x10] sm:$0xf]
  %v177 = vld [vmem:[%s173 + $0x18] sm:$0xf]
  %v178 = vld [vmem:[%s173 + $0x30] sm:$0xf]
  %v179 = vld [vmem:[%s173 + $0x38] sm:$0xf]
  %v180 = vld [vmem:[%s173 + $0x40] sm:$0xf]
  %v181 = vld [vmem:[%s173 + $0x48] sm:$0xf]
  %v182 = vld [vmem:[%s173 + $0x60] sm:$0xf]
  %v183 = vld [vmem:[%s173 + $0x68] sm:$0xf]
  %v184 = vld [vmem:[%s173 + $0x70] sm:$0xf]
  %v185 = vld [vmem:[%s173 + $0x78] sm:$0xf]
  %v186 = vld [vmem:[%s173 + $0x90] sm:$0xf]
  %v187 = vld [vmem:[%s173 + $0x98] sm:$0xf]
  %v188 = vld [vmem:[%s173 + $0xa0] sm:$0xf]
  %v189 = vld [vmem:[%s173 + $0xa8] sm:$0xf]
  %v190 = vld [vmem:[%s173 + $0x1] sm:$0xf]
  %v191 = vld [vmem:[%s173 + $0x9] sm:$0xf]
  %v192 = vld [vmem:[%s173 + $0x11] sm:$0xf]
  %v193 = vld [vmem:[%s173 + $0x19] sm:$0xf]
  %v194 = vld [vmem:[%s173 + $0x31] sm:$0xf]
  %v195 = vld [vmem:[%s173 + $0x39] sm:$0xf]
  %v196 = vld [vmem:[%s173 + $0x41] sm:$0xf]
  %v197 = vld [vmem:[%s173 + $0x49] sm:$0xf]
  %v198 = vld [vmem:[%s173 + $0x61] sm:$0xf]
  %v199 = vld [vmem:[%s173 + $0x69] sm:$0xf]
  %v200 = vld [vmem:[%s173 + $0x71] sm:$0xf]
  %v201 = vld [vmem:[%s173 + $0x79] sm:$0xf]
  %v202 = vld [vmem:[%s173 + $0x91] sm:$0xf]
  %v203 = vld [vmem:[%s173 + $0x99] sm:$0xf]
  %v204 = vld [vmem:[%s173 + $0xa1] sm:$0xf]
  %v205 = vld [vmem:[%s173 + $0xa9] sm:$0xf]
  %v206 = vld [vmem:[%s173 + $0x2] sm:$0xf]
  %v207 = vld [vmem:[%s173 + $0xa] sm:$0xf]
  %v208 = vld [vmem:[%s173 + $0x12] sm:$0xf]
  %v209 = vld [vmem:[%s173 + $0x1a] sm:$0xf]
  %v210 = vld [vmem:[%s173 + $0x32] sm:$0xf]
  %v211 = vld [vmem:[%s173 + $0x3a] sm:$0xf]
  %v212 = vld [vmem:[%s173 + $0x42] sm:$0xf]
  %v213 = vld [vmem:[%s173 + $0x4a] sm:$0xf]
  %v214 = vld [vmem:[%s173 + $0x62] sm:$0xf]
  %v215 = vld [vmem:[%s173 + $0x6a] sm:$0xf]
  %v216 = vld [vmem:[%s173 + $0x72] sm:$0xf]
  %v217 = vld [vmem:[%s173 + $0x7a] sm:$0xf]
  %v218 = vld [vmem:[%s173 + $0x92] sm:$0xf]
  %v219 = vld [vmem:[%s173 + $0x9a] sm:$0xf]
  %v220 = vld [vmem:[%s173 + $0xa2] sm:$0xf]
  %v221 = vld [vmem:[%s173 + $0xaa] sm:$0xf]
  %v238 = vcombine.low %v77, %v78
  %v239 = vcombine.low %v79, %v80
  %v240 = vcombine.low %v81, %v82
  %v241 = vcombine.low %v83, %v84
  %v242 = vcombine.low %v85, %v86
  %v243 = vcombine.low %v87, %v88
  %v244 = vcombine.low %v89, %v90
  %v245 = vcombine.low %v91, %v92
  %v270 = vcombine.low %v93, %v94
  %v271 = vcombine.low %v95, %v96
  %v272 = vcombine.low %v97, %v98
  %v273 = vcombine.low %v99, %v100
  %v274 = vcombine.low %v101, %v102
  %v275 = vcombine.low %v103, %v104
  %v276 = vcombine.low %v105, %v106
  %v277 = vcombine.low %v107, %v108
  %v302 = vcombine.low %v125, %v126
  %v303 = vcombine.low %v127, %v128
  %v304 = vcombine.low %v129, %v130
  %v305 = vcombine.low %v131, %v132
  %v306 = vcombine.low %v133, %v134
  %v307 = vcombine.low %v135, %v136
  %v308 = vcombine.low %v137, %v138
  %v309 = vcombine.low %v139, %v140
  %v334 = vcombine.low %v141, %v142
  %v335 = vcombine.low %v143, %v144
  %v336 = vcombine.low %v145, %v146
  %v337 = vcombine.low %v147, %v148
  %v338 = vcombine.low %v149, %v150
  %v339 = vcombine.low %v151, %v152
  %v340 = vcombine.low %v153, %v154
  %v341 = vcombine.low %v155, %v156
  %v350 = vld [vmem:[%s1] sm:$0xf]
  %v351 = vld [vmem:[%s1 + $0x4] sm:$0xf]
  %v352 = vld [vmem:[%s1 + $0x8] sm:$0xf]
  %v353 = vld [vmem:[%s1 + $0xc] sm:$0xf]
  %v354 = vld [vmem:[%s1 + $0x10] sm:$0xf]
  %v355 = vld [vmem:[%s1 + $0x14] sm:$0xf]
  %v356 = vld [vmem:[%s1 + $0x18] sm:$0xf]
  %v357 = vld [vmem:[%s1 + $0x1c] sm:$0xf]
  %v358 = vld [vmem:[%s1 + $0x20] sm:$0xf]
  %v359 = vld [vmem:[%s1 + $0x24] sm:$0xf]
  %v360 = vld [vmem:[%s1 + $0x28] sm:$0xf]
  %v361 = vld [vmem:[%s1 + $0x2c] sm:$0xf]
  %v362 = vld [vmem:[%s1 + $0x30] sm:$0xf]
  %v363 = vld [vmem:[%s1 + $0x34] sm:$0xf]
  %v364 = vld [vmem:[%s1 + $0x38] sm:$0xf]
  %v365 = vld [vmem:[%s1 + $0x3c] sm:$0xf]
  %v366 = vld [vmem:[%s1 + $0x40] sm:$0xf]
  %v367 = vld [vmem:[%s1 + $0x44] sm:$0xf]
  %v368 = vld [vmem:[%s1 + $0x48] sm:$0xf]
  %v369 = vld [vmem:[%s1 + $0x4c] sm:$0xf]
  %v370 = vld [vmem:[%s1 + $0x50] sm:$0xf]
  %v371 = vld [vmem:[%s1 + $0x54] sm:$0xf]
  %v372 = vld [vmem:[%s1 + $0x58] sm:$0xf]
  %v373 = vld [vmem:[%s1 + $0x5c] sm:$0xf]
  %v374 = vld [vmem:[%s1 + $0x60] sm:$0xf]
  %v375 = vld [vmem:[%s1 + $0x64] sm:$0xf]
  %v376 = vld [vmem:[%s1 + $0x68] sm:$0xf]
  %v377 = vld [vmem:[%s1 + $0x6c] sm:$0xf]
  %v378 = vld [vmem:[%s1 + $0x70] sm:$0xf]
  %v379 = vld [vmem:[%s1 + $0x74] sm:$0xf]
  %v380 = vld [vmem:[%s1 + $0x78] sm:$0xf]
  %v381 = vld [vmem:[%s1 + $0x7c] sm:$0xf]
  %v382 = vld [vmem:[%s1 + $0x80] sm:$0xf]
  %v383 = vld [vmem:[%s1 + $0x84] sm:$0xf]
  %v384 = vld [vmem:[%s1 + $0x88] sm:$0xf]
  %v385 = vld [vmem:[%s1 + $0x8c] sm:$0xf]
  %v386 = vld [vmem:[%s1 + $0x90] sm:$0xf]
  %v387 = vld [vmem:[%s1 + $0x94] sm:$0xf]
  %v388 = vld [vmem:[%s1 + $0x98] sm:$0xf]
  %v389 = vld [vmem:[%s1 + $0x9c] sm:$0xf]
  %v390 = vld [vmem:[%s1 + $0xa0] sm:$0xf]
  %v391 = vld [vmem:[%s1 + $0xa4] sm:$0xf]
  %v392 = vld [vmem:[%s1 + $0xa8] sm:$0xf]
  %v393 = vld [vmem:[%s1 + $0xac] sm:$0xf]
  %v394 = vld [vmem:[%s1 + $0xb0] sm:$0xf]
  %v395 = vld [vmem:[%s1 + $0xb4] sm:$0xf]
  %v396 = vld [vmem:[%s1 + $0xb8] sm:$0xf]
  %v397 = vld [vmem:[%s1 + $0xbc] sm:$0xf]
  %v398 = vld [vmem:[%s1 + $0xc0] sm:$0xf]
  %v399 = vld [vmem:[%s1 + $0xc4] sm:$0xf]
  %v400 = vld [vmem:[%s1 + $0xc8] sm:$0xf]
  %v401 = vld [vmem:[%s1 + $0xcc] sm:$0xf]
  %v402 = vld [vmem:[%s1 + $0xd0] sm:$0xf]
  %v403 = vld [vmem:[%s1 + $0xd4] sm:$0xf]
  %v404 = vld [vmem:[%s1 + $0xd8] sm:$0xf]
  %v405 = vld [vmem:[%s1 + $0xdc] sm:$0xf]
  %v406 = vld [vmem:[%s1 + $0xe0] sm:$0xf]
  %v407 = vld [vmem:[%s1 + $0xe4] sm:$0xf]
  %v408 = vld [vmem:[%s1 + $0xe8] sm:$0xf]
  %v409 = vld [vmem:[%s1 + $0xec] sm:$0xf]
  %v410 = vld [vmem:[%s1 + $0xf0] sm:$0xf]
  %v411 = vld [vmem:[%s1 + $0xf4] sm:$0xf]
  %v412 = vld [vmem:[%s1 + $0xf8] sm:$0xf]
  %v413 = vld [vmem:[%s1 + $0xfc] sm:$0xf]
  %v414 = vunpack.c.l.bf16 %v350
  %v415 = vunpack.c.l.bf16 %v351
  %v416 = vunpack.c.l.bf16 %v352
  %v417 = vunpack.c.l.bf16 %v353
  %v418 = vunpack.c.l.bf16 %v354
  %v419 = vunpack.c.l.bf16 %v355
  %v420 = vunpack.c.l.bf16 %v356
  %v421 = vunpack.c.l.bf16 %v357
  %v422 = vunpack.c.l.bf16 %v358
  %v423 = vunpack.c.l.bf16 %v359
  %v424 = vunpack.c.l.bf16 %v360
  %v425 = vunpack.c.l.bf16 %v361
  %v426 = vunpack.c.l.bf16 %v362
  %v427 = vunpack.c.l.bf16 %v363
  %v428 = vunpack.c.l.bf16 %v364
  %v429 = vunpack.c.l.bf16 %v365
  %v430 = vunpack.c.l.bf16 %v366
  %v431 = vunpack.c.l.bf16 %v367
  %v432 = vunpack.c.l.bf16 %v368
  %v433 = vunpack.c.l.bf16 %v369
  %v434 = vunpack.c.l.bf16 %v370
  %v435 = vunpack.c.l.bf16 %v371
  %v436 = vunpack.c.l.bf16 %v372
  %v437 = vunpack.c.l.bf16 %v373
  %v438 = vunpack.c.l.bf16 %v374
  %v439 = vunpack.c.l.bf16 %v375
  %v440 = vunpack.c.l.bf16 %v376
  %v441 = vunpack.c.l.bf16 %v377
  %v442 = vunpack.c.l.bf16 %v378
  %v443 = vunpack.c.l.bf16 %v379
  %v444 = vunpack.c.l.bf16 %v380
  %v445 = vunpack.c.l.bf16 %v381
  %v446 = vunpack.c.l.bf16 %v382
  %v447 = vunpack.c.l.bf16 %v383
  %v448 = vunpack.c.l.bf16 %v384
  %v449 = vunpack.c.l.bf16 %v385
  %v450 = vunpack.c.l.bf16 %v386
  %v451 = vunpack.c.l.bf16 %v387
  %v452 = vunpack.c.l.bf16 %v388
  %v453 = vunpack.c.l.bf16 %v389
  %v454 = vunpack.c.l.bf16 %v390
  %v455 = vunpack.c.l.bf16 %v391
  %v456 = vunpack.c.l.bf16 %v392
  %v457 = vunpack.c.l.bf16 %v393
  %v458 = vunpack.c.l.bf16 %v394
  %v459 = vunpack.c.l.bf16 %v395
  %v460 = vunpack.c.l.bf16 %v396
  %v461 = vunpack.c.l.bf16 %v397
  %v462 = vunpack.c.l.bf16 %v398
  %v463 = vunpack.c.l.bf16 %v399
  %v464 = vunpack.c.l.bf16 %v400
  %v465 = vunpack.c.l.bf16 %v401
  %v466 = vunpack.c.l.bf16 %v402
  %v467 = vunpack.c.l.bf16 %v403
  %v468 = vunpack.c.l.bf16 %v404
  %v469 = vunpack.c.l.bf16 %v405
  %v470 = vunpack.c.l.bf16 %v406
  %v471 = vunpack.c.l.bf16 %v407
  %v472 = vunpack.c.l.bf16 %v408
  %v473 = vunpack.c.l.bf16 %v409
  %v474 = vunpack.c.l.bf16 %v410
  %v475 = vunpack.c.l.bf16 %v411
  %v476 = vunpack.c.l.bf16 %v412
  %v477 = vunpack.c.l.bf16 %v413
  %v478 = vld [vmem:[%s2] sm:$0x1]
  %v480 = vlaneseq
  %v481 = vshrl.u32 %v480, 7
  %v482 = vsub.s32 0, %v481
  %v483 = vrot.slane %v478, %v482
  %485 = vmatprep.subr.mxu0 0.0
  %486 = vmatpush1.msra.mxu0 %v414
  %487 = vmatprep.subr.mxu0 0.0
  %488 = vmatpush1.msra.mxu0 %v415
  %489 = vmatprep.subr.mxu0 0.0
  %490 = vmatpush1.msra.mxu0 %v416
  %491 = vmatprep.subr.mxu0 0.0
  %492 = vmatpush1.msra.mxu0 %v417
  %493 = vmatprep.subr.mxu0 0.0
  %494 = vmatpush1.msra.mxu0 %v418
  %495 = vmatprep.subr.mxu0 0.0
  %496 = vmatpush1.msra.mxu0 %v419
  %497 = vmatprep.subr.mxu0 0.0
  %498 = vmatpush1.msra.mxu0 %v420
  %499 = vmatprep.subr.mxu0 0.0
  %500 = vmatpush1.msra.mxu0 %v421
  %501 = vmatprep.subr.mxu0 0.0
  %502 = vmatpush1.msra.mxu0 %v422
  %503 = vmatprep.subr.mxu0 0.0
  %504 = vmatpush1.msra.mxu0 %v423
  %505 = vmatprep.subr.mxu0 0.0
  %506 = vmatpush1.msra.mxu0 %v424
  %507 = vmatprep.subr.mxu0 0.0
  %508 = vmatpush1.msra.mxu0 %v425
  %509 = vmatprep.subr.mxu0 0.0
  %510 = vmatpush1.msra.mxu0 %v426
  %511 = vmatprep.subr.mxu0 0.0
  %512 = vmatpush1.msra.mxu0 %v427
  %513 = vmatprep.subr.mxu0 0.0
  %514 = vmatpush1.msra.mxu0 %v428
  %515 = vmatprep.subr.mxu0 0.0
  %516 = vmatpush1.msra.mxu0 %v429
  %517 = vmatprep.subr.mxu0 0.0
  %518 = vmatpush1.msra.mxu0 %v430
  %519 = vmatprep.subr.mxu0 0.0
  %520 = vmatpush1.msra.mxu0 %v431
  %521 = vmatprep.subr.mxu0 0.0
  %522 = vmatpush1.msra.mxu0 %v432
  %523 = vmatprep.subr.mxu0 0.0
  %524 = vmatpush1.msra.mxu0 %v433
  %525 = vmatprep.subr.mxu0 0.0
  %526 = vmatpush1.msra.mxu0 %v434
  %527 = vmatprep.subr.mxu0 0.0
  %528 = vmatpush1.msra.mxu0 %v435
  %529 = vmatprep.subr.mxu0 0.0
  %530 = vmatpush1.msra.mxu0 %v436
  %531 = vmatprep.subr.mxu0 0.0
  %532 = vmatpush1.msra.mxu0 %v437
  %533 = vmatprep.subr.mxu0 0.0
  %534 = vmatpush1.msra.mxu0 %v438
  %535 = vmatprep.subr.mxu0 0.0
  %536 = vmatpush1.msra.mxu0 %v439
  %537 = vmatprep.subr.mxu0 0.0
  %538 = vmatpush1.msra.mxu0 %v440
  %539 = vmatprep.subr.mxu0 0.0
  %540 = vmatpush1.msra.mxu0 %v441
  %541 = vmatprep.subr.mxu0 0.0
  %542 = vmatpush1.msra.mxu0 %v442
  %543 = vmatprep.subr.mxu0 0.0
  %544 = vmatpush1.msra.mxu0 %v443
  %545 = vmatprep.subr.mxu0 0.0
  %546 = vmatpush1.msra.mxu0 %v444
  %547 = vmatprep.subr.mxu0 0.0
  %548 = vmatpush1.msra.mxu0 %v445
  %549 = vmatprep.mubr.f32.mxu0 %v270
  %550 = vmatmul.mubr.f32.gmra.mrb[0].mxu0 %v238
  %v551 = vpop.f32.mrb[0].mxu0
  %v552 = vadd.f32 %v483, %v551
  %v553 = vpop.f32.mrb[0].mxu0
  %554 = vmatprep.mubr.f32.mxu0 %v271
  %555 = vmatmul.mubr.f32.gmra.mrb[0].mxu0 %v239
  %v556 = vpop.f32.mrb[0].mxu0
  %v557 = vadd.f32 %v483, %v556
  %v558 = vpop.f32.mrb[0].mxu0
  %559 = vmatprep.mubr.f32.mxu0 %v272
  %560 = vmatmul.mubr.f32.gmra.mrb[0].mxu0 %v240
  %v561 = vpop.f32.mrb[0].mxu0
  %v562 = vadd.f32 %v483, %v561
  %v563 = vpop.f32.mrb[0].mxu0
  %564 = vmatprep.mubr.f32.mxu0 %v273
  %565 = vmatmul.mubr.f32.gmra.mrb[0].mxu0 %v241
  %v566 = vpop.f32.mrb[0].mxu0
  %v567 = vadd.f32 %v483, %v566
  %v568 = vpop.f32.mrb[0].mxu0
  %569 = vmatprep.mubr.f32.mxu0 %v274
  %570 = vmatmul.mubr.f32.gmra.mrb[0].mxu0 %v242
  %v571 = vpop.f32.mrb[0].mxu0
  %v572 = vadd.f32 %v483, %v571
  %v573 = vpop.f32.mrb[0].mxu0
  %574 = vmatprep.mubr.f32.mxu0 %v275
  %575 = vmatmul.mubr.f32.gmra.mrb[0].mxu0 %v243
  %v576 = vpop.f32.mrb[0].mxu0
  %v577 = vadd.f32 %v483, %v576
  %v578 = vpop.f32.mrb[0].mxu0
  %579 = vmatprep.mubr.f32.mxu0 %v276
  %580 = vmatmul.mubr.f32.gmra.mrb[0].mxu0 %v244
  %v581 = vpop.f32.mrb[0].mxu0
  %v582 = vadd.f32 %v483, %v581
  %v583 = vpop.f32.mrb[0].mxu0
  %584 = vmatprep.mubr.f32.mxu0 %v277
  %585 = vmatmul.mubr.f32.gmra.mrb[0].mxu0 %v245
  %v586 = vpop.f32.mrb[0].mxu0
  %v587 = vadd.f32 %v483, %v586
  %v588 = vpop.f32.mrb[0].mxu0
  %589 = vdwg.mxu0
  %590 = vmatprep.subr.mxu0 0.0
  %591 = vmatpush1.msra.mxu0 %v446
  %592 = vmatprep.subr.mxu0 0.0
  %593 = vmatpush1.msra.mxu0 %v447
  %594 = vmatprep.subr.mxu0 0.0
  %595 = vmatpush1.msra.mxu0 %v448
  %596 = vmatprep.subr.mxu0 0.0
  %597 = vmatpush1.msra.mxu0 %v449
  %598 = vmatprep.subr.mxu0 0.0
  %599 = vmatpush1.msra.mxu0 %v450
  %600 = vmatprep.subr.mxu0 0.0
  %601 = vmatpush1.msra.mxu0 %v451
  %602 = vmatprep.subr.mxu0 0.0
  %603 = vmatpush1.msra.mxu0 %v452
  %604 = vmatprep.subr.mxu0 0.0
  %605 = vmatpush1.msra.mxu0 %v453
  %606 = vmatprep.subr.mxu0 0.0
  %607 = vmatpush1.msra.mxu0 %v454
  %608 = vmatprep.subr.mxu0 0.0
  %609 = vmatpush1.msra.mxu0 %v455
  %610 = vmatprep.subr.mxu0 0.0
  %611 = vmatpush1.msra.mxu0 %v456
  %612 = vmatprep.subr.mxu0 0.0
  %613 = vmatpush1.msra.mxu0 %v457
  %614 = vmatprep.subr.mxu0 0.0
  %615 = vmatpush1.msra.mxu0 %v458
  %616 = vmatprep.subr.mxu0 0.0
  %617 = vmatpush1.msra.mxu0 %v459
  %618 = vmatprep.subr.mxu0 0.0
  %619 = vmatpush1.msra.mxu0 %v460
  %620 = vmatprep.subr.mxu0 0.0
  %621 = vmatpush1.msra.mxu0 %v461
  %622 = vmatprep.subr.mxu0 0.0
  %623 = vmatpush1.msra.mxu0 %v462
  %624 = vmatprep.subr.mxu0 0.0
  %625 = vmatpush1.msra.mxu0 %v463
  %626 = vmatprep.subr.mxu0 0.0
  %627 = vmatpush1.msra.mxu0 %v464
  %628 = vmatprep.subr.mxu0 0.0
  %629 = vmatpush1.msra.mxu0 %v465
  %630 = vmatprep.subr.mxu0 0.0
  %631 = vmatpush1.msra.mxu0 %v466
  %632 = vmatprep.subr.mxu0 0.0
  %633 = vmatpush1.msra.mxu0 %v467
  %634 = vmatprep.subr.mxu0 0.0
  %635 = vmatpush1.msra.mxu0 %v468
  %636 = vmatprep.subr.mxu0 0.0
  %637 = vmatpush1.msra.mxu0 %v469
  %638 = vmatprep.subr.mxu0 0.0
  %639 = vmatpush1.msra.mxu0 %v470
  %640 = vmatprep.subr.mxu0 0.0
  %641 = vmatpush1.msra.mxu0 %v471
  %642 = vmatprep.subr.mxu0 0.0
  %643 = vmatpush1.msra.mxu0 %v472
  %644 = vmatprep.subr.mxu0 0.0
  %645 = vmatpush1.msra.mxu0 %v473
  %646 = vmatprep.subr.mxu0 0.0
  %647 = vmatpush1.msra.mxu0 %v474
  %648 = vmatprep.subr.mxu0 0.0
  %649 = vmatpush1.msra.mxu0 %v475
  %650 = vmatprep.subr.mxu0 0.0
  %651 = vmatpush1.msra.mxu0 %v476
  %652 = vmatprep.subr.mxu0 0.0
  %653 = vmatpush1.msra.mxu0 %v477
  %654 = vmatprep.mubr.f32.mxu0 %v334
  %655 = vmatmul.mubr.f32.gmra.mrb[0].mxu0 %v302
  %v656 = vpop.f32.mrb[0].mxu0
  %v657 = vadd.f32 %v552, %v656
  %v658 = vpop.f32.mrb[0].mxu0
  %659 = vmatprep.mubr.f32.mxu0 %v335
  %660 = vmatmul.mubr.f32.gmra.mrb[0].mxu0 %v303
  %v661 = vpop.f32.mrb[0].mxu0
  %v662 = vadd.f32 %v557, %v661
  %v663 = vpop.f32.mrb[0].mxu0
  %664 = vmatprep.mubr.f32.mxu0 %v336
  %665 = vmatmul.mubr.f32.gmra.mrb[0].mxu0 %v304
  %v666 = vpop.f32.mrb[0].mxu0
  %v667 = vadd.f32 %v562, %v666
  %v668 = vpop.f32.mrb[0].mxu0
  %669 = vmatprep.mubr.f32.mxu0 %v337
  %670 = vmatmul.mubr.f32.gmra.mrb[0].mxu0 %v305
  %v671 = vpop.f32.mrb[0].mxu0
  %v672 = vadd.f32 %v567, %v671
  %v673 = vpop.f32.mrb[0].mxu0
  %674 = vmatprep.mubr.f32.mxu0 %v338
  %675 = vmatmul.mubr.f32.gmra.mrb[0].mxu0 %v306
  %v676 = vpop.f32.mrb[0].mxu0
  %v677 = vadd.f32 %v572, %v676
  %v678 = vpop.f32.mrb[0].mxu0
  %679 = vmatprep.mubr.f32.mxu0 %v339
  %680 = vmatmul.mubr.f32.gmra.mrb[0].mxu0 %v307
  %v681 = vpop.f32.mrb[0].mxu0
  %v682 = vadd.f32 %v577, %v681
  %v683 = vpop.f32.mrb[0].mxu0
  %684 = vmatprep.mubr.f32.mxu0 %v340
  %685 = vmatmul.mubr.f32.gmra.mrb[0].mxu0 %v308
  %v686 = vpop.f32.mrb[0].mxu0
  %v687 = vadd.f32 %v582, %v686
  %v688 = vpop.f32.mrb[0].mxu0
  %689 = vmatprep.mubr.f32.mxu0 %v341
  %690 = vmatmul.mubr.f32.gmra.mrb[0].mxu0 %v309
  %v691 = vpop.f32.mrb[0].mxu0
  %v692 = vadd.f32 %v587, %v691
  %v693 = vpop.f32.mrb[0].mxu0
  %694 = vdwg.mxu0
  %v711 = vcombine.low %v109, %v110
  %v712 = vcombine.low %v111, %v112
  %v713 = vcombine.low %v113, %v114
  %v714 = vcombine.low %v115, %v116
  %v715 = vcombine.low %v117, %v118
  %v716 = vcombine.low %v119, %v120
  %v717 = vcombine.low %v121, %v122
  %v718 = vcombine.low %v123, %v124
  %v743 = vcombine.low %v157, %v158
  %v744 = vcombine.low %v159, %v160
  %v745 = vcombine.low %v161, %v162
  %v746 = vcombine.low %v163, %v164
  %v747 = vcombine.low %v165, %v166
  %v748 = vcombine.low %v167, %v168
  %v749 = vcombine.low %v169, %v170
  %v750 = vcombine.low %v171, %v172
  %s759 = scalar_lea.vmem %s1, 256
  %v760 = vld [vmem:[%s759] sm:$0xf]
  %v761 = vld [vmem:[%s759 + $0x4] sm:$0xf]
  %v762 = vld [vmem:[%s759 + $0x8] sm:$0xf]
  %v763 = vld [vmem:[%s759 + $0xc] sm:$0xf]
  %v764 = vld [vmem:[%s759 + $0x10] sm:$0xf]
  %v765 = vld [vmem:[%s759 + $0x14] sm:$0xf]
  %v766 = vld [vmem:[%s759 + $0x18] sm:$0xf]
  %v767 = vld [vmem:[%s759 + $0x1c] sm:$0xf]
  %v768 = vld [vmem:[%s759 + $0x20] sm:$0xf]
  %v769 = vld [vmem:[%s759 + $0x24] sm:$0xf]
  %v770 = vld [vmem:[%s759 + $0x28] sm:$0xf]
  %v771 = vld [vmem:[%s759 + $0x2c] sm:$0xf]
  %v772 = vld [vmem:[%s759 + $0x30] sm:$0xf]
  %v773 = vld [vmem:[%s759 + $0x34] sm:$0xf]
  %v774 = vld [vmem:[%s759 + $0x38] sm:$0xf]
  %v775 = vld [vmem:[%s759 + $0x3c] sm:$0xf]
  %v776 = vld [vmem:[%s759 + $0x40] sm:$0xf]
  %v777 = vld [vmem:[%s759 + $0x44] sm:$0xf]
  %v778 = vld [vmem:[%s759 + $0x48] sm:$0xf]
  %v779 = vld [vmem:[%s759 + $0x4c] sm:$0xf]
  %v780 = vld [vmem:[%s759 + $0x50] sm:$0xf]
  %v781 = vld [vmem:[%s759 + $0x54] sm:$0xf]
  %v782 = vld [vmem:[%s759 + $0x58] sm:$0xf]
  %v783 = vld [vmem:[%s759 + $0x5c] sm:$0xf]
  %v784 = vld [vmem:[%s759 + $0x60] sm:$0xf]
  %v785 = vld [vmem:[%s759 + $0x64] sm:$0xf]
  %v786 = vld [vmem:[%s759 + $0x68] sm:$0xf]
  %v787 = vld [vmem:[%s759 + $0x6c] sm:$0xf]
  %v788 = vld [vmem:[%s759 + $0x70] sm:$0xf]
  %v789 = vld [vmem:[%s759 + $0x74] sm:$0xf]
  %v790 = vld [vmem:[%s759 + $0x78] sm:$0xf]
  %v791 = vld [vmem:[%s759 + $0x7c] sm:$0xf]
  %v792 = vld [vmem:[%s759 + $0x80] sm:$0xf]
  %v793 = vld [vmem:[%s759 + $0x84] sm:$0xf]
  %v794 = vld [vmem:[%s759 + $0x88] sm:$0xf]
  %v795 = vld [vmem:[%s759 + $0x8c] sm:$0xf]
  %v796 = vld [vmem:[%s759 + $0x90] sm:$0xf]
  %v797 = vld [vmem:[%s759 + $0x94] sm:$0xf]
  %v798 = vld [vmem:[%s759 + $0x98] sm:$0xf]
  %v799 = vld [vmem:[%s759 + $0x9c] sm:$0xf]
  %v800 = vld [vmem:[%s759 + $0xa0] sm:$0xf]
  %v801 = vld [vmem:[%s759 + $0xa4] sm:$0xf]
  %v802 = vld [vmem:[%s759 + $0xa8] sm:$0xf]
  %v803 = vld [vmem:[%s759 + $0xac] sm:$0xf]
  %v804 = vld [vmem:[%s759 + $0xb0] sm:$0xf]
  %v805 = vld [vmem:[%s759 + $0xb4] sm:$0xf]
  %v806 = vld [vmem:[%s759 + $0xb8] sm:$0xf]
  %v807 = vld [vmem:[%s759 + $0xbc] sm:$0xf]
  %v808 = vld [vmem:[%s759 + $0xc0] sm:$0xf]
  %v809 = vld [vmem:[%s759 + $0xc4] sm:$0xf]
  %v810 = vld [vmem:[%s759 + $0xc8] sm:$0xf]
  %v811 = vld [vmem:[%s759 + $0xcc] sm:$0xf]
  %v812 = vld [vmem:[%s759 + $0xd0] sm:$0xf]
  %v813 = vld [vmem:[%s759 + $0xd4] sm:$0xf]
  %v814 = vld [vmem:[%s759 + $0xd8] sm:$0xf]
  %v815 = vld [vmem:[%s759 + $0xdc] sm:$0xf]
  %v816 = vld [vmem:[%s759 + $0xe0] sm:$0xf]
  %v817 = vld [vmem:[%s759 + $0xe4] sm:$0xf]
  %v818 = vld [vmem:[%s759 + $0xe8] sm:$0xf]
  %v819 = vld [vmem:[%s759 + $0xec] sm:$0xf]
  %v820 = vld [vmem:[%s759 + $0xf0] sm:$0xf]
  %v821 = vld [vmem:[%s759 + $0xf4] sm:$0xf]
  %v822 = vld [vmem:[%s759 + $0xf8] sm:$0xf]
  %v823 = vld [vmem:[%s759 + $0xfc] sm:$0xf]
  %v824 = vunpack.c.l.bf16 %v760
  %v825 = vunpack.c.l.bf16 %v761
  %v826 = vunpack.c.l.bf16 %v762
  %v827 = vunpack.c.l.bf16 %v763
  %v828 = vunpack.c.l.bf16 %v764
  %v829 = vunpack.c.l.bf16 %v765
  %v830 = vunpack.c.l.bf16 %v766
  %v831 = vunpack.c.l.bf16 %v767
  %v832 = vunpack.c.l.bf16 %v768
  %v833 = vunpack.c.l.bf16 %v769
  %v834 = vunpack.c.l.bf16 %v770
  %v835 = vunpack.c.l.bf16 %v771
  %v836 = vunpack.c.l.bf16 %v772
  %v837 = vunpack.c.l.bf16 %v773
  %v838 = vunpack.c.l.bf16 %v774
  %v839 = vunpack.c.l.bf16 %v775
  %v840 = vunpack.c.l.bf16 %v776
  %v841 = vunpack.c.l.bf16 %v777
  %v842 = vunpack.c.l.bf16 %v778
  %v843 = vunpack.c.l.bf16 %v779
  %v844 = vunpack.c.l.bf16 %v780
  %v845 = vunpack.c.l.bf16 %v781
  %v846 = vunpack.c.l.bf16 %v782
  %v847 = vunpack.c.l.bf16 %v783
  %v848 = vunpack.c.l.bf16 %v784
  %v849 = vunpack.c.l.bf16 %v785
  %v850 = vunpack.c.l.bf16 %v786
  %v851 = vunpack.c.l.bf16 %v787
  %v852 = vunpack.c.l.bf16 %v788
  %v853 = vunpack.c.l.bf16 %v789
  %v854 = vunpack.c.l.bf16 %v790
  %v855 = vunpack.c.l.bf16 %v791
  %v856 = vunpack.c.l.bf16 %v792
  %v857 = vunpack.c.l.bf16 %v793
  %v858 = vunpack.c.l.bf16 %v794
  %v859 = vunpack.c.l.bf16 %v795
  %v860 = vunpack.c.l.bf16 %v796
  %v861 = vunpack.c.l.bf16 %v797
  %v862 = vunpack.c.l.bf16 %v798
  %v863 = vunpack.c.l.bf16 %v799
  %v864 = vunpack.c.l.bf16 %v800
  %v865 = vunpack.c.l.bf16 %v801
  %v866 = vunpack.c.l.bf16 %v802
  %v867 = vunpack.c.l.bf16 %v803
  %v868 = vunpack.c.l.bf16 %v804
  %v869 = vunpack.c.l.bf16 %v805
  %v870 = vunpack.c.l.bf16 %v806
  %v871 = vunpack.c.l.bf16 %v807
  %v872 = vunpack.c.l.bf16 %v808
  %v873 = vunpack.c.l.bf16 %v809
  %v874 = vunpack.c.l.bf16 %v810
  %v875 = vunpack.c.l.bf16 %v811
  %v876 = vunpack.c.l.bf16 %v812
  %v877 = vunpack.c.l.bf16 %v813
  %v878 = vunpack.c.l.bf16 %v814
  %v879 = vunpack.c.l.bf16 %v815
  %v880 = vunpack.c.l.bf16 %v816
  %v881 = vunpack.c.l.bf16 %v817
  %v882 = vunpack.c.l.bf16 %v818
  %v883 = vunpack.c.l.bf16 %v819
  %v884 = vunpack.c.l.bf16 %v820
  %v885 = vunpack.c.l.bf16 %v821
  %v886 = vunpack.c.l.bf16 %v822
  %v887 = vunpack.c.l.bf16 %v823
  %888 = vmatprep.subr.mxu0 0.0
  %889 = vmatpush1.msra.mxu0 %v824
  %890 = vmatprep.subr.mxu0 0.0
  %891 = vmatpush1.msra.mxu0 %v825
  %892 = vmatprep.subr.mxu0 0.0
  %893 = vmatpush1.msra.mxu0 %v826
  %894 = vmatprep.subr.mxu0 0.0
  %895 = vmatpush1.msra.mxu0 %v827
  %896 = vmatprep.subr.mxu0 0.0
  %897 = vmatpush1.msra.mxu0 %v828
  %898 = vmatprep.subr.mxu0 0.0
  %899 = vmatpush1.msra.mxu0 %v829
  %900 = vmatprep.subr.mxu0 0.0
  %901 = vmatpush1.msra.mxu0 %v830
  %902 = vmatprep.subr.mxu0 0.0
  %903 = vmatpush1.msra.mxu0 %v831
  %904 = vmatprep.subr.mxu0 0.0
  %905 = vmatpush1.msra.mxu0 %v832
  %906 = vmatprep.subr.mxu0 0.0
  %907 = vmatpush1.msra.mxu0 %v833
  %908 = vmatprep.subr.mxu0 0.0
  %909 = vmatpush1.msra.mxu0 %v834
  %910 = vmatprep.subr.mxu0 0.0
  %911 = vmatpush1.msra.mxu0 %v835
  %912 = vmatprep.subr.mxu0 0.0
  %913 = vmatpush1.msra.mxu0 %v836
  %914 = vmatprep.subr.mxu0 0.0
  %915 = vmatpush1.msra.mxu0 %v837
  %916 = vmatprep.subr.mxu0 0.0
  %917 = vmatpush1.msra.mxu0 %v838
  %918 = vmatprep.subr.mxu0 0.0
  %919 = vmatpush1.msra.mxu0 %v839
  %920 = vmatprep.subr.mxu0 0.0
  %921 = vmatpush1.msra.mxu0 %v840
  %922 = vmatprep.subr.mxu0 0.0
  %923 = vmatpush1.msra.mxu0 %v841
  %924 = vmatprep.subr.mxu0 0.0
  %925 = vmatpush1.msra.mxu0 %v842
  %926 = vmatprep.subr.mxu0 0.0
  %927 = vmatpush1.msra.mxu0 %v843
  %928 = vmatprep.subr.mxu0 0.0
  %929 = vmatpush1.msra.mxu0 %v844
  %930 = vmatprep.subr.mxu0 0.0
  %931 = vmatpush1.msra.mxu0 %v845
  %932 = vmatprep.subr.mxu0 0.0
  %933 = vmatpush1.msra.mxu0 %v846
  %934 = vmatprep.subr.mxu0 0.0
  %935 = vmatpush1.msra.mxu0 %v847
  %936 = vmatprep.subr.mxu0 0.0
  %937 = vmatpush1.msra.mxu0 %v848
  %938 = vmatprep.subr.mxu0 0.0
  %939 = vmatpush1.msra.mxu0 %v849
  %940 = vmatprep.subr.mxu0 0.0
  %941 = vmatpush1.msra.mxu0 %v850
  %942 = vmatprep.subr.mxu0 0.0
  %943 = vmatpush1.msra.mxu0 %v851
  %944 = vmatprep.subr.mxu0 0.0
  %945 = vmatpush1.msra.mxu0 %v852
  %946 = vmatprep.subr.mxu0 0.0
  %947 = vmatpush1.msra.mxu0 %v853
  %948 = vmatprep.subr.mxu0 0.0
  %949 = vmatpush1.msra.mxu0 %v854
  %950 = vmatprep.subr.mxu0 0.0
  %951 = vmatpush1.msra.mxu0 %v855
  %952 = vmatprep.mubr.f32.mxu0 %v711
  %953 = vmatmul.mubr.f32.gmra.mrb[0].mxu0 %v270
  %v954 = vpop.f32.mrb[0].mxu0
  %v955 = vadd.f32 %v483, %v954
  %v956 = vpop.f32.mrb[0].mxu0
  %957 = vmatprep.mubr.f32.mxu0 %v712
  %958 = vmatmul.mubr.f32.gmra.mrb[0].mxu0 %v271
  %v959 = vpop.f32.mrb[0].mxu0
  %v960 = vadd.f32 %v483, %v959
  %v961 = vpop.f32.mrb[0].mxu0
  %962 = vmatprep.mubr.f32.mxu0 %v713
  %963 = vmatmul.mubr.f32.gmra.mrb[0].mxu0 %v272
  %v964 = vpop.f32.mrb[0].mxu0
  %v965 = vadd.f32 %v483, %v964
  %v966 = vpop.f32.mrb[0].mxu0
  %967 = vmatprep.mubr.f32.mxu0 %v714
  %968 = vmatmul.mubr.f32.gmra.mrb[0].mxu0 %v273
  %v969 = vpop.f32.mrb[0].mxu0
  %v970 = vadd.f32 %v483, %v969
  %v971 = vpop.f32.mrb[0].mxu0
  %972 = vmatprep.mubr.f32.mxu0 %v715
  %973 = vmatmul.mubr.f32.gmra.mrb[0].mxu0 %v274
  %v974 = vpop.f32.mrb[0].mxu0
  %v975 = vadd.f32 %v483, %v974
  %v976 = vpop.f32.mrb[0].mxu0
  %977 = vmatprep.mubr.f32.mxu0 %v716
  %978 = vmatmul.mubr.f32.gmra.mrb[0].mxu0 %v275
  %v979 = vpop.f32.mrb[0].mxu0
  %v980 = vadd.f32 %v483, %v979
  %v981 = vpop.f32.mrb[0].mxu0
  %982 = vmatprep.mubr.f32.mxu0 %v717
  %983 = vmatmul.mubr.f32.gmra.mrb[0].mxu0 %v276
  %v984 = vpop.f32.mrb[0].mxu0
  %v985 = vadd.f32 %v483, %v984
  %v986 = vpop.f32.mrb[0].mxu0
  %987 = vmatprep.mubr.f32.mxu0 %v718
  %988 = vmatmul.mubr.f32.gmra.mrb[0].mxu0 %v277
  %v989 = vpop.f32.mrb[0].mxu0
  %v990 = vadd.f32 %v483, %v989
  %v991 = vpop.f32.mrb[0].mxu0
  %992 = vdwg.mxu0
  %993 = vmatprep.subr.mxu0 0.0
  %994 = vmatpush1.msra.mxu0 %v856
  %995 = vmatprep.subr.mxu0 0.0
  %996 = vmatpush1.msra.mxu0 %v857
  %997 = vmatprep.subr.mxu0 0.0
  %998 = vmatpush1.msra.mxu0 %v858
  %999 = vmatprep.subr.mxu0 0.0
  %1000 = vmatpush1.msra.mxu0 %v859
  %1001 = vmatprep.subr.mxu0 0.0
  %1002 = vmatpush1.msra.mxu0 %v860
  %1003 = vmatprep.subr.mxu0 0.0
  %1004 = vmatpush1.msra.mxu0 %v861
  %1005 = vmatprep.subr.mxu0 0.0
  %1006 = vmatpush1.msra.mxu0 %v862
  %1007 = vmatprep.subr.mxu0 0.0
  %1008 = vmatpush1.msra.mxu0 %v863
  %1009 = vmatprep.subr.mxu0 0.0
  %1010 = vmatpush1.msra.mxu0 %v864
  %1011 = vmatprep.subr.mxu0 0.0
  %1012 = vmatpush1.msra.mxu0 %v865
  %1013 = vmatprep.subr.mxu0 0.0
  %1014 = vmatpush1.msra.mxu0 %v866
  %1015 = vmatprep.subr.mxu0 0.0
  %1016 = vmatpush1.msra.mxu0 %v867
  %1017 = vmatprep.subr.mxu0 0.0
  %1018 = vmatpush1.msra.mxu0 %v868
  %1019 = vmatprep.subr.mxu0 0.0
  %1020 = vmatpush1.msra.mxu0 %v869
  %1021 = vmatprep.subr.mxu0 0.0
  %1022 = vmatpush1.msra.mxu0 %v870
  %1023 = vmatprep.subr.mxu0 0.0
  %1024 = vmatpush1.msra.mxu0 %v871
  %1025 = vmatprep.subr.mxu0 0.0
  %1026 = vmatpush1.msra.mxu0 %v872
  %1027 = vmatprep.subr.mxu0 0.0
  %1028 = vmatpush1.msra.mxu0 %v873
  %1029 = vmatprep.subr.mxu0 0.0
  %1030 = vmatpush1.msra.mxu0 %v874
  %1031 = vmatprep.subr.mxu0 0.0
  %1032 = vmatpush1.msra.mxu0 %v875
  %1033 = vmatprep.subr.mxu0 0.0
  %1034 = vmatpush1.msra.mxu0 %v876
  %1035 = vmatprep.subr.mxu0 0.0
  %1036 = vmatpush1.msra.mxu0 %v877
  %1037 = vmatprep.subr.mxu0 0.0
  %1038 = vmatpush1.msra.mxu0 %v878
  %1039 = vmatprep.subr.mxu0 0.0
  %1040 = vmatpush1.msra.mxu0 %v879
  %1041 = vmatprep.subr.mxu0 0.0
  %1042 = vmatpush1.msra.mxu0 %v880
  %1043 = vmatprep.subr.mxu0 0.0
  %1044 = vmatpush1.msra.mxu0 %v881
  %1045 = vmatprep.subr.mxu0 0.0
  %1046 = vmatpush1.msra.mxu0 %v882
  %1047 = vmatprep.subr.mxu0 0.0
  %1048 = vmatpush1.msra.mxu0 %v883
  %1049 = vmatprep.subr.mxu0 0.0
  %1050 = vmatpush1.msra.mxu0 %v884
  %1051 = vmatprep.subr.mxu0 0.0
  %1052 = vmatpush1.msra.mxu0 %v885
  %1053 = vmatprep.subr.mxu0 0.0
  %1054 = vmatpush1.msra.mxu0 %v886
  %1055 = vmatprep.subr.mxu0 0.0
  %1056 = vmatpush1.msra.mxu0 %v887
  %1057 = vmatprep.mubr.f32.mxu0 %v743
  %1058 = vmatmul.mubr.f32.gmra.mrb[0].mxu0 %v334
  %v1059 = vpop.f32.mrb[0].mxu0
  %v1060 = vadd.f32 %v955, %v1059
  %v1061 = vpop.f32.mrb[0].mxu0
  %1062 = vmatprep.mubr.f32.mxu0 %v744
  %1063 = vmatmul.mubr.f32.gmra.mrb[0].mxu0 %v335
  %v1064 = vpop.f32.mrb[0].mxu0
  %v1065 = vadd.f32 %v960, %v1064
  %v1066 = vpop.f32.mrb[0].mxu0
  %1067 = vmatprep.mubr.f32.mxu0 %v745
  %1068 = vmatmul.mubr.f32.gmra.mrb[0].mxu0 %v336
  %v1069 = vpop.f32.mrb[0].mxu0
  %v1070 = vadd.f32 %v965, %v1069
  %v1071 = vpop.f32.mrb[0].mxu0
  %1072 = vmatprep.mubr.f32.mxu0 %v746
  %1073 = vmatmul.mubr.f32.gmra.mrb[0].mxu0 %v337
  %v1074 = vpop.f32.mrb[0].mxu0
  %v1075 = vadd.f32 %v970, %v1074
  %v1076 = vpop.f32.mrb[0].mxu0
  %1077 = vmatprep.mubr.f32.mxu0 %v747
  %1078 = vmatmul.mubr.f32.gmra.mrb[0].mxu0 %v338
  %v1079 = vpop.f32.mrb[0].mxu0
  %v1080 = vadd.f32 %v975, %v1079
  %v1081 = vpop.f32.mrb[0].mxu0
  %1082 = vmatprep.mubr.f32.mxu0 %v748
  %1083 = vmatmul.mubr.f32.gmra.mrb[0].mxu0 %v339
  %v1084 = vpop.f32.mrb[0].mxu0
  %v1085 = vadd.f32 %v980, %v1084
  %v1086 = vpop.f32.mrb[0].mxu0
  %1087 = vmatprep.mubr.f32.mxu0 %v749
  %1088 = vmatmul.mubr.f32.gmra.mrb[0].mxu0 %v340
  %v1089 = vpop.f32.mrb[0].mxu0
  %v1090 = vadd.f32 %v985, %v1089
  %v1091 = vpop.f32.mrb[0].mxu0
  %1092 = vmatprep.mubr.f32.mxu0 %v750
  %1093 = vmatmul.mubr.f32.gmra.mrb[0].mxu0 %v341
  %v1094 = vpop.f32.mrb[0].mxu0
  %v1095 = vadd.f32 %v990, %v1094
  %v1096 = vpop.f32.mrb[0].mxu0
  %1097 = vdwg.mxu0
  %v1114 = vcombine.low %v174, %v175
  %v1115 = vcombine.low %v176, %v177
  %v1116 = vcombine.low %v178, %v179
  %v1117 = vcombine.low %v180, %v181
  %v1118 = vcombine.low %v182, %v183
  %v1119 = vcombine.low %v184, %v185
  %v1120 = vcombine.low %v186, %v187
  %v1121 = vcombine.low %v188, %v189
  %v1146 = vcombine.low %v190, %v191
  %v1147 = vcombine.low %v192, %v193
  %v1148 = vcombine.low %v194, %v195
  %v1149 = vcombine.low %v196, %v197
  %v1150 = vcombine.low %v198, %v199
  %v1151 = vcombine.low %v200, %v201
  %v1152 = vcombine.low %v202, %v203
  %v1153 = vcombine.low %v204, %v205
  %s1162 = scalar_lea.vmem %s1, 512
  %v1163 = vld [vmem:[%s1162] sm:$0xf]
  %v1164 = vld [vmem:[%s1162 + $0x4] sm:$0xf]
  %v1165 = vld [vmem:[%s1162 + $0x8] sm:$0xf]
  %v1166 = vld [vmem:[%s1162 + $0xc] sm:$0xf]
  %v1167 = vld [vmem:[%s1162 + $0x10] sm:$0xf]
  %v1168 = vld [vmem:[%s1162 + $0x14] sm:$0xf]
  %v1169 = vld [vmem:[%s1162 + $0x18] sm:$0xf]
  %v1170 = vld [vmem:[%s1162 + $0x1c] sm:$0xf]
  %v1171 = vld [vmem:[%s1162 + $0x20] sm:$0xf]
  %v1172 = vld [vmem:[%s1162 + $0x24] sm:$0xf]
  %v1173 = vld [vmem:[%s1162 + $0x28] sm:$0xf]
  %v1174 = vld [vmem:[%s1162 + $0x2c] sm:$0xf]
  %v1175 = vld [vmem:[%s1162 + $0x30] sm:$0xf]
  %v1176 = vld [vmem:[%s1162 + $0x34] sm:$0xf]
  %v1177 = vld [vmem:[%s1162 + $0x38] sm:$0xf]
  %v1178 = vld [vmem:[%s1162 + $0x3c] sm:$0xf]
  %v1179 = vld [vmem:[%s1162 + $0x40] sm:$0xf]
  %v1180 = vld [vmem:[%s1162 + $0x44] sm:$0xf]
  %v1181 = vld [vmem:[%s1162 + $0x48] sm:$0xf]
  %v1182 = vld [vmem:[%s1162 + $0x4c] sm:$0xf]
  %v1183 = vld [vmem:[%s1162 + $0x50] sm:$0xf]
  %v1184 = vld [vmem:[%s1162 + $0x54] sm:$0xf]
  %v1185 = vld [vmem:[%s1162 + $0x58] sm:$0xf]
  %v1186 = vld [vmem:[%s1162 + $0x5c] sm:$0xf]
  %v1187 = vld [vmem:[%s1162 + $0x60] sm:$0xf]
  %v1188 = vld [vmem:[%s1162 + $0x64] sm:$0xf]
  %v1189 = vld [vmem:[%s1162 + $0x68] sm:$0xf]
  %v1190 = vld [vmem:[%s1162 + $0x6c] sm:$0xf]
  %v1191 = vld [vmem:[%s1162 + $0x70] sm:$0xf]
  %v1192 = vld [vmem:[%s1162 + $0x74] sm:$0xf]
  %v1193 = vld [vmem:[%s1162 + $0x78] sm:$0xf]
  %v1194 = vld [vmem:[%s1162 + $0x7c] sm:$0xf]
  %v1195 = vld [vmem:[%s1162 + $0x80] sm:$0xf]
  %v1196 = vld [vmem:[%s1162 + $0x84] sm:$0xf]
  %v1197 = vld [vmem:[%s1162 + $0x88] sm:$0xf]
  %v1198 = vld [vmem:[%s1162 + $0x8c] sm:$0xf]
  %v1199 = vld [vmem:[%s1162 + $0x90] sm:$0xf]
  %v1200 = vld [vmem:[%s1162 + $0x94] sm:$0xf]
  %v1201 = vld [vmem:[%s1162 + $0x98] sm:$0xf]
  %v1202 = vld [vmem:[%s1162 + $0x9c] sm:$0xf]
  %v1203 = vld [vmem:[%s1162 + $0xa0] sm:$0xf]
  %v1204 = vld [vmem:[%s1162 + $0xa4] sm:$0xf]
  %v1205 = vld [vmem:[%s1162 + $0xa8] sm:$0xf]
  %v1206 = vld [vmem:[%s1162 + $0xac] sm:$0xf]
  %v1207 = vld [vmem:[%s1162 + $0xb0] sm:$0xf]
  %v1208 = vld [vmem:[%s1162 + $0xb4] sm:$0xf]
  %v1209 = vld [vmem:[%s1162 + $0xb8] sm:$0xf]
  %v1210 = vld [vmem:[%s1162 + $0xbc] sm:$0xf]
  %v1211 = vld [vmem:[%s1162 + $0xc0] sm:$0xf]
  %v1212 = vld [vmem:[%s1162 + $0xc4] sm:$0xf]
  %v1213 = vld [vmem:[%s1162 + $0xc8] sm:$0xf]
  %v1214 = vld [vmem:[%s1162 + $0xcc] sm:$0xf]
  %v1215 = vld [vmem:[%s1162 + $0xd0] sm:$0xf]
  %v1216 = vld [vmem:[%s1162 + $0xd4] sm:$0xf]
  %v1217 = vld [vmem:[%s1162 + $0xd8] sm:$0xf]
  %v1218 = vld [vmem:[%s1162 + $0xdc] sm:$0xf]
  %v1219 = vld [vmem:[%s1162 + $0xe0] sm:$0xf]
  %v1220 = vld [vmem:[%s1162 + $0xe4] sm:$0xf]
  %v1221 = vld [vmem:[%s1162 + $0xe8] sm:$0xf]
  %v1222 = vld [vmem:[%s1162 + $0xec] sm:$0xf]
  %v1223 = vld [vmem:[%s1162 + $0xf0] sm:$0xf]
  %v1224 = vld [vmem:[%s1162 + $0xf4] sm:$0xf]
  %v1225 = vld [vmem:[%s1162 + $0xf8] sm:$0xf]
  %v1226 = vld [vmem:[%s1162 + $0xfc] sm:$0xf]
  %v1227 = vunpack.c.l.bf16 %v1163
  %v1228 = vunpack.c.l.bf16 %v1164
  %v1229 = vunpack.c.l.bf16 %v1165
  %v1230 = vunpack.c.l.bf16 %v1166
  %v1231 = vunpack.c.l.bf16 %v1167
  %v1232 = vunpack.c.l.bf16 %v1168
  %v1233 = vunpack.c.l.bf16 %v1169
  %v1234 = vunpack.c.l.bf16 %v1170
  %v1235 = vunpack.c.l.bf16 %v1171
  %v1236 = vunpack.c.l.bf16 %v1172
  %v1237 = vunpack.c.l.bf16 %v1173
  %v1238 = vunpack.c.l.bf16 %v1174
  %v1239 = vunpack.c.l.bf16 %v1175
  %v1240 = vunpack.c.l.bf16 %v1176
  %v1241 = vunpack.c.l.bf16 %v1177
  %v1242 = vunpack.c.l.bf16 %v1178
  %v1243 = vunpack.c.l.bf16 %v1179
  %v1244 = vunpack.c.l.bf16 %v1180
  %v1245 = vunpack.c.l.bf16 %v1181
  %v1246 = vunpack.c.l.bf16 %v1182
  %v1247 = vunpack.c.l.bf16 %v1183
  %v1248 = vunpack.c.l.bf16 %v1184
  %v1249 = vunpack.c.l.bf16 %v1185
  %v1250 = vunpack.c.l.bf16 %v1186
  %v1251 = vunpack.c.l.bf16 %v1187
  %v1252 = vunpack.c.l.bf16 %v1188
  %v1253 = vunpack.c.l.bf16 %v1189
  %v1254 = vunpack.c.l.bf16 %v1190
  %v1255 = vunpack.c.l.bf16 %v1191
  %v1256 = vunpack.c.l.bf16 %v1192
  %v1257 = vunpack.c.l.bf16 %v1193
  %v1258 = vunpack.c.l.bf16 %v1194
  %v1259 = vunpack.c.l.bf16 %v1195
  %v1260 = vunpack.c.l.bf16 %v1196
  %v1261 = vunpack.c.l.bf16 %v1197
  %v1262 = vunpack.c.l.bf16 %v1198
  %v1263 = vunpack.c.l.bf16 %v1199
  %v1264 = vunpack.c.l.bf16 %v1200
  %v1265 = vunpack.c.l.bf16 %v1201
  %v1266 = vunpack.c.l.bf16 %v1202
  %v1267 = vunpack.c.l.bf16 %v1203
  %v1268 = vunpack.c.l.bf16 %v1204
  %v1269 = vunpack.c.l.bf16 %v1205
  %v1270 = vunpack.c.l.bf16 %v1206
  %v1271 = vunpack.c.l.bf16 %v1207
  %v1272 = vunpack.c.l.bf16 %v1208
  %v1273 = vunpack.c.l.bf16 %v1209
  %v1274 = vunpack.c.l.bf16 %v1210
  %v1275 = vunpack.c.l.bf16 %v1211
  %v1276 = vunpack.c.l.bf16 %v1212
  %v1277 = vunpack.c.l.bf16 %v1213
  %v1278 = vunpack.c.l.bf16 %v1214
  %v1279 = vunpack.c.l.bf16 %v1215
  %v1280 = vunpack.c.l.bf16 %v1216
  %v1281 = vunpack.c.l.bf16 %v1217
  %v1282 = vunpack.c.l.bf16 %v1218
  %v1283 = vunpack.c.l.bf16 %v1219
  %v1284 = vunpack.c.l.bf16 %v1220
  %v1285 = vunpack.c.l.bf16 %v1221
  %v1286 = vunpack.c.l.bf16 %v1222
  %v1287 = vunpack.c.l.bf16 %v1223
  %v1288 = vunpack.c.l.bf16 %v1224
  %v1289 = vunpack.c.l.bf16 %v1225
  %v1290 = vunpack.c.l.bf16 %v1226
  %1291 = vmatprep.subr.mxu0 0.0
  %1292 = vmatpush1.msra.mxu0 %v1227
  %1293 = vmatprep.subr.mxu0 0.0
  %1294 = vmatpush1.msra.mxu0 %v1228
  %1295 = vmatprep.subr.mxu0 0.0
  %1296 = vmatpush1.msra.mxu0 %v1229
  %1297 = vmatprep.subr.mxu0 0.0
  %1298 = vmatpush1.msra.mxu0 %v1230
  %1299 = vmatprep.subr.mxu0 0.0
  %1300 = vmatpush1.msra.mxu0 %v1231
  %1301 = vmatprep.subr.mxu0 0.0
  %1302 = vmatpush1.msra.mxu0 %v1232
  %1303 = vmatprep.subr.mxu0 0.0
  %1304 = vmatpush1.msra.mxu0 %v1233
  %1305 = vmatprep.subr.mxu0 0.0
  %1306 = vmatpush1.msra.mxu0 %v1234
  %1307 = vmatprep.subr.mxu0 0.0
  %1308 = vmatpush1.msra.mxu0 %v1235
  %1309 = vmatprep.subr.mxu0 0.0
  %1310 = vmatpush1.msra.mxu0 %v1236
  %1311 = vmatprep.subr.mxu0 0.0
  %1312 = vmatpush1.msra.mxu0 %v1237
  %1313 = vmatprep.subr.mxu0 0.0
  %1314 = vmatpush1.msra.mxu0 %v1238
  %1315 = vmatprep.subr.mxu0 0.0
  %1316 = vmatpush1.msra.mxu0 %v1239
  %1317 = vmatprep.subr.mxu0 0.0
  %1318 = vmatpush1.msra.mxu0 %v1240
  %1319 = vmatprep.subr.mxu0 0.0
  %1320 = vmatpush1.msra.mxu0 %v1241
  %1321 = vmatprep.subr.mxu0 0.0
  %1322 = vmatpush1.msra.mxu0 %v1242
  %1323 = vmatprep.subr.mxu0 0.0
  %1324 = vmatpush1.msra.mxu0 %v1243
  %1325 = vmatprep.subr.mxu0 0.0
  %1326 = vmatpush1.msra.mxu0 %v1244
  %1327 = vmatprep.subr.mxu0 0.0
  %1328 = vmatpush1.msra.mxu0 %v1245
  %1329 = vmatprep.subr.mxu0 0.0
  %1330 = vmatpush1.msra.mxu0 %v1246
  %1331 = vmatprep.subr.mxu0 0.0
  %1332 = vmatpush1.msra.mxu0 %v1247
  %1333 = vmatprep.subr.mxu0 0.0
  %1334 = vmatpush1.msra.mxu0 %v1248
  %1335 = vmatprep.subr.mxu0 0.0
  %1336 = vmatpush1.msra.mxu0 %v1249
  %1337 = vmatprep.subr.mxu0 0.0
  %1338 = vmatpush1.msra.mxu0 %v1250
  %1339 = vmatprep.subr.mxu0 0.0
  %1340 = vmatpush1.msra.mxu0 %v1251
  %1341 = vmatprep.subr.mxu0 0.0
  %1342 = vmatpush1.msra.mxu0 %v1252
  %1343 = vmatprep.subr.mxu0 0.0
  %1344 = vmatpush1.msra.mxu0 %v1253
  %1345 = vmatprep.subr.mxu0 0.0
  %1346 = vmatpush1.msra.mxu0 %v1254
  %1347 = vmatprep.subr.mxu0 0.0
  %1348 = vmatpush1.msra.mxu0 %v1255
  %1349 = vmatprep.subr.mxu0 0.0
  %1350 = vmatpush1.msra.mxu0 %v1256
  %1351 = vmatprep.subr.mxu0 0.0
  %1352 = vmatpush1.msra.mxu0 %v1257
  %1353 = vmatprep.subr.mxu0 0.0
  %1354 = vmatpush1.msra.mxu0 %v1258
  %1355 = vmatprep.mubr.f32.mxu0 %v334
  %1356 = vmatmul.mubr.f32.gmra.mrb[0].mxu0 %v302
  %v1357 = vpop.f32.mrb[0].mxu0
  %v1358 = vadd.f32 %v483, %v1357
  %v1359 = vpop.f32.mrb[0].mxu0
  %1360 = vmatprep.mubr.f32.mxu0 %v335
  %1361 = vmatmul.mubr.f32.gmra.mrb[0].mxu0 %v303
  %v1362 = vpop.f32.mrb[0].mxu0
  %v1363 = vadd.f32 %v483, %v1362
  %v1364 = vpop.f32.mrb[0].mxu0
  %1365 = vmatprep.mubr.f32.mxu0 %v336
  %1366 = vmatmul.mubr.f32.gmra.mrb[0].mxu0 %v304
  %v1367 = vpop.f32.mrb[0].mxu0
  %v1368 = vadd.f32 %v483, %v1367
  %v1369 = vpop.f32.mrb[0].mxu0
  %1370 = vmatprep.mubr.f32.mxu0 %v337
  %1371 = vmatmul.mubr.f32.gmra.mrb[0].mxu0 %v305
  %v1372 = vpop.f32.mrb[0].mxu0
  %v1373 = vadd.f32 %v483, %v1372
  %v1374 = vpop.f32.mrb[0].mxu0
  %1375 = vmatprep.mubr.f32.mxu0 %v338
  %1376 = vmatmul.mubr.f32.gmra.mrb[0].mxu0 %v306
  %v1377 = vpop.f32.mrb[0].mxu0
  %v1378 = vadd.f32 %v483, %v1377
  %v1379 = vpop.f32.mrb[0].mxu0
  %1380 = vmatprep.mubr.f32.mxu0 %v339
  %1381 = vmatmul.mubr.f32.gmra.mrb[0].mxu0 %v307
  %v1382 = vpop.f32.mrb[0].mxu0
  %v1383 = vadd.f32 %v483, %v1382
  %v1384 = vpop.f32.mrb[0].mxu0
  %1385 = vmatprep.mubr.f32.mxu0 %v340
  %1386 = vmatmul.mubr.f32.gmra.mrb[0].mxu0 %v308
  %v1387 = vpop.f32.mrb[0].mxu0
  %v1388 = vadd.f32 %v483, %v1387
  %v1389 = vpop.f32.mrb[0].mxu0
  %1390 = vmatprep.mubr.f32.mxu0 %v341
  %1391 = vmatmul.mubr.f32.gmra.mrb[0].mxu0 %v309
  %v1392 = vpop.f32.mrb[0].mxu0
  %v1393 = vadd.f32 %v483, %v1392
  %v1394 = vpop.f32.mrb[0].mxu0
  %1395 = vdwg.mxu0
  %1396 = vmatprep.subr.mxu0 0.0
  %1397 = vmatpush1.msra.mxu0 %v1259
  %1398 = vmatprep.subr.mxu0 0.0
  %1399 = vmatpush1.msra.mxu0 %v1260
  %1400 = vmatprep.subr.mxu0 0.0
  %1401 = vmatpush1.msra.mxu0 %v1261
  %1402 = vmatprep.subr.mxu0 0.0
  %1403 = vmatpush1.msra.mxu0 %v1262
  %1404 = vmatprep.subr.mxu0 0.0
  %1405 = vmatpush1.msra.mxu0 %v1263
  %1406 = vmatprep.subr.mxu0 0.0
  %1407 = vmatpush1.msra.mxu0 %v1264
  %1408 = vmatprep.subr.mxu0 0.0
  %1409 = vmatpush1.msra.mxu0 %v1265
  %1410 = vmatprep.subr.mxu0 0.0
  %1411 = vmatpush1.msra.mxu0 %v1266
  %1412 = vmatprep.subr.mxu0 0.0
  %1413 = vmatpush1.msra.mxu0 %v1267
  %1414 = vmatprep.subr.mxu0 0.0
  %1415 = vmatpush1.msra.mxu0 %v1268
  %1416 = vmatprep.subr.mxu0 0.0
  %1417 = vmatpush1.msra.mxu0 %v1269
  %1418 = vmatprep.subr.mxu0 0.0
  %1419 = vmatpush1.msra.mxu0 %v1270
  %1420 = vmatprep.subr.mxu0 0.0
  %1421 = vmatpush1.msra.mxu0 %v1271
  %1422 = vmatprep.subr.mxu0 0.0
  %1423 = vmatpush1.msra.mxu0 %v1272
  %1424 = vmatprep.subr.mxu0 0.0
  %1425 = vmatpush1.msra.mxu0 %v1273
  %1426 = vmatprep.subr.mxu0 0.0
  %1427 = vmatpush1.msra.mxu0 %v1274
  %1428 = vmatprep.subr.mxu0 0.0
  %1429 = vmatpush1.msra.mxu0 %v1275
  %1430 = vmatprep.subr.mxu0 0.0
  %1431 = vmatpush1.msra.mxu0 %v1276
  %1432 = vmatprep.subr.mxu0 0.0
  %1433 = vmatpush1.msra.mxu0 %v1277
  %1434 = vmatprep.subr.mxu0 0.0
  %1435 = vmatpush1.msra.mxu0 %v1278
  %1436 = vmatprep.subr.mxu0 0.0
  %1437 = vmatpush1.msra.mxu0 %v1279
  %1438 = vmatprep.subr.mxu0 0.0
  %1439 = vmatpush1.msra.mxu0 %v1280
  %1440 = vmatprep.subr.mxu0 0.0
  %1441 = vmatpush1.msra.mxu0 %v1281
  %1442 = vmatprep.subr.mxu0 0.0
  %1443 = vmatpush1.msra.mxu0 %v1282
  %1444 = vmatprep.subr.mxu0 0.0
  %1445 = vmatpush1.msra.mxu0 %v1283
  %1446 = vmatprep.subr.mxu0 0.0
  %1447 = vmatpush1.msra.mxu0 %v1284
  %1448 = vmatprep.subr.mxu0 0.0
  %1449 = vmatpush1.msra.mxu0 %v1285
  %1450 = vmatprep.subr.mxu0 0.0
  %1451 = vmatpush1.msra.mxu0 %v1286
  %1452 = vmatprep.subr.mxu0 0.0
  %1453 = vmatpush1.msra.mxu0 %v1287
  %1454 = vmatprep.subr.mxu0 0.0
  %1455 = vmatpush1.msra.mxu0 %v1288
  %1456 = vmatprep.subr.mxu0 0.0
  %1457 = vmatpush1.msra.mxu0 %v1289
  %1458 = vmatprep.subr.mxu0 0.0
  %1459 = vmatpush1.msra.mxu0 %v1290
  %1460 = vmatprep.mubr.f32.mxu0 %v1146
  %1461 = vmatmul.mubr.f32.gmra.mrb[0].mxu0 %v1114
  %v1462 = vpop.f32.mrb[0].mxu0
  %v1463 = vadd.f32 %v1358, %v1462
  %v1464 = vpop.f32.mrb[0].mxu0
  %1465 = vmatprep.mubr.f32.mxu0 %v1147
  %1466 = vmatmul.mubr.f32.gmra.mrb[0].mxu0 %v1115
  %v1467 = vpop.f32.mrb[0].mxu0
  %v1468 = vadd.f32 %v1363, %v1467
  %v1469 = vpop.f32.mrb[0].mxu0
  %1470 = vmatprep.mubr.f32.mxu0 %v1148
  %1471 = vmatmul.mubr.f32.gmra.mrb[0].mxu0 %v1116
  %v1472 = vpop.f32.mrb[0].mxu0
  %v1473 = vadd.f32 %v1368, %v1472
  %v1474 = vpop.f32.mrb[0].mxu0
  %1475 = vmatprep.mubr.f32.mxu0 %v1149
  %1476 = vmatmul.mubr.f32.gmra.mrb[0].mxu0 %v1117
  %v1477 = vpop.f32.mrb[0].mxu0
  %v1478 = vadd.f32 %v1373, %v1477
  %v1479 = vpop.f32.mrb[0].mxu0
  %1480 = vmatprep.mubr.f32.mxu0 %v1150
  %1481 = vmatmul.mubr.f32.gmra.mrb[0].mxu0 %v1118
  %v1482 = vpop.f32.mrb[0].mxu0
  %v1483 = vadd.f32 %v1378, %v1482
  %v1484 = vpop.f32.mrb[0].mxu0
  %1485 = vmatprep.mubr.f32.mxu0 %v1151
  %1486 = vmatmul.mubr.f32.gmra.mrb[0].mxu0 %v1119
  %v1487 = vpop.f32.mrb[0].mxu0
  %v1488 = vadd.f32 %v1383, %v1487
  %v1489 = vpop.f32.mrb[0].mxu0
  %1490 = vmatprep.mubr.f32.mxu0 %v1152
  %1491 = vmatmul.mubr.f32.gmra.mrb[0].mxu0 %v1120
  %v1492 = vpop.f32.mrb[0].mxu0
  %v1493 = vadd.f32 %v1388, %v1492
  %v1494 = vpop.f32.mrb[0].mxu0
  %1495 = vmatprep.mubr.f32.mxu0 %v1153
  %1496 = vmatmul.mubr.f32.gmra.mrb[0].mxu0 %v1121
  %v1497 = vpop.f32.mrb[0].mxu0
  %v1498 = vadd.f32 %v1393, %v1497
  %v1499 = vpop.f32.mrb[0].mxu0
  %1500 = vdwg.mxu0
  %v1517 = vcombine.low %v206, %v207
  %v1518 = vcombine.low %v208, %v209
  %v1519 = vcombine.low %v210, %v211
  %v1520 = vcombine.low %v212, %v213
  %v1521 = vcombine.low %v214, %v215
  %v1522 = vcombine.low %v216, %v217
  %v1523 = vcombine.low %v218, %v219
  %v1524 = vcombine.low %v220, %v221
  %s1533 = scalar_lea.vmem %s1, 768
  %v1534 = vld [vmem:[%s1533] sm:$0xf]
  %v1535 = vld [vmem:[%s1533 + $0x4] sm:$0xf]
  %v1536 = vld [vmem:[%s1533 + $0x8] sm:$0xf]
  %v1537 = vld [vmem:[%s1533 + $0xc] sm:$0xf]
  %v1538 = vld [vmem:[%s1533 + $0x10] sm:$0xf]
  %v1539 = vld [vmem:[%s1533 + $0x14] sm:$0xf]
  %v1540 = vld [vmem:[%s1533 + $0x18] sm:$0xf]
  %v1541 = vld [vmem:[%s1533 + $0x1c] sm:$0xf]
  %v1542 = vld [vmem:[%s1533 + $0x20] sm:$0xf]
  %v1543 = vld [vmem:[%s1533 + $0x24] sm:$0xf]
  %v1544 = vld [vmem:[%s1533 + $0x28] sm:$0xf]
  %v1545 = vld [vmem:[%s1533 + $0x2c] sm:$0xf]
  %v1546 = vld [vmem:[%s1533 + $0x30] sm:$0xf]
  %v1547 = vld [vmem:[%s1533 + $0x34] sm:$0xf]
  %v1548 = vld [vmem:[%s1533 + $0x38] sm:$0xf]
  %v1549 = vld [vmem:[%s1533 + $0x3c] sm:$0xf]
  %v1550 = vld [vmem:[%s1533 + $0x40] sm:$0xf]
  %v1551 = vld [vmem:[%s1533 + $0x44] sm:$0xf]
  %v1552 = vld [vmem:[%s1533 + $0x48] sm:$0xf]
  %v1553 = vld [vmem:[%s1533 + $0x4c] sm:$0xf]
  %v1554 = vld [vmem:[%s1533 + $0x50] sm:$0xf]
  %v1555 = vld [vmem:[%s1533 + $0x54] sm:$0xf]
  %v1556 = vld [vmem:[%s1533 + $0x58] sm:$0xf]
  %v1557 = vld [vmem:[%s1533 + $0x5c] sm:$0xf]
  %v1558 = vld [vmem:[%s1533 + $0x60] sm:$0xf]
  %v1559 = vld [vmem:[%s1533 + $0x64] sm:$0xf]
  %v1560 = vld [vmem:[%s1533 + $0x68] sm:$0xf]
  %v1561 = vld [vmem:[%s1533 + $0x6c] sm:$0xf]
  %v1562 = vld [vmem:[%s1533 + $0x70] sm:$0xf]
  %v1563 = vld [vmem:[%s1533 + $0x74] sm:$0xf]
  %v1564 = vld [vmem:[%s1533 + $0x78] sm:$0xf]
  %v1565 = vld [vmem:[%s1533 + $0x7c] sm:$0xf]
  %v1566 = vld [vmem:[%s1533 + $0x80] sm:$0xf]
  %v1567 = vld [vmem:[%s1533 + $0x84] sm:$0xf]
  %v1568 = vld [vmem:[%s1533 + $0x88] sm:$0xf]
  %v1569 = vld [vmem:[%s1533 + $0x8c] sm:$0xf]
  %v1570 = vld [vmem:[%s1533 + $0x90] sm:$0xf]
  %v1571 = vld [vmem:[%s1533 + $0x94] sm:$0xf]
  %v1572 = vld [vmem:[%s1533 + $0x98] sm:$0xf]
  %v1573 = vld [vmem:[%s1533 + $0x9c] sm:$0xf]
  %v1574 = vld [vmem:[%s1533 + $0xa0] sm:$0xf]
  %v1575 = vld [vmem:[%s1533 + $0xa4] sm:$0xf]
  %v1576 = vld [vmem:[%s1533 + $0xa8] sm:$0xf]
  %v1577 = vld [vmem:[%s1533 + $0xac] sm:$0xf]
  %v1578 = vld [vmem:[%s1533 + $0xb0] sm:$0xf]
  %v1579 = vld [vmem:[%s1533 + $0xb4] sm:$0xf]
  %v1580 = vld [vmem:[%s1533 + $0xb8] sm:$0xf]
  %v1581 = vld [vmem:[%s1533 + $0xbc] sm:$0xf]
  %v1582 = vld [vmem:[%s1533 + $0xc0] sm:$0xf]
  %v1583 = vld [vmem:[%s1533 + $0xc4] sm:$0xf]
  %v1584 = vld [vmem:[%s1533 + $0xc8] sm:$0xf]
  %v1585 = vld [vmem:[%s1533 + $0xcc] sm:$0xf]
  %v1586 = vld [vmem:[%s1533 + $0xd0] sm:$0xf]
  %v1587 = vld [vmem:[%s1533 + $0xd4] sm:$0xf]
  %v1588 = vld [vmem:[%s1533 + $0xd8] sm:$0xf]
  %v1589 = vld [vmem:[%s1533 + $0xdc] sm:$0xf]
  %v1590 = vld [vmem:[%s1533 + $0xe0] sm:$0xf]
  %v1591 = vld [vmem:[%s1533 + $0xe4] sm:$0xf]
  %v1592 = vld [vmem:[%s1533 + $0xe8] sm:$0xf]
  %v1593 = vld [vmem:[%s1533 + $0xec] sm:$0xf]
  %v1594 = vld [vmem:[%s1533 + $0xf0] sm:$0xf]
  %v1595 = vld [vmem:[%s1533 + $0xf4] sm:$0xf]
  %v1596 = vld [vmem:[%s1533 + $0xf8] sm:$0xf]
  %v1597 = vld [vmem:[%s1533 + $0xfc] sm:$0xf]
  %v1598 = vunpack.c.l.bf16 %v1534
  %v1599 = vunpack.c.l.bf16 %v1535
  %v1600 = vunpack.c.l.bf16 %v1536
  %v1601 = vunpack.c.l.bf16 %v1537
  %v1602 = vunpack.c.l.bf16 %v1538
  %v1603 = vunpack.c.l.bf16 %v1539
  %v1604 = vunpack.c.l.bf16 %v1540
  %v1605 = vunpack.c.l.bf16 %v1541
  %v1606 = vunpack.c.l.bf16 %v1542
  %v1607 = vunpack.c.l.bf16 %v1543
  %v1608 = vunpack.c.l.bf16 %v1544
  %v1609 = vunpack.c.l.bf16 %v1545
  %v1610 = vunpack.c.l.bf16 %v1546
  %v1611 = vunpack.c.l.bf16 %v1547
  %v1612 = vunpack.c.l.bf16 %v1548
  %v1613 = vunpack.c.l.bf16 %v1549
  %v1614 = vunpack.c.l.bf16 %v1550
  %v1615 = vunpack.c.l.bf16 %v1551
  %v1616 = vunpack.c.l.bf16 %v1552
  %v1617 = vunpack.c.l.bf16 %v1553
  %v1618 = vunpack.c.l.bf16 %v1554
  %v1619 = vunpack.c.l.bf16 %v1555
  %v1620 = vunpack.c.l.bf16 %v1556
  %v1621 = vunpack.c.l.bf16 %v1557
  %v1622 = vunpack.c.l.bf16 %v1558
  %v1623 = vunpack.c.l.bf16 %v1559
  %v1624 = vunpack.c.l.bf16 %v1560
  %v1625 = vunpack.c.l.bf16 %v1561
  %v1626 = vunpack.c.l.bf16 %v1562
  %v1627 = vunpack.c.l.bf16 %v1563
  %v1628 = vunpack.c.l.bf16 %v1564
  %v1629 = vunpack.c.l.bf16 %v1565
  %v1630 = vunpack.c.l.bf16 %v1566
  %v1631 = vunpack.c.l.bf16 %v1567
  %v1632 = vunpack.c.l.bf16 %v1568
  %v1633 = vunpack.c.l.bf16 %v1569
  %v1634 = vunpack.c.l.bf16 %v1570
  %v1635 = vunpack.c.l.bf16 %v1571
  %v1636 = vunpack.c.l.bf16 %v1572
  %v1637 = vunpack.c.l.bf16 %v1573
  %v1638 = vunpack.c.l.bf16 %v1574
  %v1639 = vunpack.c.l.bf16 %v1575
  %v1640 = vunpack.c.l.bf16 %v1576
  %v1641 = vunpack.c.l.bf16 %v1577
  %v1642 = vunpack.c.l.bf16 %v1578
  %v1643 = vunpack.c.l.bf16 %v1579
  %v1644 = vunpack.c.l.bf16 %v1580
  %v1645 = vunpack.c.l.bf16 %v1581
  %v1646 = vunpack.c.l.bf16 %v1582
  %v1647 = vunpack.c.l.bf16 %v1583
  %v1648 = vunpack.c.l.bf16 %v1584
  %v1649 = vunpack.c.l.bf16 %v1585
  %v1650 = vunpack.c.l.bf16 %v1586
  %v1651 = vunpack.c.l.bf16 %v1587
  %v1652 = vunpack.c.l.bf16 %v1588
  %v1653 = vunpack.c.l.bf16 %v1589
  %v1654 = vunpack.c.l.bf16 %v1590
  %v1655 = vunpack.c.l.bf16 %v1591
  %v1656 = vunpack.c.l.bf16 %v1592
  %v1657 = vunpack.c.l.bf16 %v1593
  %v1658 = vunpack.c.l.bf16 %v1594
  %v1659 = vunpack.c.l.bf16 %v1595
  %v1660 = vunpack.c.l.bf16 %v1596
  %v1661 = vunpack.c.l.bf16 %v1597
  %1662 = vmatprep.subr.mxu0 0.0
  %1663 = vmatpush1.msra.mxu0 %v1598
  %1664 = vmatprep.subr.mxu0 0.0
  %1665 = vmatpush1.msra.mxu0 %v1599
  %1666 = vmatprep.subr.mxu0 0.0
  %1667 = vmatpush1.msra.mxu0 %v1600
  %1668 = vmatprep.subr.mxu0 0.0
  %1669 = vmatpush1.msra.mxu0 %v1601
  %1670 = vmatprep.subr.mxu0 0.0
  %1671 = vmatpush1.msra.mxu0 %v1602
  %1672 = vmatprep.subr.mxu0 0.0
  %1673 = vmatpush1.msra.mxu0 %v1603
  %1674 = vmatprep.subr.mxu0 0.0
  %1675 = vmatpush1.msra.mxu0 %v1604
  %1676 = vmatprep.subr.mxu0 0.0
  %1677 = vmatpush1.msra.mxu0 %v1605
  %1678 = vmatprep.subr.mxu0 0.0
  %1679 = vmatpush1.msra.mxu0 %v1606
  %1680 = vmatprep.subr.mxu0 0.0
  %1681 = vmatpush1.msra.mxu0 %v1607
  %1682 = vmatprep.subr.mxu0 0.0
  %1683 = vmatpush1.msra.mxu0 %v1608
  %1684 = vmatprep.subr.mxu0 0.0
  %1685 = vmatpush1.msra.mxu0 %v1609
  %1686 = vmatprep.subr.mxu0 0.0
  %1687 = vmatpush1.msra.mxu0 %v1610
  %1688 = vmatprep.subr.mxu0 0.0
  %1689 = vmatpush1.msra.mxu0 %v1611
  %1690 = vmatprep.subr.mxu0 0.0
  %1691 = vmatpush1.msra.mxu0 %v1612
  %1692 = vmatprep.subr.mxu0 0.0
  %1693 = vmatpush1.msra.mxu0 %v1613
  %1694 = vmatprep.subr.mxu0 0.0
  %1695 = vmatpush1.msra.mxu0 %v1614
  %1696 = vmatprep.subr.mxu0 0.0
  %1697 = vmatpush1.msra.mxu0 %v1615
  %1698 = vmatprep.subr.mxu0 0.0
  %1699 = vmatpush1.msra.mxu0 %v1616
  %1700 = vmatprep.subr.mxu0 0.0
  %1701 = vmatpush1.msra.mxu0 %v1617
  %1702 = vmatprep.subr.mxu0 0.0
  %1703 = vmatpush1.msra.mxu0 %v1618
  %1704 = vmatprep.subr.mxu0 0.0
  %1705 = vmatpush1.msra.mxu0 %v1619
  %1706 = vmatprep.subr.mxu0 0.0
  %1707 = vmatpush1.msra.mxu0 %v1620
  %1708 = vmatprep.subr.mxu0 0.0
  %1709 = vmatpush1.msra.mxu0 %v1621
  %1710 = vmatprep.subr.mxu0 0.0
  %1711 = vmatpush1.msra.mxu0 %v1622
  %1712 = vmatprep.subr.mxu0 0.0
  %1713 = vmatpush1.msra.mxu0 %v1623
  %1714 = vmatprep.subr.mxu0 0.0
  %1715 = vmatpush1.msra.mxu0 %v1624
  %1716 = vmatprep.subr.mxu0 0.0
  %1717 = vmatpush1.msra.mxu0 %v1625
  %1718 = vmatprep.subr.mxu0 0.0
  %1719 = vmatpush1.msra.mxu0 %v1626
  %1720 = vmatprep.subr.mxu0 0.0
  %1721 = vmatpush1.msra.mxu0 %v1627
  %1722 = vmatprep.subr.mxu0 0.0
  %1723 = vmatpush1.msra.mxu0 %v1628
  %1724 = vmatprep.subr.mxu0 0.0
  %1725 = vmatpush1.msra.mxu0 %v1629
  %1726 = vmatprep.mubr.f32.mxu0 %v743
  %1727 = vmatmul.mubr.f32.gmra.mrb[0].mxu0 %v334
  %v1728 = vpop.f32.mrb[0].mxu0
  %v1729 = vadd.f32 %v483, %v1728
  %v1730 = vpop.f32.mrb[0].mxu0
  %1731 = vmatprep.mubr.f32.mxu0 %v744
  %1732 = vmatmul.mubr.f32.gmra.mrb[0].mxu0 %v335
  %v1733 = vpop.f32.mrb[0].mxu0
  %v1734 = vadd.f32 %v483, %v1733
  %v1735 = vpop.f32.mrb[0].mxu0
  %1736 = vmatprep.mubr.f32.mxu0 %v745
  %1737 = vmatmul.mubr.f32.gmra.mrb[0].mxu0 %v336
  %v1738 = vpop.f32.mrb[0].mxu0
  %v1739 = vadd.f32 %v483, %v1738
  %v1740 = vpop.f32.mrb[0].mxu0
  %1741 = vmatprep.mubr.f32.mxu0 %v746
  %1742 = vmatmul.mubr.f32.gmra.mrb[0].mxu0 %v337
  %v1743 = vpop.f32.mrb[0].mxu0
  %v1744 = vadd.f32 %v483, %v1743
  %v1745 = vpop.f32.mrb[0].mxu0
  %1746 = vmatprep.mubr.f32.mxu0 %v747
  %1747 = vmatmul.mubr.f32.gmra.mrb[0].mxu0 %v338
  %v1748 = vpop.f32.mrb[0].mxu0
  %v1749 = vadd.f32 %v483, %v1748
  %v1750 = vpop.f32.mrb[0].mxu0
  %1751 = vmatprep.mubr.f32.mxu0 %v748
  %1752 = vmatmul.mubr.f32.gmra.mrb[0].mxu0 %v339
  %v1753 = vpop.f32.mrb[0].mxu0
  %v1754 = vadd.f32 %v483, %v1753
  %v1755 = vpop.f32.mrb[0].mxu0
  %1756 = vmatprep.mubr.f32.mxu0 %v749
  %1757 = vmatmul.mubr.f32.gmra.mrb[0].mxu0 %v340
  %v1758 = vpop.f32.mrb[0].mxu0
  %v1759 = vadd.f32 %v483, %v1758
  %v1760 = vpop.f32.mrb[0].mxu0
  %1761 = vmatprep.mubr.f32.mxu0 %v750
  %1762 = vmatmul.mubr.f32.gmra.mrb[0].mxu0 %v341
  %v1763 = vpop.f32.mrb[0].mxu0
  %v1764 = vadd.f32 %v483, %v1763
  %v1765 = vpop.f32.mrb[0].mxu0
  %1766 = vdwg.mxu0
  %1767 = vmatprep.subr.mxu0 0.0
  %1768 = vmatpush1.msra.mxu0 %v1630
  %1769 = vmatprep.subr.mxu0 0.0
  %1770 = vmatpush1.msra.mxu0 %v1631
  %1771 = vmatprep.subr.mxu0 0.0
  %1772 = vmatpush1.msra.mxu0 %v1632
  %1773 = vmatprep.subr.mxu0 0.0
  %1774 = vmatpush1.msra.mxu0 %v1633
  %1775 = vmatprep.subr.mxu0 0.0
  %1776 = vmatpush1.msra.mxu0 %v1634
  %1777 = vmatprep.subr.mxu0 0.0
  %1778 = vmatpush1.msra.mxu0 %v1635
  %1779 = vmatprep.subr.mxu0 0.0
  %1780 = vmatpush1.msra.mxu0 %v1636
  %1781 = vmatprep.subr.mxu0 0.0
  %1782 = vmatpush1.msra.mxu0 %v1637
  %1783 = vmatprep.subr.mxu0 0.0
  %1784 = vmatpush1.msra.mxu0 %v1638
  %1785 = vmatprep.subr.mxu0 0.0
  %1786 = vmatpush1.msra.mxu0 %v1639
  %1787 = vmatprep.subr.mxu0 0.0
  %1788 = vmatpush1.msra.mxu0 %v1640
  %1789 = vmatprep.subr.mxu0 0.0
  %1790 = vmatpush1.msra.mxu0 %v1641
  %1791 = vmatprep.subr.mxu0 0.0
  %1792 = vmatpush1.msra.mxu0 %v1642
  %1793 = vmatprep.subr.mxu0 0.0
  %1794 = vmatpush1.msra.mxu0 %v1643
  %1795 = vmatprep.subr.mxu0 0.0
  %1796 = vmatpush1.msra.mxu0 %v1644
  %1797 = vmatprep.subr.mxu0 0.0
  %1798 = vmatpush1.msra.mxu0 %v1645
  %1799 = vmatprep.subr.mxu0 0.0
  %1800 = vmatpush1.msra.mxu0 %v1646
  %1801 = vmatprep.subr.mxu0 0.0
  %1802 = vmatpush1.msra.mxu0 %v1647
  %1803 = vmatprep.subr.mxu0 0.0
  %1804 = vmatpush1.msra.mxu0 %v1648
  %1805 = vmatprep.subr.mxu0 0.0
  %1806 = vmatpush1.msra.mxu0 %v1649
  %1807 = vmatprep.subr.mxu0 0.0
  %1808 = vmatpush1.msra.mxu0 %v1650
  %1809 = vmatprep.subr.mxu0 0.0
  %1810 = vmatpush1.msra.mxu0 %v1651
  %1811 = vmatprep.subr.mxu0 0.0
  %1812 = vmatpush1.msra.mxu0 %v1652
  %1813 = vmatprep.subr.mxu0 0.0
  %1814 = vmatpush1.msra.mxu0 %v1653
  %1815 = vmatprep.subr.mxu0 0.0
  %1816 = vmatpush1.msra.mxu0 %v1654
  %1817 = vmatprep.subr.mxu0 0.0
  %1818 = vmatpush1.msra.mxu0 %v1655
  %1819 = vmatprep.subr.mxu0 0.0
  %1820 = vmatpush1.msra.mxu0 %v1656
  %1821 = vmatprep.subr.mxu0 0.0
  %1822 = vmatpush1.msra.mxu0 %v1657
  %1823 = vmatprep.subr.mxu0 0.0
  %1824 = vmatpush1.msra.mxu0 %v1658
  %1825 = vmatprep.subr.mxu0 0.0
  %1826 = vmatpush1.msra.mxu0 %v1659
  %1827 = vmatprep.subr.mxu0 0.0
  %1828 = vmatpush1.msra.mxu0 %v1660
  %1829 = vmatprep.subr.mxu0 0.0
  %1830 = vmatpush1.msra.mxu0 %v1661
  %1831 = vmatprep.mubr.f32.mxu0 %v1517
  %1832 = vmatmul.mubr.f32.gmra.mrb[0].mxu0 %v1146
  %v1833 = vpop.f32.mrb[0].mxu0
  %v1834 = vadd.f32 %v1729, %v1833
  %v1835 = vpop.f32.mrb[0].mxu0
  %1836 = vmatprep.mubr.f32.mxu0 %v1518
  %1837 = vmatmul.mubr.f32.gmra.mrb[0].mxu0 %v1147
  %v1838 = vpop.f32.mrb[0].mxu0
  %v1839 = vadd.f32 %v1734, %v1838
  %v1840 = vpop.f32.mrb[0].mxu0
  %1841 = vmatprep.mubr.f32.mxu0 %v1519
  %1842 = vmatmul.mubr.f32.gmra.mrb[0].mxu0 %v1148
  %v1843 = vpop.f32.mrb[0].mxu0
  %v1844 = vadd.f32 %v1739, %v1843
  %v1845 = vpop.f32.mrb[0].mxu0
  %1846 = vmatprep.mubr.f32.mxu0 %v1520
  %1847 = vmatmul.mubr.f32.gmra.mrb[0].mxu0 %v1149
  %v1848 = vpop.f32.mrb[0].mxu0
  %v1849 = vadd.f32 %v1744, %v1848
  %v1850 = vpop.f32.mrb[0].mxu0
  %1851 = vmatprep.mubr.f32.mxu0 %v1521
  %1852 = vmatmul.mubr.f32.gmra.mrb[0].mxu0 %v1150
  %v1853 = vpop.f32.mrb[0].mxu0
  %v1854 = vadd.f32 %v1749, %v1853
  %v1855 = vpop.f32.mrb[0].mxu0
  %1856 = vmatprep.mubr.f32.mxu0 %v1522
  %1857 = vmatmul.mubr.f32.gmra.mrb[0].mxu0 %v1151
  %v1858 = vpop.f32.mrb[0].mxu0
  %v1859 = vadd.f32 %v1754, %v1858
  %v1860 = vpop.f32.mrb[0].mxu0
  %1861 = vmatprep.mubr.f32.mxu0 %v1523
  %1862 = vmatmul.mubr.f32.gmra.mrb[0].mxu0 %v1152
  %v1863 = vpop.f32.mrb[0].mxu0
  %v1864 = vadd.f32 %v1759, %v1863
  %v1865 = vpop.f32.mrb[0].mxu0
  %1866 = vmatprep.mubr.f32.mxu0 %v1524
  %1867 = vmatmul.mubr.f32.gmra.mrb[0].mxu0 %v1153
  %v1868 = vpop.f32.mrb[0].mxu0
  %v1869 = vadd.f32 %v1764, %v1868
  %v1870 = vpop.f32.mrb[0].mxu0
  %1871 = vdwg.mxu0
  %v1872 = vld [vmem:[%s3] sm:$0x1]
  %v1873 = vld [vmem:[%s4] sm:$0x1]
  %v1874 = vadd.f32 %v657, %v662
  %v1875 = vadd.f32 %v1874, %v667
  %v1876 = vadd.f32 %v1875, %v672
  %v1877 = vadd.f32 %v1876, %v677
  %v1878 = vadd.f32 %v1877, %v682
  %v1879 = vadd.f32 %v1878, %v687
  %v1880 = vadd.f32 %v1879, %v692
  %v1881 = vadd.f32 %v1880, %v1060
  %v1882 = vadd.f32 %v1881, %v1065
  %v1883 = vadd.f32 %v1882, %v1070
  %v1884 = vadd.f32 %v1883, %v1075
  %v1885 = vadd.f32 %v1884, %v1080
  %v1886 = vadd.f32 %v1885, %v1085
  %v1887 = vadd.f32 %v1886, %v1090
  %v1888 = vadd.f32 %v1887, %v1095
  %v1889 = vadd.f32 %v1888, %v1463
  %v1890 = vadd.f32 %v1889, %v1468
  %v1891 = vadd.f32 %v1890, %v1473
  %v1892 = vadd.f32 %v1891, %v1478
  %v1893 = vadd.f32 %v1892, %v1483
  %v1894 = vadd.f32 %v1893, %v1488
  %v1895 = vadd.f32 %v1894, %v1493
  %v1896 = vadd.f32 %v1895, %v1498
  %v1897 = vadd.f32 %v1896, %v1834
  %v1898 = vadd.f32 %v1897, %v1839
  %v1899 = vadd.f32 %v1898, %v1844
  %v1900 = vadd.f32 %v1899, %v1849
  %v1901 = vadd.f32 %v1900, %v1854
  %v1902 = vadd.f32 %v1901, %v1859
  %v1903 = vadd.f32 %v1902, %v1864
  %v1904 = vadd.f32 %v1903, %v1869
  %v1905 = vrot.slane %v1904, 4
  %v1906 = vadd.f32 %v1904, %v1905
  %v1907 = vrot.slane %v1906, 2
  %v1908 = vadd.f32 %v1906, %v1907
  %v1909 = vrot.slane %v1908, 1
  %v1910 = vadd.f32 %v1908, %v1909
  %v1911 = vmul.f32 %v1910, 0.00390625
  %v1912 = vsub.f32 %v657, %v1911
  %v1913 = vsub.f32 %v662, %v1911
  %v1914 = vsub.f32 %v667, %v1911
  %v1915 = vsub.f32 %v672, %v1911
  %v1916 = vsub.f32 %v677, %v1911
  %v1917 = vsub.f32 %v682, %v1911
  %v1918 = vsub.f32 %v687, %v1911
  %v1919 = vsub.f32 %v692, %v1911
  %v1920 = vsub.f32 %v1060, %v1911
  %v1921 = vsub.f32 %v1065, %v1911
  %v1922 = vsub.f32 %v1070, %v1911
  %v1923 = vsub.f32 %v1075, %v1911
  %v1924 = vsub.f32 %v1080, %v1911
  %v1925 = vsub.f32 %v1085, %v1911
  %v1926 = vsub.f32 %v1090, %v1911
  %v1927 = vsub.f32 %v1095, %v1911
  %v1928 = vsub.f32 %v1463, %v1911
  %v1929 = vsub.f32 %v1468, %v1911
  %v1930 = vsub.f32 %v1473, %v1911
  %v1931 = vsub.f32 %v1478, %v1911
  %v1932 = vsub.f32 %v1483, %v1911
  %v1933 = vsub.f32 %v1488, %v1911
  %v1934 = vsub.f32 %v1493, %v1911
  %v1935 = vsub.f32 %v1498, %v1911
  %v1936 = vsub.f32 %v1834, %v1911
  %v1937 = vsub.f32 %v1839, %v1911
  %v1938 = vsub.f32 %v1844, %v1911
  %v1939 = vsub.f32 %v1849, %v1911
  %v1940 = vsub.f32 %v1854, %v1911
  %v1941 = vsub.f32 %v1859, %v1911
  %v1942 = vsub.f32 %v1864, %v1911
  %v1943 = vsub.f32 %v1869, %v1911
  %v1944 = vmul.f32 %v1912, %v1912
  %v1945 = vmul.f32 %v1913, %v1913
  %v1946 = vmul.f32 %v1914, %v1914
  %v1947 = vmul.f32 %v1915, %v1915
  %v1948 = vmul.f32 %v1916, %v1916
  %v1949 = vmul.f32 %v1917, %v1917
  %v1950 = vmul.f32 %v1918, %v1918
  %v1951 = vmul.f32 %v1919, %v1919
  %v1952 = vmul.f32 %v1920, %v1920
  %v1953 = vmul.f32 %v1921, %v1921
  %v1954 = vmul.f32 %v1922, %v1922
  %v1955 = vmul.f32 %v1923, %v1923
  %v1956 = vmul.f32 %v1924, %v1924
  %v1957 = vmul.f32 %v1925, %v1925
  %v1958 = vmul.f32 %v1926, %v1926
  %v1959 = vmul.f32 %v1927, %v1927
  %v1960 = vmul.f32 %v1928, %v1928
  %v1961 = vmul.f32 %v1929, %v1929
  %v1962 = vmul.f32 %v1930, %v1930
  %v1963 = vmul.f32 %v1931, %v1931
  %v1964 = vmul.f32 %v1932, %v1932
  %v1965 = vmul.f32 %v1933, %v1933
  %v1966 = vmul.f32 %v1934, %v1934
  %v1967 = vmul.f32 %v1935, %v1935
  %v1968 = vmul.f32 %v1936, %v1936
  %v1969 = vmul.f32 %v1937, %v1937
  %v1970 = vmul.f32 %v1938, %v1938
  %v1971 = vmul.f32 %v1939, %v1939
  %v1972 = vmul.f32 %v1940, %v1940
  %v1973 = vmul.f32 %v1941, %v1941
  %v1974 = vmul.f32 %v1942, %v1942
  %v1975 = vmul.f32 %v1943, %v1943
  %v1976 = vadd.f32 %v1944, %v1945
  %v1977 = vadd.f32 %v1976, %v1946
  %v1978 = vadd.f32 %v1977, %v1947
  %v1979 = vadd.f32 %v1978, %v1948
  %v1980 = vadd.f32 %v1979, %v1949
  %v1981 = vadd.f32 %v1980, %v1950
  %v1982 = vadd.f32 %v1981, %v1951
  %v1983 = vadd.f32 %v1982, %v1952
  %v1984 = vadd.f32 %v1983, %v1953
  %v1985 = vadd.f32 %v1984, %v1954
  %v1986 = vadd.f32 %v1985, %v1955
  %v1987 = vadd.f32 %v1986, %v1956
  %v1988 = vadd.f32 %v1987, %v1957
  %v1989 = vadd.f32 %v1988, %v1958
  %v1990 = vadd.f32 %v1989, %v1959
  %v1991 = vadd.f32 %v1990, %v1960
  %v1992 = vadd.f32 %v1991, %v1961
  %v1993 = vadd.f32 %v1992, %v1962
  %v1994 = vadd.f32 %v1993, %v1963
  %v1995 = vadd.f32 %v1994, %v1964
  %v1996 = vadd.f32 %v1995, %v1965
  %v1997 = vadd.f32 %v1996, %v1966
  %v1998 = vadd.f32 %v1997, %v1967
  %v1999 = vadd.f32 %v1998, %v1968
  %v2000 = vadd.f32 %v1999, %v1969
  %v2001 = vadd.f32 %v2000, %v1970
  %v2002 = vadd.f32 %v2001, %v1971
  %v2003 = vadd.f32 %v2002, %v1972
  %v2004 = vadd.f32 %v2003, %v1973
  %v2005 = vadd.f32 %v2004, %v1974
  %v2006 = vadd.f32 %v2005, %v1975
  %v2007 = vrot.slane %v2006, 4
  %v2008 = vadd.f32 %v2006, %v2007
  %v2009 = vrot.slane %v2008, 2
  %v2010 = vadd.f32 %v2008, %v2009
  %v2011 = vrot.slane %v2010, 1
  %v2012 = vadd.f32 %v2010, %v2011
  %v2013 = vmul.f32 %v2012, 0.00390625
  %v2014 = vadd.f32 %v2013, 1e-05
  %v2015 = vrsqrt.pop %v2014
  %v2016 = vmul.f32 %v1912, %v2015
  %v2017 = vmul.f32 %v1913, %v2015
  %v2018 = vmul.f32 %v1914, %v2015
  %v2019 = vmul.f32 %v1915, %v2015
  %v2020 = vmul.f32 %v1916, %v2015
  %v2021 = vmul.f32 %v1917, %v2015
  %v2022 = vmul.f32 %v1918, %v2015
  %v2023 = vmul.f32 %v1919, %v2015
  %v2024 = vmul.f32 %v1920, %v2015
  %v2025 = vmul.f32 %v1921, %v2015
  %v2026 = vmul.f32 %v1922, %v2015
  %v2027 = vmul.f32 %v1923, %v2015
  %v2028 = vmul.f32 %v1924, %v2015
  %v2029 = vmul.f32 %v1925, %v2015
  %v2030 = vmul.f32 %v1926, %v2015
  %v2031 = vmul.f32 %v1927, %v2015
  %v2032 = vmul.f32 %v1928, %v2015
  %v2033 = vmul.f32 %v1929, %v2015
  %v2034 = vmul.f32 %v1930, %v2015
  %v2035 = vmul.f32 %v1931, %v2015
  %v2036 = vmul.f32 %v1932, %v2015
  %v2037 = vmul.f32 %v1933, %v2015
  %v2038 = vmul.f32 %v1934, %v2015
  %v2039 = vmul.f32 %v1935, %v2015
  %v2040 = vmul.f32 %v1936, %v2015
  %v2041 = vmul.f32 %v1937, %v2015
  %v2042 = vmul.f32 %v1938, %v2015
  %v2043 = vmul.f32 %v1939, %v2015
  %v2044 = vmul.f32 %v1940, %v2015
  %v2045 = vmul.f32 %v1941, %v2015
  %v2046 = vmul.f32 %v1942, %v2015
  %v2047 = vmul.f32 %v1943, %v2015
  %v2049 = vlaneseq
  %v2050 = vshrl.u32 %v2049, 7
  %v2051 = vsub.s32 0, %v2050
  %v2052 = vrot.slane %v1872, %v2051
  %v2054 = vmul.f32 %v2016, %v2052
  %v2055 = vmul.f32 %v2017, %v2052
  %v2056 = vmul.f32 %v2018, %v2052
  %v2057 = vmul.f32 %v2019, %v2052
  %v2058 = vmul.f32 %v2020, %v2052
  %v2059 = vmul.f32 %v2021, %v2052
  %v2060 = vmul.f32 %v2022, %v2052
  %v2061 = vmul.f32 %v2023, %v2052
  %v2062 = vmul.f32 %v2024, %v2052
  %v2063 = vmul.f32 %v2025, %v2052
  %v2064 = vmul.f32 %v2026, %v2052
  %v2065 = vmul.f32 %v2027, %v2052
  %v2066 = vmul.f32 %v2028, %v2052
  %v2067 = vmul.f32 %v2029, %v2052
  %v2068 = vmul.f32 %v2030, %v2052
  %v2069 = vmul.f32 %v2031, %v2052
  %v2070 = vmul.f32 %v2032, %v2052
  %v2071 = vmul.f32 %v2033, %v2052
  %v2072 = vmul.f32 %v2034, %v2052
  %v2073 = vmul.f32 %v2035, %v2052
  %v2074 = vmul.f32 %v2036, %v2052
  %v2075 = vmul.f32 %v2037, %v2052
  %v2076 = vmul.f32 %v2038, %v2052
  %v2077 = vmul.f32 %v2039, %v2052
  %v2078 = vmul.f32 %v2040, %v2052
  %v2079 = vmul.f32 %v2041, %v2052
  %v2080 = vmul.f32 %v2042, %v2052
  %v2081 = vmul.f32 %v2043, %v2052
  %v2082 = vmul.f32 %v2044, %v2052
  %v2083 = vmul.f32 %v2045, %v2052
  %v2084 = vmul.f32 %v2046, %v2052
  %v2085 = vmul.f32 %v2047, %v2052
  %v2087 = vlaneseq
  %v2088 = vshrl.u32 %v2087, 7
  %v2089 = vsub.s32 0, %v2088
  %v2090 = vrot.slane %v1873, %v2089
  %v2092 = vadd.f32 %v2054, %v2090
  %v2093 = vadd.f32 %v2055, %v2090
  %v2094 = vadd.f32 %v2056, %v2090
  %v2095 = vadd.f32 %v2057, %v2090
  %v2096 = vadd.f32 %v2058, %v2090
  %v2097 = vadd.f32 %v2059, %v2090
  %v2098 = vadd.f32 %v2060, %v2090
  %v2099 = vadd.f32 %v2061, %v2090
  %v2100 = vadd.f32 %v2062, %v2090
  %v2101 = vadd.f32 %v2063, %v2090
  %v2102 = vadd.f32 %v2064, %v2090
  %v2103 = vadd.f32 %v2065, %v2090
  %v2104 = vadd.f32 %v2066, %v2090
  %v2105 = vadd.f32 %v2067, %v2090
  %v2106 = vadd.f32 %v2068, %v2090
  %v2107 = vadd.f32 %v2069, %v2090
  %v2108 = vadd.f32 %v2070, %v2090
  %v2109 = vadd.f32 %v2071, %v2090
  %v2110 = vadd.f32 %v2072, %v2090
  %v2111 = vadd.f32 %v2073, %v2090
  %v2112 = vadd.f32 %v2074, %v2090
  %v2113 = vadd.f32 %v2075, %v2090
  %v2114 = vadd.f32 %v2076, %v2090
  %v2115 = vadd.f32 %v2077, %v2090
  %v2116 = vadd.f32 %v2078, %v2090
  %v2117 = vadd.f32 %v2079, %v2090
  %v2118 = vadd.f32 %v2080, %v2090
  %v2119 = vadd.f32 %v2081, %v2090
  %v2120 = vadd.f32 %v2082, %v2090
  %v2121 = vadd.f32 %v2083, %v2090
  %v2122 = vadd.f32 %v2084, %v2090
  %v2123 = vadd.f32 %v2085, %v2090
  %v2124 = vmax.f32 %v2092, 0.0
  %v2125 = vmax.f32 %v2093, 0.0
  %v2126 = vmax.f32 %v2094, 0.0
  %v2127 = vmax.f32 %v2095, 0.0
  %v2128 = vmax.f32 %v2096, 0.0
  %v2129 = vmax.f32 %v2097, 0.0
  %v2130 = vmax.f32 %v2098, 0.0
  %v2131 = vmax.f32 %v2099, 0.0
  %v2132 = vmax.f32 %v2100, 0.0
  %v2133 = vmax.f32 %v2101, 0.0
  %v2134 = vmax.f32 %v2102, 0.0
  %v2135 = vmax.f32 %v2103, 0.0
  %v2136 = vmax.f32 %v2104, 0.0
  %v2137 = vmax.f32 %v2105, 0.0
  %v2138 = vmax.f32 %v2106, 0.0
  %v2139 = vmax.f32 %v2107, 0.0
  %v2140 = vmax.f32 %v2108, 0.0
  %v2141 = vmax.f32 %v2109, 0.0
  %v2142 = vmax.f32 %v2110, 0.0
  %v2143 = vmax.f32 %v2111, 0.0
  %v2144 = vmax.f32 %v2112, 0.0
  %v2145 = vmax.f32 %v2113, 0.0
  %v2146 = vmax.f32 %v2114, 0.0
  %v2147 = vmax.f32 %v2115, 0.0
  %v2148 = vmax.f32 %v2116, 0.0
  %v2149 = vmax.f32 %v2117, 0.0
  %v2150 = vmax.f32 %v2118, 0.0
  %v2151 = vmax.f32 %v2119, 0.0
  %v2152 = vmax.f32 %v2120, 0.0
  %v2153 = vmax.f32 %v2121, 0.0
  %v2154 = vmax.f32 %v2122, 0.0
  %v2155 = vmax.f32 %v2123, 0.0
  %v2164 = vcombine.high %v2124, %v2124
  %v2165 = vcombine.high %v2125, %v2125
  %v2166 = vcombine.high %v2126, %v2126
  %v2167 = vcombine.high %v2127, %v2127
  %v2168 = vcombine.high %v2128, %v2128
  %v2169 = vcombine.high %v2129, %v2129
  %v2170 = vcombine.high %v2130, %v2130
  %v2171 = vcombine.high %v2131, %v2131
  %v2180 = vcombine.high %v2132, %v2132
  %v2181 = vcombine.high %v2133, %v2133
  %v2182 = vcombine.high %v2134, %v2134
  %v2183 = vcombine.high %v2135, %v2135
  %v2184 = vcombine.high %v2136, %v2136
  %v2185 = vcombine.high %v2137, %v2137
  %v2186 = vcombine.high %v2138, %v2138
  %v2187 = vcombine.high %v2139, %v2139
  %v2188 = vcombine.low %v2124, %v2132
  %v2189 = vcombine.low %v2164, %v2180
  %v2190 = vcombine.low %v2125, %v2133
  %v2191 = vcombine.low %v2165, %v2181
  %v2192 = vcombine.low %v2126, %v2134
  %v2193 = vcombine.low %v2166, %v2182
  %v2194 = vcombine.low %v2127, %v2135
  %v2195 = vcombine.low %v2167, %v2183
  %v2196 = vcombine.low %v2128, %v2136
  %v2197 = vcombine.low %v2168, %v2184
  %v2198 = vcombine.low %v2129, %v2137
  %v2199 = vcombine.low %v2169, %v2185
  %v2200 = vcombine.low %v2130, %v2138
  %v2201 = vcombine.low %v2170, %v2186
  %v2202 = vcombine.low %v2131, %v2139
  %v2203 = vcombine.low %v2171, %v2187
  %2220 = vst [vmem:[%s5] sm:$0xff] %v2188
  %2221 = vst [vmem:[%s5 + $0x10] sm:$0xff] %v2189
  %2222 = vst [vmem:[%s5 + $0x20] sm:$0xff] %v2190
  %2223 = vst [vmem:[%s5 + $0x30] sm:$0xff] %v2191
  %2224 = vst [vmem:[%s5 + $0x40] sm:$0xff] %v2192
  %2225 = vst [vmem:[%s5 + $0x50] sm:$0xff] %v2193
  %2226 = vst [vmem:[%s5 + $0x60] sm:$0xff] %v2194
  %2227 = vst [vmem:[%s5 + $0x70] sm:$0xff] %v2195
  %2228 = vst [vmem:[%s5 + $0x80] sm:$0xff] %v2196
  %2229 = vst [vmem:[%s5 + $0x90] sm:$0xff] %v2197
  %2230 = vst [vmem:[%s5 + $0xa0] sm:$0xff] %v2198
  %2231 = vst [vmem:[%s5 + $0xb0] sm:$0xff] %v2199
  %2232 = vst [vmem:[%s5 + $0xc0] sm:$0xff] %v2200
  %2233 = vst [vmem:[%s5 + $0xd0] sm:$0xff] %v2201
  %2234 = vst [vmem:[%s5 + $0xe0] sm:$0xff] %v2202
  %2235 = vst [vmem:[%s5 + $0xf0] sm:$0xff] %v2203
  %v2244 = vcombine.high %v2140, %v2140
  %v2245 = vcombine.high %v2141, %v2141
  %v2246 = vcombine.high %v2142, %v2142
  %v2247 = vcombine.high %v2143, %v2143
  %v2248 = vcombine.high %v2144, %v2144
  %v2249 = vcombine.high %v2145, %v2145
  %v2250 = vcombine.high %v2146, %v2146
  %v2251 = vcombine.high %v2147, %v2147
  %v2260 = vcombine.high %v2148, %v2148
  %v2261 = vcombine.high %v2149, %v2149
  %v2262 = vcombine.high %v2150, %v2150
  %v2263 = vcombine.high %v2151, %v2151
  %v2264 = vcombine.high %v2152, %v2152
  %v2265 = vcombine.high %v2153, %v2153
  %v2266 = vcombine.high %v2154, %v2154
  %v2267 = vcombine.high %v2155, %v2155
  %v2268 = vcombine.low %v2140, %v2148
  %v2269 = vcombine.low %v2244, %v2260
  %v2270 = vcombine.low %v2141, %v2149
  %v2271 = vcombine.low %v2245, %v2261
  %v2272 = vcombine.low %v2142, %v2150
  %v2273 = vcombine.low %v2246, %v2262
  %v2274 = vcombine.low %v2143, %v2151
  %v2275 = vcombine.low %v2247, %v2263
  %v2276 = vcombine.low %v2144, %v2152
  %v2277 = vcombine.low %v2248, %v2264
  %v2278 = vcombine.low %v2145, %v2153
  %v2279 = vcombine.low %v2249, %v2265
  %v2280 = vcombine.low %v2146, %v2154
  %v2281 = vcombine.low %v2250, %v2266
  %v2282 = vcombine.low %v2147, %v2155
  %v2283 = vcombine.low %v2251, %v2267
  %s2300 = scalar_lea.vmem %s5, 8
  %2301 = vst [vmem:[%s2300] sm:$0xff] %v2268
  %2302 = vst [vmem:[%s2300 + $0x10] sm:$0xff] %v2269
  %2303 = vst [vmem:[%s2300 + $0x20] sm:$0xff] %v2270
  %2304 = vst [vmem:[%s2300 + $0x30] sm:$0xff] %v2271
  %2305 = vst [vmem:[%s2300 + $0x40] sm:$0xff] %v2272
  %2306 = vst [vmem:[%s2300 + $0x50] sm:$0xff] %v2273
  %2307 = vst [vmem:[%s2300 + $0x60] sm:$0xff] %v2274
  %2308 = vst [vmem:[%s2300 + $0x70] sm:$0xff] %v2275
  %2309 = vst [vmem:[%s2300 + $0x80] sm:$0xff] %v2276
  %2310 = vst [vmem:[%s2300 + $0x90] sm:$0xff] %v2277
  %2311 = vst [vmem:[%s2300 + $0xa0] sm:$0xff] %v2278
  %2312 = vst [vmem:[%s2300 + $0xb0] sm:$0xff] %v2279
  %2313 = vst [vmem:[%s2300 + $0xc0] sm:$0xff] %v2280
  %2314 = vst [vmem:[%s2300 + $0xd0] sm:$0xff] %v2281
  %2315 = vst [vmem:[%s2300 + $0xe0] sm:$0xff] %v2282
  %2316 = vst [vmem:[%s2300 + $0xf0] sm:$0xff] %v2283
  // Predicated region
  $region22: #{generator_forward.4} parent=0 // pred_check
    _
  $region23: #{generator_forward.4} parent=0 // pred_check_branch
    %2318 = sbr.rel (0) target = $region25
  $region24: #{generator_forward.4} parent=0 // pred_region
    _
  $region25: #{generator_forward.4} parent=0 // pred_fallthru
    _
  // Predicated region
  $region26: #{generator_forward.4} parent=0 // pred_check
    _
  $region27: #{generator_forward.4} parent=0 // pred_check_branch
    %2320 = sbr.rel (0) target = $region29
  $region28: #{generator_forward.4} parent=0 // pred_region
    _
  $region29: #{generator_forward.4} parent=0 // pred_fallthru
    _

// kernel: generator_forward.3
$region0: #{generator_forward.3}
  #allocation0 [shape = 'u32[]', space=smem, size = 0x4, offset = 0x4, fixed_abs, tag = 'smem constant byte address 0x4 - core index']
  #allocation1 [shape = 'u32[144,128]{1,0:T(1,128)}', space=vmem, size = 0x12000, scoped, tag = 'internal scratch']
  #allocation2 [shape = 'f32[8,1024]{1,0:T(8,128)}', space=vmem, size = 0x8000, scoped, tag = 'scratch operand']
  %s0 = inlined_call_operand.vmem [shape: f32[8,20], index: 0, kind: input, shape index: {}]
  %s1 = inlined_call_operand.hbm [shape: bf16[20,1024], index: 1, kind: input, shape index: {}]
  %s2 = inlined_call_operand.hbm [shape: f32[1,1024], index: 2, kind: input, shape index: {}]
  %s3 = inlined_call_operand.hbm [shape: f32[1,1024], index: 3, kind: input, shape index: {}]
  %s4 = inlined_call_operand.hbm [shape: f32[1,1024], index: 4, kind: input, shape index: {}]
  %s5 = inlined_call_operand.hbm [shape: bf16[1024,2048], index: 5, kind: input, shape index: {}]
  %s6 = inlined_call_operand.hbm [shape: f32[1,2048], index: 6, kind: input, shape index: {}]
  %s7 = inlined_call_operand.hbm [shape: f32[1,2048], index: 7, kind: input, shape index: {}]
  %s8 = inlined_call_operand.hbm [shape: f32[1,2048], index: 8, kind: input, shape index: {}]
  %s9 = inlined_call_operand.vmem [shape: f32[8,2048], index: 9, kind: output, shape index: {}]
  %s10 = sld [smem:[#allocation0]]
  $region105: #{generator_forward.3} parent=0
    _
  %s12 = ssub.s32 1, %s10
  %s13 = scalar_select 0, %s12, %s10
  $region1: #{generator_forward.3} parent=0
    #allocation3 [shape = 'u8[49152]{0}', space=vmem, size = 0xc000, scoped, tag = 'input window, operand 1, single buffered']
    #allocation4 [shape = 's32[2]{0}', space=sflag, size = 0x8, scoped, tag = 'scoped memory for generator_forward.3']
    #allocation5 [shape = 'u8[4096]{0}', space=vmem, size = 0x1000, scoped, tag = 'input window, operand 2, single buffered']
    #allocation6 [shape = 's32[1]{0}', space=sflag, size = 0x4, scoped, tag = 'scoped memory for generator_forward.3']
    #allocation7 [shape = 'u8[4096]{0}', space=vmem, size = 0x1000, scoped, tag = 'input window, operand 3, single buffered']
    #allocation8 [shape = 'u8[4096]{0}', space=vmem, size = 0x1000, scoped, tag = 'input window, operand 4, single buffered']
    #allocation9 [shape = 's32[1]{0}', space=sflag, size = 0x4, scoped, tag = 'scoped memory for generator_forward.3']
    #allocation10 [shape = 'u8[4194304]{0}', space=vmem, size = 0x400000, scoped, tag = 'input window, operand 5']
    #allocation11 [shape = 'u8[8192]{0}', space=vmem, size = 0x2000, scoped, tag = 'input window, operand 6']
    #allocation12 [shape = 'u8[8192]{0}', space=vmem, size = 0x2000, scoped, tag = 'input window, operand 7']
    #allocation13 [shape = 'u8[8192]{0}', space=vmem, size = 0x2000, scoped, tag = 'input window, operand 8']
    %14 = vsyncpa [#allocation4], 0
    %15 = vsyncpa [#allocation6], 0
    %16 = vsyncpa [#allocation9], 0
    loop: start=0, step=1, limit=4
    $region2: #{generator_forward.3} parent=1 // loop_pre_header
      _
    $region3: #{generator_forward.3} parent=1 // loop_header
      %s18 = sphi 0, %s22
      %p19 = scmp.ge.s32.totalorder %s18, 4
      %s26 = sphi 0, %s26
      %s28 = sphi 0, %s26
      %s29 = sphi 0, %s28
      %s43 = sphi 0, %s29
      %s47 = sphi 0, %s47
      %s49 = sphi 0, %s47
      %s50 = sphi 0, %s49
      %s64 = sphi 0, %s50
      %s68 = sphi 0, %s68
      %s70 = sphi 0, %s68
      %s71 = sphi 0, %s70
      %s85 = sphi 0, %s71
      %s89 = sphi 0, %s89
      %s91 = sphi 0, %s89
      %s92 = sphi 0, %s91
      %s106 = sphi 0, %s92
      %s110 = sphi 0, %s110
      %s112 = sphi 0, %s110
      %s113 = sphi 0, %s112
      %s127 = sphi 0, %s113
      %s133 = sphi 0, %s135
      %s136 = sphi 0, %s133
      %s137 = sphi 0, %s136
      %s153 = sphi 0, %s137
      %s159 = sphi 0, %s161
      %s162 = sphi 0, %s159
      %s163 = sphi 0, %s162
      %s179 = sphi 0, %s163
      %s185 = sphi 0, %s187
      %s188 = sphi 0, %s185
      %s189 = sphi 0, %s188
      %s205 = sphi 0, %s189
      %s211 = sphi 0, %s213
      %s214 = sphi 0, %s211
      %s215 = sphi 0, %s214
      %s231 = sphi 0, %s215
      %s237 = sphi 0, %s239
      %s240 = sphi 0, %s237
      %s241 = sphi 0, %s240
      %s257 = sphi 0, %s241
    $region4: #{generator_forward.3} parent=1 // loop_header_branch
      %21 = sbr.rel (%p19) target = $region8
    $region5: #{generator_forward.3} parent=1 // loop_body
      %s23 = ssub.s32 %s18, 1
      %s24 = ssub.s32 %s18, 2
      %s25 = sadd.s32 %s18, 1
      %s27 = sadd.s32 %s26, 1
      %p30 = scmp.eq.s32.totalorder %s18, 1
      %p31 = scmp.ne.s32.totalorder %s26, %s28
      %p32 = scmp.eq.s32.totalorder %s18, 0
      %p33 = por %p31, %p32
      %p34 = scmp.ne.s32.totalorder %s26, %s28
      %p35 = scmp.eq.s32.totalorder %s23, 1
      %p36 = por %p34, %p35
      %p37 = scmp.ne.s32.totalorder %s28, %s29
      %p38 = scmp.eq.s32.totalorder %s23, 0
      %p39 = por %p37, %p38
      %p40 = scmp.ne.s32.totalorder %s28, %s29
      %p41 = scmp.eq.s32.totalorder %s24, 1
      %p42 = por %p40, %p41
      %p44 = scmp.ne.s32.totalorder %s29, %s43
      %p45 = scmp.eq.s32.totalorder %s24, 0
      %p46 = por %p44, %p45
      %s48 = sadd.s32 %s47, 1
      %p51 = scmp.eq.s32.totalorder %s18, 1
      %p52 = scmp.ne.s32.totalorder %s47, %s49
      %p53 = scmp.eq.s32.totalorder %s18, 0
      %p54 = por %p52, %p53
      %p55 = scmp.ne.s32.totalorder %s47, %s49
      %p56 = scmp.eq.s32.totalorder %s23, 1
      %p57 = por %p55, %p56
      %p58 = scmp.ne.s32.totalorder %s49, %s50
      %p59 = scmp.eq.s32.totalorder %s23, 0
      %p60 = por %p58, %p59
      %p61 = scmp.ne.s32.totalorder %s49, %s50
      %p62 = scmp.eq.s32.totalorder %s24, 1
      %p63 = por %p61, %p62
      %p65 = scmp.ne.s32.totalorder %s50, %s64
      %p66 = scmp.eq.s32.totalorder %s24, 0
      %p67 = por %p65, %p66
      %s69 = sadd.s32 %s68, 1
      %p72 = scmp.eq.s32.totalorder %s18, 1
      %p73 = scmp.ne.s32.totalorder %s68, %s70
      %p74 = scmp.eq.s32.totalorder %s18, 0
      %p75 = por %p73, %p74
      %p76 = scmp.ne.s32.totalorder %s68, %s70
      %p77 = scmp.eq.s32.totalorder %s23, 1
      %p78 = por %p76, %p77
      %p79 = scmp.ne.s32.totalorder %s70, %s71
      %p80 = scmp.eq.s32.totalorder %s23, 0
      %p81 = por %p79, %p80
      %p82 = scmp.ne.s32.totalorder %s70, %s71
      %p83 = scmp.eq.s32.totalorder %s24, 1
      %p84 = por %p82, %p83
      %p86 = scmp.ne.s32.totalorder %s71, %s85
      %p87 = scmp.eq.s32.totalorder %s24, 0
      %p88 = por %p86, %p87
      %s90 = sadd.s32 %s89, 1
      %p93 = scmp.eq.s32.totalorder %s18, 1
      %p94 = scmp.ne.s32.totalorder %s89, %s91
      %p95 = scmp.eq.s32.totalorder %s18, 0
      %p96 = por %p94, %p95
      %p97 = scmp.ne.s32.totalorder %s89, %s91
      %p98 = scmp.eq.s32.totalorder %s23, 1
      %p99 = por %p97, %p98
      %p100 = scmp.ne.s32.totalorder %s91, %s92
      %p101 = scmp.eq.s32.totalorder %s23, 0
      %p102 = por %p100, %p101
      %p103 = scmp.ne.s32.totalorder %s91, %s92
      %p104 = scmp.eq.s32.totalorder %s24, 1
      %p105 = por %p103, %p104
      %p107 = scmp.ne.s32.totalorder %s92, %s106
      %p108 = scmp.eq.s32.totalorder %s24, 0
      %p109 = por %p107, %p108
      %s111 = sadd.s32 %s110, 1
      %p114 = scmp.eq.s32.totalorder %s18, 1
      %p115 = scmp.ne.s32.totalorder %s110, %s112
      %p116 = scmp.eq.s32.totalorder %s18, 0
      %p117 = por %p115, %p116
      %p118 = scmp.ne.s32.totalorder %s110, %s112
      %p119 = scmp.eq.s32.totalorder %s23, 1
      %p120 = por %p118, %p119
      %p121 = scmp.ne.s32.totalorder %s112, %s113
      %p122 = scmp.eq.s32.totalorder %s23, 0
      %p123 = por %p121, %p122
      %p124 = scmp.ne.s32.totalorder %s112, %s113
      %p125 = scmp.eq.s32.totalorder %s24, 1
      %p126 = por %p124, %p125
      %p128 = scmp.ne.s32.totalorder %s113, %s127
      %p129 = scmp.eq.s32.totalorder %s24, 0
      %p130 = por %p128, %p129
      %s131 = ssub.s32 %s18, %s25
      %p132 = scmp.eq.s32.totalorder %s131, 0
      %s134 = sadd.s32 %s133, 1
      %s135 = scalar_select %p132, %s133, %s134
      %p138 = pneg %p132
      %p139 = scmp.eq.s32.totalorder %s18, 1
      %p140 = por %p138, %p139
      %p141 = scmp.ne.s32.totalorder %s133, %s136
      %p142 = scmp.eq.s32.totalorder %s18, 0
      %p143 = por %p141, %p142
      %p144 = scmp.ne.s32.totalorder %s133, %s136
      %p145 = scmp.eq.s32.totalorder %s23, 1
      %p146 = por %p144, %p145
      %p147 = scmp.ne.s32.totalorder %s136, %s137
      %p148 = scmp.eq.s32.totalorder %s23, 0
      %p149 = por %p147, %p148
      %p150 = scmp.ne.s32.totalorder %s136, %s137
      %p151 = scmp.eq.s32.totalorder %s24, 1
      %p152 = por %p150, %p151
      %p154 = scmp.ne.s32.totalorder %s137, %s153
      %p155 = scmp.eq.s32.totalorder %s24, 0
      %p156 = por %p154, %p155
      %s157 = ssub.s32 %s18, %s25
      %p158 = scmp.eq.s32.totalorder %s157, 0
      %s160 = sadd.s32 %s159, 1
      %s161 = scalar_select %p158, %s159, %s160
      %p164 = pneg %p158
      %p165 = scmp.eq.s32.totalorder %s18, 1
      %p166 = por %p164, %p165
      %p167 = scmp.ne.s32.totalorder %s159, %s162
      %p168 = scmp.eq.s32.totalorder %s18, 0
      %p169 = por %p167, %p168
      %p170 = scmp.ne.s32.totalorder %s159, %s162
      %p171 = scmp.eq.s32.totalorder %s23, 1
      %p172 = por %p170, %p171
      %p173 = scmp.ne.s32.totalorder %s162, %s163
      %p174 = scmp.eq.s32.totalorder %s23, 0
      %p175 = por %p173, %p174
      %p176 = scmp.ne.s32.totalorder %s162, %s163
      %p177 = scmp.eq.s32.totalorder %s24, 1
      %p178 = por %p176, %p177
      %p180 = scmp.ne.s32.totalorder %s163, %s179
      %p181 = scmp.eq.s32.totalorder %s24, 0
      %p182 = por %p180, %p181
      %s183 = ssub.s32 %s18, %s25
      %p184 = scmp.eq.s32.totalorder %s183, 0
      %s186 = sadd.s32 %s185, 1
      %s187 = scalar_select %p184, %s185, %s186
      %p190 = pneg %p184
      %p191 = scmp.eq.s32.totalorder %s18, 1
      %p192 = por %p190, %p191
      %p193 = scmp.ne.s32.totalorder %s185, %s188
      %p194 = scmp.eq.s32.totalorder %s18, 0
      %p195 = por %p193, %p194
      %p196 = scmp.ne.s32.totalorder %s185, %s188
      %p197 = scmp.eq.s32.totalorder %s23, 1
      %p198 = por %p196, %p197
      %p199 = scmp.ne.s32.totalorder %s188, %s189
      %p200 = scmp.eq.s32.totalorder %s23, 0
      %p201 = por %p199, %p200
      %p202 = scmp.ne.s32.totalorder %s188, %s189
      %p203 = scmp.eq.s32.totalorder %s24, 1
      %p204 = por %p202, %p203
      %p206 = scmp.ne.s32.totalorder %s189, %s205
      %p207 = scmp.eq.s32.totalorder %s24, 0
      %p208 = por %p206, %p207
      %s209 = ssub.s32 %s18, %s25
      %p210 = scmp.eq.s32.totalorder %s209, 0
      %s212 = sadd.s32 %s211, 1
      %s213 = scalar_select %p210, %s211, %s212
      %p216 = pneg %p210
      %p217 = scmp.eq.s32.totalorder %s18, 1
      %p218 = por %p216, %p217
      %p219 = scmp.ne.s32.totalorder %s211, %s214
      %p220 = scmp.eq.s32.totalorder %s18, 0
      %p221 = por %p219, %p220
      %p222 = scmp.ne.s32.totalorder %s211, %s214
      %p223 = scmp.eq.s32.totalorder %s23, 1
      %p224 = por %p222, %p223
      %p225 = scmp.ne.s32.totalorder %s214, %s215
      %p226 = scmp.eq.s32.totalorder %s23, 0
      %p227 = por %p225, %p226
      %p228 = scmp.ne.s32.totalorder %s214, %s215
      %p229 = scmp.eq.s32.totalorder %s24, 1
      %p230 = por %p228, %p229
      %p232 = scmp.ne.s32.totalorder %s215, %s231
      %p233 = scmp.eq.s32.totalorder %s24, 0
      %p234 = por %p232, %p233
      %s235 = ssub.s32 %s18, %s25
      %p236 = scmp.eq.s32.totalorder %s235, 0
      %s238 = sadd.s32 %s237, 1
      %s239 = scalar_select %p236, %s237, %s238
      %p242 = pneg %p236
      %p243 = scmp.eq.s32.totalorder %s18, 1
      %p244 = por %p242, %p243
      %p245 = scmp.ne.s32.totalorder %s237, %s240
      %p246 = scmp.eq.s32.totalorder %s18, 0
      %p247 = por %p245, %p246
      %p248 = scmp.ne.s32.totalorder %s237, %s240
      %p249 = scmp.eq.s32.totalorder %s23, 1
      %p250 = por %p248, %p249
      %p251 = scmp.ne.s32.totalorder %s240, %s241
      %p252 = scmp.eq.s32.totalorder %s23, 0
      %p253 = por %p251, %p252
      %p254 = scmp.ne.s32.totalorder %s240, %s241
      %p255 = scmp.eq.s32.totalorder %s24, 1
      %p256 = por %p254, %p255
      %p258 = scmp.ne.s32.totalorder %s241, %s257
      %p259 = scmp.eq.s32.totalorder %s24, 0
      %p260 = por %p258, %p259
      %p261 = scmp.le.s32.totalorder 1, %s18
      %p262 = scmp.lt.s32.totalorder %s18, 3
      %p263 = pnand %p261, %p262
      %p264 = pneg %p263
      // Predicated region
      $region9: #{generator_forward.3} parent=5 // pred_check
        _
      $region10: #{generator_forward.3} parent=5 // pred_check_branch
        %266 = sbr.rel (%p263) target = $region12
      $region11: #{generator_forward.3} parent=5 // pred_region
        %s267 = ssub.s32 %s18, 1
        // Predicated region
        $region13: #{generator_forward.3} parent=11 // pred_check
          %p268 = pneg %p39
        $region14: #{generator_forward.3} parent=11 // pred_check_branch
          %270 = sbr.rel (%p268) target = $region16
        $region15: #{generator_forward.3} parent=11 // pred_region
          _
        $region16: #{generator_forward.3} parent=11 // pred_fallthru
          _
        // Predicated region
        $region17: #{generator_forward.3} parent=11 // pred_check
          %p271 = pneg %p60
        $region18: #{generator_forward.3} parent=11 // pred_check_branch
          %273 = sbr.rel (%p271) target = $region20
        $region19: #{generator_forward.3} parent=11 // pred_region
          %s275 = ssub.s32 1536, 1536
          %276 = vsyncadd [#allocation4], %s275
          %s277 = sshll.u32 [#allocation3], 4
          %s278 = int_to_ptr.vmem [resolvable:$true] %s277
          %283 = dma.hbm_to_vmem [thread:$0]  %s1, 1536, %s278, [#allocation4], 512, 512, 32
        $region20: #{generator_forward.3} parent=11 // pred_fallthru
          _
        // Predicated region
        $region21: #{generator_forward.3} parent=11 // pred_check
          %p284 = pneg %p81
        $region22: #{generator_forward.3} parent=11 // pred_check_branch
          %286 = sbr.rel (%p284) target = $region24
        $region23: #{generator_forward.3} parent=11 // pred_region
          %s288 = ssub.s32 128, 128
          %289 = vsyncadd [#allocation6], %s288
          %s291 = sshll.u32 [#allocation5], 4
          %s292 = int_to_ptr.vmem [resolvable:$true] %s291
          %294 = dma.hbm_to_vmem [thread:$0]  %s2, 128, %s292, [#allocation6]
        $region24: #{generator_forward.3} parent=11 // pred_fallthru
          _
        // Predicated region
        $region25: #{generator_forward.3} parent=11 // pred_check
          %p295 = pneg %p102
        $region26: #{generator_forward.3} parent=11 // pred_check_branch
          %297 = sbr.rel (%p295) target = $region28
        $region27: #{generator_forward.3} parent=11 // pred_region
          %s299 = ssub.s32 128, 128
          %300 = vsyncadd [#allocation6], %s299
          %s302 = sshll.u32 [#allocation7], 4
          %s303 = int_to_ptr.vmem [resolvable:$true] %s302
          %305 = dma.hbm_to_vmem [thread:$0]  %s3, 128, %s303, [#allocation6]
        $region28: #{generator_forward.3} parent=11 // pred_fallthru
          _
        // Predicated region
        $region29: #{generator_forward.3} parent=11 // pred_check
          %p306 = pneg %p123
        $region30: #{generator_forward.3} parent=11 // pred_check_branch
          %308 = sbr.rel (%p306) target = $region32
        $region31: #{generator_forward.3} parent=11 // pred_region
          %s310 = ssub.s32 128, 128
          %311 = vsyncadd [#allocation9], %s310
          %s313 = sshll.u32 [#allocation8], 4
          %s314 = int_to_ptr.vmem [resolvable:$true] %s313
          %316 = dma.hbm_to_vmem [thread:$0]  %s4, 128, %s314, [#allocation9]
        $region32: #{generator_forward.3} parent=11 // pred_fallthru
          _
      $region12: #{generator_forward.3} parent=5 // pred_fallthru
        _
      %p317 = scmp.lt.s32.totalorder %s18, 2
      // Predicated region
      $region33: #{generator_forward.3} parent=5 // pred_check
        %p318 = pneg %p317
      $region34: #{generator_forward.3} parent=5 // pred_check_branch
        %320 = sbr.rel (%p318) target = $region36
      $region35: #{generator_forward.3} parent=5 // pred_region
        // Predicated region
        $region37: #{generator_forward.3} parent=35 // pred_check
          %p321 = pneg %p143
        $region38: #{generator_forward.3} parent=35 // pred_check_branch
          %323 = sbr.rel (%p321) target = $region40
        $region39: #{generator_forward.3} parent=35 // pred_region
          %s324 = sand.u32 %s18, 1
          %s325 = scalar_lea.sflag [#allocation4], %s324
          %s326 = sand.u32 %s133, 1
          %s327 = smul.addr %s326, 4096
          %s328 = scalar_lea.vmem [#allocation10], %s327
          %s329 = smul.u32 8, %s18
          %s331 = ssub.s32 65536, 65536
          %332 = vsyncadd %s325, %s331
          %s333 = smul.addr %s329, 64
          %s334 = scalar_lea.hbm %s5, %s333
          %s335 = sshll.u32 %s328, 4
          %s336 = int_to_ptr.vmem [resolvable:$true] %s335
          %341 = dma.hbm_to_vmem [thread:$0]  %s334, 65536, %s336, %s325, 1024, 512, 32
        $region40: #{generator_forward.3} parent=35 // pred_fallthru
          _
        // Predicated region
        $region41: #{generator_forward.3} parent=35 // pred_check
          %p342 = pneg %p169
        $region42: #{generator_forward.3} parent=35 // pred_check_branch
          %344 = sbr.rel (%p342) target = $region44
        $region43: #{generator_forward.3} parent=35 // pred_region
          %s345 = sand.u32 %s18, 1
          %s346 = scalar_lea.sflag [#allocation4], %s345
          %s347 = sand.u32 %s159, 1
          %s348 = smul.addr %s347, 8
          %s349 = scalar_lea.vmem [#allocation11], %s348
          %s350 = smul.u32 8, %s18
          %s352 = ssub.s32 128, 128
          %353 = vsyncadd %s346, %s352
          %s354 = smul.addr %s350, 16
          %s355 = scalar_lea.hbm %s6, %s354
          %s357 = sshll.u32 %s349, 4
          %s358 = int_to_ptr.vmem [resolvable:$true] %s357
          %360 = dma.hbm_to_vmem [thread:$0]  %s355, 128, %s358, %s346
        $region44: #{generator_forward.3} parent=35 // pred_fallthru
          _
        // Predicated region
        $region45: #{generator_forward.3} parent=35 // pred_check
          %p361 = pneg %p195
        $region46: #{generator_forward.3} parent=35 // pred_check_branch
          %363 = sbr.rel (%p361) target = $region48
        $region47: #{generator_forward.3} parent=35 // pred_region
          %s364 = sand.u32 %s18, 1
          %s365 = scalar_lea.sflag [#allocation4], %s364
          %s366 = sand.u32 %s185, 1
          %s367 = smul.addr %s366, 8
          %s368 = scalar_lea.vmem [#allocation12], %s367
          %s369 = smul.u32 8, %s18
          %s371 = ssub.s32 128, 128
          %372 = vsyncadd %s365, %s371
          %s373 = smul.addr %s369, 16
          %s374 = scalar_lea.hbm %s7, %s373
          %s376 = sshll.u32 %s368, 4
          %s377 = int_to_ptr.vmem [resolvable:$true] %s376
          %379 = dma.hbm_to_vmem [thread:$0]  %s374, 128, %s377, %s365
        $region48: #{generator_forward.3} parent=35 // pred_fallthru
          _
        // Predicated region
        $region49: #{generator_forward.3} parent=35 // pred_check
          %p380 = pneg %p221
        $region50: #{generator_forward.3} parent=35 // pred_check_branch
          %382 = sbr.rel (%p380) target = $region52
        $region51: #{generator_forward.3} parent=35 // pred_region
          %s383 = sand.u32 %s18, 1
          %s384 = scalar_lea.sflag [#allocation4], %s383
          %s385 = sand.u32 %s211, 1
          %s386 = smul.addr %s385, 8
          %s387 = scalar_lea.vmem [#allocation13], %s386
          %s388 = smul.u32 8, %s18
          %s390 = ssub.s32 128, 128
          %391 = vsyncadd %s384, %s390
          %s392 = smul.addr %s388, 16
          %s393 = scalar_lea.hbm %s8, %s392
          %s395 = sshll.u32 %s387, 4
          %s396 = int_to_ptr.vmem [resolvable:$true] %s395
          %398 = dma.hbm_to_vmem [thread:$0]  %s393, 128, %s396, %s384
        $region52: #{generator_forward.3} parent=35 // pred_fallthru
          _
      $region36: #{generator_forward.3} parent=5 // pred_fallthru
        _
      %p399 = scmp.le.s32.totalorder 1, %s18
      %p400 = scmp.lt.s32.totalorder %s18, 3
      %p401 = pnand %p399, %p400
      %p402 = pneg %p401
      // Predicated region
      $region53: #{generator_forward.3} parent=5 // pred_check
        _
      $region54: #{generator_forward.3} parent=5 // pred_check_branch
        %404 = sbr.rel (%p401) target = $region56
      $region55: #{generator_forward.3} parent=5 // pred_region
        %s405 = ssub.s32 %s18, 1
        // Predicated region
        $region57: #{generator_forward.3} parent=55 // pred_check
          %p406 = pneg %p60
        $region58: #{generator_forward.3} parent=55 // pred_check_branch
          %408 = sbr.rel (%p406) target = $region60
        $region59: #{generator_forward.3} parent=55 // pred_region
          %409 = dma.done [#allocation4], 1536
        $region60: #{generator_forward.3} parent=55 // pred_fallthru
          _
        // Predicated region
        $region61: #{generator_forward.3} parent=55 // pred_check
          %p410 = pneg %p81
        $region62: #{generator_forward.3} parent=55 // pred_check_branch
          %412 = sbr.rel (%p410) target = $region64
        $region63: #{generator_forward.3} parent=55 // pred_region
          %413 = dma.done [#allocation6], 128
        $region64: #{generator_forward.3} parent=55 // pred_fallthru
          _
        // Predicated region
        $region65: #{generator_forward.3} parent=55 // pred_check
          %p414 = pneg %p102
        $region66: #{generator_forward.3} parent=55 // pred_check_branch
          %416 = sbr.rel (%p414) target = $region68
        $region67: #{generator_forward.3} parent=55 // pred_region
          %417 = dma.done [#allocation6], 128
        $region68: #{generator_forward.3} parent=55 // pred_fallthru
          _
        // Predicated region
        $region69: #{generator_forward.3} parent=55 // pred_check
          %p418 = pneg %p123
        $region70: #{generator_forward.3} parent=55 // pred_check_branch
          %420 = sbr.rel (%p418) target = $region72
        $region71: #{generator_forward.3} parent=55 // pred_region
          %421 = dma.done [#allocation9], 128
        $region72: #{generator_forward.3} parent=55 // pred_fallthru
          _
        %s422 = sand.u32 %s23, 1
        %s423 = scalar_lea.sflag [#allocation4], %s422
        %s424 = sand.u32 %s136, 1
        %s425 = smul.addr %s424, 4096
        %s426 = scalar_lea.vmem [#allocation10], %s425
        // Predicated region
        $region73: #{generator_forward.3} parent=55 // pred_check
          %p427 = pneg %p149
        $region74: #{generator_forward.3} parent=55 // pred_check_branch
          %429 = sbr.rel (%p427) target = $region76
        $region75: #{generator_forward.3} parent=55 // pred_region
          %430 = dma.done %s423, 65536
        $region76: #{generator_forward.3} parent=55 // pred_fallthru
          _
        %s431 = sand.u32 %s23, 1
        %s432 = scalar_lea.sflag [#allocation4], %s431
        %s433 = sand.u32 %s162, 1
        %s434 = smul.addr %s433, 8
        %s435 = scalar_lea.vmem [#allocation11], %s434
        // Predicated region
        $region77: #{generator_forward.3} parent=55 // pred_check
          %p436 = pneg %p175
        $region78: #{generator_forward.3} parent=55 // pred_check_branch
          %438 = sbr.rel (%p436) target = $region80
        $region79: #{generator_forward.3} parent=55 // pred_region
          %439 = dma.done %s432, 128
        $region80: #{generator_forward.3} parent=55 // pred_fallthru
          _
        %s440 = sand.u32 %s23, 1
        %s441 = scalar_lea.sflag [#allocation4], %s440
        %s442 = sand.u32 %s188, 1
        %s443 = smul.addr %s442, 8
        %s444 = scalar_lea.vmem [#allocation12], %s443
        // Predicated region
        $region81: #{generator_forward.3} parent=55 // pred_check
          %p445 = pneg %p201
        $region82: #{generator_forward.3} parent=55 // pred_check_branch
          %447 = sbr.rel (%p445) target = $region84
        $region83: #{generator_forward.3} parent=55 // pred_region
          %448 = dma.done %s441, 128
        $region84: #{generator_forward.3} parent=55 // pred_fallthru
          _
        %s449 = sand.u32 %s23, 1
        %s450 = scalar_lea.sflag [#allocation4], %s449
        %s451 = sand.u32 %s214, 1
        %s452 = smul.addr %s451, 8
        %s453 = scalar_lea.vmem [#allocation13], %s452
        // Predicated region
        $region85: #{generator_forward.3} parent=55 // pred_check
          %p454 = pneg %p227
        $region86: #{generator_forward.3} parent=55 // pred_check_branch
          %456 = sbr.rel (%p454) target = $region88
        $region87: #{generator_forward.3} parent=55 // pred_region
          %457 = dma.done %s450, 128
        $region88: #{generator_forward.3} parent=55 // pred_fallthru
          _
        %p458 = pneg %p39
        %p459 = pneg %p36
        %p460 = pneg %p60
        %p461 = pneg %p57
        %p462 = pneg %p81
        %p463 = pneg %p78
        %p464 = pneg %p102
        %p465 = pneg %p99
        %p466 = pneg %p123
        %p467 = pneg %p120
        %s468 = sand.u32 %s23, 1
        %s469 = scalar_lea.sflag [#allocation4], %s468
        %s470 = sand.u32 %s136, 1
        %s471 = smul.addr %s470, 4096
        %s472 = scalar_lea.vmem [#allocation10], %s471
        %p473 = pneg %p149
        %p474 = pneg %p146
        %s475 = sand.u32 %s23, 1
        %s476 = scalar_lea.sflag [#allocation4], %s475
        %s477 = sand.u32 %s162, 1
        %s478 = smul.addr %s477, 8
        %s479 = scalar_lea.vmem [#allocation11], %s478
        %p480 = pneg %p175
        %p481 = pneg %p172
        %s482 = sand.u32 %s23, 1
        %s483 = scalar_lea.sflag [#allocation4], %s482
        %s484 = sand.u32 %s188, 1
        %s485 = smul.addr %s484, 8
        %s486 = scalar_lea.vmem [#allocation12], %s485
        %p487 = pneg %p201
        %p488 = pneg %p198
        %s489 = sand.u32 %s23, 1
        %s490 = scalar_lea.sflag [#allocation4], %s489
        %s491 = sand.u32 %s214, 1
        %s492 = smul.addr %s491, 8
        %s493 = scalar_lea.vmem [#allocation13], %s492
        %p494 = pneg %p227
        %p495 = pneg %p224
        %p496 = pneg %p253
        %p497 = pneg %p250
        %s498 = smul.u32 8, %s23
        %p499 = scmp.lt.s32.totalorder %s498, 15
        %s500 = scalar_select %p499, %s498, 15
        %s501 = smul.addr %s500, 8
        %s502 = scalar_lea.vmem %s9, %s501
        %s503 = smul.u32 8, %s23
        %s504 = smul.u32 8, %s23
        %s505 = smul.u32 8, %s23
        %s506 = smul.u32 8, %s23
        %s507 = smul.u32 8, %s23
        %p508 = scmp.lt.s32.totalorder %s507, 15
        %s509 = scalar_select %p508, %s507, 15
        %s510 = smul.addr %s509, 8
        %s511 = scalar_lea.vmem %s9, %s510
        %s512 = smul.u32 8, %s23
        %p513 = scmp.eq.s32.totalorder %s23, 0
        // Predicated region
        $region89: #{generator_forward.3} parent=55 // pred_check
          %p514 = pneg %p513
        $region90: #{generator_forward.3} parent=55 // pred_check_branch
          %516 = sbr.rel (%p514) target = $region92
        $region91: #{generator_forward.3} parent=55 // pred_region
          %v517 = vld [vmem:[%s0] sm:$0xff]
          %v518 = vld [vmem:[#allocation3] sm:$0xff]
          %v519 = vld [vmem:[#allocation3 + $0x8] sm:$0xff]
          %v520 = vld [vmem:[#allocation3 + $0x10] sm:$0xff]
          %v521 = vld [vmem:[#allocation3 + $0x18] sm:$0xff]
          %v522 = vld [vmem:[#allocation3 + $0x20] sm:$0xff]
          %v523 = vld [vmem:[#allocation3 + $0x28] sm:$0xff]
          %v524 = vld [vmem:[#allocation3 + $0x30] sm:$0xff]
          %v525 = vld [vmem:[#allocation3 + $0x38] sm:$0xff]
          %v526 = vld [vmem:[#allocation3 + $0x40] sm:$0x33]
          %v527 = vld [vmem:[#allocation3 + $0x48] sm:$0x33]
          %v528 = vld [vmem:[#allocation3 + $0x50] sm:$0x33]
          %v529 = vld [vmem:[#allocation3 + $0x58] sm:$0x33]
          %v530 = vunpack.c.l.bf16 %v518
          %v531 = vunpack.c.h.bf16 %v518
          %v532 = vunpack.c.l.bf16 %v519
          %v533 = vunpack.c.h.bf16 %v519
          %v534 = vunpack.c.l.bf16 %v520
          %v535 = vunpack.c.h.bf16 %v520
          %v536 = vunpack.c.l.bf16 %v521
          %v537 = vunpack.c.h.bf16 %v521
          %v538 = vunpack.c.l.bf16 %v522
          %v539 = vunpack.c.h.bf16 %v522
          %v540 = vunpack.c.l.bf16 %v523
          %v541 = vunpack.c.h.bf16 %v523
          %v542 = vunpack.c.l.bf16 %v524
          %v543 = vunpack.c.h.bf16 %v524
          %v544 = vunpack.c.l.bf16 %v525
          %v545 = vunpack.c.h.bf16 %v525
          %v546 = vunpack.c.l.bf16 %v526
          %v547 = vunpack.c.h.bf16 %v526
          %v548 = vunpack.c.l.bf16 %v527
          %v549 = vunpack.c.h.bf16 %v527
          %v550 = vunpack.c.l.bf16 %v528
          %v551 = vunpack.c.h.bf16 %v528
          %v552 = vunpack.c.l.bf16 %v529
          %v553 = vunpack.c.h.bf16 %v529
          %v554 = vld [vmem:[#allocation5] sm:$0xff]
          %v556 = vlaneseq
          %v557 = vshrl.u32 %v556, 7
          %v558 = vsub.s32 0, %v557
          %v559 = vrot.slane %v554, %v558
          %v560 = vlaneseq
          %v561 = vshrl.u32 %v560, 7
          %v562 = vsub.s32 1, %v561
          %v563 = vrot.slane %v554, %v562
          %v564 = vlaneseq
          %v565 = vshrl.u32 %v564, 7
          %v566 = vsub.s32 2, %v565
          %v567 = vrot.slane %v554, %v566
          %v568 = vlaneseq
          %v569 = vshrl.u32 %v568, 7
          %v570 = vsub.s32 3, %v569
          %v571 = vrot.slane %v554, %v570
          %v572 = vlaneseq
          %v573 = vshrl.u32 %v572, 7
          %v574 = vsub.s32 4, %v573
          %v575 = vrot.slane %v554, %v574
          %v576 = vlaneseq
          %v577 = vshrl.u32 %v576, 7
          %v578 = vsub.s32 5, %v577
          %v579 = vrot.slane %v554, %v578
          %v580 = vlaneseq
          %v581 = vshrl.u32 %v580, 7
          %v582 = vsub.s32 6, %v581
          %v583 = vrot.slane %v554, %v582
          %v584 = vlaneseq
          %v585 = vshrl.u32 %v584, 7
          %v586 = vsub.s32 7, %v585
          %v587 = vrot.slane %v554, %v586
          %vm596 = vcmask 162816
          %v598 = vsel %vm596, %v517, 0
          %vm600 = vcmask 1043456
          %v602 = vsel %vm600, %v546, 0
          %v605 = vsel %vm600, %v547, 0
          %v608 = vsel %vm600, %v548, 0
          %v611 = vsel %vm600, %v549, 0
          %v614 = vsel %vm600, %v550, 0
          %v617 = vsel %vm600, %v551, 0
          %v620 = vsel %vm600, %v552, 0
          %v623 = vsel %vm600, %v553, 0
          %625 = vmatprep.subr.mxu0 %v531
          %626 = vmatpush1.msra.mxu0 %v530
          %627 = vmatprep.subr.mxu0 %v539
          %628 = vmatpush1.msra.mxu0 %v538
          %629 = vmatprep.subr.mxu0 %v605
          %630 = vmatpush1.msra.mxu0 %v602
          %631 = vmatprep.subr.mxu0 0.0
          %632 = vmatpush1.msra.mxu0 0.0
          %633 = vmatprep.subr.mxu0 0.0
          %634 = vmatpush1.msra.mxu0 0.0
          %635 = vmatprep.subr.mxu0 0.0
          %636 = vmatpush1.msra.mxu0 0.0
          %637 = vmatprep.subr.mxu0 0.0
          %638 = vmatpush1.msra.mxu0 0.0
          %639 = vmatprep.subr.mxu0 0.0
          %640 = vmatpush1.msra.mxu0 0.0
          %641 = vmatprep.subr.mxu0 0.0
          %642 = vmatpush1.msra.mxu0 0.0
          %643 = vmatprep.subr.mxu0 0.0
          %644 = vmatpush1.msra.mxu0 0.0
          %645 = vmatprep.subr.mxu0 0.0
          %646 = vmatpush1.msra.mxu0 0.0
          %647 = vmatprep.subr.mxu0 0.0
          %648 = vmatpush1.msra.mxu0 0.0
          %649 = vmatprep.subr.mxu0 0.0
          %650 = vmatpush1.msra.mxu0 0.0
          %651 = vmatprep.subr.mxu0 0.0
          %652 = vmatpush1.msra.mxu0 0.0
          %653 = vmatprep.subr.mxu0 0.0
          %654 = vmatpush1.msra.mxu0 0.0
          %655 = vmatprep.subr.mxu0 0.0
          %656 = vmatpush1.msra.mxu0 0.0
          %657 = vmatprep.subr.mxu0 0.0
          %658 = vmatpush1.msra.mxu0 0.0
          %659 = vmatprep.subr.mxu0 0.0
          %660 = vmatpush1.msra.mxu0 0.0
          %661 = vmatprep.subr.mxu0 0.0
          %662 = vmatpush1.msra.mxu0 0.0
          %663 = vmatprep.subr.mxu0 0.0
          %664 = vmatpush1.msra.mxu0 0.0
          %665 = vmatprep.subr.mxu0 0.0
          %666 = vmatpush1.msra.mxu0 0.0
          %667 = vmatprep.subr.mxu0 0.0
          %668 = vmatpush1.msra.mxu0 0.0
          %669 = vmatprep.subr.mxu0 0.0
          %670 = vmatpush1.msra.mxu0 0.0
          %671 = vmatprep.subr.mxu0 0.0
          %672 = vmatpush1.msra.mxu0 0.0
          %673 = vmatprep.subr.mxu0 0.0
          %674 = vmatpush1.msra.mxu0 0.0
          %675 = vmatprep.subr.mxu0 0.0
          %676 = vmatpush1.msra.mxu0 0.0
          %677 = vmatprep.subr.mxu0 0.0
          %678 = vmatpush1.msra.mxu0 0.0
          %679 = vmatprep.subr.mxu0 0.0
          %680 = vmatpush1.msra.mxu0 0.0
          %681 = vmatprep.subr.mxu0 0.0
          %682 = vmatpush1.msra.mxu0 0.0
          %683 = vmatprep.subr.mxu0 0.0
          %684 = vmatpush1.msra.mxu0 0.0
          %685 = vmatprep.subr.mxu0 0.0
          %686 = vmatpush1.msra.mxu0 0.0
          %687 = vmatprep.subr.mxu0 0.0
          %688 = vmatpush1.msra.mxu0 0.0
          %689 = vmatprep.mubr.f32.mxu0 0.0
          %690 = vmatmul.mubr.f32.gmra.mrb[0].mxu0 %v598
          %v691 = vpop.f32.mrb[0].mxu0
          %v692 = vadd.f32 %v559, %v691
          %v693 = vpop.f32.mrb[0].mxu0
          %v694 = vadd.f32 %v563, %v693
          %695 = vdwg.mxu0
          %696 = vmatprep.subr.mxu0 %v533
          %697 = vmatpush1.msra.mxu0 %v532
          %698 = vmatprep.subr.mxu0 %v541
          %699 = vmatpush1.msra.mxu0 %v540
          %700 = vmatprep.subr.mxu0 %v611
          %701 = vmatpush1.msra.mxu0 %v608
          %702 = vmatprep.subr.mxu0 0.0
          %703 = vmatpush1.msra.mxu0 0.0
          %704 = vmatprep.subr.mxu0 0.0
          %705 = vmatpush1.msra.mxu0 0.0
          %706 = vmatprep.subr.mxu0 0.0
          %707 = vmatpush1.msra.mxu0 0.0
          %708 = vmatprep.subr.mxu0 0.0
          %709 = vmatpush1.msra.mxu0 0.0
          %710 = vmatprep.subr.mxu0 0.0
          %711 = vmatpush1.msra.mxu0 0.0
          %712 = vmatprep.subr.mxu0 0.0
          %713 = vmatpush1.msra.mxu0 0.0
          %714 = vmatprep.subr.mxu0 0.0
          %715 = vmatpush1.msra.mxu0 0.0
          %716 = vmatprep.subr.mxu0 0.0
          %717 = vmatpush1.msra.mxu0 0.0
          %718 = vmatprep.subr.mxu0 0.0
          %719 = vmatpush1.msra.mxu0 0.0
          %720 = vmatprep.subr.mxu0 0.0
          %721 = vmatpush1.msra.mxu0 0.0
          %722 = vmatprep.subr.mxu0 0.0
          %723 = vmatpush1.msra.mxu0 0.0
          %724 = vmatprep.subr.mxu0 0.0
          %725 = vmatpush1.msra.mxu0 0.0
          %726 = vmatprep.subr.mxu0 0.0
          %727 = vmatpush1.msra.mxu0 0.0
          %728 = vmatprep.subr.mxu0 0.0
          %729 = vmatpush1.msra.mxu0 0.0
          %730 = vmatprep.subr.mxu0 0.0
          %731 = vmatpush1.msra.mxu0 0.0
          %732 = vmatprep.subr.mxu0 0.0
          %733 = vmatpush1.msra.mxu0 0.0
          %734 = vmatprep.subr.mxu0 0.0
          %735 = vmatpush1.msra.mxu0 0.0
          %736 = vmatprep.subr.mxu0 0.0
          %737 = vmatpush1.msra.mxu0 0.0
          %738 = vmatprep.subr.mxu0 0.0
          %739 = vmatpush1.msra.mxu0 0.0
          %740 = vmatprep.subr.mxu0 0.0
          %741 = vmatpush1.msra.mxu0 0.0
          %742 = vmatprep.subr.mxu0 0.0
          %743 = vmatpush1.msra.mxu0 0.0
          %744 = vmatprep.subr.mxu0 0.0
          %745 = vmatpush1.msra.mxu0 0.0
          %746 = vmatprep.subr.mxu0 0.0
          %747 = vmatpush1.msra.mxu0 0.0
          %748 = vmatprep.subr.mxu0 0.0
          %749 = vmatpush1.msra.mxu0 0.0
          %750 = vmatprep.subr.mxu0 0.0
          %751 = vmatpush1.msra.mxu0 0.0
          %752 = vmatprep.subr.mxu0 0.0
          %753 = vmatpush1.msra.mxu0 0.0
          %754 = vmatprep.subr.mxu0 0.0
          %755 = vmatpush1.msra.mxu0 0.0
          %756 = vmatprep.subr.mxu0 0.0
          %757 = vmatpush1.msra.mxu0 0.0
          %758 = vmatprep.subr.mxu0 0.0
          %759 = vmatpush1.msra.mxu0 0.0
          %760 = vmatprep.mubr.f32.mxu0 0.0
          %761 = vmatmul.mubr.f32.gmra.mrb[0].mxu0 %v598
          %v762 = vpop.f32.mrb[0].mxu0
          %v763 = vadd.f32 %v567, %v762
          %v764 = vpop.f32.mrb[0].mxu0
          %v765 = vadd.f32 %v571, %v764
          %766 = vdwg.mxu0
          %767 = vmatprep.subr.mxu0 %v535
          %768 = vmatpush1.msra.mxu0 %v534
          %769 = vmatprep.subr.mxu0 %v543
          %770 = vmatpush1.msra.mxu0 %v542
          %771 = vmatprep.subr.mxu0 %v617
          %772 = vmatpush1.msra.mxu0 %v614
          %773 = vmatprep.subr.mxu0 0.0
          %774 = vmatpush1.msra.mxu0 0.0
          %775 = vmatprep.subr.mxu0 0.0
          %776 = vmatpush1.msra.mxu0 0.0
          %777 = vmatprep.subr.mxu0 0.0
          %778 = vmatpush1.msra.mxu0 0.0
          %779 = vmatprep.subr.mxu0 0.0
          %780 = vmatpush1.msra.mxu0 0.0
          %781 = vmatprep.subr.mxu0 0.0
          %782 = vmatpush1.msra.mxu0 0.0
          %783 = vmatprep.subr.mxu0 0.0
          %784 = vmatpush1.msra.mxu0 0.0
          %785 = vmatprep.subr.mxu0 0.0
          %786 = vmatpush1.msra.mxu0 0.0
          %787 = vmatprep.subr.mxu0 0.0
          %788 = vmatpush1.msra.mxu0 0.0
          %789 = vmatprep.subr.mxu0 0.0
          %790 = vmatpush1.msra.mxu0 0.0
          %791 = vmatprep.subr.mxu0 0.0
          %792 = vmatpush1.msra.mxu0 0.0
          %793 = vmatprep.subr.mxu0 0.0
          %794 = vmatpush1.msra.mxu0 0.0
          %795 = vmatprep.subr.mxu0 0.0
          %796 = vmatpush1.msra.mxu0 0.0
          %797 = vmatprep.subr.mxu0 0.0
          %798 = vmatpush1.msra.mxu0 0.0
          %799 = vmatprep.subr.mxu0 0.0
          %800 = vmatpush1.msra.mxu0 0.0
          %801 = vmatprep.subr.mxu0 0.0
          %802 = vmatpush1.msra.mxu0 0.0
          %803 = vmatprep.subr.mxu0 0.0
          %804 = vmatpush1.msra.mxu0 0.0
          %805 = vmatprep.subr.mxu0 0.0
          %806 = vmatpush1.msra.mxu0 0.0
          %807 = vmatprep.subr.mxu0 0.0
          %808 = vmatpush1.msra.mxu0 0.0
          %809 = vmatprep.subr.mxu0 0.0
          %810 = vmatpush1.msra.mxu0 0.0
          %811 = vmatprep.subr.mxu0 0.0
          %812 = vmatpush1.msra.mxu0 0.0
          %813 = vmatprep.subr.mxu0 0.0
          %814 = vmatpush1.msra.mxu0 0.0
          %815 = vmatprep.subr.mxu0 0.0
          %816 = vmatpush1.msra.mxu0 0.0
          %817 = vmatprep.subr.mxu0 0.0
          %818 = vmatpush1.msra.mxu0 0.0
          %819 = vmatprep.subr.mxu0 0.0
          %820 = vmatpush1.msra.mxu0 0.0
          %821 = vmatprep.subr.mxu0 0.0
          %822 = vmatpush1.msra.mxu0 0.0
          %823 = vmatprep.subr.mxu0 0.0
          %824 = vmatpush1.msra.mxu0 0.0
          %825 = vmatprep.subr.mxu0 0.0
          %826 = vmatpush1.msra.mxu0 0.0
          %827 = vmatprep.subr.mxu0 0.0
          %828 = vmatpush1.msra.mxu0 0.0
          %829 = vmatprep.subr.mxu0 0.0
          %830 = vmatpush1.msra.mxu0 0.0
          %831 = vmatprep.mubr.f32.mxu0 0.0
          %832 = vmatmul.mubr.f32.gmra.mrb[0].mxu0 %v598
          %v833 = vpop.f32.mrb[0].mxu0
          %v834 = vadd.f32 %v575, %v833
          %v835 = vpop.f32.mrb[0].mxu0
          %v836 = vadd.f32 %v579, %v835
          %837 = vdwg.mxu0
          %838 = vmatprep.subr.mxu0 %v537
          %839 = vmatpush1.msra.mxu0 %v536
          %840 = vmatprep.subr.mxu0 %v545
          %841 = vmatpush1.msra.mxu0 %v544
          %842 = vmatprep.subr.mxu0 %v623
          %843 = vmatpush1.msra.mxu0 %v620
          %844 = vmatprep.subr.mxu0 0.0
          %845 = vmatpush1.msra.mxu0 0.0
          %846 = vmatprep.subr.mxu0 0.0
          %847 = vmatpush1.msra.mxu0 0.0
          %848 = vmatprep.subr.mxu0 0.0
          %849 = vmatpush1.msra.mxu0 0.0
          %850 = vmatprep.subr.mxu0 0.0
          %851 = vmatpush1.msra.mxu0 0.0
          %852 = vmatprep.subr.mxu0 0.0
          %853 = vmatpush1.msra.mxu0 0.0
          %854 = vmatprep.subr.mxu0 0.0
          %855 = vmatpush1.msra.mxu0 0.0
          %856 = vmatprep.subr.mxu0 0.0
          %857 = vmatpush1.msra.mxu0 0.0
          %858 = vmatprep.subr.mxu0 0.0
          %859 = vmatpush1.msra.mxu0 0.0
          %860 = vmatprep.subr.mxu0 0.0
          %861 = vmatpush1.msra.mxu0 0.0
          %862 = vmatprep.subr.mxu0 0.0
          %863 = vmatpush1.msra.mxu0 0.0
          %864 = vmatprep.subr.mxu0 0.0
          %865 = vmatpush1.msra.mxu0 0.0
          %866 = vmatprep.subr.mxu0 0.0
          %867 = vmatpush1.msra.mxu0 0.0
          %868 = vmatprep.subr.mxu0 0.0
          %869 = vmatpush1.msra.mxu0 0.0
          %870 = vmatprep.subr.mxu0 0.0
          %871 = vmatpush1.msra.mxu0 0.0
          %872 = vmatprep.subr.mxu0 0.0
          %873 = vmatpush1.msra.mxu0 0.0
          %874 = vmatprep.subr.mxu0 0.0
          %875 = vmatpush1.msra.mxu0 0.0
          %876 = vmatprep.subr.mxu0 0.0
          %877 = vmatpush1.msra.mxu0 0.0
          %878 = vmatprep.subr.mxu0 0.0
          %879 = vmatpush1.msra.mxu0 0.0
          %880 = vmatprep.subr.mxu0 0.0
          %881 = vmatpush1.msra.mxu0 0.0
          %882 = vmatprep.subr.mxu0 0.0
          %883 = vmatpush1.msra.mxu0 0.0
          %884 = vmatprep.subr.mxu0 0.0
          %885 = vmatpush1.msra.mxu0 0.0
          %886 = vmatprep.subr.mxu0 0.0
          %887 = vmatpush1.msra.mxu0 0.0
          %888 = vmatprep.subr.mxu0 0.0
          %889 = vmatpush1.msra.mxu0 0.0
          %890 = vmatprep.subr.mxu0 0.0
          %891 = vmatpush1.msra.mxu0 0.0
          %892 = vmatprep.subr.mxu0 0.0
          %893 = vmatpush1.msra.mxu0 0.0
          %894 = vmatprep.subr.mxu0 0.0
          %895 = vmatpush1.msra.mxu0 0.0
          %896 = vmatprep.subr.mxu0 0.0
          %897 = vmatpush1.msra.mxu0 0.0
          %898 = vmatprep.subr.mxu0 0.0
          %899 = vmatpush1.msra.mxu0 0.0
          %900 = vmatprep.subr.mxu0 0.0
          %901 = vmatpush1.msra.mxu0 0.0
          %902 = vmatprep.mubr.f32.mxu0 0.0
          %903 = vmatmul.mubr.f32.gmra.mrb[0].mxu0 %v598
          %v904 = vpop.f32.mrb[0].mxu0
          %v905 = vadd.f32 %v583, %v904
          %v906 = vpop.f32.mrb[0].mxu0
          %v907 = vadd.f32 %v587, %v906
          %908 = vdwg.mxu0
          %v909 = vld [vmem:[#allocation7] sm:$0xff]
          %v910 = vld [vmem:[#allocation8] sm:$0xff]
          %v911 = vlaneseq
          %v912 = vshrl.u32 %v911, 7
          %vm913 = vcmp.lt.s32.totalorder %v912, 4
          %v914 = vsel %vm913, 1, 0
          %v915 = vcvt.s32.f32 %v914
          %v916 = vmul.f32 %v692, %v915
          %v917 = vmul.f32 %v694, %v915
          %v918 = vmul.f32 %v763, %v915
          %v919 = vmul.f32 %v765, %v915
          %v920 = vmul.f32 %v834, %v915
          %v921 = vmul.f32 %v836, %v915
          %v922 = vmul.f32 %v905, %v915
          %v923 = vmul.f32 %v907, %v915
          %v924 = vrot.slane %v916, 4
          %v925 = vadd.f32 %v916, %v924
          %v926 = vrot.slane %v925, 2
          %v927 = vadd.f32 %v925, %v926
          %v928 = vrot.slane %v927, 1
          %v929 = vadd.f32 %v927, %v928
          %v930 = vrot.slane %v917, 4
          %v931 = vadd.f32 %v917, %v930
          %v932 = vrot.slane %v931, 2
          %v933 = vadd.f32 %v931, %v932
          %v934 = vrot.slane %v933, 1
          %v935 = vadd.f32 %v933, %v934
          %v936 = vrot.slane %v918, 4
          %v937 = vadd.f32 %v918, %v936
          %v938 = vrot.slane %v937, 2
          %v939 = vadd.f32 %v937, %v938
          %v940 = vrot.slane %v939, 1
          %v941 = vadd.f32 %v939, %v940
          %v942 = vrot.slane %v919, 4
          %v943 = vadd.f32 %v919, %v942
          %v944 = vrot.slane %v943, 2
          %v945 = vadd.f32 %v943, %v944
          %v946 = vrot.slane %v945, 1
          %v947 = vadd.f32 %v945, %v946
          %v948 = vrot.slane %v920, 4
          %v949 = vadd.f32 %v920, %v948
          %v950 = vrot.slane %v949, 2
          %v951 = vadd.f32 %v949, %v950
          %v952 = vrot.slane %v951, 1
          %v953 = vadd.f32 %v951, %v952
          %v954 = vrot.slane %v921, 4
          %v955 = vadd.f32 %v921, %v954
          %v956 = vrot.slane %v955, 2
          %v957 = vadd.f32 %v955, %v956
          %v958 = vrot.slane %v957, 1
          %v959 = vadd.f32 %v957, %v958
          %v960 = vrot.slane %v922, 4
          %v961 = vadd.f32 %v922, %v960
          %v962 = vrot.slane %v961, 2
          %v963 = vadd.f32 %v961, %v962
          %v964 = vrot.slane %v963, 1
          %v965 = vadd.f32 %v963, %v964
          %v966 = vrot.slane %v923, 4
          %v967 = vadd.f32 %v923, %v966
          %v968 = vrot.slane %v967, 2
          %v969 = vadd.f32 %v967, %v968
          %v970 = vrot.slane %v969, 1
          %v971 = vadd.f32 %v969, %v970
          %v972 = vmul.f32 %v929, 0.25
          %v973 = vmul.f32 %v935, 0.25
          %v974 = vmul.f32 %v941, 0.25
          %v975 = vmul.f32 %v947, 0.25
          %v976 = vmul.f32 %v953, 0.25
          %v977 = vmul.f32 %v959, 0.25
          %v978 = vmul.f32 %v965, 0.25
          %v979 = vmul.f32 %v971, 0.25
          %v980 = vsub.f32 %v692, %v972
          %v981 = vsub.f32 %v694, %v973
          %v982 = vsub.f32 %v763, %v974
          %v983 = vsub.f32 %v765, %v975
          %v984 = vsub.f32 %v834, %v976
          %v985 = vsub.f32 %v836, %v977
          %v986 = vsub.f32 %v905, %v978
          %v987 = vsub.f32 %v907, %v979
          %v988 = vmul.f32 %v980, %v915
          %v989 = vmul.f32 %v981, %v915
          %v990 = vmul.f32 %v982, %v915
          %v991 = vmul.f32 %v983, %v915
          %v992 = vmul.f32 %v984, %v915
          %v993 = vmul.f32 %v985, %v915
          %v994 = vmul.f32 %v986, %v915
          %v995 = vmul.f32 %v987, %v915
          %v996 = vmul.f32 %v988, %v988
          %v997 = vmul.f32 %v989, %v989
          %v998 = vmul.f32 %v990, %v990
          %v999 = vmul.f32 %v991, %v991
          %v1000 = vmul.f32 %v992, %v992
          %v1001 = vmul.f32 %v993, %v993
          %v1002 = vmul.f32 %v994, %v994
          %v1003 = vmul.f32 %v995, %v995
          %v1004 = vrot.slane %v996, 4
          %v1005 = vadd.f32 %v996, %v1004
          %v1006 = vrot.slane %v1005, 2
          %v1007 = vadd.f32 %v1005, %v1006
          %v1008 = vrot.slane %v1007, 1
          %v1009 = vadd.f32 %v1007, %v1008
          %v1010 = vrot.slane %v997, 4
          %v1011 = vadd.f32 %v997, %v1010
          %v1012 = vrot.slane %v1011, 2
          %v1013 = vadd.f32 %v1011, %v1012
          %v1014 = vrot.slane %v1013, 1
          %v1015 = vadd.f32 %v1013, %v1014
          %v1016 = vrot.slane %v998, 4
          %v1017 = vadd.f32 %v998, %v1016
          %v1018 = vrot.slane %v1017, 2
          %v1019 = vadd.f32 %v1017, %v1018
          %v1020 = vrot.slane %v1019, 1
          %v1021 = vadd.f32 %v1019, %v1020
          %v1022 = vrot.slane %v999, 4
          %v1023 = vadd.f32 %v999, %v1022
          %v1024 = vrot.slane %v1023, 2
          %v1025 = vadd.f32 %v1023, %v1024
          %v1026 = vrot.slane %v1025, 1
          %v1027 = vadd.f32 %v1025, %v1026
          %v1028 = vrot.slane %v1000, 4
          %v1029 = vadd.f32 %v1000, %v1028
          %v1030 = vrot.slane %v1029, 2
          %v1031 = vadd.f32 %v1029, %v1030
          %v1032 = vrot.slane %v1031, 1
          %v1033 = vadd.f32 %v1031, %v1032
          %v1034 = vrot.slane %v1001, 4
          %v1035 = vadd.f32 %v1001, %v1034
          %v1036 = vrot.slane %v1035, 2
          %v1037 = vadd.f32 %v1035, %v1036
          %v1038 = vrot.slane %v1037, 1
          %v1039 = vadd.f32 %v1037, %v1038
          %v1040 = vrot.slane %v1002, 4
          %v1041 = vadd.f32 %v1002, %v1040
          %v1042 = vrot.slane %v1041, 2
          %v1043 = vadd.f32 %v1041, %v1042
          %v1044 = vrot.slane %v1043, 1
          %v1045 = vadd.f32 %v1043, %v1044
          %v1046 = vrot.slane %v1003, 4
          %v1047 = vadd.f32 %v1003, %v1046
          %v1048 = vrot.slane %v1047, 2
          %v1049 = vadd.f32 %v1047, %v1048
          %v1050 = vrot.slane %v1049, 1
          %v1051 = vadd.f32 %v1049, %v1050
          %v1052 = vmul.f32 %v1009, 0.25
          %v1053 = vmul.f32 %v1015, 0.25
          %v1054 = vmul.f32 %v1021, 0.25
          %v1055 = vmul.f32 %v1027, 0.25
          %v1056 = vmul.f32 %v1033, 0.25
          %v1057 = vmul.f32 %v1039, 0.25
          %v1058 = vmul.f32 %v1045, 0.25
          %v1059 = vmul.f32 %v1051, 0.25
          %v1060 = vadd.f32 %v1052, 1e-05
          %v1061 = vadd.f32 %v1053, 1e-05
          %v1062 = vadd.f32 %v1054, 1e-05
          %v1063 = vadd.f32 %v1055, 1e-05
          %v1064 = vadd.f32 %v1056, 1e-05
          %v1065 = vadd.f32 %v1057, 1e-05
          %v1066 = vadd.f32 %v1058, 1e-05
          %v1067 = vadd.f32 %v1059, 1e-05
          %v1068 = vrsqrt.pop %v1060
          %v1069 = vrsqrt.pop %v1061
          %v1070 = vrsqrt.pop %v1062
          %v1071 = vrsqrt.pop %v1063
          %v1072 = vrsqrt.pop %v1064
          %v1073 = vrsqrt.pop %v1065
          %v1074 = vrsqrt.pop %v1066
          %v1075 = vrsqrt.pop %v1067
          %v1076 = vmul.f32 %v980, %v1068
          %v1077 = vmul.f32 %v981, %v1069
          %v1078 = vmul.f32 %v982, %v1070
          %v1079 = vmul.f32 %v983, %v1071
          %v1080 = vmul.f32 %v984, %v1072
          %v1081 = vmul.f32 %v985, %v1073
          %v1082 = vmul.f32 %v986, %v1074
          %v1083 = vmul.f32 %v987, %v1075
          %v1085 = vlaneseq
          %v1086 = vshrl.u32 %v1085, 7
          %v1087 = vsub.s32 0, %v1086
          %v1088 = vrot.slane %v909, %v1087
          %v1089 = vlaneseq
          %v1090 = vshrl.u32 %v1089, 7
          %v1091 = vsub.s32 1, %v1090
          %v1092 = vrot.slane %v909, %v1091
          %v1093 = vlaneseq
          %v1094 = vshrl.u32 %v1093, 7
          %v1095 = vsub.s32 2, %v1094
          %v1096 = vrot.slane %v909, %v1095
          %v1097 = vlaneseq
          %v1098 = vshrl.u32 %v1097, 7
          %v1099 = vsub.s32 3, %v1098
          %v1100 = vrot.slane %v909, %v1099
          %v1101 = vlaneseq
          %v1102 = vshrl.u32 %v1101, 7
          %v1103 = vsub.s32 4, %v1102
          %v1104 = vrot.slane %v909, %v1103
          %v1105 = vlaneseq
          %v1106 = vshrl.u32 %v1105, 7
          %v1107 = vsub.s32 5, %v1106
          %v1108 = vrot.slane %v909, %v1107
          %v1109 = vlaneseq
          %v1110 = vshrl.u32 %v1109, 7
          %v1111 = vsub.s32 6, %v1110
          %v1112 = vrot.slane %v909, %v1111
          %v1113 = vlaneseq
          %v1114 = vshrl.u32 %v1113, 7
          %v1115 = vsub.s32 7, %v1114
          %v1116 = vrot.slane %v909, %v1115
          %v1125 = vmul.f32 %v1076, %v1088
          %v1126 = vmul.f32 %v1077, %v1092
          %v1127 = vmul.f32 %v1078, %v1096
          %v1128 = vmul.f32 %v1079, %v1100
          %v1129 = vmul.f32 %v1080, %v1104
          %v1130 = vmul.f32 %v1081, %v1108
          %v1131 = vmul.f32 %v1082, %v1112
          %v1132 = vmul.f32 %v1083, %v1116
          %v1134 = vlaneseq
          %v1135 = vshrl.u32 %v1134, 7
          %v1136 = vsub.s32 0, %v1135
          %v1137 = vrot.slane %v910, %v1136
          %v1138 = vlaneseq
          %v1139 = vshrl.u32 %v1138, 7
          %v1140 = vsub.s32 1, %v1139
          %v1141 = vrot.slane %v910, %v1140
          %v1142 = vlaneseq
          %v1143 = vshrl.u32 %v1142, 7
          %v1144 = vsub.s32 2, %v1143
          %v1145 = vrot.slane %v910, %v1144
          %v1146 = vlaneseq
          %v1147 = vshrl.u32 %v1146, 7
          %v1148 = vsub.s32 3, %v1147
          %v1149 = vrot.slane %v910, %v1148
          %v1150 = vlaneseq
          %v1151 = vshrl.u32 %v1150, 7
          %v1152 = vsub.s32 4, %v1151
          %v1153 = vrot.slane %v910, %v1152
          %v1154 = vlaneseq
          %v1155 = vshrl.u32 %v1154, 7
          %v1156 = vsub.s32 5, %v1155
          %v1157 = vrot.slane %v910, %v1156
          %v1158 = vlaneseq
          %v1159 = vshrl.u32 %v1158, 7
          %v1160 = vsub.s32 6, %v1159
          %v1161 = vrot.slane %v910, %v1160
          %v1162 = vlaneseq
          %v1163 = vshrl.u32 %v1162, 7
          %v1164 = vsub.s32 7, %v1163
          %v1165 = vrot.slane %v910, %v1164
          %v1174 = vadd.f32 %v1125, %v1137
          %v1175 = vadd.f32 %v1126, %v1141
          %v1176 = vadd.f32 %v1127, %v1145
          %v1177 = vadd.f32 %v1128, %v1149
          %v1178 = vadd.f32 %v1129, %v1153
          %v1179 = vadd.f32 %v1130, %v1157
          %v1180 = vadd.f32 %v1131, %v1161
          %v1181 = vadd.f32 %v1132, %v1165
          %v1182 = vmax.f32 %v1174, 0.0
          %v1183 = vmax.f32 %v1175, 0.0
          %v1184 = vmax.f32 %v1176, 0.0
          %v1185 = vmax.f32 %v1177, 0.0
          %v1186 = vmax.f32 %v1178, 0.0
          %v1187 = vmax.f32 %v1179, 0.0
          %v1188 = vmax.f32 %v1180, 0.0
          %v1189 = vmax.f32 %v1181, 0.0
          %1190 = vst [vmem:[#allocation2] sm:$0xff] %v1182
          %1191 = vst [vmem:[#allocation2 + $0x8] sm:$0xff] %v1183
          %1192 = vst [vmem:[#allocation2 + $0x10] sm:$0xff] %v1184
          %1193 = vst [vmem:[#allocation2 + $0x18] sm:$0xff] %v1185
          %1194 = vst [vmem:[#allocation2 + $0x20] sm:$0xff] %v1186
          %1195 = vst [vmem:[#allocation2 + $0x28] sm:$0xff] %v1187
          %1196 = vst [vmem:[#allocation2 + $0x30] sm:$0xff] %v1188
          %1197 = vst [vmem:[#allocation2 + $0x38] sm:$0xff] %v1189
        $region92: #{generator_forward.3} parent=55 // pred_fallthru
          _
        %v1198 = vld [vmem:[#allocation2] sm:$0xff]
        %v1199 = vld [vmem:[#allocation2 + $0x8] sm:$0xff]
        %v1200 = vld [vmem:[#allocation2 + $0x10] sm:$0xff]
        %v1201 = vld [vmem:[#allocation2 + $0x18] sm:$0xff]
        %v1202 = vld [vmem:[#allocation2 + $0x20] sm:$0xff]
        %v1203 = vld [vmem:[#allocation2 + $0x28] sm:$0xff]
        %v1204 = vld [vmem:[#allocation2 + $0x30] sm:$0xff]
        %v1205 = vld [vmem:[#allocation2 + $0x38] sm:$0xff]
        %v1206 = vld [vmem:[%s426] sm:$0xff]
        %v1207 = vld [vmem:[%s426 + $0x8] sm:$0xff]
        %v1208 = vld [vmem:[%s426 + $0x10] sm:$0xff]
        %v1209 = vld [vmem:[%s426 + $0x18] sm:$0xff]
        %v1210 = vld [vmem:[%s426 + $0x20] sm:$0xff]
        %v1211 = vld [vmem:[%s426 + $0x28] sm:$0xff]
        %v1212 = vld [vmem:[%s426 + $0x30] sm:$0xff]
        %v1213 = vld [vmem:[%s426 + $0x38] sm:$0xff]
        %v1214 = vld [vmem:[%s426 + $0x40] sm:$0xff]
        %v1215 = vld [vmem:[%s426 + $0x48] sm:$0xff]
        %v1216 = vld [vmem:[%s426 + $0x50] sm:$0xff]
        %v1217 = vld [vmem:[%s426 + $0x58] sm:$0xff]
        %v1218 = vld [vmem:[%s426 + $0x60] sm:$0xff]
        %v1219 = vld [vmem:[%s426 + $0x68] sm:$0xff]
        %v1220 = vld [vmem:[%s426 + $0x70] sm:$0xff]
        %v1221 = vld [vmem:[%s426 + $0x78] sm:$0xff]
        %v1222 = vld [vmem:[%s426 + $0x80] sm:$0xff]
        %v1223 = vld [vmem:[%s426 + $0x88] sm:$0xff]
        %v1224 = vld [vmem:[%s426 + $0x90] sm:$0xff]
        %v1225 = vld [vmem:[%s426 + $0x98] sm:$0xff]
        %v1226 = vld [vmem:[%s426 + $0xa0] sm:$0xff]
        %v1227 = vld [vmem:[%s426 + $0xa8] sm:$0xff]
        %v1228 = vld [vmem:[%s426 + $0xb0] sm:$0xff]
        %v1229 = vld [vmem:[%s426 + $0xb8] sm:$0xff]
        %v1230 = vld [vmem:[%s426 + $0xc0] sm:$0xff]
        %v1231 = vld [vmem:[%s426 + $0xc8] sm:$0xff]
        %v1232 = vld [vmem:[%s426 + $0xd0] sm:$0xff]
        %v1233 = vld [vmem:[%s426 + $0xd8] sm:$0xff]
        %v1234 = vld [vmem:[%s426 + $0xe0] sm:$0xff]
        %v1235 = vld [vmem:[%s426 + $0xe8] sm:$0xff]
        %v1236 = vld [vmem:[%s426 + $0xf0] sm:$0xff]
        %v1237 = vld [vmem:[%s426 + $0xf8] sm:$0xff]
        %v1238 = vld [vmem:[%s426 + $0x100] sm:$0xff]
        %v1239 = vld [vmem:[%s426 + $0x108] sm:$0xff]
        %v1240 = vld [vmem:[%s426 + $0x110] sm:$0xff]
        %v1241 = vld [vmem:[%s426 + $0x118] sm:$0xff]
        %v1242 = vld [vmem:[%s426 + $0x120] sm:$0xff]
        %v1243 = vld [vmem:[%s426 + $0x128] sm:$0xff]
        %v1244 = vld [vmem:[%s426 + $0x130] sm:$0xff]
        %v1245 = vld [vmem:[%s426 + $0x138] sm:$0xff]
        %v1246 = vld [vmem:[%s426 + $0x140] sm:$0xff]
        %v1247 = vld [vmem:[%s426 + $0x148] sm:$0xff]
        %v1248 = vld [vmem:[%s426 + $0x150] sm:$0xff]
        %v1249 = vld [vmem:[%s426 + $0x158] sm:$0xff]
        %v1250 = vld [vmem:[%s426 + $0x160] sm:$0xff]
        %v1251 = vld [vmem:[%s426 + $0x168] sm:$0xff]
        %v1252 = vld [vmem:[%s426 + $0x170] sm:$0xff]
        %v1253 = vld [vmem:[%s426 + $0x178] sm:$0xff]
        %v1254 = vld [vmem:[%s426 + $0x180] sm:$0xff]
        %v1255 = vld [vmem:[%s426 + $0x188] sm:$0xff]
        %v1256 = vld [vmem:[%s426 + $0x190] sm:$0xff]
        %v1257 = vld [vmem:[%s426 + $0x198] sm:$0xff]
        %v1258 = vld [vmem:[%s426 + $0x1a0] sm:$0xff]
        %v1259 = vld [vmem:[%s426 + $0x1a8] sm:$0xff]
        %v1260 = vld [vmem:[%s426 + $0x1b0] sm:$0xff]
        %v1261 = vld [vmem:[%s426 + $0x1b8] sm:$0xff]
        %v1262 = vld [vmem:[%s426 + $0x1c0] sm:$0xff]
        %v1263 = vld [vmem:[%s426 + $0x1c8] sm:$0xff]
        %v1264 = vld [vmem:[%s426 + $0x1d0] sm:$0xff]
        %v1265 = vld [vmem:[%s426 + $0x1d8] sm:$0xff]
        %v1266 = vld [vmem:[%s426 + $0x1e0] sm:$0xff]
        %v1267 = vld [vmem:[%s426 + $0x1e8] sm:$0xff]
        %v1268 = vld [vmem:[%s426 + $0x1f0] sm:$0xff]
        %v1269 = vld [vmem:[%s426 + $0x1f8] sm:$0xff]
        %v1270 = vld [vmem:[%s426 + $0x200] sm:$0xff]
        %v1271 = vld [vmem:[%s426 + $0x208] sm:$0xff]
        %v1272 = vld [vmem:[%s426 + $0x210] sm:$0xff]
        %v1273 = vld [vmem:[%s426 + $0x218] sm:$0xff]
        %v1274 = vld [vmem:[%s426 + $0x220] sm:$0xff]
        %v1275 = vld [vmem:[%s426 + $0x228] sm:$0xff]
        %v1276 = vld [vmem:[%s426 + $0x230] sm:$0xff]
        %v1277 = vld [vmem:[%s426 + $0x238] sm:$0xff]
        %v1278 = vld [vmem:[%s426 + $0x240] sm:$0xff]
        %v1279 = vld [vmem:[%s426 + $0x248] sm:$0xff]
        %v1280 = vld [vmem:[%s426 + $0x250] sm:$0xff]
        %v1281 = vld [vmem:[%s426 + $0x258] sm:$0xff]
        %v1282 = vld [vmem:[%s426 + $0x260] sm:$0xff]
        %v1283 = vld [vmem:[%s426 + $0x268] sm:$0xff]
        %v1284 = vld [vmem:[%s426 + $0x270] sm:$0xff]
        %v1285 = vld [vmem:[%s426 + $0x278] sm:$0xff]
        %v1286 = vld [vmem:[%s426 + $0x280] sm:$0xff]
        %v1287 = vld [vmem:[%s426 + $0x288] sm:$0xff]
        %v1288 = vld [vmem:[%s426 + $0x290] sm:$0xff]
        %v1289 = vld [vmem:[%s426 + $0x298] sm:$0xff]
        %v1290 = vld [vmem:[%s426 + $0x2a0] sm:$0xff]
        %v1291 = vld [vmem:[%s426 + $0x2a8] sm:$0xff]
        %v1292 = vld [vmem:[%s426 + $0x2b0] sm:$0xff]
        %v1293 = vld [vmem:[%s426 + $0x2b8] sm:$0xff]
        %v1294 = vld [vmem:[%s426 + $0x2c0] sm:$0xff]
        %v1295 = vld [vmem:[%s426 + $0x2c8] sm:$0xff]
        %v1296 = vld [vmem:[%s426 + $0x2d0] sm:$0xff]
        %v1297 = vld [vmem:[%s426 + $0x2d8] sm:$0xff]
        %v1298 = vld [vmem:[%s426 + $0x2e0] sm:$0xff]
        %v1299 = vld [vmem:[%s426 + $0x2e8] sm:$0xff]
        %v1300 = vld [vmem:[%s426 + $0x2f0] sm:$0xff]
        %v1301 = vld [vmem:[%s426 + $0x2f8] sm:$0xff]
        %v1302 = vld [vmem:[%s426 + $0x300] sm:$0xff]
        %v1303 = vld [vmem:[%s426 + $0x308] sm:$0xff]
        %v1304 = vld [vmem:[%s426 + $0x310] sm:$0xff]
        %v1305 = vld [vmem:[%s426 + $0x318] sm:$0xff]
        %v1306 = vld [vmem:[%s426 + $0x320] sm:$0xff]
        %v1307 = vld [vmem:[%s426 + $0x328] sm:$0xff]
        %v1308 = vld [vmem:[%s426 + $0x330] sm:$0xff]
        %v1309 = vld [vmem:[%s426 + $0x338] sm:$0xff]
        %v1310 = vld [vmem:[%s426 + $0x340] sm:$0xff]
        %v1311 = vld [vmem:[%s426 + $0x348] sm:$0xff]
        %v1312 = vld [vmem:[%s426 + $0x350] sm:$0xff]
        %v1313 = vld [vmem:[%s426 + $0x358] sm:$0xff]
        %v1314 = vld [vmem:[%s426 + $0x360] sm:$0xff]
        %v1315 = vld [vmem:[%s426 + $0x368] sm:$0xff]
        %v1316 = vld [vmem:[%s426 + $0x370] sm:$0xff]
        %v1317 = vld [vmem:[%s426 + $0x378] sm:$0xff]
        %v1318 = vld [vmem:[%s426 + $0x380] sm:$0xff]
        %v1319 = vld [vmem:[%s426 + $0x388] sm:$0xff]
        %v1320 = vld [vmem:[%s426 + $0x390] sm:$0xff]
        %v1321 = vld [vmem:[%s426 + $0x398] sm:$0xff]
        %v1322 = vld [vmem:[%s426 + $0x3a0] sm:$0xff]
        %v1323 = vld [vmem:[%s426 + $0x3a8] sm:$0xff]
        %v1324 = vld [vmem:[%s426 + $0x3b0] sm:$0xff]
        %v1325 = vld [vmem:[%s426 + $0x3b8] sm:$0xff]
        %v1326 = vld [vmem:[%s426 + $0x3c0] sm:$0xff]
        %v1327 = vld [vmem:[%s426 + $0x3c8] sm:$0xff]
        %v1328 = vld [vmem:[%s426 + $0x3d0] sm:$0xff]
        %v1329 = vld [vmem:[%s426 + $0x3d8] sm:$0xff]
        %v1330 = vld [vmem:[%s426 + $0x3e0] sm:$0xff]
        %v1331 = vld [vmem:[%s426 + $0x3e8] sm:$0xff]
        %v1332 = vld [vmem:[%s426 + $0x3f0] sm:$0xff]
        %v1333 = vld [vmem:[%s426 + $0x3f8] sm:$0xff]
        %v1334 = vld [vmem:[%s426 + $0x400] sm:$0xff]
        %v1335 = vld [vmem:[%s426 + $0x408] sm:$0xff]
        %v1336 = vld [vmem:[%s426 + $0x410] sm:$0xff]
        %v1337 = vld [vmem:[%s426 + $0x418] sm:$0xff]
        %v1338 = vld [vmem:[%s426 + $0x420] sm:$0xff]
        %v1339 = vld [vmem:[%s426 + $0x428] sm:$0xff]
        %v1340 = vld [vmem:[%s426 + $0x430] sm:$0xff]
        %v1341 = vld [vmem:[%s426 + $0x438] sm:$0xff]
        %v1342 = vld [vmem:[%s426 + $0x440] sm:$0xff]
        %v1343 = vld [vmem:[%s426 + $0x448] sm:$0xff]
        %v1344 = vld [vmem:[%s426 + $0x450] sm:$0xff]
        %v1345 = vld [vmem:[%s426 + $0x458] sm:$0xff]
        %v1346 = vld [vmem:[%s426 + $0x460] sm:$0xff]
        %v1347 = vld [vmem:[%s426 + $0x468] sm:$0xff]
        %v1348 = vld [vmem:[%s426 + $0x470] sm:$0xff]
        %v1349 = vld [vmem:[%s426 + $0x478] sm:$0xff]
        %v1350 = vld [vmem:[%s426 + $0x480] sm:$0xff]
        %v1351 = vld [vmem:[%s426 + $0x488] sm:$0xff]
        %v1352 = vld [vmem:[%s426 + $0x490] sm:$0xff]
        %v1353 = vld [vmem:[%s426 + $0x498] sm:$0xff]
        %v1354 = vld [vmem:[%s426 + $0x4a0] sm:$0xff]
        %v1355 = vld [vmem:[%s426 + $0x4a8] sm:$0xff]
        %v1356 = vld [vmem:[%s426 + $0x4b0] sm:$0xff]
        %v1357 = vld [vmem:[%s426 + $0x4b8] sm:$0xff]
        %v1358 = vld [vmem:[%s426 + $0x4c0] sm:$0xff]
        %v1359 = vld [vmem:[%s426 + $0x4c8] sm:$0xff]
        %v1360 = vld [vmem:[%s426 + $0x4d0] sm:$0xff]
        %v1361 = vld [vmem:[%s426 + $0x4d8] sm:$0xff]
        %v1362 = vld [vmem:[%s426 + $0x4e0] sm:$0xff]
        %v1363 = vld [vmem:[%s426 + $0x4e8] sm:$0xff]
        %v1364 = vld [vmem:[%s426 + $0x4f0] sm:$0xff]
        %v1365 = vld [vmem:[%s426 + $0x4f8] sm:$0xff]
        %v1366 = vld [vmem:[%s426 + $0x500] sm:$0xff]
        %v1367 = vld [vmem:[%s426 + $0x508] sm:$0xff]
        %v1368 = vld [vmem:[%s426 + $0x510] sm:$0xff]
        %v1369 = vld [vmem:[%s426 + $0x518] sm:$0xff]
        %v1370 = vld [vmem:[%s426 + $0x520] sm:$0xff]
        %v1371 = vld [vmem:[%s426 + $0x528] sm:$0xff]
        %v1372 = vld [vmem:[%s426 + $0x530] sm:$0xff]
        %v1373 = vld [vmem:[%s426 + $0x538] sm:$0xff]
        %v1374 = vld [vmem:[%s426 + $0x540] sm:$0xff]
        %v1375 = vld [vmem:[%s426 + $0x548] sm:$0xff]
        %v1376 = vld [vmem:[%s426 + $0x550] sm:$0xff]
        %v1377 = vld [vmem:[%s426 + $0x558] sm:$0xff]
        %v1378 = vld [vmem:[%s426 + $0x560] sm:$0xff]
        %v1379 = vld [vmem:[%s426 + $0x568] sm:$0xff]
        %v1380 = vld [vmem:[%s426 + $0x570] sm:$0xff]
        %v1381 = vld [vmem:[%s426 + $0x578] sm:$0xff]
        %v1382 = vld [vmem:[%s426 + $0x580] sm:$0xff]
        %v1383 = vld [vmem:[%s426 + $0x588] sm:$0xff]
        %v1384 = vld [vmem:[%s426 + $0x590] sm:$0xff]
        %v1385 = vld [vmem:[%s426 + $0x598] sm:$0xff]
        %v1386 = vld [vmem:[%s426 + $0x5a0] sm:$0xff]
        %v1387 = vld [vmem:[%s426 + $0x5a8] sm:$0xff]
        %v1388 = vld [vmem:[%s426 + $0x5b0] sm:$0xff]
        %v1389 = vld [vmem:[%s426 + $0x5b8] sm:$0xff]
        %v1390 = vld [vmem:[%s426 + $0x5c0] sm:$0xff]
        %v1391 = vld [vmem:[%s426 + $0x5c8] sm:$0xff]
        %v1392 = vld [vmem:[%s426 + $0x5d0] sm:$0xff]
        %v1393 = vld [vmem:[%s426 + $0x5d8] sm:$0xff]
        %v1394 = vld [vmem:[%s426 + $0x5e0] sm:$0xff]
        %v1395 = vld [vmem:[%s426 + $0x5e8] sm:$0xff]
        %v1396 = vld [vmem:[%s426 + $0x5f0] sm:$0xff]
        %v1397 = vld [vmem:[%s426 + $0x5f8] sm:$0xff]
        %v1398 = vld [vmem:[%s426 + $0x600] sm:$0xff]
        %v1399 = vld [vmem:[%s426 + $0x608] sm:$0xff]
        %v1400 = vld [vmem:[%s426 + $0x610] sm:$0xff]
        %v1401 = vld [vmem:[%s426 + $0x618] sm:$0xff]
        %v1402 = vld [vmem:[%s426 + $0x620] sm:$0xff]
        %v1403 = vld [vmem:[%s426 + $0x628] sm:$0xff]
        %v1404 = vld [vmem:[%s426 + $0x630] sm:$0xff]
        %v1405 = vld [vmem:[%s426 + $0x638] sm:$0xff]
        %v1406 = vld [vmem:[%s426 + $0x640] sm:$0xff]
        %v1407 = vld [vmem:[%s426 + $0x648] sm:$0xff]
        %v1408 = vld [vmem:[%s426 + $0x650] sm:$0xff]
        %v1409 = vld [vmem:[%s426 + $0x658] sm:$0xff]
        %v1410 = vld [vmem:[%s426 + $0x660] sm:$0xff]
        %v1411 = vld [vmem:[%s426 + $0x668] sm:$0xff]
        %v1412 = vld [vmem:[%s426 + $0x670] sm:$0xff]
        %v1413 = vld [vmem:[%s426 + $0x678] sm:$0xff]
        %v1414 = vld [vmem:[%s426 + $0x680] sm:$0xff]
        %v1415 = vld [vmem:[%s426 + $0x688] sm:$0xff]
        %v1416 = vld [vmem:[%s426 + $0x690] sm:$0xff]
        %v1417 = vld [vmem:[%s426 + $0x698] sm:$0xff]
        %v1418 = vld [vmem:[%s426 + $0x6a0] sm:$0xff]
        %v1419 = vld [vmem:[%s426 + $0x6a8] sm:$0xff]
        %v1420 = vld [vmem:[%s426 + $0x6b0] sm:$0xff]
        %v1421 = vld [vmem:[%s426 + $0x6b8] sm:$0xff]
        %v1422 = vld [vmem:[%s426 + $0x6c0] sm:$0xff]
        %v1423 = vld [vmem:[%s426 + $0x6c8] sm:$0xff]
        %v1424 = vld [vmem:[%s426 + $0x6d0] sm:$0xff]
        %v1425 = vld [vmem:[%s426 + $0x6d8] sm:$0xff]
        %v1426 = vld [vmem:[%s426 + $0x6e0] sm:$0xff]
        %v1427 = vld [vmem:[%s426 + $0x6e8] sm:$0xff]
        %v1428 = vld [vmem:[%s426 + $0x6f0] sm:$0xff]
        %v1429 = vld [vmem:[%s426 + $0x6f8] sm:$0xff]
        %v1430 = vld [vmem:[%s426 + $0x700] sm:$0xff]
        %v1431 = vld [vmem:[%s426 + $0x708] sm:$0xff]
        %v1432 = vld [vmem:[%s426 + $0x710] sm:$0xff]
        %v1433 = vld [vmem:[%s426 + $0x718] sm:$0xff]
        %v1434 = vld [vmem:[%s426 + $0x720] sm:$0xff]
        %v1435 = vld [vmem:[%s426 + $0x728] sm:$0xff]
        %v1436 = vld [vmem:[%s426 + $0x730] sm:$0xff]
        %v1437 = vld [vmem:[%s426 + $0x738] sm:$0xff]
        %v1438 = vld [vmem:[%s426 + $0x740] sm:$0xff]
        %v1439 = vld [vmem:[%s426 + $0x748] sm:$0xff]
        %v1440 = vld [vmem:[%s426 + $0x750] sm:$0xff]
        %v1441 = vld [vmem:[%s426 + $0x758] sm:$0xff]
        %v1442 = vld [vmem:[%s426 + $0x760] sm:$0xff]
        %v1443 = vld [vmem:[%s426 + $0x768] sm:$0xff]
        %v1444 = vld [vmem:[%s426 + $0x770] sm:$0xff]
        %v1445 = vld [vmem:[%s426 + $0x778] sm:$0xff]
        %v1446 = vld [vmem:[%s426 + $0x780] sm:$0xff]
        %v1447 = vld [vmem:[%s426 + $0x788] sm:$0xff]
        %v1448 = vld [vmem:[%s426 + $0x790] sm:$0xff]
        %v1449 = vld [vmem:[%s426 + $0x798] sm:$0xff]
        %v1450 = vld [vmem:[%s426 + $0x7a0] sm:$0xff]
        %v1451 = vld [vmem:[%s426 + $0x7a8] sm:$0xff]
        %v1452 = vld [vmem:[%s426 + $0x7b0] sm:$0xff]
        %v1453 = vld [vmem:[%s426 + $0x7b8] sm:$0xff]
        %v1454 = vld [vmem:[%s426 + $0x7c0] sm:$0xff]
        %v1455 = vld [vmem:[%s426 + $0x7c8] sm:$0xff]
        %v1456 = vld [vmem:[%s426 + $0x7d0] sm:$0xff]
        %v1457 = vld [vmem:[%s426 + $0x7d8] sm:$0xff]
        %v1458 = vld [vmem:[%s426 + $0x7e0] sm:$0xff]
        %v1459 = vld [vmem:[%s426 + $0x7e8] sm:$0xff]
        %v1460 = vld [vmem:[%s426 + $0x7f0] sm:$0xff]
        %v1461 = vld [vmem:[%s426 + $0x7f8] sm:$0xff]
        %v1462 = vld [vmem:[%s426 + $0x800] sm:$0xff]
        %v1463 = vld [vmem:[%s426 + $0x808] sm:$0xff]
        %v1464 = vld [vmem:[%s426 + $0x810] sm:$0xff]
        %v1465 = vld [vmem:[%s426 + $0x818] sm:$0xff]
        %v1466 = vld [vmem:[%s426 + $0x820] sm:$0xff]
        %v1467 = vld [vmem:[%s426 + $0x828] sm:$0xff]
        %v1468 = vld [vmem:[%s426 + $0x830] sm:$0xff]
        %v1469 = vld [vmem:[%s426 + $0x838] sm:$0xff]
        %v1470 = vld [vmem:[%s426 + $0x840] sm:$0xff]
        %v1471 = vld [vmem:[%s426 + $0x848] sm:$0xff]
        %v1472 = vld [vmem:[%s426 + $0x850] sm:$0xff]
        %v1473 = vld [vmem:[%s426 + $0x858] sm:$0xff]
        %v1474 = vld [vmem:[%s426 + $0x860] sm:$0xff]
        %v1475 = vld [vmem:[%s426 + $0x868] sm:$0xff]
        %v1476 = vld [vmem:[%s426 + $0x870] sm:$0xff]
        %v1477 = vld [vmem:[%s426 + $0x878] sm:$0xff]
        %v1478 = vld [vmem:[%s426 + $0x880] sm:$0xff]
        %v1479 = vld [vmem:[%s426 + $0x888] sm:$0xff]
        %v1480 = vld [vmem:[%s426 + $0x890] sm:$0xff]
        %v1481 = vld [vmem:[%s426 + $0x898] sm:$0xff]
        %v1482 = vld [vmem:[%s426 + $0x8a0] sm:$0xff]
        %v1483 = vld [vmem:[%s426 + $0x8a8] sm:$0xff]
        %v1484 = vld [vmem:[%s426 + $0x8b0] sm:$0xff]
        %v1485 = vld [vmem:[%s426 + $0x8b8] sm:$0xff]
        %v1486 = vld [vmem:[%s426 + $0x8c0] sm:$0xff]
        %v1487 = vld [vmem:[%s426 + $0x8c8] sm:$0xff]
        %v1488 = vld [vmem:[%s426 + $0x8d0] sm:$0xff]
        %v1489 = vld [vmem:[%s426 + $0x8d8] sm:$0xff]
        %v1490 = vld [vmem:[%s426 + $0x8e0] sm:$0xff]
        %v1491 = vld [vmem:[%s426 + $0x8e8] sm:$0xff]
        %v1492 = vld [vmem:[%s426 + $0x8f0] sm:$0xff]
        %v1493 = vld [vmem:[%s426 + $0x8f8] sm:$0xff]
        %v1494 = vld [vmem:[%s426 + $0x900] sm:$0xff]
        %v1495 = vld [vmem:[%s426 + $0x908] sm:$0xff]
        %v1496 = vld [vmem:[%s426 + $0x910] sm:$0xff]
        %v1497 = vld [vmem:[%s426 + $0x918] sm:$0xff]
        %v1498 = vld [vmem:[%s426 + $0x920] sm:$0xff]
        %v1499 = vld [vmem:[%s426 + $0x928] sm:$0xff]
        %v1500 = vld [vmem:[%s426 + $0x930] sm:$0xff]
        %v1501 = vld [vmem:[%s426 + $0x938] sm:$0xff]
        %v1502 = vld [vmem:[%s426 + $0x940] sm:$0xff]
        %v1503 = vld [vmem:[%s426 + $0x948] sm:$0xff]
        %v1504 = vld [vmem:[%s426 + $0x950] sm:$0xff]
        %v1505 = vld [vmem:[%s426 + $0x958] sm:$0xff]
        %v1506 = vld [vmem:[%s426 + $0x960] sm:$0xff]
        %v1507 = vld [vmem:[%s426 + $0x968] sm:$0xff]
        %v1508 = vld [vmem:[%s426 + $0x970] sm:$0xff]
        %v1509 = vld [vmem:[%s426 + $0x978] sm:$0xff]
        %v1510 = vld [vmem:[%s426 + $0x980] sm:$0xff]
        %v1511 = vld [vmem:[%s426 + $0x988] sm:$0xff]
        %v1512 = vld [vmem:[%s426 + $0x990] sm:$0xff]
        %v1513 = vld [vmem:[%s426 + $0x998] sm:$0xff]
        %v1514 = vld [vmem:[%s426 + $0x9a0] sm:$0xff]
        %v1515 = vld [vmem:[%s426 + $0x9a8] sm:$0xff]
        %v1516 = vld [vmem:[%s426 + $0x9b0] sm:$0xff]
        %v1517 = vld [vmem:[%s426 + $0x9b8] sm:$0xff]
        %v1518 = vld [vmem:[%s426 + $0x9c0] sm:$0xff]
        %v1519 = vld [vmem:[%s426 + $0x9c8] sm:$0xff]
        %v1520 = vld [vmem:[%s426 + $0x9d0] sm:$0xff]
        %v1521 = vld [vmem:[%s426 + $0x9d8] sm:$0xff]
        %v1522 = vld [vmem:[%s426 + $0x9e0] sm:$0xff]
        %v1523 = vld [vmem:[%s426 + $0x9e8] sm:$0xff]
        %v1524 = vld [vmem:[%s426 + $0x9f0] sm:$0xff]
        %v1525 = vld [vmem:[%s426 + $0x9f8] sm:$0xff]
        %v1526 = vld [vmem:[%s426 + $0xa00] sm:$0xff]
        %v1527 = vld [vmem:[%s426 + $0xa08] sm:$0xff]
        %v1528 = vld [vmem:[%s426 + $0xa10] sm:$0xff]
        %v1529 = vld [vmem:[%s426 + $0xa18] sm:$0xff]
        %v1530 = vld [vmem:[%s426 + $0xa20] sm:$0xff]
        %v1531 = vld [vmem:[%s426 + $0xa28] sm:$0xff]
        %v1532 = vld [vmem:[%s426 + $0xa30] sm:$0xff]
        %v1533 = vld [vmem:[%s426 + $0xa38] sm:$0xff]
        %v1534 = vld [vmem:[%s426 + $0xa40] sm:$0xff]
        %v1535 = vld [vmem:[%s426 + $0xa48] sm:$0xff]
        %v1536 = vld [vmem:[%s426 + $0xa50] sm:$0xff]
        %v1537 = vld [vmem:[%s426 + $0xa58] sm:$0xff]
        %v1538 = vld [vmem:[%s426 + $0xa60] sm:$0xff]
        %v1539 = vld [vmem:[%s426 + $0xa68] sm:$0xff]
        %v1540 = vld [vmem:[%s426 + $0xa70] sm:$0xff]
        %v1541 = vld [vmem:[%s426 + $0xa78] sm:$0xff]
        %v1542 = vld [vmem:[%s426 + $0xa80] sm:$0xff]
        %v1543 = vld [vmem:[%s426 + $0xa88] sm:$0xff]
        %v1544 = vld [vmem:[%s426 + $0xa90] sm:$0xff]
        %v1545 = vld [vmem:[%s426 + $0xa98] sm:$0xff]
        %v1546 = vld [vmem:[%s426 + $0xaa0] sm:$0xff]
        %v1547 = vld [vmem:[%s426 + $0xaa8] sm:$0xff]
        %v1548 = vld [vmem:[%s426 + $0xab0] sm:$0xff]
        %v1549 = vld [vmem:[%s426 + $0xab8] sm:$0xff]
        %v1550 = vld [vmem:[%s426 + $0xac0] sm:$0xff]
        %v1551 = vld [vmem:[%s426 + $0xac8] sm:$0xff]
        %v1552 = vld [vmem:[%s426 + $0xad0] sm:$0xff]
        %v1553 = vld [vmem:[%s426 + $0xad8] sm:$0xff]
        %v1554 = vld [vmem:[%s426 + $0xae0] sm:$0xff]
        %v1555 = vld [vmem:[%s426 + $0xae8] sm:$0xff]
        %v1556 = vld [vmem:[%s426 + $0xaf0] sm:$0xff]
        %v1557 = vld [vmem:[%s426 + $0xaf8] sm:$0xff]
        %v1558 = vld [vmem:[%s426 + $0xb00] sm:$0xff]
        %v1559 = vld [vmem:[%s426 + $0xb08] sm:$0xff]
        %v1560 = vld [vmem:[%s426 + $0xb10] sm:$0xff]
        %v1561 = vld [vmem:[%s426 + $0xb18] sm:$0xff]
        %v1562 = vld [vmem:[%s426 + $0xb20] sm:$0xff]
        %v1563 = vld [vmem:[%s426 + $0xb28] sm:$0xff]
        %v1564 = vld [vmem:[%s426 + $0xb30] sm:$0xff]
        %v1565 = vld [vmem:[%s426 + $0xb38] sm:$0xff]
        %v1566 = vld [vmem:[%s426 + $0xb40] sm:$0xff]
        %v1567 = vld [vmem:[%s426 + $0xb48] sm:$0xff]
        %v1568 = vld [vmem:[%s426 + $0xb50] sm:$0xff]
        %v1569 = vld [vmem:[%s426 + $0xb58] sm:$0xff]
        %v1570 = vld [vmem:[%s426 + $0xb60] sm:$0xff]
        %v1571 = vld [vmem:[%s426 + $0xb68] sm:$0xff]
        %v1572 = vld [vmem:[%s426 + $0xb70] sm:$0xff]
        %v1573 = vld [vmem:[%s426 + $0xb78] sm:$0xff]
        %v1574 = vld [vmem:[%s426 + $0xb80] sm:$0xff]
        %v1575 = vld [vmem:[%s426 + $0xb88] sm:$0xff]
        %v1576 = vld [vmem:[%s426 + $0xb90] sm:$0xff]
        %v1577 = vld [vmem:[%s426 + $0xb98] sm:$0xff]
        %v1578 = vld [vmem:[%s426 + $0xba0] sm:$0xff]
        %v1579 = vld [vmem:[%s426 + $0xba8] sm:$0xff]
        %v1580 = vld [vmem:[%s426 + $0xbb0] sm:$0xff]
        %v1581 = vld [vmem:[%s426 + $0xbb8] sm:$0xff]
        %v1582 = vld [vmem:[%s426 + $0xbc0] sm:$0xff]
        %v1583 = vld [vmem:[%s426 + $0xbc8] sm:$0xff]
        %v1584 = vld [vmem:[%s426 + $0xbd0] sm:$0xff]
        %v1585 = vld [vmem:[%s426 + $0xbd8] sm:$0xff]
        %v1586 = vld [vmem:[%s426 + $0xbe0] sm:$0xff]
        %v1587 = vld [vmem:[%s426 + $0xbe8] sm:$0xff]
        %v1588 = vld [vmem:[%s426 + $0xbf0] sm:$0xff]
        %v1589 = vld [vmem:[%s426 + $0xbf8] sm:$0xff]
        %v1590 = vld [vmem:[%s426 + $0xc00] sm:$0xff]
        %v1591 = vld [vmem:[%s426 + $0xc08] sm:$0xff]
        %v1592 = vld [vmem:[%s426 + $0xc10] sm:$0xff]
        %v1593 = vld [vmem:[%s426 + $0xc18] sm:$0xff]
        %v1594 = vld [vmem:[%s426 + $0xc20] sm:$0xff]
        %v1595 = vld [vmem:[%s426 + $0xc28] sm:$0xff]
        %v1596 = vld [vmem:[%s426 + $0xc30] sm:$0xff]
        %v1597 = vld [vmem:[%s426 + $0xc38] sm:$0xff]
        %v1598 = vld [vmem:[%s426 + $0xc40] sm:$0xff]
        %v1599 = vld [vmem:[%s426 + $0xc48] sm:$0xff]
        %v1600 = vld [vmem:[%s426 + $0xc50] sm:$0xff]
        %v1601 = vld [vmem:[%s426 + $0xc58] sm:$0xff]
        %v1602 = vld [vmem:[%s426 + $0xc60] sm:$0xff]
        %v1603 = vld [vmem:[%s426 + $0xc68] sm:$0xff]
        %v1604 = vld [vmem:[%s426 + $0xc70] sm:$0xff]
        %v1605 = vld [vmem:[%s426 + $0xc78] sm:$0xff]
        %v1606 = vld [vmem:[%s426 + $0xc80] sm:$0xff]
        %v1607 = vld [vmem:[%s426 + $0xc88] sm:$0xff]
        %v1608 = vld [vmem:[%s426 + $0xc90] sm:$0xff]
        %v1609 = vld [vmem:[%s426 + $0xc98] sm:$0xff]
        %v1610 = vld [vmem:[%s426 + $0xca0] sm:$0xff]
        %v1611 = vld [vmem:[%s426 + $0xca8] sm:$0xff]
        %v1612 = vld [vmem:[%s426 + $0xcb0] sm:$0xff]
        %v1613 = vld [vmem:[%s426 + $0xcb8] sm:$0xff]
        %v1614 = vld [vmem:[%s426 + $0xcc0] sm:$0xff]
        %v1615 = vld [vmem:[%s426 + $0xcc8] sm:$0xff]
        %v1616 = vld [vmem:[%s426 + $0xcd0] sm:$0xff]
        %v1617 = vld [vmem:[%s426 + $0xcd8] sm:$0xff]
        %v1618 = vld [vmem:[%s426 + $0xce0] sm:$0xff]
        %v1619 = vld [vmem:[%s426 + $0xce8] sm:$0xff]
        %v1620 = vld [vmem:[%s426 + $0xcf0] sm:$0xff]
        %v1621 = vld [vmem:[%s426 + $0xcf8] sm:$0xff]
        %v1622 = vld [vmem:[%s426 + $0xd00] sm:$0xff]
        %v1623 = vld [vmem:[%s426 + $0xd08] sm:$0xff]
        %v1624 = vld [vmem:[%s426 + $0xd10] sm:$0xff]
        %v1625 = vld [vmem:[%s426 + $0xd18] sm:$0xff]
        %v1626 = vld [vmem:[%s426 + $0xd20] sm:$0xff]
        %v1627 = vld [vmem:[%s426 + $0xd28] sm:$0xff]
        %v1628 = vld [vmem:[%s426 + $0xd30] sm:$0xff]
        %v1629 = vld [vmem:[%s426 + $0xd38] sm:$0xff]
        %v1630 = vld [vmem:[%s426 + $0xd40] sm:$0xff]
        %v1631 = vld [vmem:[%s426 + $0xd48] sm:$0xff]
        %v1632 = vld [vmem:[%s426 + $0xd50] sm:$0xff]
        %v1633 = vld [vmem:[%s426 + $0xd58] sm:$0xff]
        %v1634 = vld [vmem:[%s426 + $0xd60] sm:$0xff]
        %v1635 = vld [vmem:[%s426 + $0xd68] sm:$0xff]
        %v1636 = vld [vmem:[%s426 + $0xd70] sm:$0xff]
        %v1637 = vld [vmem:[%s426 + $0xd78] sm:$0xff]
        %v1638 = vld [vmem:[%s426 + $0xd80] sm:$0xff]
        %v1639 = vld [vmem:[%s426 + $0xd88] sm:$0xff]
        %v1640 = vld [vmem:[%s426 + $0xd90] sm:$0xff]
        %v1641 = vld [vmem:[%s426 + $0xd98] sm:$0xff]
        %v1642 = vld [vmem:[%s426 + $0xda0] sm:$0xff]
        %v1643 = vld [vmem:[%s426 + $0xda8] sm:$0xff]
        %v1644 = vld [vmem:[%s426 + $0xdb0] sm:$0xff]
        %v1645 = vld [vmem:[%s426 + $0xdb8] sm:$0xff]
        %v1646 = vld [vmem:[%s426 + $0xdc0] sm:$0xff]
        %v1647 = vld [vmem:[%s426 + $0xdc8] sm:$0xff]
        %v1648 = vld [vmem:[%s426 + $0xdd0] sm:$0xff]
        %v1649 = vld [vmem:[%s426 + $0xdd8] sm:$0xff]
        %v1650 = vld [vmem:[%s426 + $0xde0] sm:$0xff]
        %v1651 = vld [vmem:[%s426 + $0xde8] sm:$0xff]
        %v1652 = vld [vmem:[%s426 + $0xdf0] sm:$0xff]
        %v1653 = vld [vmem:[%s426 + $0xdf8] sm:$0xff]
        %v1654 = vld [vmem:[%s426 + $0xe00] sm:$0xff]
        %v1655 = vld [vmem:[%s426 + $0xe08] sm:$0xff]
        %v1656 = vld [vmem:[%s426 + $0xe10] sm:$0xff]
        %v1657 = vld [vmem:[%s426 + $0xe18] sm:$0xff]
        %v1658 = vld [vmem:[%s426 + $0xe20] sm:$0xff]
        %v1659 = vld [vmem:[%s426 + $0xe28] sm:$0xff]
        %v1660 = vld [vmem:[%s426 + $0xe30] sm:$0xff]
        %v1661 = vld [vmem:[%s426 + $0xe38] sm:$0xff]
        %v1662 = vld [vmem:[%s426 + $0xe40] sm:$0xff]
        %v1663 = vld [vmem:[%s426 + $0xe48] sm:$0xff]
        %v1664 = vld [vmem:[%s426 + $0xe50] sm:$0xff]
        %v1665 = vld [vmem:[%s426 + $0xe58] sm:$0xff]
        %v1666 = vld [vmem:[%s426 + $0xe60] sm:$0xff]
        %v1667 = vld [vmem:[%s426 + $0xe68] sm:$0xff]
        %v1668 = vld [vmem:[%s426 + $0xe70] sm:$0xff]
        %v1669 = vld [vmem:[%s426 + $0xe78] sm:$0xff]
        %v1670 = vld [vmem:[%s426 + $0xe80] sm:$0xff]
        %v1671 = vld [vmem:[%s426 + $0xe88] sm:$0xff]
        %v1672 = vld [vmem:[%s426 + $0xe90] sm:$0xff]
        %v1673 = vld [vmem:[%s426 + $0xe98] sm:$0xff]
        %v1674 = vld [vmem:[%s426 + $0xea0] sm:$0xff]
        %v1675 = vld [vmem:[%s426 + $0xea8] sm:$0xff]
        %v1676 = vld [vmem:[%s426 + $0xeb0] sm:$0xff]
        %v1677 = vld [vmem:[%s426 + $0xeb8] sm:$0xff]
        %v1678 = vld [vmem:[%s426 + $0xec0] sm:$0xff]
        %v1679 = vld [vmem:[%s426 + $0xec8] sm:$0xff]
        %v1680 = vld [vmem:[%s426 + $0xed0] sm:$0xff]
        %v1681 = vld [vmem:[%s426 + $0xed8] sm:$0xff]
        %v1682 = vld [vmem:[%s426 + $0xee0] sm:$0xff]
        %v1683 = vld [vmem:[%s426 + $0xee8] sm:$0xff]
        %v1684 = vld [vmem:[%s426 + $0xef0] sm:$0xff]
        %v1685 = vld [vmem:[%s426 + $0xef8] sm:$0xff]
        %v1686 = vld [vmem:[%s426 + $0xf00] sm:$0xff]
        %v1687 = vld [vmem:[%s426 + $0xf08] sm:$0xff]
        %v1688 = vld [vmem:[%s426 + $0xf10] sm:$0xff]
        %v1689 = vld [vmem:[%s426 + $0xf18] sm:$0xff]
        %v1690 = vld [vmem:[%s426 + $0xf20] sm:$0xff]
        %v1691 = vld [vmem:[%s426 + $0xf28] sm:$0xff]
        %v1692 = vld [vmem:[%s426 + $0xf30] sm:$0xff]
        %v1693 = vld [vmem:[%s426 + $0xf38] sm:$0xff]
        %v1694 = vld [vmem:[%s426 + $0xf40] sm:$0xff]
        %v1695 = vld [vmem:[%s426 + $0xf48] sm:$0xff]
        %v1696 = vld [vmem:[%s426 + $0xf50] sm:$0xff]
        %v1697 = vld [vmem:[%s426 + $0xf58] sm:$0xff]
        %v1698 = vld [vmem:[%s426 + $0xf60] sm:$0xff]
        %v1699 = vld [vmem:[%s426 + $0xf68] sm:$0xff]
        %v1700 = vld [vmem:[%s426 + $0xf70] sm:$0xff]
        %v1701 = vld [vmem:[%s426 + $0xf78] sm:$0xff]
        %v1702 = vld [vmem:[%s426 + $0xf80] sm:$0xff]
        %v1703 = vld [vmem:[%s426 + $0xf88] sm:$0xff]
        %v1704 = vld [vmem:[%s426 + $0xf90] sm:$0xff]
        %v1705 = vld [vmem:[%s426 + $0xf98] sm:$0xff]
        %v1706 = vld [vmem:[%s426 + $0xfa0] sm:$0xff]
        %v1707 = vld [vmem:[%s426 + $0xfa8] sm:$0xff]
        %v1708 = vld [vmem:[%s426 + $0xfb0] sm:$0xff]
        %v1709 = vld [vmem:[%s426 + $0xfb8] sm:$0xff]
        %v1710 = vld [vmem:[%s426 + $0xfc0] sm:$0xff]
        %v1711 = vld [vmem:[%s426 + $0xfc8] sm:$0xff]
        %v1712 = vld [vmem:[%s426 + $0xfd0] sm:$0xff]
        %v1713 = vld [vmem:[%s426 + $0xfd8] sm:$0xff]
        %v1714 = vld [vmem:[%s426 + $0xfe0] sm:$0xff]
        %v1715 = vld [vmem:[%s426 + $0xfe8] sm:$0xff]
        %v1716 = vld [vmem:[%s426 + $0xff0] sm:$0xff]
        %v1717 = vld [vmem:[%s426 + $0xff8] sm:$0xff]
        %v1718 = vunpack.c.l.bf16 %v1206
        %v1719 = vunpack.c.h.bf16 %v1206
        %v1720 = vunpack.c.l.bf16 %v1207
        %v1721 = vunpack.c.h.bf16 %v1207
        %v1722 = vunpack.c.l.bf16 %v1208
        %v1723 = vunpack.c.h.bf16 %v1208
        %v1724 = vunpack.c.l.bf16 %v1209
        %v1725 = vunpack.c.h.bf16 %v1209
        %v1726 = vunpack.c.l.bf16 %v1210
        %v1727 = vunpack.c.h.bf16 %v1210
        %v1728 = vunpack.c.l.bf16 %v1211
        %v1729 = vunpack.c.h.bf16 %v1211
        %v1730 = vunpack.c.l.bf16 %v1212
        %v1731 = vunpack.c.h.bf16 %v1212
        %v1732 = vunpack.c.l.bf16 %v1213
        %v1733 = vunpack.c.h.bf16 %v1213
        %v1734 = vunpack.c.l.bf16 %v1214
        %v1735 = vunpack.c.h.bf16 %v1214
        %v1736 = vunpack.c.l.bf16 %v1215
        %v1737 = vunpack.c.h.bf16 %v1215
        %v1738 = vunpack.c.l.bf16 %v1216
        %v1739 = vunpack.c.h.bf16 %v1216
        %v1740 = vunpack.c.l.bf16 %v1217
        %v1741 = vunpack.c.h.bf16 %v1217
        %v1742 = vunpack.c.l.bf16 %v1218
        %v1743 = vunpack.c.h.bf16 %v1218
        %v1744 = vunpack.c.l.bf16 %v1219
        %v1745 = vunpack.c.h.bf16 %v1219
        %v1746 = vunpack.c.l.bf16 %v1220
        %v1747 = vunpack.c.h.bf16 %v1220
        %v1748 = vunpack.c.l.bf16 %v1221
        %v1749 = vunpack.c.h.bf16 %v1221
        %v1750 = vunpack.c.l.bf16 %v1222
        %v1751 = vunpack.c.h.bf16 %v1222
        %v1752 = vunpack.c.l.bf16 %v1223
        %v1753 = vunpack.c.h.bf16 %v1223
        %v1754 = vunpack.c.l.bf16 %v1224
        %v1755 = vunpack.c.h.bf16 %v1224
        %v1756 = vunpack.c.l.bf16 %v1225
        %v1757 = vunpack.c.h.bf16 %v1225
        %v1758 = vunpack.c.l.bf16 %v1226
        %v1759 = vunpack.c.h.bf16 %v1226
        %v1760 = vunpack.c.l.bf16 %v1227
        %v1761 = vunpack.c.h.bf16 %v1227
        %v1762 = vunpack.c.l.bf16 %v1228
        %v1763 = vunpack.c.h.bf16 %v1228
        %v1764 = vunpack.c.l.bf16 %v1229
        %v1765 = vunpack.c.h.bf16 %v1229
        %v1766 = vunpack.c.l.bf16 %v1230
        %v1767 = vunpack.c.h.bf16 %v1230
        %v1768 = vunpack.c.l.bf16 %v1231
        %v1769 = vunpack.c.h.bf16 %v1231
        %v1770 = vunpack.c.l.bf16 %v1232
        %v1771 = vunpack.c.h.bf16 %v1232
        %v1772 = vunpack.c.l.bf16 %v1233
        %v1773 = vunpack.c.h.bf16 %v1233
        %v1774 = vunpack.c.l.bf16 %v1234
        %v1775 = vunpack.c.h.bf16 %v1234
        %v1776 = vunpack.c.l.bf16 %v1235
        %v1777 = vunpack.c.h.bf16 %v1235
        %v1778 = vunpack.c.l.bf16 %v1236
        %v1779 = vunpack.c.h.bf16 %v1236
        %v1780 = vunpack.c.l.bf16 %v1237
        %v1781 = vunpack.c.h.bf16 %v1237
        %v1782 = vunpack.c.l.bf16 %v1238
        %v1783 = vunpack.c.h.bf16 %v1238
        %v1784 = vunpack.c.l.bf16 %v1239
        %v1785 = vunpack.c.h.bf16 %v1239
        %v1786 = vunpack.c.l.bf16 %v1240
        %v1787 = vunpack.c.h.bf16 %v1240
        %v1788 = vunpack.c.l.bf16 %v1241
        %v1789 = vunpack.c.h.bf16 %v1241
        %v1790 = vunpack.c.l.bf16 %v1242
        %v1791 = vunpack.c.h.bf16 %v1242
        %v1792 = vunpack.c.l.bf16 %v1243
        %v1793 = vunpack.c.h.bf16 %v1243
        %v1794 = vunpack.c.l.bf16 %v1244
        %v1795 = vunpack.c.h.bf16 %v1244
        %v1796 = vunpack.c.l.bf16 %v1245
        %v1797 = vunpack.c.h.bf16 %v1245
        %v1798 = vunpack.c.l.bf16 %v1246
        %v1799 = vunpack.c.h.bf16 %v1246
        %v1800 = vunpack.c.l.bf16 %v1247
        %v1801 = vunpack.c.h.bf16 %v1247
        %v1802 = vunpack.c.l.bf16 %v1248
        %v1803 = vunpack.c.h.bf16 %v1248
        %v1804 = vunpack.c.l.bf16 %v1249
        %v1805 = vunpack.c.h.bf16 %v1249
        %v1806 = vunpack.c.l.bf16 %v1250
        %v1807 = vunpack.c.h.bf16 %v1250
        %v1808 = vunpack.c.l.bf16 %v1251
        %v1809 = vunpack.c.h.bf16 %v1251
        %v1810 = vunpack.c.l.bf16 %v1252
        %v1811 = vunpack.c.h.bf16 %v1252
        %v1812 = vunpack.c.l.bf16 %v1253
        %v1813 = vunpack.c.h.bf16 %v1253
        %v1814 = vunpack.c.l.bf16 %v1254
        %v1815 = vunpack.c.h.bf16 %v1254
        %v1816 = vunpack.c.l.bf16 %v1255
        %v1817 = vunpack.c.h.bf16 %v1255
        %v1818 = vunpack.c.l.bf16 %v1256
        %v1819 = vunpack.c.h.bf16 %v1256
        %v1820 = vunpack.c.l.bf16 %v1257
        %v1821 = vunpack.c.h.bf16 %v1257
        %v1822 = vunpack.c.l.bf16 %v1258
        %v1823 = vunpack.c.h.bf16 %v1258
        %v1824 = vunpack.c.l.bf16 %v1259
        %v1825 = vunpack.c.h.bf16 %v1259
        %v1826 = vunpack.c.l.bf16 %v1260
        %v1827 = vunpack.c.h.bf16 %v1260
        %v1828 = vunpack.c.l.bf16 %v1261
        %v1829 = vunpack.c.h.bf16 %v1261
        %v1830 = vunpack.c.l.bf16 %v1262
        %v1831 = vunpack.c.h.bf16 %v1262
        %v1832 = vunpack.c.l.bf16 %v1263
        %v1833 = vunpack.c.h.bf16 %v1263
        %v1834 = vunpack.c.l.bf16 %v1264
        %v1835 = vunpack.c.h.bf16 %v1264
        %v1836 = vunpack.c.l.bf16 %v1265
        %v1837 = vunpack.c.h.bf16 %v1265
        %v1838 = vunpack.c.l.bf16 %v1266
        %v1839 = vunpack.c.h.bf16 %v1266
        %v1840 = vunpack.c.l.bf16 %v1267
        %v1841 = vunpack.c.h.bf16 %v1267
        %v1842 = vunpack.c.l.bf16 %v1268
        %v1843 = vunpack.c.h.bf16 %v1268
        %v1844 = vunpack.c.l.bf16 %v1269
        %v1845 = vunpack.c.h.bf16 %v1269
        %v1846 = vunpack.c.l.bf16 %v1270
        %v1847 = vunpack.c.h.bf16 %v1270
        %v1848 = vunpack.c.l.bf16 %v1271
        %v1849 = vunpack.c.h.bf16 %v1271
        %v1850 = vunpack.c.l.bf16 %v1272
        %v1851 = vunpack.c.h.bf16 %v1272
        %v1852 = vunpack.c.l.bf16 %v1273
        %v1853 = vunpack.c.h.bf16 %v1273
        %v1854 = vunpack.c.l.bf16 %v1274
        %v1855 = vunpack.c.h.bf16 %v1274
        %v1856 = vunpack.c.l.bf16 %v1275
        %v1857 = vunpack.c.h.bf16 %v1275
        %v1858 = vunpack.c.l.bf16 %v1276
        %v1859 = vunpack.c.h.bf16 %v1276
        %v1860 = vunpack.c.l.bf16 %v1277
        %v1861 = vunpack.c.h.bf16 %v1277
        %v1862 = vunpack.c.l.bf16 %v1278
        %v1863 = vunpack.c.h.bf16 %v1278
        %v1864 = vunpack.c.l.bf16 %v1279
        %v1865 = vunpack.c.h.bf16 %v1279
        %v1866 = vunpack.c.l.bf16 %v1280
        %v1867 = vunpack.c.h.bf16 %v1280
        %v1868 = vunpack.c.l.bf16 %v1281
        %v1869 = vunpack.c.h.bf16 %v1281
        %v1870 = vunpack.c.l.bf16 %v1282
        %v1871 = vunpack.c.h.bf16 %v1282
        %v1872 = vunpack.c.l.bf16 %v1283
        %v1873 = vunpack.c.h.bf16 %v1283
        %v1874 = vunpack.c.l.bf16 %v1284
        %v1875 = vunpack.c.h.bf16 %v1284
        %v1876 = vunpack.c.l.bf16 %v1285
        %v1877 = vunpack.c.h.bf16 %v1285
        %v1878 = vunpack.c.l.bf16 %v1286
        %v1879 = vunpack.c.h.bf16 %v1286
        %v1880 = vunpack.c.l.bf16 %v1287
        %v1881 = vunpack.c.h.bf16 %v1287
        %v1882 = vunpack.c.l.bf16 %v1288
        %v1883 = vunpack.c.h.bf16 %v1288
        %v1884 = vunpack.c.l.bf16 %v1289
        %v1885 = vunpack.c.h.bf16 %v1289
        %v1886 = vunpack.c.l.bf16 %v1290
        %v1887 = vunpack.c.h.bf16 %v1290
        %v1888 = vunpack.c.l.bf16 %v1291
        %v1889 = vunpack.c.h.bf16 %v1291
        %v1890 = vunpack.c.l.bf16 %v1292
        %v1891 = vunpack.c.h.bf16 %v1292
        %v1892 = vunpack.c.l.bf16 %v1293
        %v1893 = vunpack.c.h.bf16 %v1293
        %v1894 = vunpack.c.l.bf16 %v1294
        %v1895 = vunpack.c.h.bf16 %v1294
        %v1896 = vunpack.c.l.bf16 %v1295
        %v1897 = vunpack.c.h.bf16 %v1295
        %v1898 = vunpack.c.l.bf16 %v1296
        %v1899 = vunpack.c.h.bf16 %v1296
        %v1900 = vunpack.c.l.bf16 %v1297
        %v1901 = vunpack.c.h.bf16 %v1297
        %v1902 = vunpack.c.l.bf16 %v1298
        %v1903 = vunpack.c.h.bf16 %v1298
        %v1904 = vunpack.c.l.bf16 %v1299
        %v1905 = vunpack.c.h.bf16 %v1299
        %v1906 = vunpack.c.l.bf16 %v1300
        %v1907 = vunpack.c.h.bf16 %v1300
        %v1908 = vunpack.c.l.bf16 %v1301
        %v1909 = vunpack.c.h.bf16 %v1301
        %v1910 = vunpack.c.l.bf16 %v1302
        %v1911 = vunpack.c.h.bf16 %v1302
        %v1912 = vunpack.c.l.bf16 %v1303
        %v1913 = vunpack.c.h.bf16 %v1303
        %v1914 = vunpack.c.l.bf16 %v1304
        %v1915 = vunpack.c.h.bf16 %v1304
        %v1916 = vunpack.c.l.bf16 %v1305
        %v1917 = vunpack.c.h.bf16 %v1305
        %v1918 = vunpack.c.l.bf16 %v1306
        %v1919 = vunpack.c.h.bf16 %v1306
        %v1920 = vunpack.c.l.bf16 %v1307
        %v1921 = vunpack.c.h.bf16 %v1307
        %v1922 = vunpack.c.l.bf16 %v1308
        %v1923 = vunpack.c.h.bf16 %v1308
        %v1924 = vunpack.c.l.bf16 %v1309
        %v1925 = vunpack.c.h.bf16 %v1309
        %v1926 = vunpack.c.l.bf16 %v1310
        %v1927 = vunpack.c.h.bf16 %v1310
        %v1928 = vunpack.c.l.bf16 %v1311
        %v1929 = vunpack.c.h.bf16 %v1311
        %v1930 = vunpack.c.l.bf16 %v1312
        %v1931 = vunpack.c.h.bf16 %v1312
        %v1932 = vunpack.c.l.bf16 %v1313
        %v1933 = vunpack.c.h.bf16 %v1313
        %v1934 = vunpack.c.l.bf16 %v1314
        %v1935 = vunpack.c.h.bf16 %v1314
        %v1936 = vunpack.c.l.bf16 %v1315
        %v1937 = vunpack.c.h.bf16 %v1315
        %v1938 = vunpack.c.l.bf16 %v1316
        %v1939 = vunpack.c.h.bf16 %v1316
        %v1940 = vunpack.c.l.bf16 %v1317
        %v1941 = vunpack.c.h.bf16 %v1317
        %v1942 = vunpack.c.l.bf16 %v1318
        %v1943 = vunpack.c.h.bf16 %v1318
        %v1944 = vunpack.c.l.bf16 %v1319
        %v1945 = vunpack.c.h.bf16 %v1319
        %v1946 = vunpack.c.l.bf16 %v1320
        %v1947 = vunpack.c.h.bf16 %v1320
        %v1948 = vunpack.c.l.bf16 %v1321
        %v1949 = vunpack.c.h.bf16 %v1321
        %v1950 = vunpack.c.l.bf16 %v1322
        %v1951 = vunpack.c.h.bf16 %v1322
        %v1952 = vunpack.c.l.bf16 %v1323
        %v1953 = vunpack.c.h.bf16 %v1323
        %v1954 = vunpack.c.l.bf16 %v1324
        %v1955 = vunpack.c.h.bf16 %v1324
        %v1956 = vunpack.c.l.bf16 %v1325
        %v1957 = vunpack.c.h.bf16 %v1325
        %v1958 = vunpack.c.l.bf16 %v1326
        %v1959 = vunpack.c.h.bf16 %v1326
        %v1960 = vunpack.c.l.bf16 %v1327
        %v1961 = vunpack.c.h.bf16 %v1327
        %v1962 = vunpack.c.l.bf16 %v1328
        %v1963 = vunpack.c.h.bf16 %v1328
        %v1964 = vunpack.c.l.bf16 %v1329
        %v1965 = vunpack.c.h.bf16 %v1329
        %v1966 = vunpack.c.l.bf16 %v1330
        %v1967 = vunpack.c.h.bf16 %v1330
        %v1968 = vunpack.c.l.bf16 %v1331
        %v1969 = vunpack.c.h.bf16 %v1331
        %v1970 = vunpack.c.l.bf16 %v1332
        %v1971 = vunpack.c.h.bf16 %v1332
        %v1972 = vunpack.c.l.bf16 %v1333
        %v1973 = vunpack.c.h.bf16 %v1333
        %v1974 = vunpack.c.l.bf16 %v1334
        %v1975 = vunpack.c.h.bf16 %v1334
        %v1976 = vunpack.c.l.bf16 %v1335
        %v1977 = vunpack.c.h.bf16 %v1335
        %v1978 = vunpack.c.l.bf16 %v1336
        %v1979 = vunpack.c.h.bf16 %v1336
        %v1980 = vunpack.c.l.bf16 %v1337
        %v1981 = vunpack.c.h.bf16 %v1337
        %v1982 = vunpack.c.l.bf16 %v1338
        %v1983 = vunpack.c.h.bf16 %v1338
        %v1984 = vunpack.c.l.bf16 %v1339
        %v1985 = vunpack.c.h.bf16 %v1339
        %v1986 = vunpack.c.l.bf16 %v1340
        %v1987 = vunpack.c.h.bf16 %v1340
        %v1988 = vunpack.c.l.bf16 %v1341
        %v1989 = vunpack.c.h.bf16 %v1341
        %v1990 = vunpack.c.l.bf16 %v1342
        %v1991 = vunpack.c.h.bf16 %v1342
        %v1992 = vunpack.c.l.bf16 %v1343
        %v1993 = vunpack.c.h.bf16 %v1343
        %v1994 = vunpack.c.l.bf16 %v1344
        %v1995 = vunpack.c.h.bf16 %v1344
        %v1996 = vunpack.c.l.bf16 %v1345
        %v1997 = vunpack.c.h.bf16 %v1345
        %v1998 = vunpack.c.l.bf16 %v1346
        %v1999 = vunpack.c.h.bf16 %v1346
        %v2000 = vunpack.c.l.bf16 %v1347
        %v2001 = vunpack.c.h.bf16 %v1347
        %v2002 = vunpack.c.l.bf16 %v1348
        %v2003 = vunpack.c.h.bf16 %v1348
        %v2004 = vunpack.c.l.bf16 %v1349
        %v2005 = vunpack.c.h.bf16 %v1349
        %v2006 = vunpack.c.l.bf16 %v1350
        %v2007 = vunpack.c.h.bf16 %v1350
        %v2008 = vunpack.c.l.bf16 %v1351
        %v2009 = vunpack.c.h.bf16 %v1351
        %v2010 = vunpack.c.l.bf16 %v1352
        %v2011 = vunpack.c.h.bf16 %v1352
        %v2012 = vunpack.c.l.bf16 %v1353
        %v2013 = vunpack.c.h.bf16 %v1353
        %v2014 = vunpack.c.l.bf16 %v1354
        %v2015 = vunpack.c.h.bf16 %v1354
        %v2016 = vunpack.c.l.bf16 %v1355
        %v2017 = vunpack.c.h.bf16 %v1355
        %v2018 = vunpack.c.l.bf16 %v1356
        %v2019 = vunpack.c.h.bf16 %v1356
        %v2020 = vunpack.c.l.bf16 %v1357
        %v2021 = vunpack.c.h.bf16 %v1357
        %v2022 = vunpack.c.l.bf16 %v1358
        %v2023 = vunpack.c.h.bf16 %v1358
        %v2024 = vunpack.c.l.bf16 %v1359
        %v2025 = vunpack.c.h.bf16 %v1359
        %v2026 = vunpack.c.l.bf16 %v1360
        %v2027 = vunpack.c.h.bf16 %v1360
        %v2028 = vunpack.c.l.bf16 %v1361
        %v2029 = vunpack.c.h.bf16 %v1361
        %v2030 = vunpack.c.l.bf16 %v1362
        %v2031 = vunpack.c.h.bf16 %v1362
        %v2032 = vunpack.c.l.bf16 %v1363
        %v2033 = vunpack.c.h.bf16 %v1363
        %v2034 = vunpack.c.l.bf16 %v1364
        %v2035 = vunpack.c.h.bf16 %v1364
        %v2036 = vunpack.c.l.bf16 %v1365
        %v2037 = vunpack.c.h.bf16 %v1365
        %v2038 = vunpack.c.l.bf16 %v1366
        %v2039 = vunpack.c.h.bf16 %v1366
        %v2040 = vunpack.c.l.bf16 %v1367
        %v2041 = vunpack.c.h.bf16 %v1367
        %v2042 = vunpack.c.l.bf16 %v1368
        %v2043 = vunpack.c.h.bf16 %v1368
        %v2044 = vunpack.c.l.bf16 %v1369
        %v2045 = vunpack.c.h.bf16 %v1369
        %v2046 = vunpack.c.l.bf16 %v1370
        %v2047 = vunpack.c.h.bf16 %v1370
        %v2048 = vunpack.c.l.bf16 %v1371
        %v2049 = vunpack.c.h.bf16 %v1371
        %v2050 = vunpack.c.l.bf16 %v1372
        %v2051 = vunpack.c.h.bf16 %v1372
        %v2052 = vunpack.c.l.bf16 %v1373
        %v2053 = vunpack.c.h.bf16 %v1373
        %v2054 = vunpack.c.l.bf16 %v1374
        %v2055 = vunpack.c.h.bf16 %v1374
        %v2056 = vunpack.c.l.bf16 %v1375
        %v2057 = vunpack.c.h.bf16 %v1375
        %v2058 = vunpack.c.l.bf16 %v1376
        %v2059 = vunpack.c.h.bf16 %v1376
        %v2060 = vunpack.c.l.bf16 %v1377
        %v2061 = vunpack.c.h.bf16 %v1377
        %v2062 = vunpack.c.l.bf16 %v1378
        %v2063 = vunpack.c.h.bf16 %v1378
        %v2064 = vunpack.c.l.bf16 %v1379
        %v2065 = vunpack.c.h.bf16 %v1379
        %v2066 = vunpack.c.l.bf16 %v1380
        %v2067 = vunpack.c.h.bf16 %v1380
        %v2068 = vunpack.c.l.bf16 %v1381
        %v2069 = vunpack.c.h.bf16 %v1381
        %v2070 = vunpack.c.l.bf16 %v1382
        %v2071 = vunpack.c.h.bf16 %v1382
        %v2072 = vunpack.c.l.bf16 %v1383
        %v2073 = vunpack.c.h.bf16 %v1383
        %v2074 = vunpack.c.l.bf16 %v1384
        %v2075 = vunpack.c.h.bf16 %v1384
        %v2076 = vunpack.c.l.bf16 %v1385
        %v2077 = vunpack.c.h.bf16 %v1385
        %v2078 = vunpack.c.l.bf16 %v1386
        %v2079 = vunpack.c.h.bf16 %v1386
        %v2080 = vunpack.c.l.bf16 %v1387
        %v2081 = vunpack.c.h.bf16 %v1387
        %v2082 = vunpack.c.l.bf16 %v1388
        %v2083 = vunpack.c.h.bf16 %v1388
        %v2084 = vunpack.c.l.bf16 %v1389
        %v2085 = vunpack.c.h.bf16 %v1389
        %v2086 = vunpack.c.l.bf16 %v1390
        %v2087 = vunpack.c.h.bf16 %v1390
        %v2088 = vunpack.c.l.bf16 %v1391
        %v2089 = vunpack.c.h.bf16 %v1391
        %v2090 = vunpack.c.l.bf16 %v1392
        %v2091 = vunpack.c.h.bf16 %v1392
        %v2092 = vunpack.c.l.bf16 %v1393
        %v2093 = vunpack.c.h.bf16 %v1393
        %v2094 = vunpack.c.l.bf16 %v1394
        %v2095 = vunpack.c.h.bf16 %v1394
        %v2096 = vunpack.c.l.bf16 %v1395
        %v2097 = vunpack.c.h.bf16 %v1395
        %v2098 = vunpack.c.l.bf16 %v1396
        %v2099 = vunpack.c.h.bf16 %v1396
        %v2100 = vunpack.c.l.bf16 %v1397
        %v2101 = vunpack.c.h.bf16 %v1397
        %v2102 = vunpack.c.l.bf16 %v1398
        %v2103 = vunpack.c.h.bf16 %v1398
        %v2104 = vunpack.c.l.bf16 %v1399
        %v2105 = vunpack.c.h.bf16 %v1399
        %v2106 = vunpack.c.l.bf16 %v1400
        %v2107 = vunpack.c.h.bf16 %v1400
        %v2108 = vunpack.c.l.bf16 %v1401
        %v2109 = vunpack.c.h.bf16 %v1401
        %v2110 = vunpack.c.l.bf16 %v1402
        %v2111 = vunpack.c.h.bf16 %v1402
        %v2112 = vunpack.c.l.bf16 %v1403
        %v2113 = vunpack.c.h.bf16 %v1403
        %v2114 = vunpack.c.l.bf16 %v1404
        %v2115 = vunpack.c.h.bf16 %v1404
        %v2116 = vunpack.c.l.bf16 %v1405
        %v2117 = vunpack.c.h.bf16 %v1405
        %v2118 = vunpack.c.l.bf16 %v1406
        %v2119 = vunpack.c.h.bf16 %v1406
        %v2120 = vunpack.c.l.bf16 %v1407
        %v2121 = vunpack.c.h.bf16 %v1407
        %v2122 = vunpack.c.l.bf16 %v1408
        %v2123 = vunpack.c.h.bf16 %v1408
        %v2124 = vunpack.c.l.bf16 %v1409
        %v2125 = vunpack.c.h.bf16 %v1409
        %v2126 = vunpack.c.l.bf16 %v1410
        %v2127 = vunpack.c.h.bf16 %v1410
        %v2128 = vunpack.c.l.bf16 %v1411
        %v2129 = vunpack.c.h.bf16 %v1411
        %v2130 = vunpack.c.l.bf16 %v1412
        %v2131 = vunpack.c.h.bf16 %v1412
        %v2132 = vunpack.c.l.bf16 %v1413
        %v2133 = vunpack.c.h.bf16 %v1413
        %v2134 = vunpack.c.l.bf16 %v1414
        %v2135 = vunpack.c.h.bf16 %v1414
        %v2136 = vunpack.c.l.bf16 %v1415
        %v2137 = vunpack.c.h.bf16 %v1415
        %v2138 = vunpack.c.l.bf16 %v1416
        %v2139 = vunpack.c.h.bf16 %v1416
        %v2140 = vunpack.c.l.bf16 %v1417
        %v2141 = vunpack.c.h.bf16 %v1417
        %v2142 = vunpack.c.l.bf16 %v1418
        %v2143 = vunpack.c.h.bf16 %v1418
        %v2144 = vunpack.c.l.bf16 %v1419
        %v2145 = vunpack.c.h.bf16 %v1419
        %v2146 = vunpack.c.l.bf16 %v1420
        %v2147 = vunpack.c.h.bf16 %v1420
        %v2148 = vunpack.c.l.bf16 %v1421
        %v2149 = vunpack.c.h.bf16 %v1421
        %v2150 = vunpack.c.l.bf16 %v1422
        %v2151 = vunpack.c.h.bf16 %v1422
        %v2152 = vunpack.c.l.bf16 %v1423
        %v2153 = vunpack.c.h.bf16 %v1423
        %v2154 = vunpack.c.l.bf16 %v1424
        %v2155 = vunpack.c.h.bf16 %v1424
        %v2156 = vunpack.c.l.bf16 %v1425
        %v2157 = vunpack.c.h.bf16 %v1425
        %v2158 = vunpack.c.l.bf16 %v1426
        %v2159 = vunpack.c.h.bf16 %v1426
        %v2160 = vunpack.c.l.bf16 %v1427
        %v2161 = vunpack.c.h.bf16 %v1427
        %v2162 = vunpack.c.l.bf16 %v1428
        %v2163 = vunpack.c.h.bf16 %v1428
        %v2164 = vunpack.c.l.bf16 %v1429
        %v2165 = vunpack.c.h.bf16 %v1429
        %v2166 = vunpack.c.l.bf16 %v1430
        %v2167 = vunpack.c.h.bf16 %v1430
        %v2168 = vunpack.c.l.bf16 %v1431
        %v2169 = vunpack.c.h.bf16 %v1431
        %v2170 = vunpack.c.l.bf16 %v1432
        %v2171 = vunpack.c.h.bf16 %v1432
        %v2172 = vunpack.c.l.bf16 %v1433
        %v2173 = vunpack.c.h.bf16 %v1433
        %v2174 = vunpack.c.l.bf16 %v1434
        %v2175 = vunpack.c.h.bf16 %v1434
        %v2176 = vunpack.c.l.bf16 %v1435
        %v2177 = vunpack.c.h.bf16 %v1435
        %v2178 = vunpack.c.l.bf16 %v1436
        %v2179 = vunpack.c.h.bf16 %v1436
        %v2180 = vunpack.c.l.bf16 %v1437
        %v2181 = vunpack.c.h.bf16 %v1437
        %v2182 = vunpack.c.l.bf16 %v1438
        %v2183 = vunpack.c.h.bf16 %v1438
        %v2184 = vunpack.c.l.bf16 %v1439
        %v2185 = vunpack.c.h.bf16 %v1439
        %v2186 = vunpack.c.l.bf16 %v1440
        %v2187 = vunpack.c.h.bf16 %v1440
        %v2188 = vunpack.c.l.bf16 %v1441
        %v2189 = vunpack.c.h.bf16 %v1441
        %v2190 = vunpack.c.l.bf16 %v1442
        %v2191 = vunpack.c.h.bf16 %v1442
        %v2192 = vunpack.c.l.bf16 %v1443
        %v2193 = vunpack.c.h.bf16 %v1443
        %v2194 = vunpack.c.l.bf16 %v1444
        %v2195 = vunpack.c.h.bf16 %v1444
        %v2196 = vunpack.c.l.bf16 %v1445
        %v2197 = vunpack.c.h.bf16 %v1445
        %v2198 = vunpack.c.l.bf16 %v1446
        %v2199 = vunpack.c.h.bf16 %v1446
        %v2200 = vunpack.c.l.bf16 %v1447
        %v2201 = vunpack.c.h.bf16 %v1447
        %v2202 = vunpack.c.l.bf16 %v1448
        %v2203 = vunpack.c.h.bf16 %v1448
        %v2204 = vunpack.c.l.bf16 %v1449
        %v2205 = vunpack.c.h.bf16 %v1449
        %v2206 = vunpack.c.l.bf16 %v1450
        %v2207 = vunpack.c.h.bf16 %v1450
        %v2208 = vunpack.c.l.bf16 %v1451
        %v2209 = vunpack.c.h.bf16 %v1451
        %v2210 = vunpack.c.l.bf16 %v1452
        %v2211 = vunpack.c.h.bf16 %v1452
        %v2212 = vunpack.c.l.bf16 %v1453
        %v2213 = vunpack.c.h.bf16 %v1453
        %v2214 = vunpack.c.l.bf16 %v1454
        %v2215 = vunpack.c.h.bf16 %v1454
        %v2216 = vunpack.c.l.bf16 %v1455
        %v2217 = vunpack.c.h.bf16 %v1455
        %v2218 = vunpack.c.l.bf16 %v1456
        %v2219 = vunpack.c.h.bf16 %v1456
        %v2220 = vunpack.c.l.bf16 %v1457
        %v2221 = vunpack.c.h.bf16 %v1457
        %v2222 = vunpack.c.l.bf16 %v1458
        %v2223 = vunpack.c.h.bf16 %v1458
        %v2224 = vunpack.c.l.bf16 %v1459
        %v2225 = vunpack.c.h.bf16 %v1459
        %v2226 = vunpack.c.l.bf16 %v1460
        %v2227 = vunpack.c.h.bf16 %v1460
        %v2228 = vunpack.c.l.bf16 %v1461
        %v2229 = vunpack.c.h.bf16 %v1461
        %v2230 = vunpack.c.l.bf16 %v1462
        %v2231 = vunpack.c.h.bf16 %v1462
        %v2232 = vunpack.c.l.bf16 %v1463
        %v2233 = vunpack.c.h.bf16 %v1463
        %v2234 = vunpack.c.l.bf16 %v1464
        %v2235 = vunpack.c.h.bf16 %v1464
        %v2236 = vunpack.c.l.bf16 %v1465
        %v2237 = vunpack.c.h.bf16 %v1465
        %v2238 = vunpack.c.l.bf16 %v1466
        %v2239 = vunpack.c.h.bf16 %v1466
        %v2240 = vunpack.c.l.bf16 %v1467
        %v2241 = vunpack.c.h.bf16 %v1467
        %v2242 = vunpack.c.l.bf16 %v1468
        %v2243 = vunpack.c.h.bf16 %v1468
        %v2244 = vunpack.c.l.bf16 %v1469
        %v2245 = vunpack.c.h.bf16 %v1469
        %v2246 = vunpack.c.l.bf16 %v1470
        %v2247 = vunpack.c.h.bf16 %v1470
        %v2248 = vunpack.c.l.bf16 %v1471
        %v2249 = vunpack.c.h.bf16 %v1471
        %v2250 = vunpack.c.l.bf16 %v1472
        %v2251 = vunpack.c.h.bf16 %v1472
        %v2252 = vunpack.c.l.bf16 %v1473
        %v2253 = vunpack.c.h.bf16 %v1473
        %v2254 = vunpack.c.l.bf16 %v1474
        %v2255 = vunpack.c.h.bf16 %v1474
        %v2256 = vunpack.c.l.bf16 %v1475
        %v2257 = vunpack.c.h.bf16 %v1475
        %v2258 = vunpack.c.l.bf16 %v1476
        %v2259 = vunpack.c.h.bf16 %v1476
        %v2260 = vunpack.c.l.bf16 %v1477
        %v2261 = vunpack.c.h.bf16 %v1477
        %v2262 = vunpack.c.l.bf16 %v1478
        %v2263 = vunpack.c.h.bf16 %v1478
        %v2264 = vunpack.c.l.bf16 %v1479
        %v2265 = vunpack.c.h.bf16 %v1479
        %v2266 = vunpack.c.l.bf16 %v1480
        %v2267 = vunpack.c.h.bf16 %v1480
        %v2268 = vunpack.c.l.bf16 %v1481
        %v2269 = vunpack.c.h.bf16 %v1481
        %v2270 = vunpack.c.l.bf16 %v1482
        %v2271 = vunpack.c.h.bf16 %v1482
        %v2272 = vunpack.c.l.bf16 %v1483
        %v2273 = vunpack.c.h.bf16 %v1483
        %v2274 = vunpack.c.l.bf16 %v1484
        %v2275 = vunpack.c.h.bf16 %v1484
        %v2276 = vunpack.c.l.bf16 %v1485
        %v2277 = vunpack.c.h.bf16 %v1485
        %v2278 = vunpack.c.l.bf16 %v1486
        %v2279 = vunpack.c.h.bf16 %v1486
        %v2280 = vunpack.c.l.bf16 %v1487
        %v2281 = vunpack.c.h.bf16 %v1487
        %v2282 = vunpack.c.l.bf16 %v1488
        %v2283 = vunpack.c.h.bf16 %v1488
        %v2284 = vunpack.c.l.bf16 %v1489
        %v2285 = vunpack.c.h.bf16 %v1489
        %v2286 = vunpack.c.l.bf16 %v1490
        %v2287 = vunpack.c.h.bf16 %v1490
        %v2288 = vunpack.c.l.bf16 %v1491
        %v2289 = vunpack.c.h.bf16 %v1491
        %v2290 = vunpack.c.l.bf16 %v1492
        %v2291 = vunpack.c.h.bf16 %v1492
        %v2292 = vunpack.c.l.bf16 %v1493
        %v2293 = vunpack.c.h.bf16 %v1493
        %v2294 = vunpack.c.l.bf16 %v1494
        %v2295 = vunpack.c.h.bf16 %v1494
        %v2296 = vunpack.c.l.bf16 %v1495
        %v2297 = vunpack.c.h.bf16 %v1495
        %v2298 = vunpack.c.l.bf16 %v1496
        %v2299 = vunpack.c.h.bf16 %v1496
        %v2300 = vunpack.c.l.bf16 %v1497
        %v2301 = vunpack.c.h.bf16 %v1497
        %v2302 = vunpack.c.l.bf16 %v1498
        %v2303 = vunpack.c.h.bf16 %v1498
        %v2304 = vunpack.c.l.bf16 %v1499
        %v2305 = vunpack.c.h.bf16 %v1499
        %v2306 = vunpack.c.l.bf16 %v1500
        %v2307 = vunpack.c.h.bf16 %v1500
        %v2308 = vunpack.c.l.bf16 %v1501
        %v2309 = vunpack.c.h.bf16 %v1501
        %v2310 = vunpack.c.l.bf16 %v1502
        %v2311 = vunpack.c.h.bf16 %v1502
        %v2312 = vunpack.c.l.bf16 %v1503
        %v2313 = vunpack.c.h.bf16 %v1503
        %v2314 = vunpack.c.l.bf16 %v1504
        %v2315 = vunpack.c.h.bf16 %v1504
        %v2316 = vunpack.c.l.bf16 %v1505
        %v2317 = vunpack.c.h.bf16 %v1505
        %v2318 = vunpack.c.l.bf16 %v1506
        %v2319 = vunpack.c.h.bf16 %v1506
        %v2320 = vunpack.c.l.bf16 %v1507
        %v2321 = vunpack.c.h.bf16 %v1507
        %v2322 = vunpack.c.l.bf16 %v1508
        %v2323 = vunpack.c.h.bf16 %v1508
        %v2324 = vunpack.c.l.bf16 %v1509
        %v2325 = vunpack.c.h.bf16 %v1509
        %v2326 = vunpack.c.l.bf16 %v1510
        %v2327 = vunpack.c.h.bf16 %v1510
        %v2328 = vunpack.c.l.bf16 %v1511
        %v2329 = vunpack.c.h.bf16 %v1511
        %v2330 = vunpack.c.l.bf16 %v1512
        %v2331 = vunpack.c.h.bf16 %v1512
        %v2332 = vunpack.c.l.bf16 %v1513
        %v2333 = vunpack.c.h.bf16 %v1513
        %v2334 = vunpack.c.l.bf16 %v1514
        %v2335 = vunpack.c.h.bf16 %v1514
        %v2336 = vunpack.c.l.bf16 %v1515
        %v2337 = vunpack.c.h.bf16 %v1515
        %v2338 = vunpack.c.l.bf16 %v1516
        %v2339 = vunpack.c.h.bf16 %v1516
        %v2340 = vunpack.c.l.bf16 %v1517
        %v2341 = vunpack.c.h.bf16 %v1517
        %v2342 = vunpack.c.l.bf16 %v1518
        %v2343 = vunpack.c.h.bf16 %v1518
        %v2344 = vunpack.c.l.bf16 %v1519
        %v2345 = vunpack.c.h.bf16 %v1519
        %v2346 = vunpack.c.l.bf16 %v1520
        %v2347 = vunpack.c.h.bf16 %v1520
        %v2348 = vunpack.c.l.bf16 %v1521
        %v2349 = vunpack.c.h.bf16 %v1521
        %v2350 = vunpack.c.l.bf16 %v1522
        %v2351 = vunpack.c.h.bf16 %v1522
        %v2352 = vunpack.c.l.bf16 %v1523
        %v2353 = vunpack.c.h.bf16 %v1523
        %v2354 = vunpack.c.l.bf16 %v1524
        %v2355 = vunpack.c.h.bf16 %v1524
        %v2356 = vunpack.c.l.bf16 %v1525
        %v2357 = vunpack.c.h.bf16 %v1525
        %v2358 = vunpack.c.l.bf16 %v1526
        %v2359 = vunpack.c.h.bf16 %v1526
        %v2360 = vunpack.c.l.bf16 %v1527
        %v2361 = vunpack.c.h.bf16 %v1527
        %v2362 = vunpack.c.l.bf16 %v1528
        %v2363 = vunpack.c.h.bf16 %v1528
        %v2364 = vunpack.c.l.bf16 %v1529
        %v2365 = vunpack.c.h.bf16 %v1529
        %v2366 = vunpack.c.l.bf16 %v1530
        %v2367 = vunpack.c.h.bf16 %v1530
        %v2368 = vunpack.c.l.bf16 %v1531
        %v2369 = vunpack.c.h.bf16 %v1531
        %v2370 = vunpack.c.l.bf16 %v1532
        %v2371 = vunpack.c.h.bf16 %v1532
        %v2372 = vunpack.c.l.bf16 %v1533
        %v2373 = vunpack.c.h.bf16 %v1533
        %v2374 = vunpack.c.l.bf16 %v1534
        %v2375 = vunpack.c.h.bf16 %v1534
        %v2376 = vunpack.c.l.bf16 %v1535
        %v2377 = vunpack.c.h.bf16 %v1535
        %v2378 = vunpack.c.l.bf16 %v1536
        %v2379 = vunpack.c.h.bf16 %v1536
        %v2380 = vunpack.c.l.bf16 %v1537
        %v2381 = vunpack.c.h.bf16 %v1537
        %v2382 = vunpack.c.l.bf16 %v1538
        %v2383 = vunpack.c.h.bf16 %v1538
        %v2384 = vunpack.c.l.bf16 %v1539
        %v2385 = vunpack.c.h.bf16 %v1539
        %v2386 = vunpack.c.l.bf16 %v1540
        %v2387 = vunpack.c.h.bf16 %v1540
        %v2388 = vunpack.c.l.bf16 %v1541
        %v2389 = vunpack.c.h.bf16 %v1541
        %v2390 = vunpack.c.l.bf16 %v1542
        %v2391 = vunpack.c.h.bf16 %v1542
        %v2392 = vunpack.c.l.bf16 %v1543
        %v2393 = vunpack.c.h.bf16 %v1543
        %v2394 = vunpack.c.l.bf16 %v1544
        %v2395 = vunpack.c.h.bf16 %v1544
        %v2396 = vunpack.c.l.bf16 %v1545
        %v2397 = vunpack.c.h.bf16 %v1545
        %v2398 = vunpack.c.l.bf16 %v1546
        %v2399 = vunpack.c.h.bf16 %v1546
        %v2400 = vunpack.c.l.bf16 %v1547
        %v2401 = vunpack.c.h.bf16 %v1547
        %v2402 = vunpack.c.l.bf16 %v1548
        %v2403 = vunpack.c.h.bf16 %v1548
        %v2404 = vunpack.c.l.bf16 %v1549
        %v2405 = vunpack.c.h.bf16 %v1549
        %v2406 = vunpack.c.l.bf16 %v1550
        %v2407 = vunpack.c.h.bf16 %v1550
        %v2408 = vunpack.c.l.bf16 %v1551
        %v2409 = vunpack.c.h.bf16 %v1551
        %v2410 = vunpack.c.l.bf16 %v1552
        %v2411 = vunpack.c.h.bf16 %v1552
        %v2412 = vunpack.c.l.bf16 %v1553
        %v2413 = vunpack.c.h.bf16 %v1553
        %v2414 = vunpack.c.l.bf16 %v1554
        %v2415 = vunpack.c.h.bf16 %v1554
        %v2416 = vunpack.c.l.bf16 %v1555
        %v2417 = vunpack.c.h.bf16 %v1555
        %v2418 = vunpack.c.l.bf16 %v1556
        %v2419 = vunpack.c.h.bf16 %v1556
        %v2420 = vunpack.c.l.bf16 %v1557
        %v2421 = vunpack.c.h.bf16 %v1557
        %v2422 = vunpack.c.l.bf16 %v1558
        %v2423 = vunpack.c.h.bf16 %v1558
        %v2424 = vunpack.c.l.bf16 %v1559
        %v2425 = vunpack.c.h.bf16 %v1559
        %v2426 = vunpack.c.l.bf16 %v1560
        %v2427 = vunpack.c.h.bf16 %v1560
        %v2428 = vunpack.c.l.bf16 %v1561
        %v2429 = vunpack.c.h.bf16 %v1561
        %v2430 = vunpack.c.l.bf16 %v1562
        %v2431 = vunpack.c.h.bf16 %v1562
        %v2432 = vunpack.c.l.bf16 %v1563
        %v2433 = vunpack.c.h.bf16 %v1563
        %v2434 = vunpack.c.l.bf16 %v1564
        %v2435 = vunpack.c.h.bf16 %v1564
        %v2436 = vunpack.c.l.bf16 %v1565
        %v2437 = vunpack.c.h.bf16 %v1565
        %v2438 = vunpack.c.l.bf16 %v1566
        %v2439 = vunpack.c.h.bf16 %v1566
        %v2440 = vunpack.c.l.bf16 %v1567
        %v2441 = vunpack.c.h.bf16 %v1567
        %v2442 = vunpack.c.l.bf16 %v1568
        %v2443 = vunpack.c.h.bf16 %v1568
        %v2444 = vunpack.c.l.bf16 %v1569
        %v2445 = vunpack.c.h.bf16 %v1569
        %v2446 = vunpack.c.l.bf16 %v1570
        %v2447 = vunpack.c.h.bf16 %v1570
        %v2448 = vunpack.c.l.bf16 %v1571
        %v2449 = vunpack.c.h.bf16 %v1571
        %v2450 = vunpack.c.l.bf16 %v1572
        %v2451 = vunpack.c.h.bf16 %v1572
        %v2452 = vunpack.c.l.bf16 %v1573
        %v2453 = vunpack.c.h.bf16 %v1573
        %v2454 = vunpack.c.l.bf16 %v1574
        %v2455 = vunpack.c.h.bf16 %v1574
        %v2456 = vunpack.c.l.bf16 %v1575
        %v2457 = vunpack.c.h.bf16 %v1575
        %v2458 = vunpack.c.l.bf16 %v1576
        %v2459 = vunpack.c.h.bf16 %v1576
        %v2460 = vunpack.c.l.bf16 %v1577
        %v2461 = vunpack.c.h.bf16 %v1577
        %v2462 = vunpack.c.l.bf16 %v1578
        %v2463 = vunpack.c.h.bf16 %v1578
        %v2464 = vunpack.c.l.bf16 %v1579
        %v2465 = vunpack.c.h.bf16 %v1579
        %v2466 = vunpack.c.l.bf16 %v1580
        %v2467 = vunpack.c.h.bf16 %v1580
        %v2468 = vunpack.c.l.bf16 %v1581
        %v2469 = vunpack.c.h.bf16 %v1581
        %v2470 = vunpack.c.l.bf16 %v1582
        %v2471 = vunpack.c.h.bf16 %v1582
        %v2472 = vunpack.c.l.bf16 %v1583
        %v2473 = vunpack.c.h.bf16 %v1583
        %v2474 = vunpack.c.l.bf16 %v1584
        %v2475 = vunpack.c.h.bf16 %v1584
        %v2476 = vunpack.c.l.bf16 %v1585
        %v2477 = vunpack.c.h.bf16 %v1585
        %v2478 = vunpack.c.l.bf16 %v1586
        %v2479 = vunpack.c.h.bf16 %v1586
        %v2480 = vunpack.c.l.bf16 %v1587
        %v2481 = vunpack.c.h.bf16 %v1587
        %v2482 = vunpack.c.l.bf16 %v1588
        %v2483 = vunpack.c.h.bf16 %v1588
        %v2484 = vunpack.c.l.bf16 %v1589
        %v2485 = vunpack.c.h.bf16 %v1589
        %v2486 = vunpack.c.l.bf16 %v1590
        %v2487 = vunpack.c.h.bf16 %v1590
        %v2488 = vunpack.c.l.bf16 %v1591
        %v2489 = vunpack.c.h.bf16 %v1591
        %v2490 = vunpack.c.l.bf16 %v1592
        %v2491 = vunpack.c.h.bf16 %v1592
        %v2492 = vunpack.c.l.bf16 %v1593
        %v2493 = vunpack.c.h.bf16 %v1593
        %v2494 = vunpack.c.l.bf16 %v1594
        %v2495 = vunpack.c.h.bf16 %v1594
        %v2496 = vunpack.c.l.bf16 %v1595
        %v2497 = vunpack.c.h.bf16 %v1595
        %v2498 = vunpack.c.l.bf16 %v1596
        %v2499 = vunpack.c.h.bf16 %v1596
        %v2500 = vunpack.c.l.bf16 %v1597
        %v2501 = vunpack.c.h.bf16 %v1597
        %v2502 = vunpack.c.l.bf16 %v1598
        %v2503 = vunpack.c.h.bf16 %v1598
        %v2504 = vunpack.c.l.bf16 %v1599
        %v2505 = vunpack.c.h.bf16 %v1599
        %v2506 = vunpack.c.l.bf16 %v1600
        %v2507 = vunpack.c.h.bf16 %v1600
        %v2508 = vunpack.c.l.bf16 %v1601
        %v2509 = vunpack.c.h.bf16 %v1601
        %v2510 = vunpack.c.l.bf16 %v1602
        %v2511 = vunpack.c.h.bf16 %v1602
        %v2512 = vunpack.c.l.bf16 %v1603
        %v2513 = vunpack.c.h.bf16 %v1603
        %v2514 = vunpack.c.l.bf16 %v1604
        %v2515 = vunpack.c.h.bf16 %v1604
        %v2516 = vunpack.c.l.bf16 %v1605
        %v2517 = vunpack.c.h.bf16 %v1605
        %v2518 = vunpack.c.l.bf16 %v1606
        %v2519 = vunpack.c.h.bf16 %v1606
        %v2520 = vunpack.c.l.bf16 %v1607
        %v2521 = vunpack.c.h.bf16 %v1607
        %v2522 = vunpack.c.l.bf16 %v1608
        %v2523 = vunpack.c.h.bf16 %v1608
        %v2524 = vunpack.c.l.bf16 %v1609
        %v2525 = vunpack.c.h.bf16 %v1609
        %v2526 = vunpack.c.l.bf16 %v1610
        %v2527 = vunpack.c.h.bf16 %v1610
        %v2528 = vunpack.c.l.bf16 %v1611
        %v2529 = vunpack.c.h.bf16 %v1611
        %v2530 = vunpack.c.l.bf16 %v1612
        %v2531 = vunpack.c.h.bf16 %v1612
        %v2532 = vunpack.c.l.bf16 %v1613
        %v2533 = vunpack.c.h.bf16 %v1613
        %v2534 = vunpack.c.l.bf16 %v1614
        %v2535 = vunpack.c.h.bf16 %v1614
        %v2536 = vunpack.c.l.bf16 %v1615
        %v2537 = vunpack.c.h.bf16 %v1615
        %v2538 = vunpack.c.l.bf16 %v1616
        %v2539 = vunpack.c.h.bf16 %v1616
        %v2540 = vunpack.c.l.bf16 %v1617
        %v2541 = vunpack.c.h.bf16 %v1617
        %v2542 = vunpack.c.l.bf16 %v1618
        %v2543 = vunpack.c.h.bf16 %v1618
        %v2544 = vunpack.c.l.bf16 %v1619
        %v2545 = vunpack.c.h.bf16 %v1619
        %v2546 = vunpack.c.l.bf16 %v1620
        %v2547 = vunpack.c.h.bf16 %v1620
        %v2548 = vunpack.c.l.bf16 %v1621
        %v2549 = vunpack.c.h.bf16 %v1621
        %v2550 = vunpack.c.l.bf16 %v1622
        %v2551 = vunpack.c.h.bf16 %v1622
        %v2552 = vunpack.c.l.bf16 %v1623
        %v2553 = vunpack.c.h.bf16 %v1623
        %v2554 = vunpack.c.l.bf16 %v1624
        %v2555 = vunpack.c.h.bf16 %v1624
        %v2556 = vunpack.c.l.bf16 %v1625
        %v2557 = vunpack.c.h.bf16 %v1625
        %v2558 = vunpack.c.l.bf16 %v1626
        %v2559 = vunpack.c.h.bf16 %v1626
        %v2560 = vunpack.c.l.bf16 %v1627
        %v2561 = vunpack.c.h.bf16 %v1627
        %v2562 = vunpack.c.l.bf16 %v1628
        %v2563 = vunpack.c.h.bf16 %v1628
        %v2564 = vunpack.c.l.bf16 %v1629
        %v2565 = vunpack.c.h.bf16 %v1629
        %v2566 = vunpack.c.l.bf16 %v1630
        %v2567 = vunpack.c.h.bf16 %v1630
        %v2568 = vunpack.c.l.bf16 %v1631
        %v2569 = vunpack.c.h.bf16 %v1631
        %v2570 = vunpack.c.l.bf16 %v1632
        %v2571 = vunpack.c.h.bf16 %v1632
        %v2572 = vunpack.c.l.bf16 %v1633
        %v2573 = vunpack.c.h.bf16 %v1633
        %v2574 = vunpack.c.l.bf16 %v1634
        %v2575 = vunpack.c.h.bf16 %v1634
        %v2576 = vunpack.c.l.bf16 %v1635
        %v2577 = vunpack.c.h.bf16 %v1635
        %v2578 = vunpack.c.l.bf16 %v1636
        %v2579 = vunpack.c.h.bf16 %v1636
        %v2580 = vunpack.c.l.bf16 %v1637
        %v2581 = vunpack.c.h.bf16 %v1637
        %v2582 = vunpack.c.l.bf16 %v1638
        %v2583 = vunpack.c.h.bf16 %v1638
        %v2584 = vunpack.c.l.bf16 %v1639
        %v2585 = vunpack.c.h.bf16 %v1639
        %v2586 = vunpack.c.l.bf16 %v1640
        %v2587 = vunpack.c.h.bf16 %v1640
        %v2588 = vunpack.c.l.bf16 %v1641
        %v2589 = vunpack.c.h.bf16 %v1641
        %v2590 = vunpack.c.l.bf16 %v1642
        %v2591 = vunpack.c.h.bf16 %v1642
        %v2592 = vunpack.c.l.bf16 %v1643
        %v2593 = vunpack.c.h.bf16 %v1643
        %v2594 = vunpack.c.l.bf16 %v1644
        %v2595 = vunpack.c.h.bf16 %v1644
        %v2596 = vunpack.c.l.bf16 %v1645
        %v2597 = vunpack.c.h.bf16 %v1645
        %v2598 = vunpack.c.l.bf16 %v1646
        %v2599 = vunpack.c.h.bf16 %v1646
        %v2600 = vunpack.c.l.bf16 %v1647
        %v2601 = vunpack.c.h.bf16 %v1647
        %v2602 = vunpack.c.l.bf16 %v1648
        %v2603 = vunpack.c.h.bf16 %v1648
        %v2604 = vunpack.c.l.bf16 %v1649
        %v2605 = vunpack.c.h.bf16 %v1649
        %v2606 = vunpack.c.l.bf16 %v1650
        %v2607 = vunpack.c.h.bf16 %v1650
        %v2608 = vunpack.c.l.bf16 %v1651
        %v2609 = vunpack.c.h.bf16 %v1651
        %v2610 = vunpack.c.l.bf16 %v1652
        %v2611 = vunpack.c.h.bf16 %v1652
        %v2612 = vunpack.c.l.bf16 %v1653
        %v2613 = vunpack.c.h.bf16 %v1653
        %v2614 = vunpack.c.l.bf16 %v1654
        %v2615 = vunpack.c.h.bf16 %v1654
        %v2616 = vunpack.c.l.bf16 %v1655
        %v2617 = vunpack.c.h.bf16 %v1655
        %v2618 = vunpack.c.l.bf16 %v1656
        %v2619 = vunpack.c.h.bf16 %v1656
        %v2620 = vunpack.c.l.bf16 %v1657
        %v2621 = vunpack.c.h.bf16 %v1657
        %v2622 = vunpack.c.l.bf16 %v1658
        %v2623 = vunpack.c.h.bf16 %v1658
        %v2624 = vunpack.c.l.bf16 %v1659
        %v2625 = vunpack.c.h.bf16 %v1659
        %v2626 = vunpack.c.l.bf16 %v1660
        %v2627 = vunpack.c.h.bf16 %v1660
        %v2628 = vunpack.c.l.bf16 %v1661
        %v2629 = vunpack.c.h.bf16 %v1661
        %v2630 = vunpack.c.l.bf16 %v1662
        %v2631 = vunpack.c.h.bf16 %v1662
        %v2632 = vunpack.c.l.bf16 %v1663
        %v2633 = vunpack.c.h.bf16 %v1663
        %v2634 = vunpack.c.l.bf16 %v1664
        %v2635 = vunpack.c.h.bf16 %v1664
        %v2636 = vunpack.c.l.bf16 %v1665
        %v2637 = vunpack.c.h.bf16 %v1665
        %v2638 = vunpack.c.l.bf16 %v1666
        %v2639 = vunpack.c.h.bf16 %v1666
        %v2640 = vunpack.c.l.bf16 %v1667
        %v2641 = vunpack.c.h.bf16 %v1667
        %v2642 = vunpack.c.l.bf16 %v1668
        %v2643 = vunpack.c.h.bf16 %v1668
        %v2644 = vunpack.c.l.bf16 %v1669
        %v2645 = vunpack.c.h.bf16 %v1669
        %v2646 = vunpack.c.l.bf16 %v1670
        %v2647 = vunpack.c.h.bf16 %v1670
        %v2648 = vunpack.c.l.bf16 %v1671
        %v2649 = vunpack.c.h.bf16 %v1671
        %v2650 = vunpack.c.l.bf16 %v1672
        %v2651 = vunpack.c.h.bf16 %v1672
        %v2652 = vunpack.c.l.bf16 %v1673
        %v2653 = vunpack.c.h.bf16 %v1673
        %v2654 = vunpack.c.l.bf16 %v1674
        %v2655 = vunpack.c.h.bf16 %v1674
        %v2656 = vunpack.c.l.bf16 %v1675
        %v2657 = vunpack.c.h.bf16 %v1675
        %v2658 = vunpack.c.l.bf16 %v1676
        %v2659 = vunpack.c.h.bf16 %v1676
        %v2660 = vunpack.c.l.bf16 %v1677
        %v2661 = vunpack.c.h.bf16 %v1677
        %v2662 = vunpack.c.l.bf16 %v1678
        %v2663 = vunpack.c.h.bf16 %v1678
        %v2664 = vunpack.c.l.bf16 %v1679
        %v2665 = vunpack.c.h.bf16 %v1679
        %v2666 = vunpack.c.l.bf16 %v1680
        %v2667 = vunpack.c.h.bf16 %v1680
        %v2668 = vunpack.c.l.bf16 %v1681
        %v2669 = vunpack.c.h.bf16 %v1681
        %v2670 = vunpack.c.l.bf16 %v1682
        %v2671 = vunpack.c.h.bf16 %v1682
        %v2672 = vunpack.c.l.bf16 %v1683
        %v2673 = vunpack.c.h.bf16 %v1683
        %v2674 = vunpack.c.l.bf16 %v1684
        %v2675 = vunpack.c.h.bf16 %v1684
        %v2676 = vunpack.c.l.bf16 %v1685
        %v2677 = vunpack.c.h.bf16 %v1685
        %v2678 = vunpack.c.l.bf16 %v1686
        %v2679 = vunpack.c.h.bf16 %v1686
        %v2680 = vunpack.c.l.bf16 %v1687
        %v2681 = vunpack.c.h.bf16 %v1687
        %v2682 = vunpack.c.l.bf16 %v1688
        %v2683 = vunpack.c.h.bf16 %v1688
        %v2684 = vunpack.c.l.bf16 %v1689
        %v2685 = vunpack.c.h.bf16 %v1689
        %v2686 = vunpack.c.l.bf16 %v1690
        %v2687 = vunpack.c.h.bf16 %v1690
        %v2688 = vunpack.c.l.bf16 %v1691
        %v2689 = vunpack.c.h.bf16 %v1691
        %v2690 = vunpack.c.l.bf16 %v1692
        %v2691 = vunpack.c.h.bf16 %v1692
        %v2692 = vunpack.c.l.bf16 %v1693
        %v2693 = vunpack.c.h.bf16 %v1693
        %v2694 = vunpack.c.l.bf16 %v1694
        %v2695 = vunpack.c.h.bf16 %v1694
        %v2696 = vunpack.c.l.bf16 %v1695
        %v2697 = vunpack.c.h.bf16 %v1695
        %v2698 = vunpack.c.l.bf16 %v1696
        %v2699 = vunpack.c.h.bf16 %v1696
        %v2700 = vunpack.c.l.bf16 %v1697
        %v2701 = vunpack.c.h.bf16 %v1697
        %v2702 = vunpack.c.l.bf16 %v1698
        %v2703 = vunpack.c.h.bf16 %v1698
        %v2704 = vunpack.c.l.bf16 %v1699
        %v2705 = vunpack.c.h.bf16 %v1699
        %v2706 = vunpack.c.l.bf16 %v1700
        %v2707 = vunpack.c.h.bf16 %v1700
        %v2708 = vunpack.c.l.bf16 %v1701
        %v2709 = vunpack.c.h.bf16 %v1701
        %v2710 = vunpack.c.l.bf16 %v1702
        %v2711 = vunpack.c.h.bf16 %v1702
        %v2712 = vunpack.c.l.bf16 %v1703
        %v2713 = vunpack.c.h.bf16 %v1703
        %v2714 = vunpack.c.l.bf16 %v1704
        %v2715 = vunpack.c.h.bf16 %v1704
        %v2716 = vunpack.c.l.bf16 %v1705
        %v2717 = vunpack.c.h.bf16 %v1705
        %v2718 = vunpack.c.l.bf16 %v1706
        %v2719 = vunpack.c.h.bf16 %v1706
        %v2720 = vunpack.c.l.bf16 %v1707
        %v2721 = vunpack.c.h.bf16 %v1707
        %v2722 = vunpack.c.l.bf16 %v1708
        %v2723 = vunpack.c.h.bf16 %v1708
        %v2724 = vunpack.c.l.bf16 %v1709
        %v2725 = vunpack.c.h.bf16 %v1709
        %v2726 = vunpack.c.l.bf16 %v1710
        %v2727 = vunpack.c.h.bf16 %v1710
        %v2728 = vunpack.c.l.bf16 %v1711
        %v2729 = vunpack.c.h.bf16 %v1711
        %v2730 = vunpack.c.l.bf16 %v1712
        %v2731 = vunpack.c.h.bf16 %v1712
        %v2732 = vunpack.c.l.bf16 %v1713
        %v2733 = vunpack.c.h.bf16 %v1713
        %v2734 = vunpack.c.l.bf16 %v1714
        %v2735 = vunpack.c.h.bf16 %v1714
        %v2736 = vunpack.c.l.bf16 %v1715
        %v2737 = vunpack.c.h.bf16 %v1715
        %v2738 = vunpack.c.l.bf16 %v1716
        %v2739 = vunpack.c.h.bf16 %v1716
        %v2740 = vunpack.c.l.bf16 %v1717
        %v2741 = vunpack.c.h.bf16 %v1717
        %v2742 = vld [vmem:[%s435] sm:$0xff]
        %v2744 = vlaneseq
        %v2745 = vshrl.u32 %v2744, 7
        %v2746 = vsub.s32 0, %v2745
        %v2747 = vrot.slane %v2742, %v2746
        %v2748 = vlaneseq
        %v2749 = vshrl.u32 %v2748, 7
        %v2750 = vsub.s32 1, %v2749
        %v2751 = vrot.slane %v2742, %v2750
        %v2752 = vlaneseq
        %v2753 = vshrl.u32 %v2752, 7
        %v2754 = vsub.s32 2, %v2753
        %v2755 = vrot.slane %v2742, %v2754
        %v2756 = vlaneseq
        %v2757 = vshrl.u32 %v2756, 7
        %v2758 = vsub.s32 3, %v2757
        %v2759 = vrot.slane %v2742, %v2758
        %v2760 = vlaneseq
        %v2761 = vshrl.u32 %v2760, 7
        %v2762 = vsub.s32 4, %v2761
        %v2763 = vrot.slane %v2742, %v2762
        %v2764 = vlaneseq
        %v2765 = vshrl.u32 %v2764, 7
        %v2766 = vsub.s32 5, %v2765
        %v2767 = vrot.slane %v2742, %v2766
        %v2768 = vlaneseq
        %v2769 = vshrl.u32 %v2768, 7
        %v2770 = vsub.s32 6, %v2769
        %v2771 = vrot.slane %v2742, %v2770
        %v2772 = vlaneseq
        %v2773 = vshrl.u32 %v2772, 7
        %v2774 = vsub.s32 7, %v2773
        %v2775 = vrot.slane %v2742, %v2774
        %2784 = vmatprep.subr.mxu0 %v1719
        %2785 = vmatpush1.msra.mxu0 %v1718
        %2786 = vmatprep.subr.mxu0 %v1727
        %2787 = vmatpush1.msra.mxu0 %v1726
        %2788 = vmatprep.subr.mxu0 %v1735
        %2789 = vmatpush1.msra.mxu0 %v1734
        %2790 = vmatprep.subr.mxu0 %v1743
        %2791 = vmatpush1.msra.mxu0 %v1742
        %2792 = vmatprep.subr.mxu0 %v1751
        %2793 = vmatpush1.msra.mxu0 %v1750
        %2794 = vmatprep.subr.mxu0 %v1759
        %2795 = vmatpush1.msra.mxu0 %v1758
        %2796 = vmatprep.subr.mxu0 %v1767
        %2797 = vmatpush1.msra.mxu0 %v1766
        %2798 = vmatprep.subr.mxu0 %v1775
        %2799 = vmatpush1.msra.mxu0 %v1774
        %2800 = vmatprep.subr.mxu0 %v1783
        %2801 = vmatpush1.msra.mxu0 %v1782
        %2802 = vmatprep.subr.mxu0 %v1791
        %2803 = vmatpush1.msra.mxu0 %v1790
        %2804 = vmatprep.subr.mxu0 %v1799
        %2805 = vmatpush1.msra.mxu0 %v1798
        %2806 = vmatprep.subr.mxu0 %v1807
        %2807 = vmatpush1.msra.mxu0 %v1806
        %2808 = vmatprep.subr.mxu0 %v1815
        %2809 = vmatpush1.msra.mxu0 %v1814
        %2810 = vmatprep.subr.mxu0 %v1823
        %2811 = vmatpush1.msra.mxu0 %v1822
        %2812 = vmatprep.subr.mxu0 %v1831
        %2813 = vmatpush1.msra.mxu0 %v1830
        %2814 = vmatprep.subr.mxu0 %v1839
        %2815 = vmatpush1.msra.mxu0 %v1838
        %2816 = vmatprep.subr.mxu0 %v1847
        %2817 = vmatpush1.msra.mxu0 %v1846
        %2818 = vmatprep.subr.mxu0 %v1855
        %2819 = vmatpush1.msra.mxu0 %v1854
        %2820 = vmatprep.subr.mxu0 %v1863
        %2821 = vmatpush1.msra.mxu0 %v1862
        %2822 = vmatprep.subr.mxu0 %v1871
        %2823 = vmatpush1.msra.mxu0 %v1870
        %2824 = vmatprep.subr.mxu0 %v1879
        %2825 = vmatpush1.msra.mxu0 %v1878
        %2826 = vmatprep.subr.mxu0 %v1887
        %2827 = vmatpush1.msra.mxu0 %v1886
        %2828 = vmatprep.subr.mxu0 %v1895
        %2829 = vmatpush1.msra.mxu0 %v1894
        %2830 = vmatprep.subr.mxu0 %v1903
        %2831 = vmatpush1.msra.mxu0 %v1902
        %2832 = vmatprep.subr.mxu0 %v1911
        %2833 = vmatpush1.msra.mxu0 %v1910
        %2834 = vmatprep.subr.mxu0 %v1919
        %2835 = vmatpush1.msra.mxu0 %v1918
        %2836 = vmatprep.subr.mxu0 %v1927
        %2837 = vmatpush1.msra.mxu0 %v1926
        %2838 = vmatprep.subr.mxu0 %v1935
        %2839 = vmatpush1.msra.mxu0 %v1934
        %2840 = vmatprep.subr.mxu0 %v1943
        %2841 = vmatpush1.msra.mxu0 %v1942
        %2842 = vmatprep.subr.mxu0 %v1951
        %2843 = vmatpush1.msra.mxu0 %v1950
        %2844 = vmatprep.subr.mxu0 %v1959
        %2845 = vmatpush1.msra.mxu0 %v1958
        %2846 = vmatprep.subr.mxu0 %v1967
        %2847 = vmatpush1.msra.mxu0 %v1966
        %2848 = vmatprep.mubr.f32.mxu0 %v1199
        %2849 = vmatmul.mubr.f32.gmra.mrb[0].mxu0 %v1198
        %v2850 = vpop.f32.mrb[0].mxu0
        %v2851 = vadd.f32 %v2747, %v2850
        %v2852 = vpop.f32.mrb[0].mxu0
        %v2853 = vadd.f32 %v2751, %v2852
        %2854 = vdwg.mxu0
        %2855 = vmatprep.subr.mxu0 %v1975
        %2856 = vmatpush1.msra.mxu0 %v1974
        %2857 = vmatprep.subr.mxu0 %v1983
        %2858 = vmatpush1.msra.mxu0 %v1982
        %2859 = vmatprep.subr.mxu0 %v1991
        %2860 = vmatpush1.msra.mxu0 %v1990
        %2861 = vmatprep.subr.mxu0 %v1999
        %2862 = vmatpush1.msra.mxu0 %v1998
        %2863 = vmatprep.subr.mxu0 %v2007
        %2864 = vmatpush1.msra.mxu0 %v2006
        %2865 = vmatprep.subr.mxu0 %v2015
        %2866 = vmatpush1.msra.mxu0 %v2014
        %2867 = vmatprep.subr.mxu0 %v2023
        %2868 = vmatpush1.msra.mxu0 %v2022
        %2869 = vmatprep.subr.mxu0 %v2031
        %2870 = vmatpush1.msra.mxu0 %v2030
        %2871 = vmatprep.subr.mxu0 %v2039
        %2872 = vmatpush1.msra.mxu0 %v2038
        %2873 = vmatprep.subr.mxu0 %v2047
        %2874 = vmatpush1.msra.mxu0 %v2046
        %2875 = vmatprep.subr.mxu0 %v2055
        %2876 = vmatpush1.msra.mxu0 %v2054
        %2877 = vmatprep.subr.mxu0 %v2063
        %2878 = vmatpush1.msra.mxu0 %v2062
        %2879 = vmatprep.subr.mxu0 %v2071
        %2880 = vmatpush1.msra.mxu0 %v2070
        %2881 = vmatprep.subr.mxu0 %v2079
        %2882 = vmatpush1.msra.mxu0 %v2078
        %2883 = vmatprep.subr.mxu0 %v2087
        %2884 = vmatpush1.msra.mxu0 %v2086
        %2885 = vmatprep.subr.mxu0 %v2095
        %2886 = vmatpush1.msra.mxu0 %v2094
        %2887 = vmatprep.subr.mxu0 %v2103
        %2888 = vmatpush1.msra.mxu0 %v2102
        %2889 = vmatprep.subr.mxu0 %v2111
        %2890 = vmatpush1.msra.mxu0 %v2110
        %2891 = vmatprep.subr.mxu0 %v2119
        %2892 = vmatpush1.msra.mxu0 %v2118
        %2893 = vmatprep.subr.mxu0 %v2127
        %2894 = vmatpush1.msra.mxu0 %v2126
        %2895 = vmatprep.subr.mxu0 %v2135
        %2896 = vmatpush1.msra.mxu0 %v2134
        %2897 = vmatprep.subr.mxu0 %v2143
        %2898 = vmatpush1.msra.mxu0 %v2142
        %2899 = vmatprep.subr.mxu0 %v2151
        %2900 = vmatpush1.msra.mxu0 %v2150
        %2901 = vmatprep.subr.mxu0 %v2159
        %2902 = vmatpush1.msra.mxu0 %v2158
        %2903 = vmatprep.subr.mxu0 %v2167
        %2904 = vmatpush1.msra.mxu0 %v2166
        %2905 = vmatprep.subr.mxu0 %v2175
        %2906 = vmatpush1.msra.mxu0 %v2174
        %2907 = vmatprep.subr.mxu0 %v2183
        %2908 = vmatpush1.msra.mxu0 %v2182
        %2909 = vmatprep.subr.mxu0 %v2191
        %2910 = vmatpush1.msra.mxu0 %v2190
        %2911 = vmatprep.subr.mxu0 %v2199
        %2912 = vmatpush1.msra.mxu0 %v2198
        %2913 = vmatprep.subr.mxu0 %v2207
        %2914 = vmatpush1.msra.mxu0 %v2206
        %2915 = vmatprep.subr.mxu0 %v2215
        %2916 = vmatpush1.msra.mxu0 %v2214
        %2917 = vmatprep.subr.mxu0 %v2223
        %2918 = vmatpush1.msra.mxu0 %v2222
        %2919 = vmatprep.mubr.f32.mxu0 %v1201
        %2920 = vmatmul.mubr.f32.gmra.mrb[0].mxu0 %v1200
        %v2921 = vpop.f32.mrb[0].mxu0
        %v2922 = vadd.f32 %v2851, %v2921
        %v2923 = vpop.f32.mrb[0].mxu0
        %v2924 = vadd.f32 %v2853, %v2923
        %2925 = vdwg.mxu0
        %2926 = vmatprep.subr.mxu0 %v2231
        %2927 = vmatpush1.msra.mxu0 %v2230
        %2928 = vmatprep.subr.mxu0 %v2239
        %2929 = vmatpush1.msra.mxu0 %v2238
        %2930 = vmatprep.subr.mxu0 %v2247
        %2931 = vmatpush1.msra.mxu0 %v2246
        %2932 = vmatprep.subr.mxu0 %v2255
        %2933 = vmatpush1.msra.mxu0 %v2254
        %2934 = vmatprep.subr.mxu0 %v2263
        %2935 = vmatpush1.msra.mxu0 %v2262
        %2936 = vmatprep.subr.mxu0 %v2271
        %2937 = vmatpush1.msra.mxu0 %v2270
        %2938 = vmatprep.subr.mxu0 %v2279
        %2939 = vmatpush1.msra.mxu0 %v2278
        %2940 = vmatprep.subr.mxu0 %v2287
        %2941 = vmatpush1.msra.mxu0 %v2286
        %2942 = vmatprep.subr.mxu0 %v2295
        %2943 = vmatpush1.msra.mxu0 %v2294
        %2944 = vmatprep.subr.mxu0 %v2303
        %2945 = vmatpush1.msra.mxu0 %v2302
        %2946 = vmatprep.subr.mxu0 %v2311
        %2947 = vmatpush1.msra.mxu0 %v2310
        %2948 = vmatprep.subr.mxu0 %v2319
        %2949 = vmatpush1.msra.mxu0 %v2318
        %2950 = vmatprep.subr.mxu0 %v2327
        %2951 = vmatpush1.msra.mxu0 %v2326
        %2952 = vmatprep.subr.mxu0 %v2335
        %2953 = vmatpush1.msra.mxu0 %v2334
        %2954 = vmatprep.subr.mxu0 %v2343
        %2955 = vmatpush1.msra.mxu0 %v2342
        %2956 = vmatprep.subr.mxu0 %v2351
        %2957 = vmatpush1.msra.mxu0 %v2350
        %2958 = vmatprep.subr.mxu0 %v2359
        %2959 = vmatpush1.msra.mxu0 %v2358
        %2960 = vmatprep.subr.mxu0 %v2367
        %2961 = vmatpush1.msra.mxu0 %v2366
        %2962 = vmatprep.subr.mxu0 %v2375
        %2963 = vmatpush1.msra.mxu0 %v2374
        %2964 = vmatprep.subr.mxu0 %v2383
        %2965 = vmatpush1.msra.mxu0 %v2382
        %2966 = vmatprep.subr.mxu0 %v2391
        %2967 = vmatpush1.msra.mxu0 %v2390
        %2968 = vmatprep.subr.mxu0 %v2399
        %2969 = vmatpush1.msra.mxu0 %v2398
        %2970 = vmatprep.subr.mxu0 %v2407
        %2971 = vmatpush1.msra.mxu0 %v2406
        %2972 = vmatprep.subr.mxu0 %v2415
        %2973 = vmatpush1.msra.mxu0 %v2414
        %2974 = vmatprep.subr.mxu0 %v2423
        %2975 = vmatpush1.msra.mxu0 %v2422
        %2976 = vmatprep.subr.mxu0 %v2431
        %2977 = vmatpush1.msra.mxu0 %v2430
        %2978 = vmatprep.subr.mxu0 %v2439
        %2979 = vmatpush1.msra.mxu0 %v2438
        %2980 = vmatprep.subr.mxu0 %v2447
        %2981 = vmatpush1.msra.mxu0 %v2446
        %2982 = vmatprep.subr.mxu0 %v2455
        %2983 = vmatpush1.msra.mxu0 %v2454
        %2984 = vmatprep.subr.mxu0 %v2463
        %2985 = vmatpush1.msra.mxu0 %v2462
        %2986 = vmatprep.subr.mxu0 %v2471
        %2987 = vmatpush1.msra.mxu0 %v2470
        %2988 = vmatprep.subr.mxu0 %v2479
        %2989 = vmatpush1.msra.mxu0 %v2478
        %2990 = vmatprep.mubr.f32.mxu0 %v1203
        %2991 = vmatmul.mubr.f32.gmra.mrb[0].mxu0 %v1202
        %v2992 = vpop.f32.mrb[0].mxu0
        %v2993 = vadd.f32 %v2922, %v2992
        %v2994 = vpop.f32.mrb[0].mxu0
        %v2995 = vadd.f32 %v2924, %v2994
        %2996 = vdwg.mxu0
        %2997 = vmatprep.subr.mxu0 %v2487
        %2998 = vmatpush1.msra.mxu0 %v2486
        %2999 = vmatprep.subr.mxu0 %v2495
        %3000 = vmatpush1.msra.mxu0 %v2494
        %3001 = vmatprep.subr.mxu0 %v2503
        %3002 = vmatpush1.msra.mxu0 %v2502
        %3003 = vmatprep.subr.mxu0 %v2511
        %3004 = vmatpush1.msra.mxu0 %v2510
        %3005 = vmatprep.subr.mxu0 %v2519
        %3006 = vmatpush1.msra.mxu0 %v2518
        %3007 = vmatprep.subr.mxu0 %v2527
        %3008 = vmatpush1.msra.mxu0 %v2526
        %3009 = vmatprep.subr.mxu0 %v2535
        %3010 = vmatpush1.msra.mxu0 %v2534
        %3011 = vmatprep.subr.mxu0 %v2543
        %3012 = vmatpush1.msra.mxu0 %v2542
        %3013 = vmatprep.subr.mxu0 %v2551
        %3014 = vmatpush1.msra.mxu0 %v2550
        %3015 = vmatprep.subr.mxu0 %v2559
        %3016 = vmatpush1.msra.mxu0 %v2558
        %3017 = vmatprep.subr.mxu0 %v2567
        %3018 = vmatpush1.msra.mxu0 %v2566
        %3019 = vmatprep.subr.mxu0 %v2575
        %3020 = vmatpush1.msra.mxu0 %v2574
        %3021 = vmatprep.subr.mxu0 %v2583
        %3022 = vmatpush1.msra.mxu0 %v2582
        %3023 = vmatprep.subr.mxu0 %v2591
        %3024 = vmatpush1.msra.mxu0 %v2590
        %3025 = vmatprep.subr.mxu0 %v2599
        %3026 = vmatpush1.msra.mxu0 %v2598
        %3027 = vmatprep.subr.mxu0 %v2607
        %3028 = vmatpush1.msra.mxu0 %v2606
        %3029 = vmatprep.subr.mxu0 %v2615
        %3030 = vmatpush1.msra.mxu0 %v2614
        %3031 = vmatprep.subr.mxu0 %v2623
        %3032 = vmatpush1.msra.mxu0 %v2622
        %3033 = vmatprep.subr.mxu0 %v2631
        %3034 = vmatpush1.msra.mxu0 %v2630
        %3035 = vmatprep.subr.mxu0 %v2639
        %3036 = vmatpush1.msra.mxu0 %v2638
        %3037 = vmatprep.subr.mxu0 %v2647
        %3038 = vmatpush1.msra.mxu0 %v2646
        %3039 = vmatprep.subr.mxu0 %v2655
        %3040 = vmatpush1.msra.mxu0 %v2654
        %3041 = vmatprep.subr.mxu0 %v2663
        %3042 = vmatpush1.msra.mxu0 %v2662
        %3043 = vmatprep.subr.mxu0 %v2671
        %3044 = vmatpush1.msra.mxu0 %v2670
        %3045 = vmatprep.subr.mxu0 %v2679
        %3046 = vmatpush1.msra.mxu0 %v2678
        %3047 = vmatprep.subr.mxu0 %v2687
        %3048 = vmatpush1.msra.mxu0 %v2686
        %3049 = vmatprep.subr.mxu0 %v2695
        %3050 = vmatpush1.msra.mxu0 %v2694
        %3051 = vmatprep.subr.mxu0 %v2703
        %3052 = vmatpush1.msra.mxu0 %v2702
        %3053 = vmatprep.subr.mxu0 %v2711
        %3054 = vmatpush1.msra.mxu0 %v2710
        %3055 = vmatprep.subr.mxu0 %v2719
        %3056 = vmatpush1.msra.mxu0 %v2718
        %3057 = vmatprep.subr.mxu0 %v2727
        %3058 = vmatpush1.msra.mxu0 %v2726
        %3059 = vmatprep.subr.mxu0 %v2735
        %3060 = vmatpush1.msra.mxu0 %v2734
        %3061 = vmatprep.mubr.f32.mxu0 %v1205
        %3062 = vmatmul.mubr.f32.gmra.mrb[0].mxu0 %v1204
        %v3063 = vpop.f32.mrb[0].mxu0
        %v3064 = vadd.f32 %v2993, %v3063
        %v3065 = vpop.f32.mrb[0].mxu0
        %v3066 = vadd.f32 %v2995, %v3065
        %3067 = vdwg.mxu0
        %3068 = vmatprep.subr.mxu0 %v1721
        %3069 = vmatpush1.msra.mxu0 %v1720
        %3070 = vmatprep.subr.mxu0 %v1729
        %3071 = vmatpush1.msra.mxu0 %v1728
        %3072 = vmatprep.subr.mxu0 %v1737
        %3073 = vmatpush1.msra.mxu0 %v1736
        %3074 = vmatprep.subr.mxu0 %v1745
        %3075 = vmatpush1.msra.mxu0 %v1744
        %3076 = vmatprep.subr.mxu0 %v1753
        %3077 = vmatpush1.msra.mxu0 %v1752
        %3078 = vmatprep.subr.mxu0 %v1761
        %3079 = vmatpush1.msra.mxu0 %v1760
        %3080 = vmatprep.subr.mxu0 %v1769
        %3081 = vmatpush1.msra.mxu0 %v1768
        %3082 = vmatprep.subr.mxu0 %v1777
        %3083 = vmatpush1.msra.mxu0 %v1776
        %3084 = vmatprep.subr.mxu0 %v1785
        %3085 = vmatpush1.msra.mxu0 %v1784
        %3086 = vmatprep.subr.mxu0 %v1793
        %3087 = vmatpush1.msra.mxu0 %v1792
        %3088 = vmatprep.subr.mxu0 %v1801
        %3089 = vmatpush1.msra.mxu0 %v1800
        %3090 = vmatprep.subr.mxu0 %v1809
        %3091 = vmatpush1.msra.mxu0 %v1808
        %3092 = vmatprep.subr.mxu0 %v1817
        %3093 = vmatpush1.msra.mxu0 %v1816
        %3094 = vmatprep.subr.mxu0 %v1825
        %3095 = vmatpush1.msra.mxu0 %v1824
        %3096 = vmatprep.subr.mxu0 %v1833
        %3097 = vmatpush1.msra.mxu0 %v1832
        %3098 = vmatprep.subr.mxu0 %v1841
        %3099 = vmatpush1.msra.mxu0 %v1840
        %3100 = vmatprep.subr.mxu0 %v1849
        %3101 = vmatpush1.msra.mxu0 %v1848
        %3102 = vmatprep.subr.mxu0 %v1857
        %3103 = vmatpush1.msra.mxu0 %v1856
        %3104 = vmatprep.subr.mxu0 %v1865
        %3105 = vmatpush1.msra.mxu0 %v1864
        %3106 = vmatprep.subr.mxu0 %v1873
        %3107 = vmatpush1.msra.mxu0 %v1872
        %3108 = vmatprep.subr.mxu0 %v1881
        %3109 = vmatpush1.msra.mxu0 %v1880
        %3110 = vmatprep.subr.mxu0 %v1889
        %3111 = vmatpush1.msra.mxu0 %v1888
        %3112 = vmatprep.subr.mxu0 %v1897
        %3113 = vmatpush1.msra.mxu0 %v1896
        %3114 = vmatprep.subr.mxu0 %v1905
        %3115 = vmatpush1.msra.mxu0 %v1904
        %3116 = vmatprep.subr.mxu0 %v1913
        %3117 = vmatpush1.msra.mxu0 %v1912
        %3118 = vmatprep.subr.mxu0 %v1921
        %3119 = vmatpush1.msra.mxu0 %v1920
        %3120 = vmatprep.subr.mxu0 %v1929
        %3121 = vmatpush1.msra.mxu0 %v1928
        %3122 = vmatprep.subr.mxu0 %v1937
        %3123 = vmatpush1.msra.mxu0 %v1936
        %3124 = vmatprep.subr.mxu0 %v1945
        %3125 = vmatpush1.msra.mxu0 %v1944
        %3126 = vmatprep.subr.mxu0 %v1953
        %3127 = vmatpush1.msra.mxu0 %v1952
        %3128 = vmatprep.subr.mxu0 %v1961
        %3129 = vmatpush1.msra.mxu0 %v1960
        %3130 = vmatprep.subr.mxu0 %v1969
        %3131 = vmatpush1.msra.mxu0 %v1968
        %3132 = vmatprep.mubr.f32.mxu0 %v1199
        %3133 = vmatmul.mubr.f32.gmra.mrb[0].mxu0 %v1198
        %v3134 = vpop.f32.mrb[0].mxu0
        %v3135 = vadd.f32 %v2755, %v3134
        %v3136 = vpop.f32.mrb[0].mxu0
        %v3137 = vadd.f32 %v2759, %v3136
        %3138 = vdwg.mxu0
        %3139 = vmatprep.subr.mxu0 %v1977
        %3140 = vmatpush1.msra.mxu0 %v1976
        %3141 = vmatprep.subr.mxu0 %v1985
        %3142 = vmatpush1.msra.mxu0 %v1984
        %3143 = vmatprep.subr.mxu0 %v1993
        %3144 = vmatpush1.msra.mxu0 %v1992
        %3145 = vmatprep.subr.mxu0 %v2001
        %3146 = vmatpush1.msra.mxu0 %v2000
        %3147 = vmatprep.subr.mxu0 %v2009
        %3148 = vmatpush1.msra.mxu0 %v2008
        %3149 = vmatprep.subr.mxu0 %v2017
        %3150 = vmatpush1.msra.mxu0 %v2016
        %3151 = vmatprep.subr.mxu0 %v2025
        %3152 = vmatpush1.msra.mxu0 %v2024
        %3153 = vmatprep.subr.mxu0 %v2033
        %3154 = vmatpush1.msra.mxu0 %v2032
        %3155 = vmatprep.subr.mxu0 %v2041
        %3156 = vmatpush1.msra.mxu0 %v2040
        %3157 = vmatprep.subr.mxu0 %v2049
        %3158 = vmatpush1.msra.mxu0 %v2048
        %3159 = vmatprep.subr.mxu0 %v2057
        %3160 = vmatpush1.msra.mxu0 %v2056
        %3161 = vmatprep.subr.mxu0 %v2065
        %3162 = vmatpush1.msra.mxu0 %v2064
        %3163 = vmatprep.subr.mxu0 %v2073
        %3164 = vmatpush1.msra.mxu0 %v2072
        %3165 = vmatprep.subr.mxu0 %v2081
        %3166 = vmatpush1.msra.mxu0 %v2080
        %3167 = vmatprep.subr.mxu0 %v2089
        %3168 = vmatpush1.msra.mxu0 %v2088
        %3169 = vmatprep.subr.mxu0 %v2097
        %3170 = vmatpush1.msra.mxu0 %v2096
        %3171 = vmatprep.subr.mxu0 %v2105
        %3172 = vmatpush1.msra.mxu0 %v2104
        %3173 = vmatprep.subr.mxu0 %v2113
        %3174 = vmatpush1.msra.mxu0 %v2112
        %3175 = vmatprep.subr.mxu0 %v2121
        %3176 = vmatpush1.msra.mxu0 %v2120
        %3177 = vmatprep.subr.mxu0 %v2129
        %3178 = vmatpush1.msra.mxu0 %v2128
        %3179 = vmatprep.subr.mxu0 %v2137
        %3180 = vmatpush1.msra.mxu0 %v2136
        %3181 = vmatprep.subr.mxu0 %v2145
        %3182 = vmatpush1.msra.mxu0 %v2144
        %3183 = vmatprep.subr.mxu0 %v2153
        %3184 = vmatpush1.msra.mxu0 %v2152
        %3185 = vmatprep.subr.mxu0 %v2161
        %3186 = vmatpush1.msra.mxu0 %v2160
        %3187 = vmatprep.subr.mxu0 %v2169
        %3188 = vmatpush1.msra.mxu0 %v2168
        %3189 = vmatprep.subr.mxu0 %v2177
        %3190 = vmatpush1.msra.mxu0 %v2176
        %3191 = vmatprep.subr.mxu0 %v2185
        %3192 = vmatpush1.msra.mxu0 %v2184
        %3193 = vmatprep.subr.mxu0 %v2193
        %3194 = vmatpush1.msra.mxu0 %v2192
        %3195 = vmatprep.subr.mxu0 %v2201
        %3196 = vmatpush1.msra.mxu0 %v2200
        %3197 = vmatprep.subr.mxu0 %v2209
        %3198 = vmatpush1.msra.mxu0 %v2208
        %3199 = vmatprep.subr.mxu0 %v2217
        %3200 = vmatpush1.msra.mxu0 %v2216
        %3201 = vmatprep.subr.mxu0 %v2225
        %3202 = vmatpush1.msra.mxu0 %v2224
        %3203 = vmatprep.mubr.f32.mxu0 %v1201
        %3204 = vmatmul.mubr.f32.gmra.mrb[0].mxu0 %v1200
        %v3205 = vpop.f32.mrb[0].mxu0
        %v3206 = vadd.f32 %v3135, %v3205
        %v3207 = vpop.f32.mrb[0].mxu0
        %v3208 = vadd.f32 %v3137, %v3207
        %3209 = vdwg.mxu0
        %3210 = vmatprep.subr.mxu0 %v2233
        %3211 = vmatpush1.msra.mxu0 %v2232
        %3212 = vmatprep.subr.mxu0 %v2241
        %3213 = vmatpush1.msra.mxu0 %v2240
        %3214 = vmatprep.subr.mxu0 %v2249
        %3215 = vmatpush1.msra.mxu0 %v2248
        %3216 = vmatprep.subr.mxu0 %v2257
        %3217 = vmatpush1.msra.mxu0 %v2256
        %3218 = vmatprep.subr.mxu0 %v2265
        %3219 = vmatpush1.msra.mxu0 %v2264
        %3220 = vmatprep.subr.mxu0 %v2273
        %3221 = vmatpush1.msra.mxu0 %v2272
        %3222 = vmatprep.subr.mxu0 %v2281
        %3223 = vmatpush1.msra.mxu0 %v2280
        %3224 = vmatprep.subr.mxu0 %v2289
        %3225 = vmatpush1.msra.mxu0 %v2288
        %3226 = vmatprep.subr.mxu0 %v2297
        %3227 = vmatpush1.msra.mxu0 %v2296
        %3228 = vmatprep.subr.mxu0 %v2305
        %3229 = vmatpush1.msra.mxu0 %v2304
        %3230 = vmatprep.subr.mxu0 %v2313
        %3231 = vmatpush1.msra.mxu0 %v2312
        %3232 = vmatprep.subr.mxu0 %v2321
        %3233 = vmatpush1.msra.mxu0 %v2320
        %3234 = vmatprep.subr.mxu0 %v2329
        %3235 = vmatpush1.msra.mxu0 %v2328
        %3236 = vmatprep.subr.mxu0 %v2337
        %3237 = vmatpush1.msra.mxu0 %v2336
        %3238 = vmatprep.subr.mxu0 %v2345
        %3239 = vmatpush1.msra.mxu0 %v2344
        %3240 = vmatprep.subr.mxu0 %v2353
        %3241 = vmatpush1.msra.mxu0 %v2352
        %3242 = vmatprep.subr.mxu0 %v2361
        %3243 = vmatpush1.msra.mxu0 %v2360
        %3244 = vmatprep.subr.mxu0 %v2369
        %3245 = vmatpush1.msra.mxu0 %v2368
        %3246 = vmatprep.subr.mxu0 %v2377
        %3247 = vmatpush1.msra.mxu0 %v2376
        %3248 = vmatprep.subr.mxu0 %v2385
        %3249 = vmatpush1.msra.mxu0 %v2384
        %3250 = vmatprep.subr.mxu0 %v2393
        %3251 = vmatpush1.msra.mxu0 %v2392
        %3252 = vmatprep.subr.mxu0 %v2401
        %3253 = vmatpush1.msra.mxu0 %v2400
        %3254 = vmatprep.subr.mxu0 %v2409
        %3255 = vmatpush1.msra.mxu0 %v2408
        %3256 = vmatprep.subr.mxu0 %v2417
        %3257 = vmatpush1.msra.mxu0 %v2416
        %3258 = vmatprep.subr.mxu0 %v2425
        %3259 = vmatpush1.msra.mxu0 %v2424
        %3260 = vmatprep.subr.mxu0 %v2433
        %3261 = vmatpush1.msra.mxu0 %v2432
        %3262 = vmatprep.subr.mxu0 %v2441
        %3263 = vmatpush1.msra.mxu0 %v2440
        %3264 = vmatprep.subr.mxu0 %v2449
        %3265 = vmatpush1.msra.mxu0 %v2448
        %3266 = vmatprep.subr.mxu0 %v2457
        %3267 = vmatpush1.msra.mxu0 %v2456
        %3268 = vmatprep.subr.mxu0 %v2465
        %3269 = vmatpush1.msra.mxu0 %v2464
        %3270 = vmatprep.subr.mxu0 %v2473
        %3271 = vmatpush1.msra.mxu0 %v2472
        %3272 = vmatprep.subr.mxu0 %v2481
        %3273 = vmatpush1.msra.mxu0 %v2480
        %3274 = vmatprep.mubr.f32.mxu0 %v1203
        %3275 = vmatmul.mubr.f32.gmra.mrb[0].mxu0 %v1202
        %v3276 = vpop.f32.mrb[0].mxu0
        %v3277 = vadd.f32 %v3206, %v3276
        %v3278 = vpop.f32.mrb[0].mxu0
        %v3279 = vadd.f32 %v3208, %v3278
        %3280 = vdwg.mxu0
        %3281 = vmatprep.subr.mxu0 %v2489
        %3282 = vmatpush1.msra.mxu0 %v2488
        %3283 = vmatprep.subr.mxu0 %v2497
        %3284 = vmatpush1.msra.mxu0 %v2496
        %3285 = vmatprep.subr.mxu0 %v2505
        %3286 = vmatpush1.msra.mxu0 %v2504
        %3287 = vmatprep.subr.mxu0 %v2513
        %3288 = vmatpush1.msra.mxu0 %v2512
        %3289 = vmatprep.subr.mxu0 %v2521
        %3290 = vmatpush1.msra.mxu0 %v2520
        %3291 = vmatprep.subr.mxu0 %v2529
        %3292 = vmatpush1.msra.mxu0 %v2528
        %3293 = vmatprep.subr.mxu0 %v2537
        %3294 = vmatpush1.msra.mxu0 %v2536
        %3295 = vmatprep.subr.mxu0 %v2545
        %3296 = vmatpush1.msra.mxu0 %v2544
        %3297 = vmatprep.subr.mxu0 %v2553
        %3298 = vmatpush1.msra.mxu0 %v2552
        %3299 = vmatprep.subr.mxu0 %v2561
        %3300 = vmatpush1.msra.mxu0 %v2560
        %3301 = vmatprep.subr.mxu0 %v2569
        %3302 = vmatpush1.msra.mxu0 %v2568
        %3303 = vmatprep.subr.mxu0 %v2577
        %3304 = vmatpush1.msra.mxu0 %v2576
        %3305 = vmatprep.subr.mxu0 %v2585
        %3306 = vmatpush1.msra.mxu0 %v2584
        %3307 = vmatprep.subr.mxu0 %v2593
        %3308 = vmatpush1.msra.mxu0 %v2592
        %3309 = vmatprep.subr.mxu0 %v2601
        %3310 = vmatpush1.msra.mxu0 %v2600
        %3311 = vmatprep.subr.mxu0 %v2609
        %3312 = vmatpush1.msra.mxu0 %v2608
        %3313 = vmatprep.subr.mxu0 %v2617
        %3314 = vmatpush1.msra.mxu0 %v2616
        %3315 = vmatprep.subr.mxu0 %v2625
        %3316 = vmatpush1.msra.mxu0 %v2624
        %3317 = vmatprep.subr.mxu0 %v2633
        %3318 = vmatpush1.msra.mxu0 %v2632
        %3319 = vmatprep.subr.mxu0 %v2641
        %3320 = vmatpush1.msra.mxu0 %v2640
        %3321 = vmatprep.subr.mxu0 %v2649
        %3322 = vmatpush1.msra.mxu0 %v2648
        %3323 = vmatprep.subr.mxu0 %v2657
        %3324 = vmatpush1.msra.mxu0 %v2656
        %3325 = vmatprep.subr.mxu0 %v2665
        %3326 = vmatpush1.msra.mxu0 %v2664
        %3327 = vmatprep.subr.mxu0 %v2673
        %3328 = vmatpush1.msra.mxu0 %v2672
        %3329 = vmatprep.subr.mxu0 %v2681
        %3330 = vmatpush1.msra.mxu0 %v2680
        %3331 = vmatprep.subr.mxu0 %v2689
        %3332 = vmatpush1.msra.mxu0 %v2688
        %3333 = vmatprep.subr.mxu0 %v2697
        %3334 = vmatpush1.msra.mxu0 %v2696
        %3335 = vmatprep.subr.mxu0 %v2705
        %3336 = vmatpush1.msra.mxu0 %v2704
        %3337 = vmatprep.subr.mxu0 %v2713
        %3338 = vmatpush1.msra.mxu0 %v2712
        %3339 = vmatprep.subr.mxu0 %v2721
        %3340 = vmatpush1.msra.mxu0 %v2720
        %3341 = vmatprep.subr.mxu0 %v2729
        %3342 = vmatpush1.msra.mxu0 %v2728
        %3343 = vmatprep.subr.mxu0 %v2737
        %3344 = vmatpush1.msra.mxu0 %v2736
        %3345 = vmatprep.mubr.f32.mxu0 %v1205
        %3346 = vmatmul.mubr.f32.gmra.mrb[0].mxu0 %v1204
        %v3347 = vpop.f32.mrb[0].mxu0
        %v3348 = vadd.f32 %v3277, %v3347
        %v3349 = vpop.f32.mrb[0].mxu0
        %v3350 = vadd.f32 %v3279, %v3349
        %3351 = vdwg.mxu0
        %3352 = vmatprep.subr.mxu0 %v1723
        %3353 = vmatpush1.msra.mxu0 %v1722
        %3354 = vmatprep.subr.mxu0 %v1731
        %3355 = vmatpush1.msra.mxu0 %v1730
        %3356 = vmatprep.subr.mxu0 %v1739
        %3357 = vmatpush1.msra.mxu0 %v1738
        %3358 = vmatprep.subr.mxu0 %v1747
        %3359 = vmatpush1.msra.mxu0 %v1746
        %3360 = vmatprep.subr.mxu0 %v1755
        %3361 = vmatpush1.msra.mxu0 %v1754
        %3362 = vmatprep.subr.mxu0 %v1763
        %3363 = vmatpush1.msra.mxu0 %v1762
        %3364 = vmatprep.subr.mxu0 %v1771
        %3365 = vmatpush1.msra.mxu0 %v1770
        %3366 = vmatprep.subr.mxu0 %v1779
        %3367 = vmatpush1.msra.mxu0 %v1778
        %3368 = vmatprep.subr.mxu0 %v1787
        %3369 = vmatpush1.msra.mxu0 %v1786
        %3370 = vmatprep.subr.mxu0 %v1795
        %3371 = vmatpush1.msra.mxu0 %v1794
        %3372 = vmatprep.subr.mxu0 %v1803
        %3373 = vmatpush1.msra.mxu0 %v1802
        %3374 = vmatprep.subr.mxu0 %v1811
        %3375 = vmatpush1.msra.mxu0 %v1810
        %3376 = vmatprep.subr.mxu0 %v1819
        %3377 = vmatpush1.msra.mxu0 %v1818
        %3378 = vmatprep.subr.mxu0 %v1827
        %3379 = vmatpush1.msra.mxu0 %v1826
        %3380 = vmatprep.subr.mxu0 %v1835
        %3381 = vmatpush1.msra.mxu0 %v1834
        %3382 = vmatprep.subr.mxu0 %v1843
        %3383 = vmatpush1.msra.mxu0 %v1842
        %3384 = vmatprep.subr.mxu0 %v1851
        %3385 = vmatpush1.msra.mxu0 %v1850
        %3386 = vmatprep.subr.mxu0 %v1859
        %3387 = vmatpush1.msra.mxu0 %v1858
        %3388 = vmatprep.subr.mxu0 %v1867
        %3389 = vmatpush1.msra.mxu0 %v1866
        %3390 = vmatprep.subr.mxu0 %v1875
        %3391 = vmatpush1.msra.mxu0 %v1874
        %3392 = vmatprep.subr.mxu0 %v1883
        %3393 = vmatpush1.msra.mxu0 %v1882
        %3394 = vmatprep.subr.mxu0 %v1891
        %3395 = vmatpush1.msra.mxu0 %v1890
        %3396 = vmatprep.subr.mxu0 %v1899
        %3397 = vmatpush1.msra.mxu0 %v1898
        %3398 = vmatprep.subr.mxu0 %v1907
        %3399 = vmatpush1.msra.mxu0 %v1906
        %3400 = vmatprep.subr.mxu0 %v1915
        %3401 = vmatpush1.msra.mxu0 %v1914
        %3402 = vmatprep.subr.mxu0 %v1923
        %3403 = vmatpush1.msra.mxu0 %v1922
        %3404 = vmatprep.subr.mxu0 %v1931
        %3405 = vmatpush1.msra.mxu0 %v1930
        %3406 = vmatprep.subr.mxu0 %v1939
        %3407 = vmatpush1.msra.mxu0 %v1938
        %3408 = vmatprep.subr.mxu0 %v1947
        %3409 = vmatpush1.msra.mxu0 %v1946
        %3410 = vmatprep.subr.mxu0 %v1955
        %3411 = vmatpush1.msra.mxu0 %v1954
        %3412 = vmatprep.subr.mxu0 %v1963
        %3413 = vmatpush1.msra.mxu0 %v1962
        %3414 = vmatprep.subr.mxu0 %v1971
        %3415 = vmatpush1.msra.mxu0 %v1970
        %3416 = vmatprep.mubr.f32.mxu0 %v1199
        %3417 = vmatmul.mubr.f32.gmra.mrb[0].mxu0 %v1198
        %v3418 = vpop.f32.mrb[0].mxu0
        %v3419 = vadd.f32 %v2763, %v3418
        %v3420 = vpop.f32.mrb[0].mxu0
        %v3421 = vadd.f32 %v2767, %v3420
        %3422 = vdwg.mxu0
        %3423 = vmatprep.subr.mxu0 %v1979
        %3424 = vmatpush1.msra.mxu0 %v1978
        %3425 = vmatprep.subr.mxu0 %v1987
        %3426 = vmatpush1.msra.mxu0 %v1986
        %3427 = vmatprep.subr.mxu0 %v1995
        %3428 = vmatpush1.msra.mxu0 %v1994
        %3429 = vmatprep.subr.mxu0 %v2003
        %3430 = vmatpush1.msra.mxu0 %v2002
        %3431 = vmatprep.subr.mxu0 %v2011
        %3432 = vmatpush1.msra.mxu0 %v2010
        %3433 = vmatprep.subr.mxu0 %v2019
        %3434 = vmatpush1.msra.mxu0 %v2018
        %3435 = vmatprep.subr.mxu0 %v2027
        %3436 = vmatpush1.msra.mxu0 %v2026
        %3437 = vmatprep.subr.mxu0 %v2035
        %3438 = vmatpush1.msra.mxu0 %v2034
        %3439 = vmatprep.subr.mxu0 %v2043
        %3440 = vmatpush1.msra.mxu0 %v2042
        %3441 = vmatprep.subr.mxu0 %v2051
        %3442 = vmatpush1.msra.mxu0 %v2050
        %3443 = vmatprep.subr.mxu0 %v2059
        %3444 = vmatpush1.msra.mxu0 %v2058
        %3445 = vmatprep.subr.mxu0 %v2067
        %3446 = vmatpush1.msra.mxu0 %v2066
        %3447 = vmatprep.subr.mxu0 %v2075
        %3448 = vmatpush1.msra.mxu0 %v2074
        %3449 = vmatprep.subr.mxu0 %v2083
        %3450 = vmatpush1.msra.mxu0 %v2082
        %3451 = vmatprep.subr.mxu0 %v2091
        %3452 = vmatpush1.msra.mxu0 %v2090
        %3453 = vmatprep.subr.mxu0 %v2099
        %3454 = vmatpush1.msra.mxu0 %v2098
        %3455 = vmatprep.subr.mxu0 %v2107
        %3456 = vmatpush1.msra.mxu0 %v2106
        %3457 = vmatprep.subr.mxu0 %v2115
        %3458 = vmatpush1.msra.mxu0 %v2114
        %3459 = vmatprep.subr.mxu0 %v2123
        %3460 = vmatpush1.msra.mxu0 %v2122
        %3461 = vmatprep.subr.mxu0 %v2131
        %3462 = vmatpush1.msra.mxu0 %v2130
        %3463 = vmatprep.subr.mxu0 %v2139
        %3464 = vmatpush1.msra.mxu0 %v2138
        %3465 = vmatprep.subr.mxu0 %v2147
        %3466 = vmatpush1.msra.mxu0 %v2146
        %3467 = vmatprep.subr.mxu0 %v2155
        %3468 = vmatpush1.msra.mxu0 %v2154
        %3469 = vmatprep.subr.mxu0 %v2163
        %3470 = vmatpush1.msra.mxu0 %v2162
        %3471 = vmatprep.subr.mxu0 %v2171
        %3472 = vmatpush1.msra.mxu0 %v2170
        %3473 = vmatprep.subr.mxu0 %v2179
        %3474 = vmatpush1.msra.mxu0 %v2178
        %3475 = vmatprep.subr.mxu0 %v2187
        %3476 = vmatpush1.msra.mxu0 %v2186
        %3477 = vmatprep.subr.mxu0 %v2195
        %3478 = vmatpush1.msra.mxu0 %v2194
        %3479 = vmatprep.subr.mxu0 %v2203
        %3480 = vmatpush1.msra.mxu0 %v2202
        %3481 = vmatprep.subr.mxu0 %v2211
        %3482 = vmatpush1.msra.mxu0 %v2210
        %3483 = vmatprep.subr.mxu0 %v2219
        %3484 = vmatpush1.msra.mxu0 %v2218
        %3485 = vmatprep.subr.mxu0 %v2227
        %3486 = vmatpush1.msra.mxu0 %v2226
        %3487 = vmatprep.mubr.f32.mxu0 %v1201
        %3488 = vmatmul.mubr.f32.gmra.mrb[0].mxu0 %v1200
        %v3489 = vpop.f32.mrb[0].mxu0
        %v3490 = vadd.f32 %v3419, %v3489
        %v3491 = vpop.f32.mrb[0].mxu0
        %v3492 = vadd.f32 %v3421, %v3491
        %3493 = vdwg.mxu0
        %3494 = vmatprep.subr.mxu0 %v2235
        %3495 = vmatpush1.msra.mxu0 %v2234
        %3496 = vmatprep.subr.mxu0 %v2243
        %3497 = vmatpush1.msra.mxu0 %v2242
        %3498 = vmatprep.subr.mxu0 %v2251
        %3499 = vmatpush1.msra.mxu0 %v2250
        %3500 = vmatprep.subr.mxu0 %v2259
        %3501 = vmatpush1.msra.mxu0 %v2258
        %3502 = vmatprep.subr.mxu0 %v2267
        %3503 = vmatpush1.msra.mxu0 %v2266
        %3504 = vmatprep.subr.mxu0 %v2275
        %3505 = vmatpush1.msra.mxu0 %v2274
        %3506 = vmatprep.subr.mxu0 %v2283
        %3507 = vmatpush1.msra.mxu0 %v2282
        %3508 = vmatprep.subr.mxu0 %v2291
        %3509 = vmatpush1.msra.mxu0 %v2290
        %3510 = vmatprep.subr.mxu0 %v2299
        %3511 = vmatpush1.msra.mxu0 %v2298
        %3512 = vmatprep.subr.mxu0 %v2307
        %3513 = vmatpush1.msra.mxu0 %v2306
        %3514 = vmatprep.subr.mxu0 %v2315
        %3515 = vmatpush1.msra.mxu0 %v2314
        %3516 = vmatprep.subr.mxu0 %v2323
        %3517 = vmatpush1.msra.mxu0 %v2322
        %3518 = vmatprep.subr.mxu0 %v2331
        %3519 = vmatpush1.msra.mxu0 %v2330
        %3520 = vmatprep.subr.mxu0 %v2339
        %3521 = vmatpush1.msra.mxu0 %v2338
        %3522 = vmatprep.subr.mxu0 %v2347
        %3523 = vmatpush1.msra.mxu0 %v2346
        %3524 = vmatprep.subr.mxu0 %v2355
        %3525 = vmatpush1.msra.mxu0 %v2354
        %3526 = vmatprep.subr.mxu0 %v2363
        %3527 = vmatpush1.msra.mxu0 %v2362
        %3528 = vmatprep.subr.mxu0 %v2371
        %3529 = vmatpush1.msra.mxu0 %v2370
        %3530 = vmatprep.subr.mxu0 %v2379
        %3531 = vmatpush1.msra.mxu0 %v2378
        %3532 = vmatprep.subr.mxu0 %v2387
        %3533 = vmatpush1.msra.mxu0 %v2386
        %3534 = vmatprep.subr.mxu0 %v2395
        %3535 = vmatpush1.msra.mxu0 %v2394
        %3536 = vmatprep.subr.mxu0 %v2403
        %3537 = vmatpush1.msra.mxu0 %v2402
        %3538 = vmatprep.subr.mxu0 %v2411
        %3539 = vmatpush1.msra.mxu0 %v2410
        %3540 = vmatprep.subr.mxu0 %v2419
        %3541 = vmatpush1.msra.mxu0 %v2418
        %3542 = vmatprep.subr.mxu0 %v2427
        %3543 = vmatpush1.msra.mxu0 %v2426
        %3544 = vmatprep.subr.mxu0 %v2435
        %3545 = vmatpush1.msra.mxu0 %v2434
        %3546 = vmatprep.subr.mxu0 %v2443
        %3547 = vmatpush1.msra.mxu0 %v2442
        %3548 = vmatprep.subr.mxu0 %v2451
        %3549 = vmatpush1.msra.mxu0 %v2450
        %3550 = vmatprep.subr.mxu0 %v2459
        %3551 = vmatpush1.msra.mxu0 %v2458
        %3552 = vmatprep.subr.mxu0 %v2467
        %3553 = vmatpush1.msra.mxu0 %v2466
        %3554 = vmatprep.subr.mxu0 %v2475
        %3555 = vmatpush1.msra.mxu0 %v2474
        %3556 = vmatprep.subr.mxu0 %v2483
        %3557 = vmatpush1.msra.mxu0 %v2482
        %3558 = vmatprep.mubr.f32.mxu0 %v1203
        %3559 = vmatmul.mubr.f32.gmra.mrb[0].mxu0 %v1202
        %v3560 = vpop.f32.mrb[0].mxu0
        %v3561 = vadd.f32 %v3490, %v3560
        %v3562 = vpop.f32.mrb[0].mxu0
        %v3563 = vadd.f32 %v3492, %v3562
        %3564 = vdwg.mxu0
        %3565 = vmatprep.subr.mxu0 %v2491
        %3566 = vmatpush1.msra.mxu0 %v2490
        %3567 = vmatprep.subr.mxu0 %v2499
        %3568 = vmatpush1.msra.mxu0 %v2498
        %3569 = vmatprep.subr.mxu0 %v2507
        %3570 = vmatpush1.msra.mxu0 %v2506
        %3571 = vmatprep.subr.mxu0 %v2515
        %3572 = vmatpush1.msra.mxu0 %v2514
        %3573 = vmatprep.subr.mxu0 %v2523
        %3574 = vmatpush1.msra.mxu0 %v2522
        %3575 = vmatprep.subr.mxu0 %v2531
        %3576 = vmatpush1.msra.mxu0 %v2530
        %3577 = vmatprep.subr.mxu0 %v2539
        %3578 = vmatpush1.msra.mxu0 %v2538
        %3579 = vmatprep.subr.mxu0 %v2547
        %3580 = vmatpush1.msra.mxu0 %v2546
        %3581 = vmatprep.subr.mxu0 %v2555
        %3582 = vmatpush1.msra.mxu0 %v2554
        %3583 = vmatprep.subr.mxu0 %v2563
        %3584 = vmatpush1.msra.mxu0 %v2562
        %3585 = vmatprep.subr.mxu0 %v2571
        %3586 = vmatpush1.msra.mxu0 %v2570
        %3587 = vmatprep.subr.mxu0 %v2579
        %3588 = vmatpush1.msra.mxu0 %v2578
        %3589 = vmatprep.subr.mxu0 %v2587
        %3590 = vmatpush1.msra.mxu0 %v2586
        %3591 = vmatprep.subr.mxu0 %v2595
        %3592 = vmatpush1.msra.mxu0 %v2594
        %3593 = vmatprep.subr.mxu0 %v2603
        %3594 = vmatpush1.msra.mxu0 %v2602
        %3595 = vmatprep.subr.mxu0 %v2611
        %3596 = vmatpush1.msra.mxu0 %v2610
        %3597 = vmatprep.subr.mxu0 %v2619
        %3598 = vmatpush1.msra.mxu0 %v2618
        %3599 = vmatprep.subr.mxu0 %v2627
        %3600 = vmatpush1.msra.mxu0 %v2626
        %3601 = vmatprep.subr.mxu0 %v2635
        %3602 = vmatpush1.msra.mxu0 %v2634
        %3603 = vmatprep.subr.mxu0 %v2643
        %3604 = vmatpush1.msra.mxu0 %v2642
        %3605 = vmatprep.subr.mxu0 %v2651
        %3606 = vmatpush1.msra.mxu0 %v2650
        %3607 = vmatprep.subr.mxu0 %v2659
        %3608 = vmatpush1.msra.mxu0 %v2658
        %3609 = vmatprep.subr.mxu0 %v2667
        %3610 = vmatpush1.msra.mxu0 %v2666
        %3611 = vmatprep.subr.mxu0 %v2675
        %3612 = vmatpush1.msra.mxu0 %v2674
        %3613 = vmatprep.subr.mxu0 %v2683
        %3614 = vmatpush1.msra.mxu0 %v2682
        %3615 = vmatprep.subr.mxu0 %v2691
        %3616 = vmatpush1.msra.mxu0 %v2690
        %3617 = vmatprep.subr.mxu0 %v2699
        %3618 = vmatpush1.msra.mxu0 %v2698
        %3619 = vmatprep.subr.mxu0 %v2707
        %3620 = vmatpush1.msra.mxu0 %v2706
        %3621 = vmatprep.subr.mxu0 %v2715
        %3622 = vmatpush1.msra.mxu0 %v2714
        %3623 = vmatprep.subr.mxu0 %v2723
        %3624 = vmatpush1.msra.mxu0 %v2722
        %3625 = vmatprep.subr.mxu0 %v2731
        %3626 = vmatpush1.msra.mxu0 %v2730
        %3627 = vmatprep.subr.mxu0 %v2739
        %3628 = vmatpush1.msra.mxu0 %v2738
        %3629 = vmatprep.mubr.f32.mxu0 %v1205
        %3630 = vmatmul.mubr.f32.gmra.mrb[0].mxu0 %v1204
        %v3631 = vpop.f32.mrb[0].mxu0
        %v3632 = vadd.f32 %v3561, %v3631
        %v3633 = vpop.f32.mrb[0].mxu0
        %v3634 = vadd.f32 %v3563, %v3633
        %3635 = vdwg.mxu0
        %3636 = vmatprep.subr.mxu0 %v1725
        %3637 = vmatpush1.msra.mxu0 %v1724
        %3638 = vmatprep.subr.mxu0 %v1733
        %3639 = vmatpush1.msra.mxu0 %v1732
        %3640 = vmatprep.subr.mxu0 %v1741
        %3641 = vmatpush1.msra.mxu0 %v1740
        %3642 = vmatprep.subr.mxu0 %v1749
        %3643 = vmatpush1.msra.mxu0 %v1748
        %3644 = vmatprep.subr.mxu0 %v1757
        %3645 = vmatpush1.msra.mxu0 %v1756
        %3646 = vmatprep.subr.mxu0 %v1765
        %3647 = vmatpush1.msra.mxu0 %v1764
        %3648 = vmatprep.subr.mxu0 %v1773
        %3649 = vmatpush1.msra.mxu0 %v1772
        %3650 = vmatprep.subr.mxu0 %v1781
        %3651 = vmatpush1.msra.mxu0 %v1780
        %3652 = vmatprep.subr.mxu0 %v1789
        %3653 = vmatpush1.msra.mxu0 %v1788
        %3654 = vmatprep.subr.mxu0 %v1797
        %3655 = vmatpush1.msra.mxu0 %v1796
        %3656 = vmatprep.subr.mxu0 %v1805
        %3657 = vmatpush1.msra.mxu0 %v1804
        %3658 = vmatprep.subr.mxu0 %v1813
        %3659 = vmatpush1.msra.mxu0 %v1812
        %3660 = vmatprep.subr.mxu0 %v1821
        %3661 = vmatpush1.msra.mxu0 %v1820
        %3662 = vmatprep.subr.mxu0 %v1829
        %3663 = vmatpush1.msra.mxu0 %v1828
        %3664 = vmatprep.subr.mxu0 %v1837
        %3665 = vmatpush1.msra.mxu0 %v1836
        %3666 = vmatprep.subr.mxu0 %v1845
        %3667 = vmatpush1.msra.mxu0 %v1844
        %3668 = vmatprep.subr.mxu0 %v1853
        %3669 = vmatpush1.msra.mxu0 %v1852
        %3670 = vmatprep.subr.mxu0 %v1861
        %3671 = vmatpush1.msra.mxu0 %v1860
        %3672 = vmatprep.subr.mxu0 %v1869
        %3673 = vmatpush1.msra.mxu0 %v1868
        %3674 = vmatprep.subr.mxu0 %v1877
        %3675 = vmatpush1.msra.mxu0 %v1876
        %3676 = vmatprep.subr.mxu0 %v1885
        %3677 = vmatpush1.msra.mxu0 %v1884
        %3678 = vmatprep.subr.mxu0 %v1893
        %3679 = vmatpush1.msra.mxu0 %v1892
        %3680 = vmatprep.subr.mxu0 %v1901
        %3681 = vmatpush1.msra.mxu0 %v1900
        %3682 = vmatprep.subr.mxu0 %v1909
        %3683 = vmatpush1.msra.mxu0 %v1908
        %3684 = vmatprep.subr.mxu0 %v1917
        %3685 = vmatpush1.msra.mxu0 %v1916
        %3686 = vmatprep.subr.mxu0 %v1925
        %3687 = vmatpush1.msra.mxu0 %v1924
        %3688 = vmatprep.subr.mxu0 %v1933
        %3689 = vmatpush1.msra.mxu0 %v1932
        %3690 = vmatprep.subr.mxu0 %v1941
        %3691 = vmatpush1.msra.mxu0 %v1940
        %3692 = vmatprep.subr.mxu0 %v1949
        %3693 = vmatpush1.msra.mxu0 %v1948
        %3694 = vmatprep.subr.mxu0 %v1957
        %3695 = vmatpush1.msra.mxu0 %v1956
        %3696 = vmatprep.subr.mxu0 %v1965
        %3697 = vmatpush1.msra.mxu0 %v1964
        %3698 = vmatprep.subr.mxu0 %v1973
        %3699 = vmatpush1.msra.mxu0 %v1972
        %3700 = vmatprep.mubr.f32.mxu0 %v1199
        %3701 = vmatmul.mubr.f32.gmra.mrb[0].mxu0 %v1198
        %v3702 = vpop.f32.mrb[0].mxu0
        %v3703 = vadd.f32 %v2771, %v3702
        %v3704 = vpop.f32.mrb[0].mxu0
        %v3705 = vadd.f32 %v2775, %v3704
        %3706 = vdwg.mxu0
        %3707 = vmatprep.subr.mxu0 %v1981
        %3708 = vmatpush1.msra.mxu0 %v1980
        %3709 = vmatprep.subr.mxu0 %v1989
        %3710 = vmatpush1.msra.mxu0 %v1988
        %3711 = vmatprep.subr.mxu0 %v1997
        %3712 = vmatpush1.msra.mxu0 %v1996
        %3713 = vmatprep.subr.mxu0 %v2005
        %3714 = vmatpush1.msra.mxu0 %v2004
        %3715 = vmatprep.subr.mxu0 %v2013
        %3716 = vmatpush1.msra.mxu0 %v2012
        %3717 = vmatprep.subr.mxu0 %v2021
        %3718 = vmatpush1.msra.mxu0 %v2020
        %3719 = vmatprep.subr.mxu0 %v2029
        %3720 = vmatpush1.msra.mxu0 %v2028
        %3721 = vmatprep.subr.mxu0 %v2037
        %3722 = vmatpush1.msra.mxu0 %v2036
        %3723 = vmatprep.subr.mxu0 %v2045
        %3724 = vmatpush1.msra.mxu0 %v2044
        %3725 = vmatprep.subr.mxu0 %v2053
        %3726 = vmatpush1.msra.mxu0 %v2052
        %3727 = vmatprep.subr.mxu0 %v2061
        %3728 = vmatpush1.msra.mxu0 %v2060
        %3729 = vmatprep.subr.mxu0 %v2069
        %3730 = vmatpush1.msra.mxu0 %v2068
        %3731 = vmatprep.subr.mxu0 %v2077
        %3732 = vmatpush1.msra.mxu0 %v2076
        %3733 = vmatprep.subr.mxu0 %v2085
        %3734 = vmatpush1.msra.mxu0 %v2084
        %3735 = vmatprep.subr.mxu0 %v2093
        %3736 = vmatpush1.msra.mxu0 %v2092
        %3737 = vmatprep.subr.mxu0 %v2101
        %3738 = vmatpush1.msra.mxu0 %v2100
        %3739 = vmatprep.subr.mxu0 %v2109
        %3740 = vmatpush1.msra.mxu0 %v2108
        %3741 = vmatprep.subr.mxu0 %v2117
        %3742 = vmatpush1.msra.mxu0 %v2116
        %3743 = vmatprep.subr.mxu0 %v2125
        %3744 = vmatpush1.msra.mxu0 %v2124
        %3745 = vmatprep.subr.mxu0 %v2133
        %3746 = vmatpush1.msra.mxu0 %v2132
        %3747 = vmatprep.subr.mxu0 %v2141
        %3748 = vmatpush1.msra.mxu0 %v2140
        %3749 = vmatprep.subr.mxu0 %v2149
        %3750 = vmatpush1.msra.mxu0 %v2148
        %3751 = vmatprep.subr.mxu0 %v2157
        %3752 = vmatpush1.msra.mxu0 %v2156
        %3753 = vmatprep.subr.mxu0 %v2165
        %3754 = vmatpush1.msra.mxu0 %v2164
        %3755 = vmatprep.subr.mxu0 %v2173
        %3756 = vmatpush1.msra.mxu0 %v2172
        %3757 = vmatprep.subr.mxu0 %v2181
        %3758 = vmatpush1.msra.mxu0 %v2180
        %3759 = vmatprep.subr.mxu0 %v2189
        %3760 = vmatpush1.msra.mxu0 %v2188
        %3761 = vmatprep.subr.mxu0 %v2197
        %3762 = vmatpush1.msra.mxu0 %v2196
        %3763 = vmatprep.subr.mxu0 %v2205
        %3764 = vmatpush1.msra.mxu0 %v2204
        %3765 = vmatprep.subr.mxu0 %v2213
        %3766 = vmatpush1.msra.mxu0 %v2212
        %3767 = vmatprep.subr.mxu0 %v2221
        %3768 = vmatpush1.msra.mxu0 %v2220
        %3769 = vmatprep.subr.mxu0 %v2229
        %3770 = vmatpush1.msra.mxu0 %v2228
        %3771 = vmatprep.mubr.f32.mxu0 %v1201
        %3772 = vmatmul.mubr.f32.gmra.mrb[0].mxu0 %v1200
        %v3773 = vpop.f32.mrb[0].mxu0
        %v3774 = vadd.f32 %v3703, %v3773
        %v3775 = vpop.f32.mrb[0].mxu0
        %v3776 = vadd.f32 %v3705, %v3775
        %3777 = vdwg.mxu0
        %3778 = vmatprep.subr.mxu0 %v2237
        %3779 = vmatpush1.msra.mxu0 %v2236
        %3780 = vmatprep.subr.mxu0 %v2245
        %3781 = vmatpush1.msra.mxu0 %v2244
        %3782 = vmatprep.subr.mxu0 %v2253
        %3783 = vmatpush1.msra.mxu0 %v2252
        %3784 = vmatprep.subr.mxu0 %v2261
        %3785 = vmatpush1.msra.mxu0 %v2260
        %3786 = vmatprep.subr.mxu0 %v2269
        %3787 = vmatpush1.msra.mxu0 %v2268
        %3788 = vmatprep.subr.mxu0 %v2277
        %3789 = vmatpush1.msra.mxu0 %v2276
        %3790 = vmatprep.subr.mxu0 %v2285
        %3791 = vmatpush1.msra.mxu0 %v2284
        %3792 = vmatprep.subr.mxu0 %v2293
        %3793 = vmatpush1.msra.mxu0 %v2292
        %3794 = vmatprep.subr.mxu0 %v2301
        %3795 = vmatpush1.msra.mxu0 %v2300
        %3796 = vmatprep.subr.mxu0 %v2309
        %3797 = vmatpush1.msra.mxu0 %v2308
        %3798 = vmatprep.subr.mxu0 %v2317
        %3799 = vmatpush1.msra.mxu0 %v2316
        %3800 = vmatprep.subr.mxu0 %v2325
        %3801 = vmatpush1.msra.mxu0 %v2324
        %3802 = vmatprep.subr.mxu0 %v2333
        %3803 = vmatpush1.msra.mxu0 %v2332
        %3804 = vmatprep.subr.mxu0 %v2341
        %3805 = vmatpush1.msra.mxu0 %v2340
        %3806 = vmatprep.subr.mxu0 %v2349
        %3807 = vmatpush1.msra.mxu0 %v2348
        %3808 = vmatprep.subr.mxu0 %v2357
        %3809 = vmatpush1.msra.mxu0 %v2356
        %3810 = vmatprep.subr.mxu0 %v2365
        %3811 = vmatpush1.msra.mxu0 %v2364
        %3812 = vmatprep.subr.mxu0 %v2373
        %3813 = vmatpush1.msra.mxu0 %v2372
        %3814 = vmatprep.subr.mxu0 %v2381
        %3815 = vmatpush1.msra.mxu0 %v2380
        %3816 = vmatprep.subr.mxu0 %v2389
        %3817 = vmatpush1.msra.mxu0 %v2388
        %3818 = vmatprep.subr.mxu0 %v2397
        %3819 = vmatpush1.msra.mxu0 %v2396
        %3820 = vmatprep.subr.mxu0 %v2405
        %3821 = vmatpush1.msra.mxu0 %v2404
        %3822 = vmatprep.subr.mxu0 %v2413
        %3823 = vmatpush1.msra.mxu0 %v2412
        %3824 = vmatprep.subr.mxu0 %v2421
        %3825 = vmatpush1.msra.mxu0 %v2420
        %3826 = vmatprep.subr.mxu0 %v2429
        %3827 = vmatpush1.msra.mxu0 %v2428
        %3828 = vmatprep.subr.mxu0 %v2437
        %3829 = vmatpush1.msra.mxu0 %v2436
        %3830 = vmatprep.subr.mxu0 %v2445
        %3831 = vmatpush1.msra.mxu0 %v2444
        %3832 = vmatprep.subr.mxu0 %v2453
        %3833 = vmatpush1.msra.mxu0 %v2452
        %3834 = vmatprep.subr.mxu0 %v2461
        %3835 = vmatpush1.msra.mxu0 %v2460
        %3836 = vmatprep.subr.mxu0 %v2469
        %3837 = vmatpush1.msra.mxu0 %v2468
        %3838 = vmatprep.subr.mxu0 %v2477
        %3839 = vmatpush1.msra.mxu0 %v2476
        %3840 = vmatprep.subr.mxu0 %v2485
        %3841 = vmatpush1.msra.mxu0 %v2484
        %3842 = vmatprep.mubr.f32.mxu0 %v1203
        %3843 = vmatmul.mubr.f32.gmra.mrb[0].mxu0 %v1202
        %v3844 = vpop.f32.mrb[0].mxu0
        %v3845 = vadd.f32 %v3774, %v3844
        %v3846 = vpop.f32.mrb[0].mxu0
        %v3847 = vadd.f32 %v3776, %v3846
        %3848 = vdwg.mxu0
        %3849 = vmatprep.subr.mxu0 %v2493
        %3850 = vmatpush1.msra.mxu0 %v2492
        %3851 = vmatprep.subr.mxu0 %v2501
        %3852 = vmatpush1.msra.mxu0 %v2500
        %3853 = vmatprep.subr.mxu0 %v2509
        %3854 = vmatpush1.msra.mxu0 %v2508
        %3855 = vmatprep.subr.mxu0 %v2517
        %3856 = vmatpush1.msra.mxu0 %v2516
        %3857 = vmatprep.subr.mxu0 %v2525
        %3858 = vmatpush1.msra.mxu0 %v2524
        %3859 = vmatprep.subr.mxu0 %v2533
        %3860 = vmatpush1.msra.mxu0 %v2532
        %3861 = vmatprep.subr.mxu0 %v2541
        %3862 = vmatpush1.msra.mxu0 %v2540
        %3863 = vmatprep.subr.mxu0 %v2549
        %3864 = vmatpush1.msra.mxu0 %v2548
        %3865 = vmatprep.subr.mxu0 %v2557
        %3866 = vmatpush1.msra.mxu0 %v2556
        %3867 = vmatprep.subr.mxu0 %v2565
        %3868 = vmatpush1.msra.mxu0 %v2564
        %3869 = vmatprep.subr.mxu0 %v2573
        %3870 = vmatpush1.msra.mxu0 %v2572
        %3871 = vmatprep.subr.mxu0 %v2581
        %3872 = vmatpush1.msra.mxu0 %v2580
        %3873 = vmatprep.subr.mxu0 %v2589
        %3874 = vmatpush1.msra.mxu0 %v2588
        %3875 = vmatprep.subr.mxu0 %v2597
        %3876 = vmatpush1.msra.mxu0 %v2596
        %3877 = vmatprep.subr.mxu0 %v2605
        %3878 = vmatpush1.msra.mxu0 %v2604
        %3879 = vmatprep.subr.mxu0 %v2613
        %3880 = vmatpush1.msra.mxu0 %v2612
        %3881 = vmatprep.subr.mxu0 %v2621
        %3882 = vmatpush1.msra.mxu0 %v2620
        %3883 = vmatprep.subr.mxu0 %v2629
        %3884 = vmatpush1.msra.mxu0 %v2628
        %3885 = vmatprep.subr.mxu0 %v2637
        %3886 = vmatpush1.msra.mxu0 %v2636
        %3887 = vmatprep.subr.mxu0 %v2645
        %3888 = vmatpush1.msra.mxu0 %v2644
        %3889 = vmatprep.subr.mxu0 %v2653
        %3890 = vmatpush1.msra.mxu0 %v2652
        %3891 = vmatprep.subr.mxu0 %v2661
        %3892 = vmatpush1.msra.mxu0 %v2660
        %3893 = vmatprep.subr.mxu0 %v2669
        %3894 = vmatpush1.msra.mxu0 %v2668
        %3895 = vmatprep.subr.mxu0 %v2677
        %3896 = vmatpush1.msra.mxu0 %v2676
        %3897 = vmatprep.subr.mxu0 %v2685
        %3898 = vmatpush1.msra.mxu0 %v2684
        %3899 = vmatprep.subr.mxu0 %v2693
        %3900 = vmatpush1.msra.mxu0 %v2692
        %3901 = vmatprep.subr.mxu0 %v2701
        %3902 = vmatpush1.msra.mxu0 %v2700
        %3903 = vmatprep.subr.mxu0 %v2709
        %3904 = vmatpush1.msra.mxu0 %v2708
        %3905 = vmatprep.subr.mxu0 %v2717
        %3906 = vmatpush1.msra.mxu0 %v2716
        %3907 = vmatprep.subr.mxu0 %v2725
        %3908 = vmatpush1.msra.mxu0 %v2724
        %3909 = vmatprep.subr.mxu0 %v2733
        %3910 = vmatpush1.msra.mxu0 %v2732
        %3911 = vmatprep.subr.mxu0 %v2741
        %3912 = vmatpush1.msra.mxu0 %v2740
        %3913 = vmatprep.mubr.f32.mxu0 %v1205
        %3914 = vmatmul.mubr.f32.gmra.mrb[0].mxu0 %v1204
        %v3915 = vpop.f32.mrb[0].mxu0
        %v3916 = vadd.f32 %v3845, %v3915
        %v3917 = vpop.f32.mrb[0].mxu0
        %v3918 = vadd.f32 %v3847, %v3917
        %3919 = vdwg.mxu0
        %v3920 = vld [vmem:[%s444] sm:$0xff]
        %v3921 = vld [vmem:[%s453] sm:$0xff]
        %v3922 = vlaneseq
        %v3923 = vshrl.u32 %v3922, 7
        %vm3924 = vcmp.lt.s32.totalorder %v3923, 4
        %v3925 = vsel %vm3924, 1, 0
        %v3926 = vcvt.s32.f32 %v3925
        %v3927 = vmul.f32 %v3064, %v3926
        %v3928 = vmul.f32 %v3066, %v3926
        %v3929 = vmul.f32 %v3348, %v3926
        %v3930 = vmul.f32 %v3350, %v3926
        %v3931 = vmul.f32 %v3632, %v3926
        %v3932 = vmul.f32 %v3634, %v3926
        %v3933 = vmul.f32 %v3916, %v3926
        %v3934 = vmul.f32 %v3918, %v3926
        %v3935 = vrot.slane %v3927, 4
        %v3936 = vadd.f32 %v3927, %v3935
        %v3937 = vrot.slane %v3936, 2
        %v3938 = vadd.f32 %v3936, %v3937
        %v3939 = vrot.slane %v3938, 1
        %v3940 = vadd.f32 %v3938, %v3939
        %v3941 = vrot.slane %v3928, 4
        %v3942 = vadd.f32 %v3928, %v3941
        %v3943 = vrot.slane %v3942, 2
        %v3944 = vadd.f32 %v3942, %v3943
        %v3945 = vrot.slane %v3944, 1
        %v3946 = vadd.f32 %v3944, %v3945
        %v3947 = vrot.slane %v3929, 4
        %v3948 = vadd.f32 %v3929, %v3947
        %v3949 = vrot.slane %v3948, 2
        %v3950 = vadd.f32 %v3948, %v3949
        %v3951 = vrot.slane %v3950, 1
        %v3952 = vadd.f32 %v3950, %v3951
        %v3953 = vrot.slane %v3930, 4
        %v3954 = vadd.f32 %v3930, %v3953
        %v3955 = vrot.slane %v3954, 2
        %v3956 = vadd.f32 %v3954, %v3955
        %v3957 = vrot.slane %v3956, 1
        %v3958 = vadd.f32 %v3956, %v3957
        %v3959 = vrot.slane %v3931, 4
        %v3960 = vadd.f32 %v3931, %v3959
        %v3961 = vrot.slane %v3960, 2
        %v3962 = vadd.f32 %v3960, %v3961
        %v3963 = vrot.slane %v3962, 1
        %v3964 = vadd.f32 %v3962, %v3963
        %v3965 = vrot.slane %v3932, 4
        %v3966 = vadd.f32 %v3932, %v3965
        %v3967 = vrot.slane %v3966, 2
        %v3968 = vadd.f32 %v3966, %v3967
        %v3969 = vrot.slane %v3968, 1
        %v3970 = vadd.f32 %v3968, %v3969
        %v3971 = vrot.slane %v3933, 4
        %v3972 = vadd.f32 %v3933, %v3971
        %v3973 = vrot.slane %v3972, 2
        %v3974 = vadd.f32 %v3972, %v3973
        %v3975 = vrot.slane %v3974, 1
        %v3976 = vadd.f32 %v3974, %v3975
        %v3977 = vrot.slane %v3934, 4
        %v3978 = vadd.f32 %v3934, %v3977
        %v3979 = vrot.slane %v3978, 2
        %v3980 = vadd.f32 %v3978, %v3979
        %v3981 = vrot.slane %v3980, 1
        %v3982 = vadd.f32 %v3980, %v3981
        %v3983 = vmul.f32 %v3940, 0.25
        %v3984 = vmul.f32 %v3946, 0.25
        %v3985 = vmul.f32 %v3952, 0.25
        %v3986 = vmul.f32 %v3958, 0.25
        %v3987 = vmul.f32 %v3964, 0.25
        %v3988 = vmul.f32 %v3970, 0.25
        %v3989 = vmul.f32 %v3976, 0.25
        %v3990 = vmul.f32 %v3982, 0.25
        %v3991 = vsub.f32 %v3064, %v3983
        %v3992 = vsub.f32 %v3066, %v3984
        %v3993 = vsub.f32 %v3348, %v3985
        %v3994 = vsub.f32 %v3350, %v3986
        %v3995 = vsub.f32 %v3632, %v3987
        %v3996 = vsub.f32 %v3634, %v3988
        %v3997 = vsub.f32 %v3916, %v3989
        %v3998 = vsub.f32 %v3918, %v3990
        %v3999 = vmul.f32 %v3991, %v3926
        %v4000 = vmul.f32 %v3992, %v3926
        %v4001 = vmul.f32 %v3993, %v3926
        %v4002 = vmul.f32 %v3994, %v3926
        %v4003 = vmul.f32 %v3995, %v3926
        %v4004 = vmul.f32 %v3996, %v3926
        %v4005 = vmul.f32 %v3997, %v3926
        %v4006 = vmul.f32 %v3998, %v3926
        %v4007 = vmul.f32 %v3999, %v3999
        %v4008 = vmul.f32 %v4000, %v4000
        %v4009 = vmul.f32 %v4001, %v4001
        %v4010 = vmul.f32 %v4002, %v4002
        %v4011 = vmul.f32 %v4003, %v4003
        %v4012 = vmul.f32 %v4004, %v4004
        %v4013 = vmul.f32 %v4005, %v4005
        %v4014 = vmul.f32 %v4006, %v4006
        %v4015 = vrot.slane %v4007, 4
        %v4016 = vadd.f32 %v4007, %v4015
        %v4017 = vrot.slane %v4016, 2
        %v4018 = vadd.f32 %v4016, %v4017
        %v4019 = vrot.slane %v4018, 1
        %v4020 = vadd.f32 %v4018, %v4019
        %v4021 = vrot.slane %v4008, 4
        %v4022 = vadd.f32 %v4008, %v4021
        %v4023 = vrot.slane %v4022, 2
        %v4024 = vadd.f32 %v4022, %v4023
        %v4025 = vrot.slane %v4024, 1
        %v4026 = vadd.f32 %v4024, %v4025
        %v4027 = vrot.slane %v4009, 4
        %v4028 = vadd.f32 %v4009, %v4027
        %v4029 = vrot.slane %v4028, 2
        %v4030 = vadd.f32 %v4028, %v4029
        %v4031 = vrot.slane %v4030, 1
        %v4032 = vadd.f32 %v4030, %v4031
        %v4033 = vrot.slane %v4010, 4
        %v4034 = vadd.f32 %v4010, %v4033
        %v4035 = vrot.slane %v4034, 2
        %v4036 = vadd.f32 %v4034, %v4035
        %v4037 = vrot.slane %v4036, 1
        %v4038 = vadd.f32 %v4036, %v4037
        %v4039 = vrot.slane %v4011, 4
        %v4040 = vadd.f32 %v4011, %v4039
        %v4041 = vrot.slane %v4040, 2
        %v4042 = vadd.f32 %v4040, %v4041
        %v4043 = vrot.slane %v4042, 1
        %v4044 = vadd.f32 %v4042, %v4043
        %v4045 = vrot.slane %v4012, 4
        %v4046 = vadd.f32 %v4012, %v4045
        %v4047 = vrot.slane %v4046, 2
        %v4048 = vadd.f32 %v4046, %v4047
        %v4049 = vrot.slane %v4048, 1
        %v4050 = vadd.f32 %v4048, %v4049
        %v4051 = vrot.slane %v4013, 4
        %v4052 = vadd.f32 %v4013, %v4051
        %v4053 = vrot.slane %v4052, 2
        %v4054 = vadd.f32 %v4052, %v4053
        %v4055 = vrot.slane %v4054, 1
        %v4056 = vadd.f32 %v4054, %v4055
        %v4057 = vrot.slane %v4014, 4
        %v4058 = vadd.f32 %v4014, %v4057
        %v4059 = vrot.slane %v4058, 2
        %v4060 = vadd.f32 %v4058, %v4059
        %v4061 = vrot.slane %v4060, 1
        %v4062 = vadd.f32 %v4060, %v4061
        %v4063 = vmul.f32 %v4020, 0.25
        %v4064 = vmul.f32 %v4026, 0.25
        %v4065 = vmul.f32 %v4032, 0.25
        %v4066 = vmul.f32 %v4038, 0.25
        %v4067 = vmul.f32 %v4044, 0.25
        %v4068 = vmul.f32 %v4050, 0.25
        %v4069 = vmul.f32 %v4056, 0.25
        %v4070 = vmul.f32 %v4062, 0.25
        %v4071 = vadd.f32 %v4063, 1e-05
        %v4072 = vadd.f32 %v4064, 1e-05
        %v4073 = vadd.f32 %v4065, 1e-05
        %v4074 = vadd.f32 %v4066, 1e-05
        %v4075 = vadd.f32 %v4067, 1e-05
        %v4076 = vadd.f32 %v4068, 1e-05
        %v4077 = vadd.f32 %v4069, 1e-05
        %v4078 = vadd.f32 %v4070, 1e-05
        %v4079 = vrsqrt.pop %v4071
        %v4080 = vrsqrt.pop %v4072
        %v4081 = vrsqrt.pop %v4073
        %v4082 = vrsqrt.pop %v4074
        %v4083 = vrsqrt.pop %v4075
        %v4084 = vrsqrt.pop %v4076
        %v4085 = vrsqrt.pop %v4077
        %v4086 = vrsqrt.pop %v4078
        %v4087 = vmul.f32 %v3991, %v4079
        %v4088 = vmul.f32 %v3992, %v4080
        %v4089 = vmul.f32 %v3993, %v4081
        %v4090 = vmul.f32 %v3994, %v4082
        %v4091 = vmul.f32 %v3995, %v4083
        %v4092 = vmul.f32 %v3996, %v4084
        %v4093 = vmul.f32 %v3997, %v4085
        %v4094 = vmul.f32 %v3998, %v4086
        %v4096 = vlaneseq
        %v4097 = vshrl.u32 %v4096, 7
        %v4098 = vsub.s32 0, %v4097
        %v4099 = vrot.slane %v3920, %v4098
        %v4100 = vlaneseq
        %v4101 = vshrl.u32 %v4100, 7
        %v4102 = vsub.s32 1, %v4101
        %v4103 = vrot.slane %v3920, %v4102
        %v4104 = vlaneseq
        %v4105 = vshrl.u32 %v4104, 7
        %v4106 = vsub.s32 2, %v4105
        %v4107 = vrot.slane %v3920, %v4106
        %v4108 = vlaneseq
        %v4109 = vshrl.u32 %v4108, 7
        %v4110 = vsub.s32 3, %v4109
        %v4111 = vrot.slane %v3920, %v4110
        %v4112 = vlaneseq
        %v4113 = vshrl.u32 %v4112, 7
        %v4114 = vsub.s32 4, %v4113
        %v4115 = vrot.slane %v3920, %v4114
        %v4116 = vlaneseq
        %v4117 = vshrl.u32 %v4116, 7
        %v4118 = vsub.s32 5, %v4117
        %v4119 = vrot.slane %v3920, %v4118
        %v4120 = vlaneseq
        %v4121 = vshrl.u32 %v4120, 7
        %v4122 = vsub.s32 6, %v4121
        %v4123 = vrot.slane %v3920, %v4122
        %v4124 = vlaneseq
        %v4125 = vshrl.u32 %v4124, 7
        %v4126 = vsub.s32 7, %v4125
        %v4127 = vrot.slane %v3920, %v4126
        %v4136 = vmul.f32 %v4087, %v4099
        %v4137 = vmul.f32 %v4088, %v4103
        %v4138 = vmul.f32 %v4089, %v4107
        %v4139 = vmul.f32 %v4090, %v4111
        %v4140 = vmul.f32 %v4091, %v4115
        %v4141 = vmul.f32 %v4092, %v4119
        %v4142 = vmul.f32 %v4093, %v4123
        %v4143 = vmul.f32 %v4094, %v4127
        %v4145 = vlaneseq
        %v4146 = vshrl.u32 %v4145, 7
        %v4147 = vsub.s32 0, %v4146
        %v4148 = vrot.slane %v3921, %v4147
        %v4149 = vlaneseq
        %v4150 = vshrl.u32 %v4149, 7
        %v4151 = vsub.s32 1, %v4150
        %v4152 = vrot.slane %v3921, %v4151
        %v4153 = vlaneseq
        %v4154 = vshrl.u32 %v4153, 7
        %v4155 = vsub.s32 2, %v4154
        %v4156 = vrot.slane %v3921, %v4155
        %v4157 = vlaneseq
        %v4158 = vshrl.u32 %v4157, 7
        %v4159 = vsub.s32 3, %v4158
        %v4160 = vrot.slane %v3921, %v4159
        %v4161 = vlaneseq
        %v4162 = vshrl.u32 %v4161, 7
        %v4163 = vsub.s32 4, %v4162
        %v4164 = vrot.slane %v3921, %v4163
        %v4165 = vlaneseq
        %v4166 = vshrl.u32 %v4165, 7
        %v4167 = vsub.s32 5, %v4166
        %v4168 = vrot.slane %v3921, %v4167
        %v4169 = vlaneseq
        %v4170 = vshrl.u32 %v4169, 7
        %v4171 = vsub.s32 6, %v4170
        %v4172 = vrot.slane %v3921, %v4171
        %v4173 = vlaneseq
        %v4174 = vshrl.u32 %v4173, 7
        %v4175 = vsub.s32 7, %v4174
        %v4176 = vrot.slane %v3921, %v4175
        %v4185 = vadd.f32 %v4136, %v4148
        %v4186 = vadd.f32 %v4137, %v4152
        %v4187 = vadd.f32 %v4138, %v4156
        %v4188 = vadd.f32 %v4139, %v4160
        %v4189 = vadd.f32 %v4140, %v4164
        %v4190 = vadd.f32 %v4141, %v4168
        %v4191 = vadd.f32 %v4142, %v4172
        %v4192 = vadd.f32 %v4143, %v4176
        %v4193 = vmax.f32 %v4185, 0.0
        %v4194 = vmax.f32 %v4186, 0.0
        %v4195 = vmax.f32 %v4187, 0.0
        %v4196 = vmax.f32 %v4188, 0.0
        %v4197 = vmax.f32 %v4189, 0.0
        %v4198 = vmax.f32 %v4190, 0.0
        %v4199 = vmax.f32 %v4191, 0.0
        %v4200 = vmax.f32 %v4192, 0.0
        %4201 = vst [vmem:[%s511] sm:$0xff] %v4193
        %4202 = vst [vmem:[%s511 + $0x8] sm:$0xff] %v4194
        %4203 = vst [vmem:[%s511 + $0x10] sm:$0xff] %v4195
        %4204 = vst [vmem:[%s511 + $0x18] sm:$0xff] %v4196
        %4205 = vst [vmem:[%s511 + $0x20] sm:$0xff] %v4197
        %4206 = vst [vmem:[%s511 + $0x28] sm:$0xff] %v4198
        %4207 = vst [vmem:[%s511 + $0x30] sm:$0xff] %v4199
        %4208 = vst [vmem:[%s511 + $0x38] sm:$0xff] %v4200
        %s4209 = smul.u32 8, %s23
        %p4210 = scmp.lt.s32.totalorder %s4209, 15
        %s4211 = scalar_select %p4210, %s4209, 15
        %s4212 = smul.addr %s4211, 8
        %s4213 = scalar_lea.vmem %s9, %s4212
        // Predicated region
        $region93: #{generator_forward.3} parent=55 // pred_check
          %p4214 = pneg %p250
        $region94: #{generator_forward.3} parent=55 // pred_check_branch
          %4216 = sbr.rel (%p4214) target = $region96
        $region95: #{generator_forward.3} parent=55 // pred_region
          %s4217 = smul.u32 8, %s23
        $region96: #{generator_forward.3} parent=55 // pred_fallthru
          _
      $region56: #{generator_forward.3} parent=5 // pred_fallthru
        _
      %p4218 = scmp.le.s32.totalorder 2, %s18
      // Predicated region
      $region97: #{generator_forward.3} parent=5 // pred_check
        %p4219 = pneg %p4218
      $region98: #{generator_forward.3} parent=5 // pred_check_branch
        %4221 = sbr.rel (%p4219) target = $region100
      $region99: #{generator_forward.3} parent=5 // pred_region
        %s4222 = ssub.s32 %s18, 2
        // Predicated region
        $region101: #{generator_forward.3} parent=99 // pred_check
          %p4223 = pneg %p256
        $region102: #{generator_forward.3} parent=99 // pred_check_branch
          %4225 = sbr.rel (%p4223) target = $region104
        $region103: #{generator_forward.3} parent=99 // pred_region
          %s4226 = smul.u32 8, %s24
          %p4227 = scmp.lt.s32.totalorder %s4226, 15
          %s4228 = scalar_select %p4227, %s4226, 15
          %s4229 = smul.addr %s4228, 8
          %s4230 = scalar_lea.vmem %s9, %s4229
        $region104: #{generator_forward.3} parent=99 // pred_fallthru
          _
      $region100: #{generator_forward.3} parent=5 // pred_fallthru
        _
    $region6: #{generator_forward.3} parent=1 // loop_footer
      %s22 = sadd.s32 1, %s18
    $region7: #{generator_forward.3} parent=1 // loop_footer_branch
      %17 = sbr.rel target = $region3
    $region8: #{generator_forward.3} parent=1 // loop_exit
      _
    %4231 = vsyncpa [#allocation4], 1
    %s4232 = scalar_lea.sflag [#allocation4], 1
    %4233 = vsyncpa %s4232, 1
    %4234 = vsyncpa [#allocation6], 1
    %4235 = vsyncpa [#allocation9], 1

</llo_original>
